<compile_context>
chip_gen: v6e
topology: v6e:2x2x1
jax: 0.10.0
libtpu: 0.0.40
codegen_flags: <defaults>
</compile_context>

<pallas_src>
import jax
import jax.numpy as jnp
from jax import lax
from jax.experimental import pallas as pl
from jax.experimental.pallas import tpu as pltpu


_IMGS_PER_STEP = 16          # images fused into one grid step (B)


# ---------------------------------------------------------------------------
# The fused Pallas kernel (B images per grid step, row-stacked).
# ---------------------------------------------------------------------------
def _lenet5_kernel(x_ref,                          # (B*32+16, 30) bf16 input
                   w1_ref, b1_ref, pc1_ref, g1_ref,    # conv1 + pool1
                   w2_ref, b2_ref, pc2_ref, g2_ref,    # conv2 + pool2
                   m1_ref, bf1_ref,                    # fc1 (flatten folded in)
                   wf2_ref, bf2_ref,                   # fc2
                   wf3_ref, bf3_ref,                   # fc3 (padded to 128)
                   out_ref):                           # (B*8, 128) f32
    bf16 = jnp.bfloat16
    R2 = out_ref.shape[0]          # B*8
    R1 = g2_ref.shape[1]           # B*16
    R = g1_ref.shape[1]            # B*32

    def mm(a, b):                  # bf16 MXU operands, f32 accumulation
        return jnp.dot(a, b, preferred_element_type=jnp.float32)

    x = x_ref[...]                                           # (R+16, 30) bf16

    # conv1 (1->16, 3x3, pad=1) + bias + ReLU: 3 shifted row taps.
    t0 = mm(x, w1_ref[0])
    t1 = mm(x, w1_ref[1])
    t2 = mm(x, w1_ref[2])
    a1 = t0[0:R] + t1[1:R + 1] + t2[2:R + 2] + b1_ref[...]
    a1 = jnp.maximum(a1, 0.0).astype(bf16)                   # (R, 448)

    # pool1: lane-combine matmul, then block-diag row-combine + compaction.
    p1 = mm(g1_ref[...], mm(a1, pc1_ref[...]).astype(bf16)).astype(bf16)
    # p1: (R1+8, 224); image b pooled rows live at rows b*16 + 0..13.

    # conv2 (16->32, 3x3, valid) + bias + ReLU: 3 shifted row taps.
    u0 = mm(p1, w2_ref[0])
    u1 = mm(p1, w2_ref[1])
    u2 = mm(p1, w2_ref[2])
    a2 = u0[0:R1] + u1[1:R1 + 1] + u2[2:R1 + 2] + b2_ref[...]
    a2 = jnp.maximum(a2, 0.0).astype(bf16)                   # (R1, 384)

    # pool2: lane-combine matmul, then block-diag row-combine + compaction.
    p2 = mm(g2_ref[...], mm(a2, pc2_ref[...]).astype(bf16)).astype(bf16)
    # p2: (R2+8, 192); image b pooled map rows live at rows b*8 + 0..5.

    # fc1 (NCHW flatten folded into m1): 6 shifted row taps, tree-summed.
    v0 = mm(p2[0:R2],     m1_ref[0])
    v1 = mm(p2[1:R2 + 1], m1_ref[1])
    v2 = mm(p2[2:R2 + 2], m1_ref[2])
    v3 = mm(p2[3:R2 + 3], m1_ref[3])
    v4 = mm(p2[4:R2 + 4], m1_ref[4])
    v5 = mm(p2[5:R2 + 5], m1_ref[5])
    y = ((v0 + v1) + (v2 + v3)) + ((v4 + v5) + bf1_ref[...])
    y = jnp.maximum(y, 0.0).astype(bf16)                     # (R2, 256)

    y = jnp.maximum(mm(y, wf2_ref[...]) + bf2_ref[...], 0.0).astype(bf16)
    y = mm(y, wf3_ref[...]) + bf3_ref[...]                   # (R2, 128) f32
    out_ref[...] = y.astype(out_ref.dtype)   # image b logits at row b*8, lanes 0..9


# ---------------------------------------------------------------------------
# Wrapper-side weight transforms (pure JAX on tiny weight tensors).
# ---------------------------------------------------------------------------
def _conv_toeplitz(w_oihw, in_w, out_w):
    """Per-kh Toeplitz expansion of a 3x3 conv weight.

    Input lanes j = w*Cin + ci, output lanes l = ow*Cout + co:
        conv_out[h] = sum_kh rows_shifted_by_kh(x)[h] @ W[kh].
    """
    cout, cin, ksz, _ = w_oihw.shape
    j = jnp.arange(in_w * cin)
    w_in, ci = j // cin, j % cin
    l = jnp.arange(out_w * cout)
    ow, co = l // cout, l % cout
    kw = w_in[:, None] - ow[None, :]
    valid = (kw >= 0) & (kw < ksz)
    kw_c = jnp.clip(kw, 0, ksz - 1)
    wt = jnp.transpose(w_oihw, (2, 3, 1, 0))          # (kh, kw, cin, cout)
    full = wt[:, kw_c, ci[:, None], co[None, :]]      # (3, in_w*cin, out_w*cout)
    return jnp.where(valid[None], full, 0.0)


def _pool_cols(in_w, c):
    """(in_w*c, (in_w//2)*c) lane-combine matrix for 2x2/2 average pooling."""
    j = jnp.arange(in_w * c)
    l = jnp.arange((in_w // 2) * c)
    w_, ch = j // c, j % c
    wp, ch2 = l // c, l % c
    hit = (ch[:, None] == ch2[None, :]) & ((w_[:, None] // 2) == wp[None, :])
    return jnp.where(hit, 0.5, 0.0)


def _pool_rows_gather(n_imgs, stride_in, stride_out, n_valid, out_pad):
    """Block-diagonal row-combine + compaction matrix for 2x2/2 avg pooling.

    G[b*stride_out + i, b*stride_in + 2i + {0,1}] = 0.5 for i < n_valid;
    trailing `out_pad` rows are zero (headroom for shifted slices downstream).
    """
    rows = n_imgs * stride_out + out_pad
    cols = n_imgs * stride_in
    r = jnp.arange(rows)[:, None]
    c = jnp.arange(cols)[None, :]
    hit = ((r // stride_out) == (c // stride_in)) \
        & (r < n_imgs * stride_out) \
        & ((r % stride_out) < n_valid) \
        & (((c % stride_in) // 2) == (r % stride_out))
    return jnp.where(hit, 0.5, 0.0)


def _fc1_permuted(fc1_w):
    """fc1 weight regrouped per pooled row h: matches the kernel's
    (h, lane = w*32 + c) layout and PyTorch's NCHW flatten k = c*36 + h*6 + w."""
    l = jnp.arange(6 * 32)
    wp, co = l // 32, l % 32
    h = jnp.arange(6)
    k = co[None, :] * 36 + h[:, None] * 6 + wp[None, :]       # (6, 192)
    return jnp.transpose(fc1_w[:, k], (1, 2, 0))              # (6, 192, 256)


def _full_spec(arr):
    """Whole-array block with a constant index map (weight stays resident)."""
    if arr.ndim == 2:
        return pl.BlockSpec(arr.shape, lambda s: (0, 0))
    return pl.BlockSpec(arr.shape, lambda s: (0, 0, 0))


# ---------------------------------------------------------------------------
# LeNet-5 forward: one fused pallas_call, B images per grid step.
# ---------------------------------------------------------------------------
@jax.jit
def lenet5_forward(x_nchw, params):
    assert x_nchw.shape[1:] == (1, 28, 28), x_nchw.shape
    n = x_nchw.shape[0]
    f32, bf16 = jnp.float32, jnp.bfloat16

    B = min(_IMGS_PER_STEP, n)
    n_steps = -(-n // B)
    n_pad = n_steps * B
    R, R1, R2 = B * 32, B * 16, B * 8

    # Input layout: zero-padded 30x30 images row-stacked with stride 32,
    # plus 16 trailing zero rows per step (headroom for shifted slices), bf16.
    x = x_nchw[:, 0].astype(f32)                                  # (n, 28, 28)
    x = jnp.pad(x, ((0, n_pad - n), (1, 1), (1, 1)))              # (n_pad, 30, 30)
    x = jnp.pad(x, ((0, 0), (0, 2), (0, 0)))                      # (n_pad, 32, 30)
    x = x.reshape(n_steps, R, 30)
    x = jnp.pad(x, ((0, 0), (0, 16), (0, 0)))                     # (n_steps, R+16, 30)
    x = x.reshape(n_steps * (R + 16), 30).astype(bf16)

    # conv1 / pool1 operands
    w1 = _conv_toeplitz(params["conv1_w"], 30, 28).astype(bf16)   # (3, 30, 448)
    b1 = jnp.tile(params["conv1_b"], 28)[None, :].astype(f32)     # (1, 448)
    pc1 = _pool_cols(28, 16).astype(bf16)                         # (448, 224)
    g1 = _pool_rows_gather(B, 32, 16, 14, 8).astype(bf16)         # (R1+8, R)

    # conv2 / pool2 operands
    w2 = _conv_toeplitz(params["conv2_w"], 14, 12).astype(bf16)   # (3, 224, 384)
    b2 = jnp.tile(params["conv2_b"], 12)[None, :].astype(f32)     # (1, 384)
    pc2 = _pool_cols(12, 32).astype(bf16)                         # (384, 192)
    g2 = _pool_rows_gather(B, 16, 8, 6, 8).astype(bf16)           # (R2+8, R1)

    # classifier operands
    m1 = _fc1_permuted(params["fc1_w"]).astype(bf16)              # (6, 192, 256)
    bf1 = params["fc1_b"][None, :].astype(f32)                    # (1, 256)
    wf2 = params["fc2_w"].T.astype(bf16)                          # (256, 128)
    bf2 = params["fc2_b"][None, :].astype(f32)                    # (1, 128)
    wf3 = jnp.zeros((128, 128), f32).at[:, :10].set(params["fc3_w"].T)
    wf3 = wf3.astype(bf16)                                        # (128, 128)
    bf3 = jnp.zeros((1, 128), f32).at[:, :10].set(params["fc3_b"])

    weights = (w1, b1, pc1, g1, w2, b2, pc2, g2,
               m1, bf1, wf2, bf2, wf3, bf3)

    out = pl.pallas_call(
        _lenet5_kernel,
        out_shape=jax.ShapeDtypeStruct((n_steps * R2, 128), f32),
        grid=(n_steps,),
        in_specs=[pl.BlockSpec((R + 16, 30), lambda s: (s, 0))]
                 + [_full_spec(w) for w in weights],
        out_specs=pl.BlockSpec((R2, 128), lambda s: (s, 0)),
        compiler_params=pltpu.CompilerParams(
            dimension_semantics=("parallel",),
            vmem_limit_bytes=32 * 1024 * 1024),
    )(x, *weights)

    # image (s, b) logits live at output row s*R2 + b*8, lanes 0..9
    logits = out.reshape(n_steps, B, 8, 128)[:, :, 0, :10]
    return logits.reshape(n_pad, 10)[:n]


# ---------------------------------------------------------------------------
# Pure-JAX reference (mirrors the PyTorch module) for a sanity check.
# ---------------------------------------------------------------------------
def _ref_forward(x, p):
    dn = ("NCHW", "OIHW", "NCHW")
    y = lax.conv_general_dilated(x, p["conv1_w"], (1, 1), ((1, 1), (1, 1)),
                                 dimension_numbers=dn)
    y = jax.nn.relu(y + p["conv1_b"][None, :, None, None])
    n, c, h, w = y.shape
    y = y.reshape(n, c, h // 2, 2, w // 2, 2).mean(axis=(3, 5))
    y = lax.conv_general_dilated(y, p["conv2_w"], (1, 1), "VALID",
                                 dimension_numbers=dn)
    y = jax.nn.relu(y + p["conv2_b"][None, :, None, None])
    n, c, h, w = y.shape
    y = y.reshape(n, c, h // 2, 2, w // 2, 2).mean(axis=(3, 5))
    y = y.reshape(n, -1)
    y = jax.nn.relu(y @ p["fc1_w"].T + p["fc1_b"])
    y = jax.nn.relu(y @ p["fc2_w"].T + p["fc2_b"])
    return y @ p["fc3_w"].T + p["fc3_b"]


def init_params(key):
    keys = jax.random.split(key, 10)
    s = 0.05
    return {
        "conv1_w": s * jax.random.normal(keys[0], (16, 1, 3, 3), jnp.float32),
        "conv1_b": s * jax.random.normal(keys[1], (16,), jnp.float32),
        "conv2_w": s * jax.random.normal(keys[2], (32, 16, 3, 3), jnp.float32),
        "conv2_b": s * jax.random.normal(keys[3], (32,), jnp.float32),
        "fc1_w": s * jax.random.normal(keys[4], (256, 32 * 6 * 6), jnp.float32),
        "fc1_b": s * jax.random.normal(keys[5], (256,), jnp.float32),
        "fc2_w": s * jax.random.normal(keys[6], (128, 256), jnp.float32),
        "fc2_b": s * jax.random.normal(keys[7], (128,), jnp.float32),
        "fc3_w": s * jax.random.normal(keys[8], (10, 128), jnp.float32),
        "fc3_b": s * jax.random.normal(keys[9], (10,), jnp.float32),
    }


if __name__ == "__main__":
    key = jax.random.PRNGKey(0)
    k_x, k_p = jax.random.split(key)
    # LeNet-5 flatten (32*6*6) fixes the spatial size: input must be 28x28.
    x = jax.random.normal(k_x, (8, 1, 28, 28), jnp.float32)   # NCHW, batch=8
    params = init_params(k_p)

    out = jax.block_until_ready(lenet5_forward(x, params))
    assert out.shape == (8, 10), out.shape
    assert bool(jnp.all(jnp.isfinite(out)))

    # Sanity check vs. the f32 reference (bf16 MXU operands -> loose tol).
    ref = _ref_forward(x, params)
    max_err = float(jnp.max(jnp.abs(out - ref)))
    tol = 2e-2 + 5e-2 * float(jnp.max(jnp.abs(ref)))
    assert max_err < tol, (max_err, tol)

    print("KERNEL_OK")
</pallas_src>

<mosaic_0001>
module attributes {stable_mosaic.version = 11 : i64} {
  func.func @_lenet5_kernel(%arg0: i32, %arg1: memref<272x30xbf16, #tpu.memory_space<vmem>>, %arg2: memref<3x30x448xbf16, #tpu.memory_space<vmem>>, %arg3: memref<1x448xf32, #tpu.memory_space<vmem>>, %arg4: memref<448x224xbf16, #tpu.memory_space<vmem>>, %arg5: memref<136x256xbf16, #tpu.memory_space<vmem>>, %arg6: memref<3x224x384xbf16, #tpu.memory_space<vmem>>, %arg7: memref<1x384xf32, #tpu.memory_space<vmem>>, %arg8: memref<384x192xbf16, #tpu.memory_space<vmem>>, %arg9: memref<72x128xbf16, #tpu.memory_space<vmem>>, %arg10: memref<6x192x256xbf16, #tpu.memory_space<vmem>>, %arg11: memref<1x256xf32, #tpu.memory_space<vmem>>, %arg12: memref<256x128xbf16, #tpu.memory_space<vmem>>, %arg13: memref<1x128xf32, #tpu.memory_space<vmem>>, %arg14: memref<128x128xbf16, #tpu.memory_space<vmem>>, %arg15: memref<1x128xf32, #tpu.memory_space<vmem>>, %arg16: memref<64x128xf32, #tpu.memory_space<vmem>>) attributes {dimension_semantics = [#tpu.dimension_semantics<parallel>], iteration_bounds = array<i64: 1>, scalar_prefetch = 0 : i64, scratch_operands = 0 : i64, tpu.core_type = #tpu.core_type<tc>, window_params = [{transform_indices = @transform_0, window_bounds = array<i64: 272, 30>}, {pipeline_mode = #tpu.pipeline_mode<synchronous>, transform_indices = @transform_1, window_bounds = array<i64: 3, 30, 448>}, {pipeline_mode = #tpu.pipeline_mode<synchronous>, transform_indices = @transform_2, window_bounds = array<i64: 1, 448>}, {pipeline_mode = #tpu.pipeline_mode<synchronous>, transform_indices = @transform_3, window_bounds = array<i64: 448, 224>}, {pipeline_mode = #tpu.pipeline_mode<synchronous>, transform_indices = @transform_4, window_bounds = array<i64: 136, 256>}, {pipeline_mode = #tpu.pipeline_mode<synchronous>, transform_indices = @transform_5, window_bounds = array<i64: 3, 224, 384>}, {pipeline_mode = #tpu.pipeline_mode<synchronous>, transform_indices = @transform_6, window_bounds = array<i64: 1, 384>}, {pipeline_mode = #tpu.pipeline_mode<synchronous>, transform_indices = @transform_7, window_bounds = array<i64: 384, 192>}, {pipeline_mode = #tpu.pipeline_mode<synchronous>, transform_indices = @transform_8, window_bounds = array<i64: 72, 128>}, {pipeline_mode = #tpu.pipeline_mode<synchronous>, transform_indices = @transform_9, window_bounds = array<i64: 6, 192, 256>}, {pipeline_mode = #tpu.pipeline_mode<synchronous>, transform_indices = @transform_10, window_bounds = array<i64: 1, 256>}, {pipeline_mode = #tpu.pipeline_mode<synchronous>, transform_indices = @transform_11, window_bounds = array<i64: 256, 128>}, {pipeline_mode = #tpu.pipeline_mode<synchronous>, transform_indices = @transform_12, window_bounds = array<i64: 1, 128>}, {pipeline_mode = #tpu.pipeline_mode<synchronous>, transform_indices = @transform_13, window_bounds = array<i64: 128, 128>}, {pipeline_mode = #tpu.pipeline_mode<synchronous>, transform_indices = @transform_14, window_bounds = array<i64: 1, 128>}, {transform_indices = @transform_15, window_bounds = array<i64: 64, 128>}]} {
    %c0 = arith.constant 0 : index
    %c0_0 = arith.constant 0 : index
    %0 = vector.load %arg1[%c0, %c0_0] : memref<272x30xbf16, #tpu.memory_space<vmem>>, vector<272x30xbf16>
    %c0_1 = arith.constant 0 : index
    %c0_2 = arith.constant 0 : index
    %c0_3 = arith.constant 0 : index
    %1 = vector.load %arg2[%c0_1, %c0_2, %c0_3] : memref<3x30x448xbf16, #tpu.memory_space<vmem>>, vector<1x30x448xbf16>
    %2 = vector.shape_cast %1 : vector<1x30x448xbf16> to vector<30x448xbf16>
    %cst = arith.constant dense<0.000000e+00> : vector<272x448xf32>
    %3 = tpu.matmul %0, %2, %cst {dimension_numbers = #tpu.dot_dimension_numbers<[1], [0], [0], [1], [0, 0, 1, 1], [], []>} : vector<272x30xbf16>, vector<30x448xbf16>, vector<272x448xf32> -> vector<272x448xf32>
    %c1 = arith.constant 1 : index
    %c0_4 = arith.constant 0 : index
    %c0_5 = arith.constant 0 : index
    %4 = vector.load %arg2[%c1, %c0_4, %c0_5] : memref<3x30x448xbf16, #tpu.memory_space<vmem>>, vector<1x30x448xbf16>
    %5 = vector.shape_cast %4 : vector<1x30x448xbf16> to vector<30x448xbf16>
    %cst_6 = arith.constant dense<0.000000e+00> : vector<272x448xf32>
    %6 = tpu.matmul %0, %5, %cst_6 {dimension_numbers = #tpu.dot_dimension_numbers<[1], [0], [0], [1], [0, 0, 1, 1], [], []>} : vector<272x30xbf16>, vector<30x448xbf16>, vector<272x448xf32> -> vector<272x448xf32>
    %c2 = arith.constant 2 : index
    %c0_7 = arith.constant 0 : index
    %c0_8 = arith.constant 0 : index
    %7 = vector.load %arg2[%c2, %c0_7, %c0_8] : memref<3x30x448xbf16, #tpu.memory_space<vmem>>, vector<1x30x448xbf16>
    %8 = vector.shape_cast %7 : vector<1x30x448xbf16> to vector<30x448xbf16>
    %cst_9 = arith.constant dense<0.000000e+00> : vector<272x448xf32>
    %9 = tpu.matmul %0, %8, %cst_9 {dimension_numbers = #tpu.dot_dimension_numbers<[1], [0], [0], [1], [0, 0, 1, 1], [], []>} : vector<272x30xbf16>, vector<30x448xbf16>, vector<272x448xf32> -> vector<272x448xf32>
    %10 = vector.extract_strided_slice %3 {offsets = [0, 0], sizes = [256, 448], strides = [1, 1]} : vector<272x448xf32> to vector<256x448xf32>
    %11 = vector.extract_strided_slice %6 {offsets = [1, 0], sizes = [256, 448], strides = [1, 1]} : vector<272x448xf32> to vector<256x448xf32>
    %12 = arith.addf %10, %11 : vector<256x448xf32>
    %13 = vector.extract_strided_slice %9 {offsets = [2, 0], sizes = [256, 448], strides = [1, 1]} : vector<272x448xf32> to vector<256x448xf32>
    %14 = arith.addf %12, %13 : vector<256x448xf32>
    %c0_10 = arith.constant 0 : index
    %c0_11 = arith.constant 0 : index
    %15 = vector.load %arg3[%c0_10, %c0_11] : memref<1x448xf32, #tpu.memory_space<vmem>>, vector<1x448xf32>
    %16 = vector.broadcast %15 : vector<1x448xf32> to vector<256x448xf32>
    %17 = arith.addf %14, %16 : vector<256x448xf32>
    %cst_12 = arith.constant 0.000000e+00 : f32
    %18 = vector.broadcast %cst_12 : f32 to vector<256x448xf32>
    %19 = arith.maximumf %17, %18 : vector<256x448xf32>
    %20 = arith.truncf %19 : vector<256x448xf32> to vector<256x448xbf16>
    %c0_13 = arith.constant 0 : index
    %c0_14 = arith.constant 0 : index
    %21 = vector.load %arg5[%c0_13, %c0_14] : memref<136x256xbf16, #tpu.memory_space<vmem>>, vector<136x256xbf16>
    %c0_15 = arith.constant 0 : index
    %c0_16 = arith.constant 0 : index
    %22 = vector.load %arg4[%c0_15, %c0_16] : memref<448x224xbf16, #tpu.memory_space<vmem>>, vector<448x224xbf16>
    %cst_17 = arith.constant dense<0.000000e+00> : vector<256x224xf32>
    %23 = tpu.matmul %20, %22, %cst_17 {dimension_numbers = #tpu.dot_dimension_numbers<[1], [0], [0], [1], [0, 0, 1, 1], [], []>} : vector<256x448xbf16>, vector<448x224xbf16>, vector<256x224xf32> -> vector<256x224xf32>
    %24 = arith.truncf %23 : vector<256x224xf32> to vector<256x224xbf16>
    %cst_18 = arith.constant dense<0.000000e+00> : vector<136x224xf32>
    %25 = tpu.matmul %21, %24, %cst_18 {dimension_numbers = #tpu.dot_dimension_numbers<[1], [0], [0], [1], [0, 0, 1, 1], [], []>} : vector<136x256xbf16>, vector<256x224xbf16>, vector<136x224xf32> -> vector<136x224xf32>
    %26 = arith.truncf %25 : vector<136x224xf32> to vector<136x224xbf16>
    %c0_19 = arith.constant 0 : index
    %c0_20 = arith.constant 0 : index
    %c0_21 = arith.constant 0 : index
    %27 = vector.load %arg6[%c0_19, %c0_20, %c0_21] : memref<3x224x384xbf16, #tpu.memory_space<vmem>>, vector<1x224x384xbf16>
    %28 = vector.shape_cast %27 : vector<1x224x384xbf16> to vector<224x384xbf16>
    %cst_22 = arith.constant dense<0.000000e+00> : vector<136x384xf32>
    %29 = tpu.matmul %26, %28, %cst_22 {dimension_numbers = #tpu.dot_dimension_numbers<[1], [0], [0], [1], [0, 0, 1, 1], [], []>} : vector<136x224xbf16>, vector<224x384xbf16>, vector<136x384xf32> -> vector<136x384xf32>
    %c1_23 = arith.constant 1 : index
    %c0_24 = arith.constant 0 : index
    %c0_25 = arith.constant 0 : index
    %30 = vector.load %arg6[%c1_23, %c0_24, %c0_25] : memref<3x224x384xbf16, #tpu.memory_space<vmem>>, vector<1x224x384xbf16>
    %31 = vector.shape_cast %30 : vector<1x224x384xbf16> to vector<224x384xbf16>
    %cst_26 = arith.constant dense<0.000000e+00> : vector<136x384xf32>
    %32 = tpu.matmul %26, %31, %cst_26 {dimension_numbers = #tpu.dot_dimension_numbers<[1], [0], [0], [1], [0, 0, 1, 1], [], []>} : vector<136x224xbf16>, vector<224x384xbf16>, vector<136x384xf32> -> vector<136x384xf32>
    %c2_27 = arith.constant 2 : index
    %c0_28 = arith.constant 0 : index
    %c0_29 = arith.constant 0 : index
    %33 = vector.load %arg6[%c2_27, %c0_28, %c0_29] : memref<3x224x384xbf16, #tpu.memory_space<vmem>>, vector<1x224x384xbf16>
    %34 = vector.shape_cast %33 : vector<1x224x384xbf16> to vector<224x384xbf16>
    %cst_30 = arith.constant dense<0.000000e+00> : vector<136x384xf32>
    %35 = tpu.matmul %26, %34, %cst_30 {dimension_numbers = #tpu.dot_dimension_numbers<[1], [0], [0], [1], [0, 0, 1, 1], [], []>} : vector<136x224xbf16>, vector<224x384xbf16>, vector<136x384xf32> -> vector<136x384xf32>
    %36 = vector.extract_strided_slice %29 {offsets = [0, 0], sizes = [128, 384], strides = [1, 1]} : vector<136x384xf32> to vector<128x384xf32>
    %37 = vector.extract_strided_slice %32 {offsets = [1, 0], sizes = [128, 384], strides = [1, 1]} : vector<136x384xf32> to vector<128x384xf32>
    %38 = arith.addf %36, %37 : vector<128x384xf32>
    %39 = vector.extract_strided_slice %35 {offsets = [2, 0], sizes = [128, 384], strides = [1, 1]} : vector<136x384xf32> to vector<128x384xf32>
    %40 = arith.addf %38, %39 : vector<128x384xf32>
    %c0_31 = arith.constant 0 : index
    %c0_32 = arith.constant 0 : index
    %41 = vector.load %arg7[%c0_31, %c0_32] : memref<1x384xf32, #tpu.memory_space<vmem>>, vector<1x384xf32>
    %42 = vector.broadcast %41 : vector<1x384xf32> to vector<128x384xf32>
    %43 = arith.addf %40, %42 : vector<128x384xf32>
    %cst_33 = arith.constant 0.000000e+00 : f32
    %44 = vector.broadcast %cst_33 : f32 to vector<128x384xf32>
    %45 = arith.maximumf %43, %44 : vector<128x384xf32>
    %46 = arith.truncf %45 : vector<128x384xf32> to vector<128x384xbf16>
    %c0_34 = arith.constant 0 : index
    %c0_35 = arith.constant 0 : index
    %47 = vector.load %arg9[%c0_34, %c0_35] : memref<72x128xbf16, #tpu.memory_space<vmem>>, vector<72x128xbf16>
    %c0_36 = arith.constant 0 : index
    %c0_37 = arith.constant 0 : index
    %48 = vector.load %arg8[%c0_36, %c0_37] : memref<384x192xbf16, #tpu.memory_space<vmem>>, vector<384x192xbf16>
    %cst_38 = arith.constant dense<0.000000e+00> : vector<128x192xf32>
    %49 = tpu.matmul %46, %48, %cst_38 {dimension_numbers = #tpu.dot_dimension_numbers<[1], [0], [0], [1], [0, 0, 1, 1], [], []>} : vector<128x384xbf16>, vector<384x192xbf16>, vector<128x192xf32> -> vector<128x192xf32>
    %50 = arith.truncf %49 : vector<128x192xf32> to vector<128x192xbf16>
    %cst_39 = arith.constant dense<0.000000e+00> : vector<72x192xf32>
    %51 = tpu.matmul %47, %50, %cst_39 {dimension_numbers = #tpu.dot_dimension_numbers<[1], [0], [0], [1], [0, 0, 1, 1], [], []>} : vector<72x128xbf16>, vector<128x192xbf16>, vector<72x192xf32> -> vector<72x192xf32>
    %52 = arith.truncf %51 : vector<72x192xf32> to vector<72x192xbf16>
    %53 = vector.extract_strided_slice %52 {offsets = [0, 0], sizes = [64, 192], strides = [1, 1]} : vector<72x192xbf16> to vector<64x192xbf16>
    %c0_40 = arith.constant 0 : index
    %c0_41 = arith.constant 0 : index
    %c0_42 = arith.constant 0 : index
    %54 = vector.load %arg10[%c0_40, %c0_41, %c0_42] : memref<6x192x256xbf16, #tpu.memory_space<vmem>>, vector<1x192x256xbf16>
    %55 = vector.shape_cast %54 : vector<1x192x256xbf16> to vector<192x256xbf16>
    %cst_43 = arith.constant dense<0.000000e+00> : vector<64x256xf32>
    %56 = tpu.matmul %53, %55, %cst_43 {dimension_numbers = #tpu.dot_dimension_numbers<[1], [0], [0], [1], [0, 0, 1, 1], [], []>} : vector<64x192xbf16>, vector<192x256xbf16>, vector<64x256xf32> -> vector<64x256xf32>
    %57 = vector.extract_strided_slice %52 {offsets = [1, 0], sizes = [64, 192], strides = [1, 1]} : vector<72x192xbf16> to vector<64x192xbf16>
    %c1_44 = arith.constant 1 : index
    %c0_45 = arith.constant 0 : index
    %c0_46 = arith.constant 0 : index
    %58 = vector.load %arg10[%c1_44, %c0_45, %c0_46] : memref<6x192x256xbf16, #tpu.memory_space<vmem>>, vector<1x192x256xbf16>
    %59 = vector.shape_cast %58 : vector<1x192x256xbf16> to vector<192x256xbf16>
    %cst_47 = arith.constant dense<0.000000e+00> : vector<64x256xf32>
    %60 = tpu.matmul %57, %59, %cst_47 {dimension_numbers = #tpu.dot_dimension_numbers<[1], [0], [0], [1], [0, 0, 1, 1], [], []>} : vector<64x192xbf16>, vector<192x256xbf16>, vector<64x256xf32> -> vector<64x256xf32>
    %61 = vector.extract_strided_slice %52 {offsets = [2, 0], sizes = [64, 192], strides = [1, 1]} : vector<72x192xbf16> to vector<64x192xbf16>
    %c2_48 = arith.constant 2 : index
    %c0_49 = arith.constant 0 : index
    %c0_50 = arith.constant 0 : index
    %62 = vector.load %arg10[%c2_48, %c0_49, %c0_50] : memref<6x192x256xbf16, #tpu.memory_space<vmem>>, vector<1x192x256xbf16>
    %63 = vector.shape_cast %62 : vector<1x192x256xbf16> to vector<192x256xbf16>
    %cst_51 = arith.constant dense<0.000000e+00> : vector<64x256xf32>
    %64 = tpu.matmul %61, %63, %cst_51 {dimension_numbers = #tpu.dot_dimension_numbers<[1], [0], [0], [1], [0, 0, 1, 1], [], []>} : vector<64x192xbf16>, vector<192x256xbf16>, vector<64x256xf32> -> vector<64x256xf32>
    %65 = vector.extract_strided_slice %52 {offsets = [3, 0], sizes = [64, 192], strides = [1, 1]} : vector<72x192xbf16> to vector<64x192xbf16>
    %c3 = arith.constant 3 : index
    %c0_52 = arith.constant 0 : index
    %c0_53 = arith.constant 0 : index
    %66 = vector.load %arg10[%c3, %c0_52, %c0_53] : memref<6x192x256xbf16, #tpu.memory_space<vmem>>, vector<1x192x256xbf16>
    %67 = vector.shape_cast %66 : vector<1x192x256xbf16> to vector<192x256xbf16>
    %cst_54 = arith.constant dense<0.000000e+00> : vector<64x256xf32>
    %68 = tpu.matmul %65, %67, %cst_54 {dimension_numbers = #tpu.dot_dimension_numbers<[1], [0], [0], [1], [0, 0, 1, 1], [], []>} : vector<64x192xbf16>, vector<192x256xbf16>, vector<64x256xf32> -> vector<64x256xf32>
    %69 = vector.extract_strided_slice %52 {offsets = [4, 0], sizes = [64, 192], strides = [1, 1]} : vector<72x192xbf16> to vector<64x192xbf16>
    %c4 = arith.constant 4 : index
    %c0_55 = arith.constant 0 : index
    %c0_56 = arith.constant 0 : index
    %70 = vector.load %arg10[%c4, %c0_55, %c0_56] : memref<6x192x256xbf16, #tpu.memory_space<vmem>>, vector<1x192x256xbf16>
    %71 = vector.shape_cast %70 : vector<1x192x256xbf16> to vector<192x256xbf16>
    %cst_57 = arith.constant dense<0.000000e+00> : vector<64x256xf32>
    %72 = tpu.matmul %69, %71, %cst_57 {dimension_numbers = #tpu.dot_dimension_numbers<[1], [0], [0], [1], [0, 0, 1, 1], [], []>} : vector<64x192xbf16>, vector<192x256xbf16>, vector<64x256xf32> -> vector<64x256xf32>
    %73 = vector.extract_strided_slice %52 {offsets = [5, 0], sizes = [64, 192], strides = [1, 1]} : vector<72x192xbf16> to vector<64x192xbf16>
    %c5 = arith.constant 5 : index
    %c0_58 = arith.constant 0 : index
    %c0_59 = arith.constant 0 : index
    %74 = vector.load %arg10[%c5, %c0_58, %c0_59] : memref<6x192x256xbf16, #tpu.memory_space<vmem>>, vector<1x192x256xbf16>
    %75 = vector.shape_cast %74 : vector<1x192x256xbf16> to vector<192x256xbf16>
    %cst_60 = arith.constant dense<0.000000e+00> : vector<64x256xf32>
    %76 = tpu.matmul %73, %75, %cst_60 {dimension_numbers = #tpu.dot_dimension_numbers<[1], [0], [0], [1], [0, 0, 1, 1], [], []>} : vector<64x192xbf16>, vector<192x256xbf16>, vector<64x256xf32> -> vector<64x256xf32>
    %77 = arith.addf %56, %60 : vector<64x256xf32>
    %78 = arith.addf %64, %68 : vector<64x256xf32>
    %79 = arith.addf %77, %78 : vector<64x256xf32>
    %80 = arith.addf %72, %76 : vector<64x256xf32>
    %c0_61 = arith.constant 0 : index
    %c0_62 = arith.constant 0 : index
    %81 = vector.load %arg11[%c0_61, %c0_62] : memref<1x256xf32, #tpu.memory_space<vmem>>, vector<1x256xf32>
    %82 = vector.broadcast %81 : vector<1x256xf32> to vector<64x256xf32>
    %83 = arith.addf %80, %82 : vector<64x256xf32>
    %84 = arith.addf %79, %83 : vector<64x256xf32>
    %cst_63 = arith.constant 0.000000e+00 : f32
    %85 = vector.broadcast %cst_63 : f32 to vector<64x256xf32>
    %86 = arith.maximumf %84, %85 : vector<64x256xf32>
    %87 = arith.truncf %86 : vector<64x256xf32> to vector<64x256xbf16>
    %c0_64 = arith.constant 0 : index
    %c0_65 = arith.constant 0 : index
    %88 = vector.load %arg12[%c0_64, %c0_65] : memref<256x128xbf16, #tpu.memory_space<vmem>>, vector<256x128xbf16>
    %cst_66 = arith.constant dense<0.000000e+00> : vector<64x128xf32>
    %89 = tpu.matmul %87, %88, %cst_66 {dimension_numbers = #tpu.dot_dimension_numbers<[1], [0], [0], [1], [0, 0, 1, 1], [], []>} : vector<64x256xbf16>, vector<256x128xbf16>, vector<64x128xf32> -> vector<64x128xf32>
    %c0_67 = arith.constant 0 : index
    %c0_68 = arith.constant 0 : index
    %90 = vector.load %arg13[%c0_67, %c0_68] : memref<1x128xf32, #tpu.memory_space<vmem>>, vector<1x128xf32>
    %91 = vector.broadcast %90 : vector<1x128xf32> to vector<64x128xf32>
    %92 = arith.addf %89, %91 : vector<64x128xf32>
    %cst_69 = arith.constant 0.000000e+00 : f32
    %93 = vector.broadcast %cst_69 : f32 to vector<64x128xf32>
    %94 = arith.maximumf %92, %93 : vector<64x128xf32>
    %95 = arith.truncf %94 : vector<64x128xf32> to vector<64x128xbf16>
    %c0_70 = arith.constant 0 : index
    %c0_71 = arith.constant 0 : index
    %96 = vector.load %arg14[%c0_70, %c0_71] : memref<128x128xbf16, #tpu.memory_space<vmem>>, vector<128x128xbf16>
    %cst_72 = arith.constant dense<0.000000e+00> : vector<64x128xf32>
    %97 = tpu.matmul %95, %96, %cst_72 {dimension_numbers = #tpu.dot_dimension_numbers<[1], [0], [0], [1], [0, 0, 1, 1], [], []>} : vector<64x128xbf16>, vector<128x128xbf16>, vector<64x128xf32> -> vector<64x128xf32>
    %c0_73 = arith.constant 0 : index
    %c0_74 = arith.constant 0 : index
    %98 = vector.load %arg15[%c0_73, %c0_74] : memref<1x128xf32, #tpu.memory_space<vmem>>, vector<1x128xf32>
    %99 = vector.broadcast %98 : vector<1x128xf32> to vector<64x128xf32>
    %100 = arith.addf %97, %99 : vector<64x128xf32>
    %c0_75 = arith.constant 0 : index
    %c0_76 = arith.constant 0 : index
    %101 = vector.load %arg16[%c0_75, %c0_76] : memref<64x128xf32, #tpu.memory_space<vmem>>, vector<64x128xf32>
    tpu.vector_store %arg16[%c0_75, %c0_76], %100 {strides = array<i32>} : memref<64x128xf32, #tpu.memory_space<vmem>>, vector<64x128xf32>,
    return
  }
  func.func @transform_0(%arg0: i32) -> (i32, i32) {
    %c0_i32 = arith.constant 0 : i32
    %c0_i32_0 = arith.constant 0 : i32
    return %arg0, %c0_i32 : i32, i32
  }
  func.func @transform_1(%arg0: i32) -> (i32, i32, i32) {
    %c0_i32 = arith.constant 0 : i32
    %c0_i32_0 = arith.constant 0 : i32
    %c0_i32_1 = arith.constant 0 : i32
    %c0_i32_2 = arith.constant 0 : i32
    return %c0_i32, %c0_i32_0, %c0_i32_1 : i32, i32, i32
  }
  func.func @transform_2(%arg0: i32) -> (i32, i32) {
    %c0_i32 = arith.constant 0 : i32
    %c0_i32_0 = arith.constant 0 : i32
    %c0_i32_1 = arith.constant 0 : i32
    return %c0_i32, %c0_i32_0 : i32, i32
  }
  func.func @transform_3(%arg0: i32) -> (i32, i32) {
    %c0_i32 = arith.constant 0 : i32
    %c0_i32_0 = arith.constant 0 : i32
    %c0_i32_1 = arith.constant 0 : i32
    return %c0_i32, %c0_i32_0 : i32, i32
  }
  func.func @transform_4(%arg0: i32) -> (i32, i32) {
    %c0_i32 = arith.constant 0 : i32
    %c0_i32_0 = arith.constant 0 : i32
    %c0_i32_1 = arith.constant 0 : i32
    return %c0_i32, %c0_i32_0 : i32, i32
  }
  func.func @transform_5(%arg0: i32) -> (i32, i32, i32) {
    %c0_i32 = arith.constant 0 : i32
    %c0_i32_0 = arith.constant 0 : i32
    %c0_i32_1 = arith.constant 0 : i32
    %c0_i32_2 = arith.constant 0 : i32
    return %c0_i32, %c0_i32_0, %c0_i32_1 : i32, i32, i32
  }
  func.func @transform_6(%arg0: i32) -> (i32, i32) {
    %c0_i32 = arith.constant 0 : i32
    %c0_i32_0 = arith.constant 0 : i32
    %c0_i32_1 = arith.constant 0 : i32
    return %c0_i32, %c0_i32_0 : i32, i32
  }
  func.func @transform_7(%arg0: i32) -> (i32, i32) {
    %c0_i32 = arith.constant 0 : i32
    %c0_i32_0 = arith.constant 0 : i32
    %c0_i32_1 = arith.constant 0 : i32
    return %c0_i32, %c0_i32_0 : i32, i32
  }
  func.func @transform_8(%arg0: i32) -> (i32, i32) {
    %c0_i32 = arith.constant 0 : i32
    %c0_i32_0 = arith.constant 0 : i32
    %c0_i32_1 = arith.constant 0 : i32
    return %c0_i32, %c0_i32_0 : i32, i32
  }
  func.func @transform_9(%arg0: i32) -> (i32, i32, i32) {
    %c0_i32 = arith.constant 0 : i32
    %c0_i32_0 = arith.constant 0 : i32
    %c0_i32_1 = arith.constant 0 : i32
    %c0_i32_2 = arith.constant 0 : i32
    return %c0_i32, %c0_i32_0, %c0_i32_1 : i32, i32, i32
  }
  func.func @transform_10(%arg0: i32) -> (i32, i32) {
    %c0_i32 = arith.constant 0 : i32
    %c0_i32_0 = arith.constant 0 : i32
    %c0_i32_1 = arith.constant 0 : i32
    return %c0_i32, %c0_i32_0 : i32, i32
  }
  func.func @transform_11(%arg0: i32) -> (i32, i32) {
    %c0_i32 = arith.constant 0 : i32
    %c0_i32_0 = arith.constant 0 : i32
    %c0_i32_1 = arith.constant 0 : i32
    return %c0_i32, %c0_i32_0 : i32, i32
  }
  func.func @transform_12(%arg0: i32) -> (i32, i32) {
    %c0_i32 = arith.constant 0 : i32
    %c0_i32_0 = arith.constant 0 : i32
    %c0_i32_1 = arith.constant 0 : i32
    return %c0_i32, %c0_i32_0 : i32, i32
  }
  func.func @transform_13(%arg0: i32) -> (i32, i32) {
    %c0_i32 = arith.constant 0 : i32
    %c0_i32_0 = arith.constant 0 : i32
    %c0_i32_1 = arith.constant 0 : i32
    return %c0_i32, %c0_i32_0 : i32, i32
  }
  func.func @transform_14(%arg0: i32) -> (i32, i32) {
    %c0_i32 = arith.constant 0 : i32
    %c0_i32_0 = arith.constant 0 : i32
    %c0_i32_1 = arith.constant 0 : i32
    return %c0_i32, %c0_i32_0 : i32, i32
  }
  func.func @transform_15(%arg0: i32) -> (i32, i32) {
    %c0_i32 = arith.constant 0 : i32
    %c0_i32_0 = arith.constant 0 : i32
    return %arg0, %c0_i32 : i32, i32
  }
}

</mosaic_0001>

<llo_original>
// kernel: tile.13
$region0: #{tile.13}
  #allocation0 [shape = 's32[1]{0}', space=sflag, size = 0x4, scoped, tag = 'scoped memory for tile.13']
  %s0 = inlined_call_operand.vmem [shape: f32[16], index: 0, kind: input, shape index: {}]
  %s1 = inlined_call_operand.vmem [shape: f32[28,16], index: 1, kind: output, shape index: {}]
  // Predicated region
  $region2: #{tile.13} parent=0 // pred_check
    _
  $region3: #{tile.13} parent=0 // pred_check_branch
    %3 = sbr.rel (0) target = $region5
  $region4: #{tile.13} parent=0 // pred_region
    _
  $region5: #{tile.13} parent=0 // pred_fallthru
    _
  %v4 = vld [vmem:[%s0] ss:$0 sm:$0xff]
  %5 = vst [vmem:[%s1] sm:$0xff] %v4
  %s6 = scalar_lea.vmem %s1, 8
  %7 = vst [vmem:[%s6] sm:$0xff] %v4
  %s8 = scalar_lea.vmem %s1, 16
  %9 = vst [vmem:[%s8] sm:$0xff] %v4
  %s10 = scalar_lea.vmem %s1, 24
  %11 = vst [vmem:[%s10] sm:$0xff] %v4

// kernel: tile.14
$region0: #{tile.14}
  %s0 = inlined_call_operand.vmem [shape: f32[28,16], index: 0, kind: input, shape index: {}]
  %s1 = inlined_call_operand.vmem [shape: f32[1,448], index: 1, kind: output, shape index: {}]
  $region1: #{tile.14} parent=0
    #allocation0 [shape = 'u8[16384]{0}', space=vmem, size = 0x4000, scoped, tag = 'scoped mem for output reshape']
    %v2 = vld [vmem:[%s0] ss:$8 sm:$0xf]
    %vm3 = vcmask 130048
    %4 = vst.msk [vmem:[#allocation0] ss:$8 sm:$0xf] %vm3, %v2
    %s5 = scalar_lea.vmem %s0, 7
    %v6 = vld [vmem:[%s5] ss:$8 sm:$0x7]
    %7 = vrot.lane.b32.xlu0 %v6, 112
    %v8 = vpop.permute.xlu0 %7
    %vm9 = vcmask 1048448
    %10 = vst.msk [vmem:[#allocation0] ss:$8 sm:$0x7] %vm9, %v8
    %s11 = scalar_lea.vmem %s0, 6
    %v12 = vld [vmem:[%s11] ss:$8 sm:$0x7]
    %13 = vrot.lane.b32.xlu0 %v12, 96
    %v14 = vpop.permute.xlu0 %13
    %vm15 = vcmask 917248
    %16 = vst.msk [vmem:[#allocation0] ss:$8 sm:$0x7] %vm15, %v14
    %s17 = scalar_lea.vmem %s0, 5
    %v18 = vld [vmem:[%s17] ss:$8 sm:$0x7]
    %19 = vrot.lane.b32.xlu0 %v18, 80
    %v20 = vpop.permute.xlu0 %19
    %vm21 = vcmask 786048
    %22 = vst.msk [vmem:[#allocation0] ss:$8 sm:$0x7] %vm21, %v20
    %s23 = scalar_lea.vmem %s0, 4
    %v24 = vld [vmem:[%s23] ss:$8 sm:$0x7]
    %25 = vrot.lane.b32.xlu0 %v24, 64
    %v26 = vpop.permute.xlu0 %25
    %vm27 = vcmask 654848
    %28 = vst.msk [vmem:[#allocation0] ss:$8 sm:$0x7] %vm27, %v26
    %s29 = scalar_lea.vmem %s0, 3
    %v30 = vld [vmem:[%s29] ss:$8 sm:$0xf]
    %31 = vrot.lane.b32.xlu0 %v30, 48
    %v32 = vpop.permute.xlu0 %31
    %vm33 = vcmask 523648
    %34 = vst.msk [vmem:[#allocation0] ss:$8 sm:$0xf] %vm33, %v32
    %s35 = scalar_lea.vmem %s0, 2
    %v36 = vld [vmem:[%s35] ss:$8 sm:$0xf]
    %37 = vrot.lane.b32.xlu0 %v36, 32
    %v38 = vpop.permute.xlu0 %37
    %vm39 = vcmask 392448
    %40 = vst.msk [vmem:[#allocation0] ss:$8 sm:$0xf] %vm39, %v38
    %s41 = scalar_lea.vmem %s0, 1
    %v42 = vld [vmem:[%s41] ss:$8 sm:$0xf]
    %43 = vrot.lane.b32.xlu0 %v42, 16
    %v44 = vpop.permute.xlu0 %43
    %vm45 = vcmask 261248
    %46 = vst.msk [vmem:[#allocation0] ss:$8 sm:$0xf] %vm45, %v44
    %s48 = sshll.u32 1, 1
    %s49 = ssub.s32 %s48, 1
    %v51 = vld [vmem:[#allocation0] sm:%s49]
    %s52 = sshll.u32 1, 1
    %s53 = ssub.s32 %s52, 1
    %54 = vst [vmem:[%s1] sm:%s53] %v51
    %s55 = scalar_lea.vmem [#allocation0], 8
    %v56 = vld [vmem:[%s55] sm:%s49]
    %s57 = sshll.u32 1, 1
    %s58 = ssub.s32 %s57, 1
    %s59 = scalar_lea.vmem %s1, 1
    %60 = vst [vmem:[%s59] sm:%s58] %v56
    %s61 = scalar_lea.vmem [#allocation0], 16
    %v62 = vld [vmem:[%s61] sm:%s49]
    %s63 = sshll.u32 1, 1
    %s64 = ssub.s32 %s63, 1
    %s65 = smul.addr 1, 2
    %s66 = scalar_lea.vmem %s1, %s65
    %67 = vst [vmem:[%s66] sm:%s64] %v62
    %s68 = scalar_lea.vmem [#allocation0], 24
    %v69 = vld [vmem:[%s68] sm:%s49]
    %s70 = sshll.u32 1, 1
    %s71 = ssub.s32 %s70, 1
    %s72 = smul.addr 1, 3
    %s73 = scalar_lea.vmem %s1, %s72
    %74 = vst [vmem:[%s73] sm:%s71] %v69

// kernel: tile.18
$region0: #{tile.18}
  #allocation0 [shape = 's32[1]{0}', space=sflag, size = 0x4, scoped, tag = 'scoped memory for tile.18']
  %s0 = inlined_call_operand.vmem [shape: f32[32], index: 0, kind: input, shape index: {}]
  %s1 = inlined_call_operand.vmem [shape: f32[12,32], index: 1, kind: output, shape index: {}]
  // Predicated region
  $region2: #{tile.18} parent=0 // pred_check
    _
  $region3: #{tile.18} parent=0 // pred_check_branch
    %3 = sbr.rel (0) target = $region5
  $region4: #{tile.18} parent=0 // pred_region
    _
  $region5: #{tile.18} parent=0 // pred_fallthru
    _
  %v4 = vld [vmem:[%s0] ss:$0 sm:$0xff]
  %5 = vst [vmem:[%s1] sm:$0xff] %v4
  %s6 = scalar_lea.vmem %s1, 8
  %7 = vst [vmem:[%s6] sm:$0xff] %v4

// kernel: tile.19
$region0: #{tile.19}
  %s0 = inlined_call_operand.vmem [shape: f32[12,32], index: 0, kind: input, shape index: {}]
  %s1 = inlined_call_operand.vmem [shape: f32[1,384], index: 1, kind: output, shape index: {}]
  $region1: #{tile.19} parent=0
    #allocation0 [shape = 'u8[12288]{0}', space=vmem, size = 0x3000, scoped, tag = 'scoped mem for output reshape']
    %v2 = vld [vmem:[%s0] ss:$4 sm:$0x7]
    %vm3 = vcmask 261120
    %4 = vst.msk [vmem:[#allocation0] ss:$8 sm:$0x7] %vm3, %v2
    %s5 = scalar_lea.vmem %s0, 3
    %v6 = vld [vmem:[%s5] ss:$4 sm:$0x7]
    %7 = vrot.lane.b32.xlu0 %v6, 96
    %v8 = vpop.permute.xlu0 %7
    %vm9 = vcmask 1048320
    %10 = vst.msk [vmem:[#allocation0] ss:$8 sm:$0x7] %vm9, %v8
    %s11 = scalar_lea.vmem %s0, 2
    %v12 = vld [vmem:[%s11] ss:$4 sm:$0x7]
    %13 = vrot.lane.b32.xlu0 %v12, 64
    %v14 = vpop.permute.xlu0 %13
    %vm15 = vcmask 785920
    %16 = vst.msk [vmem:[#allocation0] ss:$8 sm:$0x7] %vm15, %v14
    %s17 = scalar_lea.vmem %s0, 1
    %v18 = vld [vmem:[%s17] ss:$4 sm:$0x7]
    %19 = vrot.lane.b32.xlu0 %v18, 32
    %v20 = vpop.permute.xlu0 %19
    %vm21 = vcmask 523520
    %22 = vst.msk [vmem:[#allocation0] ss:$8 sm:$0x7] %vm21, %v20
    %s24 = sshll.u32 1, 1
    %s25 = ssub.s32 %s24, 1
    %v27 = vld [vmem:[#allocation0] sm:%s25]
    %s28 = sshll.u32 1, 1
    %s29 = ssub.s32 %s28, 1
    %30 = vst [vmem:[%s1] sm:%s29] %v27
    %s31 = scalar_lea.vmem [#allocation0], 8
    %v32 = vld [vmem:[%s31] sm:%s25]
    %s33 = sshll.u32 1, 1
    %s34 = ssub.s32 %s33, 1
    %s35 = scalar_lea.vmem %s1, 1
    %36 = vst [vmem:[%s35] sm:%s34] %v32
    %s37 = scalar_lea.vmem [#allocation0], 16
    %v38 = vld [vmem:[%s37] sm:%s25]
    %s39 = sshll.u32 1, 1
    %s40 = ssub.s32 %s39, 1
    %s41 = smul.addr 1, 2
    %s42 = scalar_lea.vmem %s1, %s41
    %43 = vst [vmem:[%s42] sm:%s40] %v38

// kernel: lenet5_forward.1
$region0: #{lenet5_forward.1}
  #allocation0 [shape = 'u32[]', space=smem, size = 0x4, offset = 0x4, fixed_abs, tag = 'smem constant byte address 0x4 - core index']
  #allocation1 [shape = 'u32[144,128]{1,0:T(1,128)}', space=vmem, size = 0x12000, scoped, tag = 'internal scratch']
  %s0 = inlined_call_operand.vmem [shape: bf16[272,30], index: 0, kind: input, shape index: {}]
  %s1 = inlined_call_operand.vmem [shape: bf16[3,30,448], index: 1, kind: input, shape index: {}]
  %s2 = inlined_call_operand.vmem [shape: f32[1,448], index: 2, kind: input, shape index: {}]
  %s3 = inlined_call_operand.vmem [shape: bf16[448,224], index: 3, kind: input, shape index: {}]
  %s4 = inlined_call_operand.vmem [shape: bf16[136,256], index: 4, kind: input, shape index: {}]
  %s5 = inlined_call_operand.vmem [shape: bf16[3,224,384], index: 5, kind: input, shape index: {}]
  %s6 = inlined_call_operand.vmem [shape: f32[1,384], index: 6, kind: input, shape index: {}]
  %s7 = inlined_call_operand.vmem [shape: bf16[384,192], index: 7, kind: input, shape index: {}]
  %s8 = inlined_call_operand.vmem [shape: bf16[72,128], index: 8, kind: input, shape index: {}]
  %s9 = inlined_call_operand.vmem [shape: bf16[6,192,256], index: 9, kind: input, shape index: {}]
  %s10 = inlined_call_operand.vmem [shape: f32[1,256], index: 10, kind: input, shape index: {}]
  %s11 = inlined_call_operand.vmem [shape: bf16[256,128], index: 11, kind: input, shape index: {}]
  %s12 = inlined_call_operand.vmem [shape: f32[1,128], index: 12, kind: input, shape index: {}]
  %s13 = inlined_call_operand.vmem [shape: bf16[128,128], index: 13, kind: input, shape index: {}]
  %s14 = inlined_call_operand.vmem [shape: f32[1,128], index: 14, kind: input, shape index: {}]
  %s15 = inlined_call_operand.vmem [shape: f32[64,128], index: 15, kind: output, shape index: {}]
  %s16 = sld [smem:[#allocation0]]
  $region70: #{lenet5_forward.1} parent=0
    _
  %s18 = ssub.s32 1, %s16
  %s19 = scalar_select 0, %s18, %s16
  // Predicated region
  $region2: #{lenet5_forward.1} parent=0 // pred_check
    _
  $region3: #{lenet5_forward.1} parent=0 // pred_check_branch
    %21 = sbr.rel (0) target = $region5
  $region4: #{lenet5_forward.1} parent=0 // pred_region
    _
  $region5: #{lenet5_forward.1} parent=0 // pred_fallthru
    _
  // Predicated region
  $region6: #{lenet5_forward.1} parent=0 // pred_check
    _
  $region7: #{lenet5_forward.1} parent=0 // pred_check_branch
    %23 = sbr.rel (0) target = $region9
  $region8: #{lenet5_forward.1} parent=0 // pred_region
    _
  $region9: #{lenet5_forward.1} parent=0 // pred_fallthru
    _
  // Predicated region
  $region10: #{lenet5_forward.1} parent=0 // pred_check
    _
  $region11: #{lenet5_forward.1} parent=0 // pred_check_branch
    %25 = sbr.rel (0) target = $region13
  $region12: #{lenet5_forward.1} parent=0 // pred_region
    _
  $region13: #{lenet5_forward.1} parent=0 // pred_fallthru
    _
  // Predicated region
  $region14: #{lenet5_forward.1} parent=0 // pred_check
    _
  $region15: #{lenet5_forward.1} parent=0 // pred_check_branch
    %27 = sbr.rel (0) target = $region17
  $region16: #{lenet5_forward.1} parent=0 // pred_region
    _
  $region17: #{lenet5_forward.1} parent=0 // pred_fallthru
    _
  // Predicated region
  $region18: #{lenet5_forward.1} parent=0 // pred_check
    _
  $region19: #{lenet5_forward.1} parent=0 // pred_check_branch
    %29 = sbr.rel (0) target = $region21
  $region20: #{lenet5_forward.1} parent=0 // pred_region
    _
  $region21: #{lenet5_forward.1} parent=0 // pred_fallthru
    _
  // Predicated region
  $region22: #{lenet5_forward.1} parent=0 // pred_check
    _
  $region23: #{lenet5_forward.1} parent=0 // pred_check_branch
    %31 = sbr.rel (0) target = $region25
  $region24: #{lenet5_forward.1} parent=0 // pred_region
    _
  $region25: #{lenet5_forward.1} parent=0 // pred_fallthru
    _
  // Predicated region
  $region26: #{lenet5_forward.1} parent=0 // pred_check
    _
  $region27: #{lenet5_forward.1} parent=0 // pred_check_branch
    %33 = sbr.rel (0) target = $region29
  $region28: #{lenet5_forward.1} parent=0 // pred_region
    _
  $region29: #{lenet5_forward.1} parent=0 // pred_fallthru
    _
  // Predicated region
  $region30: #{lenet5_forward.1} parent=0 // pred_check
    _
  $region31: #{lenet5_forward.1} parent=0 // pred_check_branch
    %35 = sbr.rel (0) target = $region33
  $region32: #{lenet5_forward.1} parent=0 // pred_region
    _
  $region33: #{lenet5_forward.1} parent=0 // pred_fallthru
    _
  // Predicated region
  $region34: #{lenet5_forward.1} parent=0 // pred_check
    _
  $region35: #{lenet5_forward.1} parent=0 // pred_check_branch
    %37 = sbr.rel (0) target = $region37
  $region36: #{lenet5_forward.1} parent=0 // pred_region
    _
  $region37: #{lenet5_forward.1} parent=0 // pred_fallthru
    _
  // Predicated region
  $region38: #{lenet5_forward.1} parent=0 // pred_check
    _
  $region39: #{lenet5_forward.1} parent=0 // pred_check_branch
    %39 = sbr.rel (0) target = $region41
  $region40: #{lenet5_forward.1} parent=0 // pred_region
    _
  $region41: #{lenet5_forward.1} parent=0 // pred_fallthru
    _
  // Predicated region
  $region42: #{lenet5_forward.1} parent=0 // pred_check
    _
  $region43: #{lenet5_forward.1} parent=0 // pred_check_branch
    %41 = sbr.rel (0) target = $region45
  $region44: #{lenet5_forward.1} parent=0 // pred_region
    _
  $region45: #{lenet5_forward.1} parent=0 // pred_fallthru
    _
  // Predicated region
  $region46: #{lenet5_forward.1} parent=0 // pred_check
    _
  $region47: #{lenet5_forward.1} parent=0 // pred_check_branch
    %43 = sbr.rel (0) target = $region49
  $region48: #{lenet5_forward.1} parent=0 // pred_region
    _
  $region49: #{lenet5_forward.1} parent=0 // pred_fallthru
    _
  // Predicated region
  $region50: #{lenet5_forward.1} parent=0 // pred_check
    _
  $region51: #{lenet5_forward.1} parent=0 // pred_check_branch
    %45 = sbr.rel (0) target = $region53
  $region52: #{lenet5_forward.1} parent=0 // pred_region
    _
  $region53: #{lenet5_forward.1} parent=0 // pred_fallthru
    _
  // Predicated region
  $region54: #{lenet5_forward.1} parent=0 // pred_check
    _
  $region55: #{lenet5_forward.1} parent=0 // pred_check_branch
    %47 = sbr.rel (0) target = $region57
  $region56: #{lenet5_forward.1} parent=0 // pred_region
    _
  $region57: #{lenet5_forward.1} parent=0 // pred_fallthru
    _
  // Predicated region
  $region58: #{lenet5_forward.1} parent=0 // pred_check
    _
  $region59: #{lenet5_forward.1} parent=0 // pred_check_branch
    %49 = sbr.rel (0) target = $region61
  $region60: #{lenet5_forward.1} parent=0 // pred_region
    _
  $region61: #{lenet5_forward.1} parent=0 // pred_fallthru
    _
  %v51 = vld [vmem:[%s0] sm:$0xf]
  %v52 = vld [vmem:[%s0 + $0x4] sm:$0xf]
  %v53 = vld [vmem:[%s0 + $0x8] sm:$0xf]
  %v54 = vld [vmem:[%s0 + $0xc] sm:$0xf]
  %v55 = vld [vmem:[%s0 + $0x10] sm:$0xf]
  %v56 = vld [vmem:[%s0 + $0x14] sm:$0xf]
  %v57 = vld [vmem:[%s0 + $0x18] sm:$0xf]
  %v58 = vld [vmem:[%s0 + $0x1c] sm:$0xf]
  %v59 = vld [vmem:[%s0 + $0x20] sm:$0xf]
  %v60 = vld [vmem:[%s0 + $0x24] sm:$0xf]
  %v61 = vld [vmem:[%s0 + $0x28] sm:$0xf]
  %v62 = vld [vmem:[%s0 + $0x2c] sm:$0xf]
  %v63 = vld [vmem:[%s0 + $0x30] sm:$0xf]
  %v64 = vld [vmem:[%s0 + $0x34] sm:$0xf]
  %v65 = vld [vmem:[%s0 + $0x38] sm:$0xf]
  %v66 = vld [vmem:[%s0 + $0x3c] sm:$0xf]
  %v67 = vld [vmem:[%s0 + $0x40] sm:$0xf]
  %v68 = vld [vmem:[%s0 + $0x44] sm:$0xf]
  %v69 = vld [vmem:[%s0 + $0x48] sm:$0xf]
  %v70 = vld [vmem:[%s0 + $0x4c] sm:$0xf]
  %v71 = vld [vmem:[%s0 + $0x50] sm:$0xf]
  %v72 = vld [vmem:[%s0 + $0x54] sm:$0xf]
  %v73 = vld [vmem:[%s0 + $0x58] sm:$0xf]
  %v74 = vld [vmem:[%s0 + $0x5c] sm:$0xf]
  %v75 = vld [vmem:[%s0 + $0x60] sm:$0xf]
  %v76 = vld [vmem:[%s0 + $0x64] sm:$0xf]
  %v77 = vld [vmem:[%s0 + $0x68] sm:$0xf]
  %v78 = vld [vmem:[%s0 + $0x6c] sm:$0xf]
  %v79 = vld [vmem:[%s0 + $0x70] sm:$0xf]
  %v80 = vld [vmem:[%s0 + $0x74] sm:$0xf]
  %v81 = vld [vmem:[%s0 + $0x78] sm:$0xf]
  %v82 = vld [vmem:[%s0 + $0x7c] sm:$0xf]
  %v83 = vld [vmem:[%s0 + $0x80] sm:$0xf]
  %v84 = vld [vmem:[%s0 + $0x84] sm:$0xf]
  %v85 = vld [vmem:[%s1] sm:$0xff]
  %v86 = vld [vmem:[%s1 + $0x8] sm:$0xff]
  %v87 = vld [vmem:[%s1 + $0x10] sm:$0xff]
  %v88 = vld [vmem:[%s1 + $0x18] sm:$0xff]
  %v89 = vld [vmem:[%s1 + $0x20] sm:$0xff]
  %v90 = vld [vmem:[%s1 + $0x28] sm:$0xff]
  %v91 = vld [vmem:[%s1 + $0x30] sm:$0x77]
  %v92 = vld [vmem:[%s1 + $0x38] sm:$0x77]
  %v127 = vunpack.c.l.b16 %v51
  %v128 = vunpack.c.l.b16 %v52
  %v129 = vunpack.c.l.b16 %v53
  %v130 = vunpack.c.l.b16 %v54
  %v131 = vunpack.c.l.b16 %v55
  %v132 = vunpack.c.l.b16 %v56
  %v133 = vunpack.c.l.b16 %v57
  %v134 = vunpack.c.l.b16 %v58
  %v135 = vunpack.c.l.b16 %v59
  %v136 = vunpack.c.l.b16 %v60
  %v137 = vunpack.c.l.b16 %v61
  %v138 = vunpack.c.l.b16 %v62
  %v139 = vunpack.c.l.b16 %v63
  %v140 = vunpack.c.l.b16 %v64
  %v141 = vunpack.c.l.b16 %v65
  %v142 = vunpack.c.l.b16 %v66
  %v143 = vunpack.c.l.b16 %v67
  %v144 = vunpack.c.l.b16 %v68
  %v145 = vunpack.c.l.b16 %v69
  %v146 = vunpack.c.l.b16 %v70
  %v147 = vunpack.c.l.b16 %v71
  %v148 = vunpack.c.l.b16 %v72
  %v149 = vunpack.c.l.b16 %v73
  %v150 = vunpack.c.l.b16 %v74
  %v151 = vunpack.c.l.b16 %v75
  %v152 = vunpack.c.l.b16 %v76
  %v153 = vunpack.c.l.b16 %v77
  %v154 = vunpack.c.l.b16 %v78
  %v155 = vunpack.c.l.b16 %v79
  %v156 = vunpack.c.l.b16 %v80
  %v157 = vunpack.c.l.b16 %v81
  %v158 = vunpack.c.l.b16 %v82
  %v159 = vunpack.c.l.b16 %v83
  %v160 = vunpack.c.l.b16 %v84
  %v161 = vpack.c.b16 %v128, %v127
  %v162 = vpack.c.b16 %v130, %v129
  %v163 = vpack.c.b16 %v132, %v131
  %v164 = vpack.c.b16 %v134, %v133
  %v165 = vpack.c.b16 %v136, %v135
  %v166 = vpack.c.b16 %v138, %v137
  %v167 = vpack.c.b16 %v140, %v139
  %v168 = vpack.c.b16 %v142, %v141
  %v169 = vpack.c.b16 %v144, %v143
  %v170 = vpack.c.b16 %v146, %v145
  %v171 = vpack.c.b16 %v148, %v147
  %v172 = vpack.c.b16 %v150, %v149
  %v173 = vpack.c.b16 %v152, %v151
  %v174 = vpack.c.b16 %v154, %v153
  %v175 = vpack.c.b16 %v156, %v155
  %v176 = vpack.c.b16 %v158, %v157
  %v177 = vpack.c.b16 %v160, %v159
  %v186 = vunpack.c.l.b16 %v85
  %v187 = vunpack.c.h.b16 %v85
  %v188 = vunpack.c.l.b16 %v86
  %v189 = vunpack.c.h.b16 %v86
  %v190 = vunpack.c.l.b16 %v87
  %v191 = vunpack.c.h.b16 %v87
  %v192 = vunpack.c.l.b16 %v88
  %v193 = vunpack.c.h.b16 %v88
  %v194 = vunpack.c.l.b16 %v89
  %v195 = vunpack.c.h.b16 %v89
  %v196 = vunpack.c.l.b16 %v90
  %v197 = vunpack.c.h.b16 %v90
  %v198 = vunpack.c.l.b16 %v91
  %v199 = vunpack.c.h.b16 %v91
  %v200 = vunpack.c.l.b16 %v92
  %v201 = vunpack.c.h.b16 %v92
  %v202 = vpack.c.b16 %v190, %v186
  %v203 = vpack.c.b16 %v191, %v187
  %v204 = vpack.c.b16 %v192, %v188
  %v205 = vpack.c.b16 %v193, %v189
  %v206 = vpack.c.b16 %v198, %v194
  %v207 = vpack.c.b16 %v199, %v195
  %v208 = vpack.c.b16 %v200, %v196
  %v209 = vpack.c.b16 %v201, %v197
  %vm214 = vcmask 244736
  %v216 = vsel %vm214, %v161, 0
  %v219 = vsel %vm214, %v162, 0
  %v222 = vsel %vm214, %v163, 0
  %v225 = vsel %vm214, %v164, 0
  %v228 = vsel %vm214, %v165, 0
  %v231 = vsel %vm214, %v166, 0
  %v234 = vsel %vm214, %v167, 0
  %v237 = vsel %vm214, %v168, 0
  %v240 = vsel %vm214, %v169, 0
  %v243 = vsel %vm214, %v170, 0
  %v246 = vsel %vm214, %v171, 0
  %v249 = vsel %vm214, %v172, 0
  %v252 = vsel %vm214, %v173, 0
  %v255 = vsel %vm214, %v174, 0
  %v258 = vsel %vm214, %v175, 0
  %v261 = vsel %vm214, %v176, 0
  %v264 = vsel %vm214, %v177, 0
  %vm266 = vcmask 1046528
  %v268 = vsel %vm266, %v206, 0
  %v271 = vsel %vm266, %v207, 0
  %v274 = vsel %vm266, %v208, 0
  %v277 = vsel %vm266, %v209, 0
  %279 = vmatprep.subr.bf16.mxu0 0
  %280 = vmatpush1.bf16.msra.mxu0 0
  %281 = vmatprep.subr.bf16.mxu0 0
  %282 = vmatpush1.bf16.msra.mxu0 0
  %283 = vmatprep.subr.bf16.mxu0 0
  %284 = vmatpush1.bf16.msra.mxu0 0
  %285 = vmatprep.subr.bf16.mxu0 0
  %286 = vmatpush1.bf16.msra.mxu0 0
  %287 = vmatprep.subr.bf16.mxu0 0
  %288 = vmatpush1.bf16.msra.mxu0 0
  %289 = vmatprep.subr.bf16.mxu0 0
  %290 = vmatpush1.bf16.msra.mxu0 0
  %291 = vmatprep.subr.bf16.mxu0 %v271
  %292 = vmatpush1.bf16.msra.mxu0 %v268
  %293 = vmatprep.subr.bf16.mxu0 %v203
  %294 = vmatpush1.bf16.msra.mxu0 %v202
  %295 = vmatprep.subr.bf16.mxu0 0
  %296 = vmatpush2.bf16.msra.mxu0 0
  %297 = vmatprep.subr.bf16.mxu0 0
  %298 = vmatpush2.bf16.msra.mxu0 0
  %299 = vmatprep.subr.bf16.mxu0 0
  %300 = vmatpush2.bf16.msra.mxu0 0
  %301 = vmatprep.subr.bf16.mxu0 0
  %302 = vmatpush2.bf16.msra.mxu0 0
  %303 = vmatprep.subr.bf16.mxu0 0
  %304 = vmatpush2.bf16.msra.mxu0 0
  %305 = vmatprep.subr.bf16.mxu0 0
  %306 = vmatpush2.bf16.msra.mxu0 0
  %307 = vmatprep.subr.bf16.mxu0 0
  %308 = vmatpush2.bf16.msra.mxu0 0
  %309 = vmatprep.subr.bf16.mxu0 0
  %310 = vmatpush2.bf16.msra.mxu0 0
  %311 = vmatprep.mubr.bf16.mxu0 0
  %312 = vmatmul.mubr.bf16.gmra.mxu0 %v216
  %v313 = vpop.f32.mrf.mxu0
  %v314 = vadd.f32 0.0, %v313
  %v315 = vpop.f32.mrf.mxu0
  %v316 = vadd.f32 0.0, %v315
  %v317 = vpop.f32.mrf.mxu0
  %v318 = vadd.f32 0.0, %v317
  %v319 = vpop.f32.mrf.mxu0
  %v320 = vadd.f32 0.0, %v319
  %321 = vmatprep.mubr.bf16.mxu0 0
  %322 = vmatmul.mubr.bf16.gmra.mxu0 %v219
  %v323 = vpop.f32.mrf.mxu0
  %v324 = vadd.f32 0.0, %v323
  %v325 = vpop.f32.mrf.mxu0
  %v326 = vadd.f32 0.0, %v325
  %v327 = vpop.f32.mrf.mxu0
  %v328 = vadd.f32 0.0, %v327
  %v329 = vpop.f32.mrf.mxu0
  %v330 = vadd.f32 0.0, %v329
  %331 = vmatprep.mubr.bf16.mxu0 0
  %332 = vmatmul.mubr.bf16.gmra.mxu0 %v222
  %v333 = vpop.f32.mrf.mxu0
  %v334 = vadd.f32 0.0, %v333
  %v335 = vpop.f32.mrf.mxu0
  %v336 = vadd.f32 0.0, %v335
  %v337 = vpop.f32.mrf.mxu0
  %v338 = vadd.f32 0.0, %v337
  %v339 = vpop.f32.mrf.mxu0
  %v340 = vadd.f32 0.0, %v339
  %341 = vmatprep.mubr.bf16.mxu0 0
  %342 = vmatmul.mubr.bf16.gmra.mxu0 %v225
  %v343 = vpop.f32.mrf.mxu0
  %v344 = vadd.f32 0.0, %v343
  %v345 = vpop.f32.mrf.mxu0
  %v346 = vadd.f32 0.0, %v345
  %v347 = vpop.f32.mrf.mxu0
  %v348 = vadd.f32 0.0, %v347
  %v349 = vpop.f32.mrf.mxu0
  %v350 = vadd.f32 0.0, %v349
  %351 = vmatprep.mubr.bf16.mxu0 0
  %352 = vmatmul.mubr.bf16.gmra.mxu0 %v228
  %v353 = vpop.f32.mrf.mxu0
  %v354 = vadd.f32 0.0, %v353
  %v355 = vpop.f32.mrf.mxu0
  %v356 = vadd.f32 0.0, %v355
  %v357 = vpop.f32.mrf.mxu0
  %v358 = vadd.f32 0.0, %v357
  %v359 = vpop.f32.mrf.mxu0
  %v360 = vadd.f32 0.0, %v359
  %361 = vmatprep.mubr.bf16.mxu0 0
  %362 = vmatmul.mubr.bf16.gmra.mxu0 %v231
  %v363 = vpop.f32.mrf.mxu0
  %v364 = vadd.f32 0.0, %v363
  %v365 = vpop.f32.mrf.mxu0
  %v366 = vadd.f32 0.0, %v365
  %v367 = vpop.f32.mrf.mxu0
  %v368 = vadd.f32 0.0, %v367
  %v369 = vpop.f32.mrf.mxu0
  %v370 = vadd.f32 0.0, %v369
  %371 = vmatprep.mubr.bf16.mxu0 0
  %372 = vmatmul.mubr.bf16.gmra.mxu0 %v234
  %v373 = vpop.f32.mrf.mxu0
  %v374 = vadd.f32 0.0, %v373
  %v375 = vpop.f32.mrf.mxu0
  %v376 = vadd.f32 0.0, %v375
  %v377 = vpop.f32.mrf.mxu0
  %v378 = vadd.f32 0.0, %v377
  %v379 = vpop.f32.mrf.mxu0
  %v380 = vadd.f32 0.0, %v379
  %381 = vmatprep.mubr.bf16.mxu0 0
  %382 = vmatmul.mubr.bf16.gmra.mxu0 %v237
  %v383 = vpop.f32.mrf.mxu0
  %v384 = vadd.f32 0.0, %v383
  %v385 = vpop.f32.mrf.mxu0
  %v386 = vadd.f32 0.0, %v385
  %v387 = vpop.f32.mrf.mxu0
  %v388 = vadd.f32 0.0, %v387
  %v389 = vpop.f32.mrf.mxu0
  %v390 = vadd.f32 0.0, %v389
  %391 = vmatprep.mubr.bf16.mxu0 0
  %392 = vmatmul.mubr.bf16.gmra.mxu0 %v240
  %v393 = vpop.f32.mrf.mxu0
  %v394 = vadd.f32 0.0, %v393
  %v395 = vpop.f32.mrf.mxu0
  %v396 = vadd.f32 0.0, %v395
  %v397 = vpop.f32.mrf.mxu0
  %v398 = vadd.f32 0.0, %v397
  %v399 = vpop.f32.mrf.mxu0
  %v400 = vadd.f32 0.0, %v399
  %401 = vmatprep.mubr.bf16.mxu0 0
  %402 = vmatmul.mubr.bf16.gmra.mxu0 %v243
  %v403 = vpop.f32.mrf.mxu0
  %v404 = vadd.f32 0.0, %v403
  %v405 = vpop.f32.mrf.mxu0
  %v406 = vadd.f32 0.0, %v405
  %v407 = vpop.f32.mrf.mxu0
  %v408 = vadd.f32 0.0, %v407
  %v409 = vpop.f32.mrf.mxu0
  %v410 = vadd.f32 0.0, %v409
  %411 = vmatprep.mubr.bf16.mxu0 0
  %412 = vmatmul.mubr.bf16.gmra.mxu0 %v246
  %v413 = vpop.f32.mrf.mxu0
  %v414 = vadd.f32 0.0, %v413
  %v415 = vpop.f32.mrf.mxu0
  %v416 = vadd.f32 0.0, %v415
  %v417 = vpop.f32.mrf.mxu0
  %v418 = vadd.f32 0.0, %v417
  %v419 = vpop.f32.mrf.mxu0
  %v420 = vadd.f32 0.0, %v419
  %421 = vmatprep.mubr.bf16.mxu0 0
  %422 = vmatmul.mubr.bf16.gmra.mxu0 %v249
  %v423 = vpop.f32.mrf.mxu0
  %v424 = vadd.f32 0.0, %v423
  %v425 = vpop.f32.mrf.mxu0
  %v426 = vadd.f32 0.0, %v425
  %v427 = vpop.f32.mrf.mxu0
  %v428 = vadd.f32 0.0, %v427
  %v429 = vpop.f32.mrf.mxu0
  %v430 = vadd.f32 0.0, %v429
  %431 = vmatprep.mubr.bf16.mxu0 0
  %432 = vmatmul.mubr.bf16.gmra.mxu0 %v252
  %v433 = vpop.f32.mrf.mxu0
  %v434 = vadd.f32 0.0, %v433
  %v435 = vpop.f32.mrf.mxu0
  %v436 = vadd.f32 0.0, %v435
  %v437 = vpop.f32.mrf.mxu0
  %v438 = vadd.f32 0.0, %v437
  %v439 = vpop.f32.mrf.mxu0
  %v440 = vadd.f32 0.0, %v439
  %441 = vmatprep.mubr.bf16.mxu0 0
  %442 = vmatmul.mubr.bf16.gmra.mxu0 %v255
  %v443 = vpop.f32.mrf.mxu0
  %v444 = vadd.f32 0.0, %v443
  %v445 = vpop.f32.mrf.mxu0
  %v446 = vadd.f32 0.0, %v445
  %v447 = vpop.f32.mrf.mxu0
  %v448 = vadd.f32 0.0, %v447
  %v449 = vpop.f32.mrf.mxu0
  %v450 = vadd.f32 0.0, %v449
  %451 = vmatprep.mubr.bf16.mxu0 0
  %452 = vmatmul.mubr.bf16.gmra.mxu0 %v258
  %v453 = vpop.f32.mrf.mxu0
  %v454 = vadd.f32 0.0, %v453
  %v455 = vpop.f32.mrf.mxu0
  %v456 = vadd.f32 0.0, %v455
  %v457 = vpop.f32.mrf.mxu0
  %v458 = vadd.f32 0.0, %v457
  %v459 = vpop.f32.mrf.mxu0
  %v460 = vadd.f32 0.0, %v459
  %461 = vmatprep.mubr.bf16.mxu0 0
  %462 = vmatmul.mubr.bf16.gmra.mxu0 %v261
  %v463 = vpop.f32.mrf.mxu0
  %v464 = vadd.f32 0.0, %v463
  %v465 = vpop.f32.mrf.mxu0
  %v466 = vadd.f32 0.0, %v465
  %v467 = vpop.f32.mrf.mxu0
  %v468 = vadd.f32 0.0, %v467
  %v469 = vpop.f32.mrf.mxu0
  %v470 = vadd.f32 0.0, %v469
  %471 = vmatprep.mubr.bf16.mxu0 0
  %472 = vmatmul.mubr.bf16.gmra.mxu0 %v264
  %v473 = vpop.f32.mrf.mxu0
  %v474 = vpop.f32.mrf.mxu0
  %v475 = vpop.f32.mrf.mxu0
  %v476 = vpop.f32.mrf.mxu0
  %477 = vdwg.mxu0
  %478 = vmatprep.subr.bf16.mxu0 0
  %479 = vmatpush1.bf16.msra.mxu0 0
  %480 = vmatprep.subr.bf16.mxu0 0
  %481 = vmatpush1.bf16.msra.mxu0 0
  %482 = vmatprep.subr.bf16.mxu0 0
  %483 = vmatpush1.bf16.msra.mxu0 0
  %484 = vmatprep.subr.bf16.mxu0 0
  %485 = vmatpush1.bf16.msra.mxu0 0
  %486 = vmatprep.subr.bf16.mxu0 0
  %487 = vmatpush1.bf16.msra.mxu0 0
  %488 = vmatprep.subr.bf16.mxu0 0
  %489 = vmatpush1.bf16.msra.mxu0 0
  %490 = vmatprep.subr.bf16.mxu0 %v277
  %491 = vmatpush1.bf16.msra.mxu0 %v274
  %492 = vmatprep.subr.bf16.mxu0 %v205
  %493 = vmatpush1.bf16.msra.mxu0 %v204
  %494 = vmatprep.subr.bf16.mxu0 0
  %495 = vmatpush2.bf16.msra.mxu0 0
  %496 = vmatprep.subr.bf16.mxu0 0
  %497 = vmatpush2.bf16.msra.mxu0 0
  %498 = vmatprep.subr.bf16.mxu0 0
  %499 = vmatpush2.bf16.msra.mxu0 0
  %500 = vmatprep.subr.bf16.mxu0 0
  %501 = vmatpush2.bf16.msra.mxu0 0
  %502 = vmatprep.subr.bf16.mxu0 0
  %503 = vmatpush2.bf16.msra.mxu0 0
  %504 = vmatprep.subr.bf16.mxu0 0
  %505 = vmatpush2.bf16.msra.mxu0 0
  %506 = vmatprep.subr.bf16.mxu0 0
  %507 = vmatpush2.bf16.msra.mxu0 0
  %508 = vmatprep.subr.bf16.mxu0 0
  %509 = vmatpush2.bf16.msra.mxu0 0
  %510 = vmatprep.mubr.bf16.mxu0 0
  %511 = vmatmul.mubr.bf16.gmra.mxu0 %v216
  %v512 = vpop.f32.mrf.mxu0
  %v513 = vadd.f32 0.0, %v512
  %v514 = vpop.f32.mrf.mxu0
  %v515 = vadd.f32 0.0, %v514
  %v516 = vpop.f32.mrf.mxu0
  %v517 = vadd.f32 0.0, %v516
  %v518 = vpop.f32.mrf.mxu0
  %v519 = vadd.f32 0.0, %v518
  %520 = vmatprep.mubr.bf16.mxu0 0
  %521 = vmatmul.mubr.bf16.gmra.mxu0 %v219
  %v522 = vpop.f32.mrf.mxu0
  %v523 = vadd.f32 0.0, %v522
  %v524 = vpop.f32.mrf.mxu0
  %v525 = vadd.f32 0.0, %v524
  %v526 = vpop.f32.mrf.mxu0
  %v527 = vadd.f32 0.0, %v526
  %v528 = vpop.f32.mrf.mxu0
  %v529 = vadd.f32 0.0, %v528
  %530 = vmatprep.mubr.bf16.mxu0 0
  %531 = vmatmul.mubr.bf16.gmra.mxu0 %v222
  %v532 = vpop.f32.mrf.mxu0
  %v533 = vadd.f32 0.0, %v532
  %v534 = vpop.f32.mrf.mxu0
  %v535 = vadd.f32 0.0, %v534
  %v536 = vpop.f32.mrf.mxu0
  %v537 = vadd.f32 0.0, %v536
  %v538 = vpop.f32.mrf.mxu0
  %v539 = vadd.f32 0.0, %v538
  %540 = vmatprep.mubr.bf16.mxu0 0
  %541 = vmatmul.mubr.bf16.gmra.mxu0 %v225
  %v542 = vpop.f32.mrf.mxu0
  %v543 = vadd.f32 0.0, %v542
  %v544 = vpop.f32.mrf.mxu0
  %v545 = vadd.f32 0.0, %v544
  %v546 = vpop.f32.mrf.mxu0
  %v547 = vadd.f32 0.0, %v546
  %v548 = vpop.f32.mrf.mxu0
  %v549 = vadd.f32 0.0, %v548
  %550 = vmatprep.mubr.bf16.mxu0 0
  %551 = vmatmul.mubr.bf16.gmra.mxu0 %v228
  %v552 = vpop.f32.mrf.mxu0
  %v553 = vadd.f32 0.0, %v552
  %v554 = vpop.f32.mrf.mxu0
  %v555 = vadd.f32 0.0, %v554
  %v556 = vpop.f32.mrf.mxu0
  %v557 = vadd.f32 0.0, %v556
  %v558 = vpop.f32.mrf.mxu0
  %v559 = vadd.f32 0.0, %v558
  %560 = vmatprep.mubr.bf16.mxu0 0
  %561 = vmatmul.mubr.bf16.gmra.mxu0 %v231
  %v562 = vpop.f32.mrf.mxu0
  %v563 = vadd.f32 0.0, %v562
  %v564 = vpop.f32.mrf.mxu0
  %v565 = vadd.f32 0.0, %v564
  %v566 = vpop.f32.mrf.mxu0
  %v567 = vadd.f32 0.0, %v566
  %v568 = vpop.f32.mrf.mxu0
  %v569 = vadd.f32 0.0, %v568
  %570 = vmatprep.mubr.bf16.mxu0 0
  %571 = vmatmul.mubr.bf16.gmra.mxu0 %v234
  %v572 = vpop.f32.mrf.mxu0
  %v573 = vadd.f32 0.0, %v572
  %v574 = vpop.f32.mrf.mxu0
  %v575 = vadd.f32 0.0, %v574
  %v576 = vpop.f32.mrf.mxu0
  %v577 = vadd.f32 0.0, %v576
  %v578 = vpop.f32.mrf.mxu0
  %v579 = vadd.f32 0.0, %v578
  %580 = vmatprep.mubr.bf16.mxu0 0
  %581 = vmatmul.mubr.bf16.gmra.mxu0 %v237
  %v582 = vpop.f32.mrf.mxu0
  %v583 = vadd.f32 0.0, %v582
  %v584 = vpop.f32.mrf.mxu0
  %v585 = vadd.f32 0.0, %v584
  %v586 = vpop.f32.mrf.mxu0
  %v587 = vadd.f32 0.0, %v586
  %v588 = vpop.f32.mrf.mxu0
  %v589 = vadd.f32 0.0, %v588
  %590 = vmatprep.mubr.bf16.mxu0 0
  %591 = vmatmul.mubr.bf16.gmra.mxu0 %v240
  %v592 = vpop.f32.mrf.mxu0
  %v593 = vadd.f32 0.0, %v592
  %v594 = vpop.f32.mrf.mxu0
  %v595 = vadd.f32 0.0, %v594
  %v596 = vpop.f32.mrf.mxu0
  %v597 = vadd.f32 0.0, %v596
  %v598 = vpop.f32.mrf.mxu0
  %v599 = vadd.f32 0.0, %v598
  %600 = vmatprep.mubr.bf16.mxu0 0
  %601 = vmatmul.mubr.bf16.gmra.mxu0 %v243
  %v602 = vpop.f32.mrf.mxu0
  %v603 = vadd.f32 0.0, %v602
  %v604 = vpop.f32.mrf.mxu0
  %v605 = vadd.f32 0.0, %v604
  %v606 = vpop.f32.mrf.mxu0
  %v607 = vadd.f32 0.0, %v606
  %v608 = vpop.f32.mrf.mxu0
  %v609 = vadd.f32 0.0, %v608
  %610 = vmatprep.mubr.bf16.mxu0 0
  %611 = vmatmul.mubr.bf16.gmra.mxu0 %v246
  %v612 = vpop.f32.mrf.mxu0
  %v613 = vadd.f32 0.0, %v612
  %v614 = vpop.f32.mrf.mxu0
  %v615 = vadd.f32 0.0, %v614
  %v616 = vpop.f32.mrf.mxu0
  %v617 = vadd.f32 0.0, %v616
  %v618 = vpop.f32.mrf.mxu0
  %v619 = vadd.f32 0.0, %v618
  %620 = vmatprep.mubr.bf16.mxu0 0
  %621 = vmatmul.mubr.bf16.gmra.mxu0 %v249
  %v622 = vpop.f32.mrf.mxu0
  %v623 = vadd.f32 0.0, %v622
  %v624 = vpop.f32.mrf.mxu0
  %v625 = vadd.f32 0.0, %v624
  %v626 = vpop.f32.mrf.mxu0
  %v627 = vadd.f32 0.0, %v626
  %v628 = vpop.f32.mrf.mxu0
  %v629 = vadd.f32 0.0, %v628
  %630 = vmatprep.mubr.bf16.mxu0 0
  %631 = vmatmul.mubr.bf16.gmra.mxu0 %v252
  %v632 = vpop.f32.mrf.mxu0
  %v633 = vadd.f32 0.0, %v632
  %v634 = vpop.f32.mrf.mxu0
  %v635 = vadd.f32 0.0, %v634
  %v636 = vpop.f32.mrf.mxu0
  %v637 = vadd.f32 0.0, %v636
  %v638 = vpop.f32.mrf.mxu0
  %v639 = vadd.f32 0.0, %v638
  %640 = vmatprep.mubr.bf16.mxu0 0
  %641 = vmatmul.mubr.bf16.gmra.mxu0 %v255
  %v642 = vpop.f32.mrf.mxu0
  %v643 = vadd.f32 0.0, %v642
  %v644 = vpop.f32.mrf.mxu0
  %v645 = vadd.f32 0.0, %v644
  %v646 = vpop.f32.mrf.mxu0
  %v647 = vadd.f32 0.0, %v646
  %v648 = vpop.f32.mrf.mxu0
  %v649 = vadd.f32 0.0, %v648
  %650 = vmatprep.mubr.bf16.mxu0 0
  %651 = vmatmul.mubr.bf16.gmra.mxu0 %v258
  %v652 = vpop.f32.mrf.mxu0
  %v653 = vadd.f32 0.0, %v652
  %v654 = vpop.f32.mrf.mxu0
  %v655 = vadd.f32 0.0, %v654
  %v656 = vpop.f32.mrf.mxu0
  %v657 = vadd.f32 0.0, %v656
  %v658 = vpop.f32.mrf.mxu0
  %v659 = vadd.f32 0.0, %v658
  %660 = vmatprep.mubr.bf16.mxu0 0
  %661 = vmatmul.mubr.bf16.gmra.mxu0 %v261
  %v662 = vpop.f32.mrf.mxu0
  %v663 = vadd.f32 0.0, %v662
  %v664 = vpop.f32.mrf.mxu0
  %v665 = vadd.f32 0.0, %v664
  %v666 = vpop.f32.mrf.mxu0
  %v667 = vadd.f32 0.0, %v666
  %v668 = vpop.f32.mrf.mxu0
  %v669 = vadd.f32 0.0, %v668
  %670 = vmatprep.mubr.bf16.mxu0 0
  %671 = vmatmul.mubr.bf16.gmra.mxu0 %v264
  %v672 = vpop.f32.mrf.mxu0
  %v673 = vpop.f32.mrf.mxu0
  %v674 = vpop.f32.mrf.mxu0
  %v675 = vpop.f32.mrf.mxu0
  %676 = vdwg.mxu0
  %s677 = scalar_lea.vmem %s1, 64
  %v678 = vld [vmem:[%s677] sm:$0xff]
  %v679 = vld [vmem:[%s677 + $0x8] sm:$0xff]
  %v680 = vld [vmem:[%s677 + $0x10] sm:$0xff]
  %v681 = vld [vmem:[%s677 + $0x18] sm:$0xff]
  %v682 = vld [vmem:[%s677 + $0x20] sm:$0xff]
  %v683 = vld [vmem:[%s677 + $0x28] sm:$0xff]
  %v684 = vld [vmem:[%s677 + $0x30] sm:$0x77]
  %v685 = vld [vmem:[%s677 + $0x38] sm:$0x77]
  %v694 = vunpack.c.l.b16 %v678
  %v695 = vunpack.c.h.b16 %v678
  %v696 = vunpack.c.l.b16 %v679
  %v697 = vunpack.c.h.b16 %v679
  %v698 = vunpack.c.l.b16 %v680
  %v699 = vunpack.c.h.b16 %v680
  %v700 = vunpack.c.l.b16 %v681
  %v701 = vunpack.c.h.b16 %v681
  %v702 = vunpack.c.l.b16 %v682
  %v703 = vunpack.c.h.b16 %v682
  %v704 = vunpack.c.l.b16 %v683
  %v705 = vunpack.c.h.b16 %v683
  %v706 = vunpack.c.l.b16 %v684
  %v707 = vunpack.c.h.b16 %v684
  %v708 = vunpack.c.l.b16 %v685
  %v709 = vunpack.c.h.b16 %v685
  %v710 = vpack.c.b16 %v698, %v694
  %v711 = vpack.c.b16 %v699, %v695
  %v712 = vpack.c.b16 %v700, %v696
  %v713 = vpack.c.b16 %v701, %v697
  %v714 = vpack.c.b16 %v706, %v702
  %v715 = vpack.c.b16 %v707, %v703
  %v716 = vpack.c.b16 %v708, %v704
  %v717 = vpack.c.b16 %v709, %v705
  %v723 = vsel %vm266, %v714, 0
  %v726 = vsel %vm266, %v715, 0
  %v729 = vsel %vm266, %v716, 0
  %v732 = vsel %vm266, %v717, 0
  %734 = vmatprep.subr.bf16.mxu0 0
  %735 = vmatpush1.bf16.msra.mxu0 0
  %736 = vmatprep.subr.bf16.mxu0 0
  %737 = vmatpush1.bf16.msra.mxu0 0
  %738 = vmatprep.subr.bf16.mxu0 0
  %739 = vmatpush1.bf16.msra.mxu0 0
  %740 = vmatprep.subr.bf16.mxu0 0
  %741 = vmatpush1.bf16.msra.mxu0 0
  %742 = vmatprep.subr.bf16.mxu0 0
  %743 = vmatpush1.bf16.msra.mxu0 0
  %744 = vmatprep.subr.bf16.mxu0 0
  %745 = vmatpush1.bf16.msra.mxu0 0
  %746 = vmatprep.subr.bf16.mxu0 %v726
  %747 = vmatpush1.bf16.msra.mxu0 %v723
  %748 = vmatprep.subr.bf16.mxu0 %v711
  %749 = vmatpush1.bf16.msra.mxu0 %v710
  %750 = vmatprep.subr.bf16.mxu0 0
  %751 = vmatpush2.bf16.msra.mxu0 0
  %752 = vmatprep.subr.bf16.mxu0 0
  %753 = vmatpush2.bf16.msra.mxu0 0
  %754 = vmatprep.subr.bf16.mxu0 0
  %755 = vmatpush2.bf16.msra.mxu0 0
  %756 = vmatprep.subr.bf16.mxu0 0
  %757 = vmatpush2.bf16.msra.mxu0 0
  %758 = vmatprep.subr.bf16.mxu0 0
  %759 = vmatpush2.bf16.msra.mxu0 0
  %760 = vmatprep.subr.bf16.mxu0 0
  %761 = vmatpush2.bf16.msra.mxu0 0
  %762 = vmatprep.subr.bf16.mxu0 0
  %763 = vmatpush2.bf16.msra.mxu0 0
  %764 = vmatprep.subr.bf16.mxu0 0
  %765 = vmatpush2.bf16.msra.mxu0 0
  %766 = vmatprep.mubr.bf16.mxu0 0
  %767 = vmatmul.mubr.bf16.gmra.mxu0 %v216
  %v768 = vpop.f32.mrf.mxu0
  %v769 = vadd.f32 0.0, %v768
  %v770 = vpop.f32.mrf.mxu0
  %v771 = vadd.f32 0.0, %v770
  %v772 = vpop.f32.mrf.mxu0
  %v773 = vadd.f32 0.0, %v772
  %v774 = vpop.f32.mrf.mxu0
  %v775 = vadd.f32 0.0, %v774
  %776 = vmatprep.mubr.bf16.mxu0 0
  %777 = vmatmul.mubr.bf16.gmra.mxu0 %v219
  %v778 = vpop.f32.mrf.mxu0
  %v779 = vadd.f32 0.0, %v778
  %v780 = vpop.f32.mrf.mxu0
  %v781 = vadd.f32 0.0, %v780
  %v782 = vpop.f32.mrf.mxu0
  %v783 = vadd.f32 0.0, %v782
  %v784 = vpop.f32.mrf.mxu0
  %v785 = vadd.f32 0.0, %v784
  %786 = vmatprep.mubr.bf16.mxu0 0
  %787 = vmatmul.mubr.bf16.gmra.mxu0 %v222
  %v788 = vpop.f32.mrf.mxu0
  %v789 = vadd.f32 0.0, %v788
  %v790 = vpop.f32.mrf.mxu0
  %v791 = vadd.f32 0.0, %v790
  %v792 = vpop.f32.mrf.mxu0
  %v793 = vadd.f32 0.0, %v792
  %v794 = vpop.f32.mrf.mxu0
  %v795 = vadd.f32 0.0, %v794
  %796 = vmatprep.mubr.bf16.mxu0 0
  %797 = vmatmul.mubr.bf16.gmra.mxu0 %v225
  %v798 = vpop.f32.mrf.mxu0
  %v799 = vadd.f32 0.0, %v798
  %v800 = vpop.f32.mrf.mxu0
  %v801 = vadd.f32 0.0, %v800
  %v802 = vpop.f32.mrf.mxu0
  %v803 = vadd.f32 0.0, %v802
  %v804 = vpop.f32.mrf.mxu0
  %v805 = vadd.f32 0.0, %v804
  %806 = vmatprep.mubr.bf16.mxu0 0
  %807 = vmatmul.mubr.bf16.gmra.mxu0 %v228
  %v808 = vpop.f32.mrf.mxu0
  %v809 = vadd.f32 0.0, %v808
  %v810 = vpop.f32.mrf.mxu0
  %v811 = vadd.f32 0.0, %v810
  %v812 = vpop.f32.mrf.mxu0
  %v813 = vadd.f32 0.0, %v812
  %v814 = vpop.f32.mrf.mxu0
  %v815 = vadd.f32 0.0, %v814
  %816 = vmatprep.mubr.bf16.mxu0 0
  %817 = vmatmul.mubr.bf16.gmra.mxu0 %v231
  %v818 = vpop.f32.mrf.mxu0
  %v819 = vadd.f32 0.0, %v818
  %v820 = vpop.f32.mrf.mxu0
  %v821 = vadd.f32 0.0, %v820
  %v822 = vpop.f32.mrf.mxu0
  %v823 = vadd.f32 0.0, %v822
  %v824 = vpop.f32.mrf.mxu0
  %v825 = vadd.f32 0.0, %v824
  %826 = vmatprep.mubr.bf16.mxu0 0
  %827 = vmatmul.mubr.bf16.gmra.mxu0 %v234
  %v828 = vpop.f32.mrf.mxu0
  %v829 = vadd.f32 0.0, %v828
  %v830 = vpop.f32.mrf.mxu0
  %v831 = vadd.f32 0.0, %v830
  %v832 = vpop.f32.mrf.mxu0
  %v833 = vadd.f32 0.0, %v832
  %v834 = vpop.f32.mrf.mxu0
  %v835 = vadd.f32 0.0, %v834
  %836 = vmatprep.mubr.bf16.mxu0 0
  %837 = vmatmul.mubr.bf16.gmra.mxu0 %v237
  %v838 = vpop.f32.mrf.mxu0
  %v839 = vadd.f32 0.0, %v838
  %v840 = vpop.f32.mrf.mxu0
  %v841 = vadd.f32 0.0, %v840
  %v842 = vpop.f32.mrf.mxu0
  %v843 = vadd.f32 0.0, %v842
  %v844 = vpop.f32.mrf.mxu0
  %v845 = vadd.f32 0.0, %v844
  %846 = vmatprep.mubr.bf16.mxu0 0
  %847 = vmatmul.mubr.bf16.gmra.mxu0 %v240
  %v848 = vpop.f32.mrf.mxu0
  %v849 = vadd.f32 0.0, %v848
  %v850 = vpop.f32.mrf.mxu0
  %v851 = vadd.f32 0.0, %v850
  %v852 = vpop.f32.mrf.mxu0
  %v853 = vadd.f32 0.0, %v852
  %v854 = vpop.f32.mrf.mxu0
  %v855 = vadd.f32 0.0, %v854
  %856 = vmatprep.mubr.bf16.mxu0 0
  %857 = vmatmul.mubr.bf16.gmra.mxu0 %v243
  %v858 = vpop.f32.mrf.mxu0
  %v859 = vadd.f32 0.0, %v858
  %v860 = vpop.f32.mrf.mxu0
  %v861 = vadd.f32 0.0, %v860
  %v862 = vpop.f32.mrf.mxu0
  %v863 = vadd.f32 0.0, %v862
  %v864 = vpop.f32.mrf.mxu0
  %v865 = vadd.f32 0.0, %v864
  %866 = vmatprep.mubr.bf16.mxu0 0
  %867 = vmatmul.mubr.bf16.gmra.mxu0 %v246
  %v868 = vpop.f32.mrf.mxu0
  %v869 = vadd.f32 0.0, %v868
  %v870 = vpop.f32.mrf.mxu0
  %v871 = vadd.f32 0.0, %v870
  %v872 = vpop.f32.mrf.mxu0
  %v873 = vadd.f32 0.0, %v872
  %v874 = vpop.f32.mrf.mxu0
  %v875 = vadd.f32 0.0, %v874
  %876 = vmatprep.mubr.bf16.mxu0 0
  %877 = vmatmul.mubr.bf16.gmra.mxu0 %v249
  %v878 = vpop.f32.mrf.mxu0
  %v879 = vadd.f32 0.0, %v878
  %v880 = vpop.f32.mrf.mxu0
  %v881 = vadd.f32 0.0, %v880
  %v882 = vpop.f32.mrf.mxu0
  %v883 = vadd.f32 0.0, %v882
  %v884 = vpop.f32.mrf.mxu0
  %v885 = vadd.f32 0.0, %v884
  %886 = vmatprep.mubr.bf16.mxu0 0
  %887 = vmatmul.mubr.bf16.gmra.mxu0 %v252
  %v888 = vpop.f32.mrf.mxu0
  %v889 = vadd.f32 0.0, %v888
  %v890 = vpop.f32.mrf.mxu0
  %v891 = vadd.f32 0.0, %v890
  %v892 = vpop.f32.mrf.mxu0
  %v893 = vadd.f32 0.0, %v892
  %v894 = vpop.f32.mrf.mxu0
  %v895 = vadd.f32 0.0, %v894
  %896 = vmatprep.mubr.bf16.mxu0 0
  %897 = vmatmul.mubr.bf16.gmra.mxu0 %v255
  %v898 = vpop.f32.mrf.mxu0
  %v899 = vadd.f32 0.0, %v898
  %v900 = vpop.f32.mrf.mxu0
  %v901 = vadd.f32 0.0, %v900
  %v902 = vpop.f32.mrf.mxu0
  %v903 = vadd.f32 0.0, %v902
  %v904 = vpop.f32.mrf.mxu0
  %v905 = vadd.f32 0.0, %v904
  %906 = vmatprep.mubr.bf16.mxu0 0
  %907 = vmatmul.mubr.bf16.gmra.mxu0 %v258
  %v908 = vpop.f32.mrf.mxu0
  %v909 = vadd.f32 0.0, %v908
  %v910 = vpop.f32.mrf.mxu0
  %v911 = vadd.f32 0.0, %v910
  %v912 = vpop.f32.mrf.mxu0
  %v913 = vadd.f32 0.0, %v912
  %v914 = vpop.f32.mrf.mxu0
  %v915 = vadd.f32 0.0, %v914
  %916 = vmatprep.mubr.bf16.mxu0 0
  %917 = vmatmul.mubr.bf16.gmra.mxu0 %v261
  %v918 = vpop.f32.mrf.mxu0
  %v919 = vadd.f32 0.0, %v918
  %v920 = vpop.f32.mrf.mxu0
  %v921 = vadd.f32 0.0, %v920
  %v922 = vpop.f32.mrf.mxu0
  %v923 = vadd.f32 0.0, %v922
  %v924 = vpop.f32.mrf.mxu0
  %v925 = vadd.f32 0.0, %v924
  %926 = vmatprep.mubr.bf16.mxu0 0
  %927 = vmatmul.mubr.bf16.gmra.mxu0 %v264
  %v928 = vpop.f32.mrf.mxu0
  %v929 = vadd.f32 0.0, %v928
  %v930 = vpop.f32.mrf.mxu0
  %v931 = vadd.f32 0.0, %v930
  %v932 = vpop.f32.mrf.mxu0
  %v933 = vpop.f32.mrf.mxu0
  %934 = vdwg.mxu0
  %935 = vmatprep.subr.bf16.mxu0 0
  %936 = vmatpush1.bf16.msra.mxu0 0
  %937 = vmatprep.subr.bf16.mxu0 0
  %938 = vmatpush1.bf16.msra.mxu0 0
  %939 = vmatprep.subr.bf16.mxu0 0
  %940 = vmatpush1.bf16.msra.mxu0 0
  %941 = vmatprep.subr.bf16.mxu0 0
  %942 = vmatpush1.bf16.msra.mxu0 0
  %943 = vmatprep.subr.bf16.mxu0 0
  %944 = vmatpush1.bf16.msra.mxu0 0
  %945 = vmatprep.subr.bf16.mxu0 0
  %946 = vmatpush1.bf16.msra.mxu0 0
  %947 = vmatprep.subr.bf16.mxu0 %v732
  %948 = vmatpush1.bf16.msra.mxu0 %v729
  %949 = vmatprep.subr.bf16.mxu0 %v713
  %950 = vmatpush1.bf16.msra.mxu0 %v712
  %951 = vmatprep.subr.bf16.mxu0 0
  %952 = vmatpush2.bf16.msra.mxu0 0
  %953 = vmatprep.subr.bf16.mxu0 0
  %954 = vmatpush2.bf16.msra.mxu0 0
  %955 = vmatprep.subr.bf16.mxu0 0
  %956 = vmatpush2.bf16.msra.mxu0 0
  %957 = vmatprep.subr.bf16.mxu0 0
  %958 = vmatpush2.bf16.msra.mxu0 0
  %959 = vmatprep.subr.bf16.mxu0 0
  %960 = vmatpush2.bf16.msra.mxu0 0
  %961 = vmatprep.subr.bf16.mxu0 0
  %962 = vmatpush2.bf16.msra.mxu0 0
  %963 = vmatprep.subr.bf16.mxu0 0
  %964 = vmatpush2.bf16.msra.mxu0 0
  %965 = vmatprep.subr.bf16.mxu0 0
  %966 = vmatpush2.bf16.msra.mxu0 0
  %967 = vmatprep.mubr.bf16.mxu0 0
  %968 = vmatmul.mubr.bf16.gmra.mxu0 %v216
  %v969 = vpop.f32.mrf.mxu0
  %v970 = vadd.f32 0.0, %v969
  %v971 = vpop.f32.mrf.mxu0
  %v972 = vadd.f32 0.0, %v971
  %v973 = vpop.f32.mrf.mxu0
  %v974 = vadd.f32 0.0, %v973
  %v975 = vpop.f32.mrf.mxu0
  %v976 = vadd.f32 0.0, %v975
  %977 = vmatprep.mubr.bf16.mxu0 0
  %978 = vmatmul.mubr.bf16.gmra.mxu0 %v219
  %v979 = vpop.f32.mrf.mxu0
  %v980 = vadd.f32 0.0, %v979
  %v981 = vpop.f32.mrf.mxu0
  %v982 = vadd.f32 0.0, %v981
  %v983 = vpop.f32.mrf.mxu0
  %v984 = vadd.f32 0.0, %v983
  %v985 = vpop.f32.mrf.mxu0
  %v986 = vadd.f32 0.0, %v985
  %987 = vmatprep.mubr.bf16.mxu0 0
  %988 = vmatmul.mubr.bf16.gmra.mxu0 %v222
  %v989 = vpop.f32.mrf.mxu0
  %v990 = vadd.f32 0.0, %v989
  %v991 = vpop.f32.mrf.mxu0
  %v992 = vadd.f32 0.0, %v991
  %v993 = vpop.f32.mrf.mxu0
  %v994 = vadd.f32 0.0, %v993
  %v995 = vpop.f32.mrf.mxu0
  %v996 = vadd.f32 0.0, %v995
  %997 = vmatprep.mubr.bf16.mxu0 0
  %998 = vmatmul.mubr.bf16.gmra.mxu0 %v225
  %v999 = vpop.f32.mrf.mxu0
  %v1000 = vadd.f32 0.0, %v999
  %v1001 = vpop.f32.mrf.mxu0
  %v1002 = vadd.f32 0.0, %v1001
  %v1003 = vpop.f32.mrf.mxu0
  %v1004 = vadd.f32 0.0, %v1003
  %v1005 = vpop.f32.mrf.mxu0
  %v1006 = vadd.f32 0.0, %v1005
  %1007 = vmatprep.mubr.bf16.mxu0 0
  %1008 = vmatmul.mubr.bf16.gmra.mxu0 %v228
  %v1009 = vpop.f32.mrf.mxu0
  %v1010 = vadd.f32 0.0, %v1009
  %v1011 = vpop.f32.mrf.mxu0
  %v1012 = vadd.f32 0.0, %v1011
  %v1013 = vpop.f32.mrf.mxu0
  %v1014 = vadd.f32 0.0, %v1013
  %v1015 = vpop.f32.mrf.mxu0
  %v1016 = vadd.f32 0.0, %v1015
  %1017 = vmatprep.mubr.bf16.mxu0 0
  %1018 = vmatmul.mubr.bf16.gmra.mxu0 %v231
  %v1019 = vpop.f32.mrf.mxu0
  %v1020 = vadd.f32 0.0, %v1019
  %v1021 = vpop.f32.mrf.mxu0
  %v1022 = vadd.f32 0.0, %v1021
  %v1023 = vpop.f32.mrf.mxu0
  %v1024 = vadd.f32 0.0, %v1023
  %v1025 = vpop.f32.mrf.mxu0
  %v1026 = vadd.f32 0.0, %v1025
  %1027 = vmatprep.mubr.bf16.mxu0 0
  %1028 = vmatmul.mubr.bf16.gmra.mxu0 %v234
  %v1029 = vpop.f32.mrf.mxu0
  %v1030 = vadd.f32 0.0, %v1029
  %v1031 = vpop.f32.mrf.mxu0
  %v1032 = vadd.f32 0.0, %v1031
  %v1033 = vpop.f32.mrf.mxu0
  %v1034 = vadd.f32 0.0, %v1033
  %v1035 = vpop.f32.mrf.mxu0
  %v1036 = vadd.f32 0.0, %v1035
  %1037 = vmatprep.mubr.bf16.mxu0 0
  %1038 = vmatmul.mubr.bf16.gmra.mxu0 %v237
  %v1039 = vpop.f32.mrf.mxu0
  %v1040 = vadd.f32 0.0, %v1039
  %v1041 = vpop.f32.mrf.mxu0
  %v1042 = vadd.f32 0.0, %v1041
  %v1043 = vpop.f32.mrf.mxu0
  %v1044 = vadd.f32 0.0, %v1043
  %v1045 = vpop.f32.mrf.mxu0
  %v1046 = vadd.f32 0.0, %v1045
  %1047 = vmatprep.mubr.bf16.mxu0 0
  %1048 = vmatmul.mubr.bf16.gmra.mxu0 %v240
  %v1049 = vpop.f32.mrf.mxu0
  %v1050 = vadd.f32 0.0, %v1049
  %v1051 = vpop.f32.mrf.mxu0
  %v1052 = vadd.f32 0.0, %v1051
  %v1053 = vpop.f32.mrf.mxu0
  %v1054 = vadd.f32 0.0, %v1053
  %v1055 = vpop.f32.mrf.mxu0
  %v1056 = vadd.f32 0.0, %v1055
  %1057 = vmatprep.mubr.bf16.mxu0 0
  %1058 = vmatmul.mubr.bf16.gmra.mxu0 %v243
  %v1059 = vpop.f32.mrf.mxu0
  %v1060 = vadd.f32 0.0, %v1059
  %v1061 = vpop.f32.mrf.mxu0
  %v1062 = vadd.f32 0.0, %v1061
  %v1063 = vpop.f32.mrf.mxu0
  %v1064 = vadd.f32 0.0, %v1063
  %v1065 = vpop.f32.mrf.mxu0
  %v1066 = vadd.f32 0.0, %v1065
  %1067 = vmatprep.mubr.bf16.mxu0 0
  %1068 = vmatmul.mubr.bf16.gmra.mxu0 %v246
  %v1069 = vpop.f32.mrf.mxu0
  %v1070 = vadd.f32 0.0, %v1069
  %v1071 = vpop.f32.mrf.mxu0
  %v1072 = vadd.f32 0.0, %v1071
  %v1073 = vpop.f32.mrf.mxu0
  %v1074 = vadd.f32 0.0, %v1073
  %v1075 = vpop.f32.mrf.mxu0
  %v1076 = vadd.f32 0.0, %v1075
  %1077 = vmatprep.mubr.bf16.mxu0 0
  %1078 = vmatmul.mubr.bf16.gmra.mxu0 %v249
  %v1079 = vpop.f32.mrf.mxu0
  %v1080 = vadd.f32 0.0, %v1079
  %v1081 = vpop.f32.mrf.mxu0
  %v1082 = vadd.f32 0.0, %v1081
  %v1083 = vpop.f32.mrf.mxu0
  %v1084 = vadd.f32 0.0, %v1083
  %v1085 = vpop.f32.mrf.mxu0
  %v1086 = vadd.f32 0.0, %v1085
  %1087 = vmatprep.mubr.bf16.mxu0 0
  %1088 = vmatmul.mubr.bf16.gmra.mxu0 %v252
  %v1089 = vpop.f32.mrf.mxu0
  %v1090 = vadd.f32 0.0, %v1089
  %v1091 = vpop.f32.mrf.mxu0
  %v1092 = vadd.f32 0.0, %v1091
  %v1093 = vpop.f32.mrf.mxu0
  %v1094 = vadd.f32 0.0, %v1093
  %v1095 = vpop.f32.mrf.mxu0
  %v1096 = vadd.f32 0.0, %v1095
  %1097 = vmatprep.mubr.bf16.mxu0 0
  %1098 = vmatmul.mubr.bf16.gmra.mxu0 %v255
  %v1099 = vpop.f32.mrf.mxu0
  %v1100 = vadd.f32 0.0, %v1099
  %v1101 = vpop.f32.mrf.mxu0
  %v1102 = vadd.f32 0.0, %v1101
  %v1103 = vpop.f32.mrf.mxu0
  %v1104 = vadd.f32 0.0, %v1103
  %v1105 = vpop.f32.mrf.mxu0
  %v1106 = vadd.f32 0.0, %v1105
  %1107 = vmatprep.mubr.bf16.mxu0 0
  %1108 = vmatmul.mubr.bf16.gmra.mxu0 %v258
  %v1109 = vpop.f32.mrf.mxu0
  %v1110 = vadd.f32 0.0, %v1109
  %v1111 = vpop.f32.mrf.mxu0
  %v1112 = vadd.f32 0.0, %v1111
  %v1113 = vpop.f32.mrf.mxu0
  %v1114 = vadd.f32 0.0, %v1113
  %v1115 = vpop.f32.mrf.mxu0
  %v1116 = vadd.f32 0.0, %v1115
  %1117 = vmatprep.mubr.bf16.mxu0 0
  %1118 = vmatmul.mubr.bf16.gmra.mxu0 %v261
  %v1119 = vpop.f32.mrf.mxu0
  %v1120 = vadd.f32 0.0, %v1119
  %v1121 = vpop.f32.mrf.mxu0
  %v1122 = vadd.f32 0.0, %v1121
  %v1123 = vpop.f32.mrf.mxu0
  %v1124 = vadd.f32 0.0, %v1123
  %v1125 = vpop.f32.mrf.mxu0
  %v1126 = vadd.f32 0.0, %v1125
  %1127 = vmatprep.mubr.bf16.mxu0 0
  %1128 = vmatmul.mubr.bf16.gmra.mxu0 %v264
  %v1129 = vpop.f32.mrf.mxu0
  %v1130 = vadd.f32 0.0, %v1129
  %v1131 = vpop.f32.mrf.mxu0
  %v1132 = vadd.f32 0.0, %v1131
  %v1133 = vpop.f32.mrf.mxu0
  %v1134 = vpop.f32.mrf.mxu0
  %1135 = vdwg.mxu0
  %s1136 = scalar_lea.vmem %s1, 128
  %v1137 = vld [vmem:[%s1136] sm:$0xff]
  %v1138 = vld [vmem:[%s1136 + $0x8] sm:$0xff]
  %v1139 = vld [vmem:[%s1136 + $0x10] sm:$0xff]
  %v1140 = vld [vmem:[%s1136 + $0x18] sm:$0xff]
  %v1141 = vld [vmem:[%s1136 + $0x20] sm:$0xff]
  %v1142 = vld [vmem:[%s1136 + $0x28] sm:$0xff]
  %v1143 = vld [vmem:[%s1136 + $0x30] sm:$0x77]
  %v1144 = vld [vmem:[%s1136 + $0x38] sm:$0x77]
  %v1153 = vunpack.c.l.b16 %v1137
  %v1154 = vunpack.c.h.b16 %v1137
  %v1155 = vunpack.c.l.b16 %v1138
  %v1156 = vunpack.c.h.b16 %v1138
  %v1157 = vunpack.c.l.b16 %v1139
  %v1158 = vunpack.c.h.b16 %v1139
  %v1159 = vunpack.c.l.b16 %v1140
  %v1160 = vunpack.c.h.b16 %v1140
  %v1161 = vunpack.c.l.b16 %v1141
  %v1162 = vunpack.c.h.b16 %v1141
  %v1163 = vunpack.c.l.b16 %v1142
  %v1164 = vunpack.c.h.b16 %v1142
  %v1165 = vunpack.c.l.b16 %v1143
  %v1166 = vunpack.c.h.b16 %v1143
  %v1167 = vunpack.c.l.b16 %v1144
  %v1168 = vunpack.c.h.b16 %v1144
  %v1169 = vpack.c.b16 %v1157, %v1153
  %v1170 = vpack.c.b16 %v1158, %v1154
  %v1171 = vpack.c.b16 %v1159, %v1155
  %v1172 = vpack.c.b16 %v1160, %v1156
  %v1173 = vpack.c.b16 %v1165, %v1161
  %v1174 = vpack.c.b16 %v1166, %v1162
  %v1175 = vpack.c.b16 %v1167, %v1163
  %v1176 = vpack.c.b16 %v1168, %v1164
  %v1182 = vsel %vm266, %v1173, 0
  %v1185 = vsel %vm266, %v1174, 0
  %v1188 = vsel %vm266, %v1175, 0
  %v1191 = vsel %vm266, %v1176, 0
  %1193 = vmatprep.subr.bf16.mxu0 0
  %1194 = vmatpush1.bf16.msra.mxu0 0
  %1195 = vmatprep.subr.bf16.mxu0 0
  %1196 = vmatpush1.bf16.msra.mxu0 0
  %1197 = vmatprep.subr.bf16.mxu0 0
  %1198 = vmatpush1.bf16.msra.mxu0 0
  %1199 = vmatprep.subr.bf16.mxu0 0
  %1200 = vmatpush1.bf16.msra.mxu0 0
  %1201 = vmatprep.subr.bf16.mxu0 0
  %1202 = vmatpush1.bf16.msra.mxu0 0
  %1203 = vmatprep.subr.bf16.mxu0 0
  %1204 = vmatpush1.bf16.msra.mxu0 0
  %1205 = vmatprep.subr.bf16.mxu0 %v1185
  %1206 = vmatpush1.bf16.msra.mxu0 %v1182
  %1207 = vmatprep.subr.bf16.mxu0 %v1170
  %1208 = vmatpush1.bf16.msra.mxu0 %v1169
  %1209 = vmatprep.subr.bf16.mxu0 0
  %1210 = vmatpush2.bf16.msra.mxu0 0
  %1211 = vmatprep.subr.bf16.mxu0 0
  %1212 = vmatpush2.bf16.msra.mxu0 0
  %1213 = vmatprep.subr.bf16.mxu0 0
  %1214 = vmatpush2.bf16.msra.mxu0 0
  %1215 = vmatprep.subr.bf16.mxu0 0
  %1216 = vmatpush2.bf16.msra.mxu0 0
  %1217 = vmatprep.subr.bf16.mxu0 0
  %1218 = vmatpush2.bf16.msra.mxu0 0
  %1219 = vmatprep.subr.bf16.mxu0 0
  %1220 = vmatpush2.bf16.msra.mxu0 0
  %1221 = vmatprep.subr.bf16.mxu0 0
  %1222 = vmatpush2.bf16.msra.mxu0 0
  %1223 = vmatprep.subr.bf16.mxu0 0
  %1224 = vmatpush2.bf16.msra.mxu0 0
  %1225 = vmatprep.mubr.bf16.mxu0 0
  %1226 = vmatmul.mubr.bf16.gmra.mxu0 %v216
  %v1227 = vpop.f32.mrf.mxu0
  %v1228 = vadd.f32 0.0, %v1227
  %v1229 = vpop.f32.mrf.mxu0
  %v1230 = vadd.f32 0.0, %v1229
  %v1231 = vpop.f32.mrf.mxu0
  %v1232 = vadd.f32 0.0, %v1231
  %v1233 = vpop.f32.mrf.mxu0
  %v1234 = vadd.f32 0.0, %v1233
  %1235 = vmatprep.mubr.bf16.mxu0 0
  %1236 = vmatmul.mubr.bf16.gmra.mxu0 %v219
  %v1237 = vpop.f32.mrf.mxu0
  %v1238 = vadd.f32 0.0, %v1237
  %v1239 = vpop.f32.mrf.mxu0
  %v1240 = vadd.f32 0.0, %v1239
  %v1241 = vpop.f32.mrf.mxu0
  %v1242 = vadd.f32 0.0, %v1241
  %v1243 = vpop.f32.mrf.mxu0
  %v1244 = vadd.f32 0.0, %v1243
  %1245 = vmatprep.mubr.bf16.mxu0 0
  %1246 = vmatmul.mubr.bf16.gmra.mxu0 %v222
  %v1247 = vpop.f32.mrf.mxu0
  %v1248 = vadd.f32 0.0, %v1247
  %v1249 = vpop.f32.mrf.mxu0
  %v1250 = vadd.f32 0.0, %v1249
  %v1251 = vpop.f32.mrf.mxu0
  %v1252 = vadd.f32 0.0, %v1251
  %v1253 = vpop.f32.mrf.mxu0
  %v1254 = vadd.f32 0.0, %v1253
  %1255 = vmatprep.mubr.bf16.mxu0 0
  %1256 = vmatmul.mubr.bf16.gmra.mxu0 %v225
  %v1257 = vpop.f32.mrf.mxu0
  %v1258 = vadd.f32 0.0, %v1257
  %v1259 = vpop.f32.mrf.mxu0
  %v1260 = vadd.f32 0.0, %v1259
  %v1261 = vpop.f32.mrf.mxu0
  %v1262 = vadd.f32 0.0, %v1261
  %v1263 = vpop.f32.mrf.mxu0
  %v1264 = vadd.f32 0.0, %v1263
  %1265 = vmatprep.mubr.bf16.mxu0 0
  %1266 = vmatmul.mubr.bf16.gmra.mxu0 %v228
  %v1267 = vpop.f32.mrf.mxu0
  %v1268 = vadd.f32 0.0, %v1267
  %v1269 = vpop.f32.mrf.mxu0
  %v1270 = vadd.f32 0.0, %v1269
  %v1271 = vpop.f32.mrf.mxu0
  %v1272 = vadd.f32 0.0, %v1271
  %v1273 = vpop.f32.mrf.mxu0
  %v1274 = vadd.f32 0.0, %v1273
  %1275 = vmatprep.mubr.bf16.mxu0 0
  %1276 = vmatmul.mubr.bf16.gmra.mxu0 %v231
  %v1277 = vpop.f32.mrf.mxu0
  %v1278 = vadd.f32 0.0, %v1277
  %v1279 = vpop.f32.mrf.mxu0
  %v1280 = vadd.f32 0.0, %v1279
  %v1281 = vpop.f32.mrf.mxu0
  %v1282 = vadd.f32 0.0, %v1281
  %v1283 = vpop.f32.mrf.mxu0
  %v1284 = vadd.f32 0.0, %v1283
  %1285 = vmatprep.mubr.bf16.mxu0 0
  %1286 = vmatmul.mubr.bf16.gmra.mxu0 %v234
  %v1287 = vpop.f32.mrf.mxu0
  %v1288 = vadd.f32 0.0, %v1287
  %v1289 = vpop.f32.mrf.mxu0
  %v1290 = vadd.f32 0.0, %v1289
  %v1291 = vpop.f32.mrf.mxu0
  %v1292 = vadd.f32 0.0, %v1291
  %v1293 = vpop.f32.mrf.mxu0
  %v1294 = vadd.f32 0.0, %v1293
  %1295 = vmatprep.mubr.bf16.mxu0 0
  %1296 = vmatmul.mubr.bf16.gmra.mxu0 %v237
  %v1297 = vpop.f32.mrf.mxu0
  %v1298 = vadd.f32 0.0, %v1297
  %v1299 = vpop.f32.mrf.mxu0
  %v1300 = vadd.f32 0.0, %v1299
  %v1301 = vpop.f32.mrf.mxu0
  %v1302 = vadd.f32 0.0, %v1301
  %v1303 = vpop.f32.mrf.mxu0
  %v1304 = vadd.f32 0.0, %v1303
  %1305 = vmatprep.mubr.bf16.mxu0 0
  %1306 = vmatmul.mubr.bf16.gmra.mxu0 %v240
  %v1307 = vpop.f32.mrf.mxu0
  %v1308 = vadd.f32 0.0, %v1307
  %v1309 = vpop.f32.mrf.mxu0
  %v1310 = vadd.f32 0.0, %v1309
  %v1311 = vpop.f32.mrf.mxu0
  %v1312 = vadd.f32 0.0, %v1311
  %v1313 = vpop.f32.mrf.mxu0
  %v1314 = vadd.f32 0.0, %v1313
  %1315 = vmatprep.mubr.bf16.mxu0 0
  %1316 = vmatmul.mubr.bf16.gmra.mxu0 %v243
  %v1317 = vpop.f32.mrf.mxu0
  %v1318 = vadd.f32 0.0, %v1317
  %v1319 = vpop.f32.mrf.mxu0
  %v1320 = vadd.f32 0.0, %v1319
  %v1321 = vpop.f32.mrf.mxu0
  %v1322 = vadd.f32 0.0, %v1321
  %v1323 = vpop.f32.mrf.mxu0
  %v1324 = vadd.f32 0.0, %v1323
  %1325 = vmatprep.mubr.bf16.mxu0 0
  %1326 = vmatmul.mubr.bf16.gmra.mxu0 %v246
  %v1327 = vpop.f32.mrf.mxu0
  %v1328 = vadd.f32 0.0, %v1327
  %v1329 = vpop.f32.mrf.mxu0
  %v1330 = vadd.f32 0.0, %v1329
  %v1331 = vpop.f32.mrf.mxu0
  %v1332 = vadd.f32 0.0, %v1331
  %v1333 = vpop.f32.mrf.mxu0
  %v1334 = vadd.f32 0.0, %v1333
  %1335 = vmatprep.mubr.bf16.mxu0 0
  %1336 = vmatmul.mubr.bf16.gmra.mxu0 %v249
  %v1337 = vpop.f32.mrf.mxu0
  %v1338 = vadd.f32 0.0, %v1337
  %v1339 = vpop.f32.mrf.mxu0
  %v1340 = vadd.f32 0.0, %v1339
  %v1341 = vpop.f32.mrf.mxu0
  %v1342 = vadd.f32 0.0, %v1341
  %v1343 = vpop.f32.mrf.mxu0
  %v1344 = vadd.f32 0.0, %v1343
  %1345 = vmatprep.mubr.bf16.mxu0 0
  %1346 = vmatmul.mubr.bf16.gmra.mxu0 %v252
  %v1347 = vpop.f32.mrf.mxu0
  %v1348 = vadd.f32 0.0, %v1347
  %v1349 = vpop.f32.mrf.mxu0
  %v1350 = vadd.f32 0.0, %v1349
  %v1351 = vpop.f32.mrf.mxu0
  %v1352 = vadd.f32 0.0, %v1351
  %v1353 = vpop.f32.mrf.mxu0
  %v1354 = vadd.f32 0.0, %v1353
  %1355 = vmatprep.mubr.bf16.mxu0 0
  %1356 = vmatmul.mubr.bf16.gmra.mxu0 %v255
  %v1357 = vpop.f32.mrf.mxu0
  %v1358 = vadd.f32 0.0, %v1357
  %v1359 = vpop.f32.mrf.mxu0
  %v1360 = vadd.f32 0.0, %v1359
  %v1361 = vpop.f32.mrf.mxu0
  %v1362 = vadd.f32 0.0, %v1361
  %v1363 = vpop.f32.mrf.mxu0
  %v1364 = vadd.f32 0.0, %v1363
  %1365 = vmatprep.mubr.bf16.mxu0 0
  %1366 = vmatmul.mubr.bf16.gmra.mxu0 %v258
  %v1367 = vpop.f32.mrf.mxu0
  %v1368 = vadd.f32 0.0, %v1367
  %v1369 = vpop.f32.mrf.mxu0
  %v1370 = vadd.f32 0.0, %v1369
  %v1371 = vpop.f32.mrf.mxu0
  %v1372 = vadd.f32 0.0, %v1371
  %v1373 = vpop.f32.mrf.mxu0
  %v1374 = vadd.f32 0.0, %v1373
  %1375 = vmatprep.mubr.bf16.mxu0 0
  %1376 = vmatmul.mubr.bf16.gmra.mxu0 %v261
  %v1377 = vpop.f32.mrf.mxu0
  %v1378 = vadd.f32 0.0, %v1377
  %v1379 = vpop.f32.mrf.mxu0
  %v1380 = vadd.f32 0.0, %v1379
  %v1381 = vpop.f32.mrf.mxu0
  %v1382 = vadd.f32 0.0, %v1381
  %v1383 = vpop.f32.mrf.mxu0
  %v1384 = vadd.f32 0.0, %v1383
  %1385 = vmatprep.mubr.bf16.mxu0 0
  %1386 = vmatmul.mubr.bf16.gmra.mxu0 %v264
  %v1387 = vpop.f32.mrf.mxu0
  %v1388 = vadd.f32 0.0, %v1387
  %v1389 = vpop.f32.mrf.mxu0
  %v1390 = vadd.f32 0.0, %v1389
  %v1391 = vpop.f32.mrf.mxu0
  %v1392 = vpop.f32.mrf.mxu0
  %1393 = vdwg.mxu0
  %1394 = vmatprep.subr.bf16.mxu0 0
  %1395 = vmatpush1.bf16.msra.mxu0 0
  %1396 = vmatprep.subr.bf16.mxu0 0
  %1397 = vmatpush1.bf16.msra.mxu0 0
  %1398 = vmatprep.subr.bf16.mxu0 0
  %1399 = vmatpush1.bf16.msra.mxu0 0
  %1400 = vmatprep.subr.bf16.mxu0 0
  %1401 = vmatpush1.bf16.msra.mxu0 0
  %1402 = vmatprep.subr.bf16.mxu0 0
  %1403 = vmatpush1.bf16.msra.mxu0 0
  %1404 = vmatprep.subr.bf16.mxu0 0
  %1405 = vmatpush1.bf16.msra.mxu0 0
  %1406 = vmatprep.subr.bf16.mxu0 %v1191
  %1407 = vmatpush1.bf16.msra.mxu0 %v1188
  %1408 = vmatprep.subr.bf16.mxu0 %v1172
  %1409 = vmatpush1.bf16.msra.mxu0 %v1171
  %1410 = vmatprep.subr.bf16.mxu0 0
  %1411 = vmatpush2.bf16.msra.mxu0 0
  %1412 = vmatprep.subr.bf16.mxu0 0
  %1413 = vmatpush2.bf16.msra.mxu0 0
  %1414 = vmatprep.subr.bf16.mxu0 0
  %1415 = vmatpush2.bf16.msra.mxu0 0
  %1416 = vmatprep.subr.bf16.mxu0 0
  %1417 = vmatpush2.bf16.msra.mxu0 0
  %1418 = vmatprep.subr.bf16.mxu0 0
  %1419 = vmatpush2.bf16.msra.mxu0 0
  %1420 = vmatprep.subr.bf16.mxu0 0
  %1421 = vmatpush2.bf16.msra.mxu0 0
  %1422 = vmatprep.subr.bf16.mxu0 0
  %1423 = vmatpush2.bf16.msra.mxu0 0
  %1424 = vmatprep.subr.bf16.mxu0 0
  %1425 = vmatpush2.bf16.msra.mxu0 0
  %1426 = vmatprep.mubr.bf16.mxu0 0
  %1427 = vmatmul.mubr.bf16.gmra.mxu0 %v216
  %v1428 = vpop.f32.mrf.mxu0
  %v1429 = vadd.f32 0.0, %v1428
  %v1430 = vpop.f32.mrf.mxu0
  %v1431 = vadd.f32 0.0, %v1430
  %v1432 = vpop.f32.mrf.mxu0
  %v1433 = vadd.f32 0.0, %v1432
  %v1434 = vpop.f32.mrf.mxu0
  %v1435 = vadd.f32 0.0, %v1434
  %1436 = vmatprep.mubr.bf16.mxu0 0
  %1437 = vmatmul.mubr.bf16.gmra.mxu0 %v219
  %v1438 = vpop.f32.mrf.mxu0
  %v1439 = vadd.f32 0.0, %v1438
  %v1440 = vpop.f32.mrf.mxu0
  %v1441 = vadd.f32 0.0, %v1440
  %v1442 = vpop.f32.mrf.mxu0
  %v1443 = vadd.f32 0.0, %v1442
  %v1444 = vpop.f32.mrf.mxu0
  %v1445 = vadd.f32 0.0, %v1444
  %1446 = vmatprep.mubr.bf16.mxu0 0
  %1447 = vmatmul.mubr.bf16.gmra.mxu0 %v222
  %v1448 = vpop.f32.mrf.mxu0
  %v1449 = vadd.f32 0.0, %v1448
  %v1450 = vpop.f32.mrf.mxu0
  %v1451 = vadd.f32 0.0, %v1450
  %v1452 = vpop.f32.mrf.mxu0
  %v1453 = vadd.f32 0.0, %v1452
  %v1454 = vpop.f32.mrf.mxu0
  %v1455 = vadd.f32 0.0, %v1454
  %1456 = vmatprep.mubr.bf16.mxu0 0
  %1457 = vmatmul.mubr.bf16.gmra.mxu0 %v225
  %v1458 = vpop.f32.mrf.mxu0
  %v1459 = vadd.f32 0.0, %v1458
  %v1460 = vpop.f32.mrf.mxu0
  %v1461 = vadd.f32 0.0, %v1460
  %v1462 = vpop.f32.mrf.mxu0
  %v1463 = vadd.f32 0.0, %v1462
  %v1464 = vpop.f32.mrf.mxu0
  %v1465 = vadd.f32 0.0, %v1464
  %1466 = vmatprep.mubr.bf16.mxu0 0
  %1467 = vmatmul.mubr.bf16.gmra.mxu0 %v228
  %v1468 = vpop.f32.mrf.mxu0
  %v1469 = vadd.f32 0.0, %v1468
  %v1470 = vpop.f32.mrf.mxu0
  %v1471 = vadd.f32 0.0, %v1470
  %v1472 = vpop.f32.mrf.mxu0
  %v1473 = vadd.f32 0.0, %v1472
  %v1474 = vpop.f32.mrf.mxu0
  %v1475 = vadd.f32 0.0, %v1474
  %1476 = vmatprep.mubr.bf16.mxu0 0
  %1477 = vmatmul.mubr.bf16.gmra.mxu0 %v231
  %v1478 = vpop.f32.mrf.mxu0
  %v1479 = vadd.f32 0.0, %v1478
  %v1480 = vpop.f32.mrf.mxu0
  %v1481 = vadd.f32 0.0, %v1480
  %v1482 = vpop.f32.mrf.mxu0
  %v1483 = vadd.f32 0.0, %v1482
  %v1484 = vpop.f32.mrf.mxu0
  %v1485 = vadd.f32 0.0, %v1484
  %1486 = vmatprep.mubr.bf16.mxu0 0
  %1487 = vmatmul.mubr.bf16.gmra.mxu0 %v234
  %v1488 = vpop.f32.mrf.mxu0
  %v1489 = vadd.f32 0.0, %v1488
  %v1490 = vpop.f32.mrf.mxu0
  %v1491 = vadd.f32 0.0, %v1490
  %v1492 = vpop.f32.mrf.mxu0
  %v1493 = vadd.f32 0.0, %v1492
  %v1494 = vpop.f32.mrf.mxu0
  %v1495 = vadd.f32 0.0, %v1494
  %1496 = vmatprep.mubr.bf16.mxu0 0
  %1497 = vmatmul.mubr.bf16.gmra.mxu0 %v237
  %v1498 = vpop.f32.mrf.mxu0
  %v1499 = vadd.f32 0.0, %v1498
  %v1500 = vpop.f32.mrf.mxu0
  %v1501 = vadd.f32 0.0, %v1500
  %v1502 = vpop.f32.mrf.mxu0
  %v1503 = vadd.f32 0.0, %v1502
  %v1504 = vpop.f32.mrf.mxu0
  %v1505 = vadd.f32 0.0, %v1504
  %1506 = vmatprep.mubr.bf16.mxu0 0
  %1507 = vmatmul.mubr.bf16.gmra.mxu0 %v240
  %v1508 = vpop.f32.mrf.mxu0
  %v1509 = vadd.f32 0.0, %v1508
  %v1510 = vpop.f32.mrf.mxu0
  %v1511 = vadd.f32 0.0, %v1510
  %v1512 = vpop.f32.mrf.mxu0
  %v1513 = vadd.f32 0.0, %v1512
  %v1514 = vpop.f32.mrf.mxu0
  %v1515 = vadd.f32 0.0, %v1514
  %1516 = vmatprep.mubr.bf16.mxu0 0
  %1517 = vmatmul.mubr.bf16.gmra.mxu0 %v243
  %v1518 = vpop.f32.mrf.mxu0
  %v1519 = vadd.f32 0.0, %v1518
  %v1520 = vpop.f32.mrf.mxu0
  %v1521 = vadd.f32 0.0, %v1520
  %v1522 = vpop.f32.mrf.mxu0
  %v1523 = vadd.f32 0.0, %v1522
  %v1524 = vpop.f32.mrf.mxu0
  %v1525 = vadd.f32 0.0, %v1524
  %1526 = vmatprep.mubr.bf16.mxu0 0
  %1527 = vmatmul.mubr.bf16.gmra.mxu0 %v246
  %v1528 = vpop.f32.mrf.mxu0
  %v1529 = vadd.f32 0.0, %v1528
  %v1530 = vpop.f32.mrf.mxu0
  %v1531 = vadd.f32 0.0, %v1530
  %v1532 = vpop.f32.mrf.mxu0
  %v1533 = vadd.f32 0.0, %v1532
  %v1534 = vpop.f32.mrf.mxu0
  %v1535 = vadd.f32 0.0, %v1534
  %1536 = vmatprep.mubr.bf16.mxu0 0
  %1537 = vmatmul.mubr.bf16.gmra.mxu0 %v249
  %v1538 = vpop.f32.mrf.mxu0
  %v1539 = vadd.f32 0.0, %v1538
  %v1540 = vpop.f32.mrf.mxu0
  %v1541 = vadd.f32 0.0, %v1540
  %v1542 = vpop.f32.mrf.mxu0
  %v1543 = vadd.f32 0.0, %v1542
  %v1544 = vpop.f32.mrf.mxu0
  %v1545 = vadd.f32 0.0, %v1544
  %1546 = vmatprep.mubr.bf16.mxu0 0
  %1547 = vmatmul.mubr.bf16.gmra.mxu0 %v252
  %v1548 = vpop.f32.mrf.mxu0
  %v1549 = vadd.f32 0.0, %v1548
  %v1550 = vpop.f32.mrf.mxu0
  %v1551 = vadd.f32 0.0, %v1550
  %v1552 = vpop.f32.mrf.mxu0
  %v1553 = vadd.f32 0.0, %v1552
  %v1554 = vpop.f32.mrf.mxu0
  %v1555 = vadd.f32 0.0, %v1554
  %1556 = vmatprep.mubr.bf16.mxu0 0
  %1557 = vmatmul.mubr.bf16.gmra.mxu0 %v255
  %v1558 = vpop.f32.mrf.mxu0
  %v1559 = vadd.f32 0.0, %v1558
  %v1560 = vpop.f32.mrf.mxu0
  %v1561 = vadd.f32 0.0, %v1560
  %v1562 = vpop.f32.mrf.mxu0
  %v1563 = vadd.f32 0.0, %v1562
  %v1564 = vpop.f32.mrf.mxu0
  %v1565 = vadd.f32 0.0, %v1564
  %1566 = vmatprep.mubr.bf16.mxu0 0
  %1567 = vmatmul.mubr.bf16.gmra.mxu0 %v258
  %v1568 = vpop.f32.mrf.mxu0
  %v1569 = vadd.f32 0.0, %v1568
  %v1570 = vpop.f32.mrf.mxu0
  %v1571 = vadd.f32 0.0, %v1570
  %v1572 = vpop.f32.mrf.mxu0
  %v1573 = vadd.f32 0.0, %v1572
  %v1574 = vpop.f32.mrf.mxu0
  %v1575 = vadd.f32 0.0, %v1574
  %1576 = vmatprep.mubr.bf16.mxu0 0
  %1577 = vmatmul.mubr.bf16.gmra.mxu0 %v261
  %v1578 = vpop.f32.mrf.mxu0
  %v1579 = vadd.f32 0.0, %v1578
  %v1580 = vpop.f32.mrf.mxu0
  %v1581 = vadd.f32 0.0, %v1580
  %v1582 = vpop.f32.mrf.mxu0
  %v1583 = vadd.f32 0.0, %v1582
  %v1584 = vpop.f32.mrf.mxu0
  %v1585 = vadd.f32 0.0, %v1584
  %1586 = vmatprep.mubr.bf16.mxu0 0
  %1587 = vmatmul.mubr.bf16.gmra.mxu0 %v264
  %v1588 = vpop.f32.mrf.mxu0
  %v1589 = vadd.f32 0.0, %v1588
  %v1590 = vpop.f32.mrf.mxu0
  %v1591 = vadd.f32 0.0, %v1590
  %v1592 = vpop.f32.mrf.mxu0
  %v1593 = vpop.f32.mrf.mxu0
  %1594 = vdwg.mxu0
  %v1727 = vrot.slane %v769, 1
  %v1728 = vrot.slane %v773, 1
  %v1729 = vsel %vm266, %v1727, %v1728
  %v1730 = vrot.slane %v771, 1
  %v1731 = vrot.slane %v775, 1
  %v1732 = vsel %vm266, %v1730, %v1731
  %v1733 = vrot.slane %v970, 1
  %v1734 = vrot.slane %v974, 1
  %v1735 = vsel %vm266, %v1733, %v1734
  %v1736 = vrot.slane %v972, 1
  %v1737 = vrot.slane %v976, 1
  %v1738 = vsel %vm266, %v1736, %v1737
  %v1739 = vrot.slane %v779, 1
  %v1740 = vsel %vm266, %v1728, %v1739
  %v1741 = vrot.slane %v781, 1
  %v1742 = vsel %vm266, %v1731, %v1741
  %v1743 = vrot.slane %v980, 1
  %v1744 = vsel %vm266, %v1734, %v1743
  %v1745 = vrot.slane %v982, 1
  %v1746 = vsel %vm266, %v1737, %v1745
  %v1747 = vrot.slane %v783, 1
  %v1748 = vsel %vm266, %v1739, %v1747
  %v1749 = vrot.slane %v785, 1
  %v1750 = vsel %vm266, %v1741, %v1749
  %v1751 = vrot.slane %v984, 1
  %v1752 = vsel %vm266, %v1743, %v1751
  %v1753 = vrot.slane %v986, 1
  %v1754 = vsel %vm266, %v1745, %v1753
  %v1755 = vrot.slane %v789, 1
  %v1756 = vsel %vm266, %v1747, %v1755
  %v1757 = vrot.slane %v791, 1
  %v1758 = vsel %vm266, %v1749, %v1757
  %v1759 = vrot.slane %v990, 1
  %v1760 = vsel %vm266, %v1751, %v1759
  %v1761 = vrot.slane %v992, 1
  %v1762 = vsel %vm266, %v1753, %v1761
  %v1763 = vrot.slane %v793, 1
  %v1764 = vsel %vm266, %v1755, %v1763
  %v1765 = vrot.slane %v795, 1
  %v1766 = vsel %vm266, %v1757, %v1765
  %v1767 = vrot.slane %v994, 1
  %v1768 = vsel %vm266, %v1759, %v1767
  %v1769 = vrot.slane %v996, 1
  %v1770 = vsel %vm266, %v1761, %v1769
  %v1771 = vrot.slane %v799, 1
  %v1772 = vsel %vm266, %v1763, %v1771
  %v1773 = vrot.slane %v801, 1
  %v1774 = vsel %vm266, %v1765, %v1773
  %v1775 = vrot.slane %v1000, 1
  %v1776 = vsel %vm266, %v1767, %v1775
  %v1777 = vrot.slane %v1002, 1
  %v1778 = vsel %vm266, %v1769, %v1777
  %v1779 = vrot.slane %v803, 1
  %v1780 = vsel %vm266, %v1771, %v1779
  %v1781 = vrot.slane %v805, 1
  %v1782 = vsel %vm266, %v1773, %v1781
  %v1783 = vrot.slane %v1004, 1
  %v1784 = vsel %vm266, %v1775, %v1783
  %v1785 = vrot.slane %v1006, 1
  %v1786 = vsel %vm266, %v1777, %v1785
  %v1787 = vrot.slane %v809, 1
  %v1788 = vsel %vm266, %v1779, %v1787
  %v1789 = vrot.slane %v811, 1
  %v1790 = vsel %vm266, %v1781, %v1789
  %v1791 = vrot.slane %v1010, 1
  %v1792 = vsel %vm266, %v1783, %v1791
  %v1793 = vrot.slane %v1012, 1
  %v1794 = vsel %vm266, %v1785, %v1793
  %v1795 = vrot.slane %v813, 1
  %v1796 = vsel %vm266, %v1787, %v1795
  %v1797 = vrot.slane %v815, 1
  %v1798 = vsel %vm266, %v1789, %v1797
  %v1799 = vrot.slane %v1014, 1
  %v1800 = vsel %vm266, %v1791, %v1799
  %v1801 = vrot.slane %v1016, 1
  %v1802 = vsel %vm266, %v1793, %v1801
  %v1803 = vrot.slane %v819, 1
  %v1804 = vsel %vm266, %v1795, %v1803
  %v1805 = vrot.slane %v821, 1
  %v1806 = vsel %vm266, %v1797, %v1805
  %v1807 = vrot.slane %v1020, 1
  %v1808 = vsel %vm266, %v1799, %v1807
  %v1809 = vrot.slane %v1022, 1
  %v1810 = vsel %vm266, %v1801, %v1809
  %v1811 = vrot.slane %v823, 1
  %v1812 = vsel %vm266, %v1803, %v1811
  %v1813 = vrot.slane %v825, 1
  %v1814 = vsel %vm266, %v1805, %v1813
  %v1815 = vrot.slane %v1024, 1
  %v1816 = vsel %vm266, %v1807, %v1815
  %v1817 = vrot.slane %v1026, 1
  %v1818 = vsel %vm266, %v1809, %v1817
  %v1819 = vrot.slane %v829, 1
  %v1820 = vsel %vm266, %v1811, %v1819
  %v1821 = vrot.slane %v831, 1
  %v1822 = vsel %vm266, %v1813, %v1821
  %v1823 = vrot.slane %v1030, 1
  %v1824 = vsel %vm266, %v1815, %v1823
  %v1825 = vrot.slane %v1032, 1
  %v1826 = vsel %vm266, %v1817, %v1825
  %v1827 = vrot.slane %v833, 1
  %v1828 = vsel %vm266, %v1819, %v1827
  %v1829 = vrot.slane %v835, 1
  %v1830 = vsel %vm266, %v1821, %v1829
  %v1831 = vrot.slane %v1034, 1
  %v1832 = vsel %vm266, %v1823, %v1831
  %v1833 = vrot.slane %v1036, 1
  %v1834 = vsel %vm266, %v1825, %v1833
  %v1835 = vrot.slane %v839, 1
  %v1836 = vsel %vm266, %v1827, %v1835
  %v1837 = vrot.slane %v841, 1
  %v1838 = vsel %vm266, %v1829, %v1837
  %v1839 = vrot.slane %v1040, 1
  %v1840 = vsel %vm266, %v1831, %v1839
  %v1841 = vrot.slane %v1042, 1
  %v1842 = vsel %vm266, %v1833, %v1841
  %v1843 = vrot.slane %v843, 1
  %v1844 = vsel %vm266, %v1835, %v1843
  %v1845 = vrot.slane %v845, 1
  %v1846 = vsel %vm266, %v1837, %v1845
  %v1847 = vrot.slane %v1044, 1
  %v1848 = vsel %vm266, %v1839, %v1847
  %v1849 = vrot.slane %v1046, 1
  %v1850 = vsel %vm266, %v1841, %v1849
  %v1851 = vrot.slane %v849, 1
  %v1852 = vsel %vm266, %v1843, %v1851
  %v1853 = vrot.slane %v851, 1
  %v1854 = vsel %vm266, %v1845, %v1853
  %v1855 = vrot.slane %v1050, 1
  %v1856 = vsel %vm266, %v1847, %v1855
  %v1857 = vrot.slane %v1052, 1
  %v1858 = vsel %vm266, %v1849, %v1857
  %v1859 = vrot.slane %v853, 1
  %v1860 = vsel %vm266, %v1851, %v1859
  %v1861 = vrot.slane %v855, 1
  %v1862 = vsel %vm266, %v1853, %v1861
  %v1863 = vrot.slane %v1054, 1
  %v1864 = vsel %vm266, %v1855, %v1863
  %v1865 = vrot.slane %v1056, 1
  %v1866 = vsel %vm266, %v1857, %v1865
  %v1867 = vrot.slane %v859, 1
  %v1868 = vsel %vm266, %v1859, %v1867
  %v1869 = vrot.slane %v861, 1
  %v1870 = vsel %vm266, %v1861, %v1869
  %v1871 = vrot.slane %v1060, 1
  %v1872 = vsel %vm266, %v1863, %v1871
  %v1873 = vrot.slane %v1062, 1
  %v1874 = vsel %vm266, %v1865, %v1873
  %v1875 = vrot.slane %v863, 1
  %v1876 = vsel %vm266, %v1867, %v1875
  %v1877 = vrot.slane %v865, 1
  %v1878 = vsel %vm266, %v1869, %v1877
  %v1879 = vrot.slane %v1064, 1
  %v1880 = vsel %vm266, %v1871, %v1879
  %v1881 = vrot.slane %v1066, 1
  %v1882 = vsel %vm266, %v1873, %v1881
  %v1883 = vrot.slane %v869, 1
  %v1884 = vsel %vm266, %v1875, %v1883
  %v1885 = vrot.slane %v871, 1
  %v1886 = vsel %vm266, %v1877, %v1885
  %v1887 = vrot.slane %v1070, 1
  %v1888 = vsel %vm266, %v1879, %v1887
  %v1889 = vrot.slane %v1072, 1
  %v1890 = vsel %vm266, %v1881, %v1889
  %v1891 = vrot.slane %v873, 1
  %v1892 = vsel %vm266, %v1883, %v1891
  %v1893 = vrot.slane %v875, 1
  %v1894 = vsel %vm266, %v1885, %v1893
  %v1895 = vrot.slane %v1074, 1
  %v1896 = vsel %vm266, %v1887, %v1895
  %v1897 = vrot.slane %v1076, 1
  %v1898 = vsel %vm266, %v1889, %v1897
  %v1899 = vrot.slane %v879, 1
  %v1900 = vsel %vm266, %v1891, %v1899
  %v1901 = vrot.slane %v881, 1
  %v1902 = vsel %vm266, %v1893, %v1901
  %v1903 = vrot.slane %v1080, 1
  %v1904 = vsel %vm266, %v1895, %v1903
  %v1905 = vrot.slane %v1082, 1
  %v1906 = vsel %vm266, %v1897, %v1905
  %v1907 = vrot.slane %v883, 1
  %v1908 = vsel %vm266, %v1899, %v1907
  %v1909 = vrot.slane %v885, 1
  %v1910 = vsel %vm266, %v1901, %v1909
  %v1911 = vrot.slane %v1084, 1
  %v1912 = vsel %vm266, %v1903, %v1911
  %v1913 = vrot.slane %v1086, 1
  %v1914 = vsel %vm266, %v1905, %v1913
  %v1915 = vrot.slane %v889, 1
  %v1916 = vsel %vm266, %v1907, %v1915
  %v1917 = vrot.slane %v891, 1
  %v1918 = vsel %vm266, %v1909, %v1917
  %v1919 = vrot.slane %v1090, 1
  %v1920 = vsel %vm266, %v1911, %v1919
  %v1921 = vrot.slane %v1092, 1
  %v1922 = vsel %vm266, %v1913, %v1921
  %v1923 = vrot.slane %v893, 1
  %v1924 = vsel %vm266, %v1915, %v1923
  %v1925 = vrot.slane %v895, 1
  %v1926 = vsel %vm266, %v1917, %v1925
  %v1927 = vrot.slane %v1094, 1
  %v1928 = vsel %vm266, %v1919, %v1927
  %v1929 = vrot.slane %v1096, 1
  %v1930 = vsel %vm266, %v1921, %v1929
  %v1931 = vrot.slane %v899, 1
  %v1932 = vsel %vm266, %v1923, %v1931
  %v1933 = vrot.slane %v901, 1
  %v1934 = vsel %vm266, %v1925, %v1933
  %v1935 = vrot.slane %v1100, 1
  %v1936 = vsel %vm266, %v1927, %v1935
  %v1937 = vrot.slane %v1102, 1
  %v1938 = vsel %vm266, %v1929, %v1937
  %v1939 = vrot.slane %v903, 1
  %v1940 = vsel %vm266, %v1931, %v1939
  %v1941 = vrot.slane %v905, 1
  %v1942 = vsel %vm266, %v1933, %v1941
  %v1943 = vrot.slane %v1104, 1
  %v1944 = vsel %vm266, %v1935, %v1943
  %v1945 = vrot.slane %v1106, 1
  %v1946 = vsel %vm266, %v1937, %v1945
  %v1947 = vrot.slane %v909, 1
  %v1948 = vsel %vm266, %v1939, %v1947
  %v1949 = vrot.slane %v911, 1
  %v1950 = vsel %vm266, %v1941, %v1949
  %v1951 = vrot.slane %v1110, 1
  %v1952 = vsel %vm266, %v1943, %v1951
  %v1953 = vrot.slane %v1112, 1
  %v1954 = vsel %vm266, %v1945, %v1953
  %v1955 = vrot.slane %v913, 1
  %v1956 = vsel %vm266, %v1947, %v1955
  %v1957 = vrot.slane %v915, 1
  %v1958 = vsel %vm266, %v1949, %v1957
  %v1959 = vrot.slane %v1114, 1
  %v1960 = vsel %vm266, %v1951, %v1959
  %v1961 = vrot.slane %v1116, 1
  %v1962 = vsel %vm266, %v1953, %v1961
  %v1963 = vrot.slane %v919, 1
  %v1964 = vsel %vm266, %v1955, %v1963
  %v1965 = vrot.slane %v921, 1
  %v1966 = vsel %vm266, %v1957, %v1965
  %v1967 = vrot.slane %v1120, 1
  %v1968 = vsel %vm266, %v1959, %v1967
  %v1969 = vrot.slane %v1122, 1
  %v1970 = vsel %vm266, %v1961, %v1969
  %v1971 = vrot.slane %v923, 1
  %v1972 = vsel %vm266, %v1963, %v1971
  %v1973 = vrot.slane %v925, 1
  %v1974 = vsel %vm266, %v1965, %v1973
  %v1975 = vrot.slane %v1124, 1
  %v1976 = vsel %vm266, %v1967, %v1975
  %v1977 = vrot.slane %v1126, 1
  %v1978 = vsel %vm266, %v1969, %v1977
  %v1979 = vrot.slane %v929, 1
  %v1980 = vsel %vm266, %v1971, %v1979
  %v1981 = vrot.slane %v931, 1
  %v1982 = vsel %vm266, %v1973, %v1981
  %v1983 = vrot.slane %v1130, 1
  %v1984 = vsel %vm266, %v1975, %v1983
  %v1985 = vrot.slane %v1132, 1
  %v1986 = vsel %vm266, %v1977, %v1985
  %v2115 = vadd.f32 %v314, %v1729
  %v2116 = vadd.f32 %v316, %v1732
  %v2117 = vadd.f32 %v513, %v1735
  %v2118 = vadd.f32 %v515, %v1738
  %v2119 = vadd.f32 %v318, %v1740
  %v2120 = vadd.f32 %v320, %v1742
  %v2121 = vadd.f32 %v517, %v1744
  %v2122 = vadd.f32 %v519, %v1746
  %v2123 = vadd.f32 %v324, %v1748
  %v2124 = vadd.f32 %v326, %v1750
  %v2125 = vadd.f32 %v523, %v1752
  %v2126 = vadd.f32 %v525, %v1754
  %v2127 = vadd.f32 %v328, %v1756
  %v2128 = vadd.f32 %v330, %v1758
  %v2129 = vadd.f32 %v527, %v1760
  %v2130 = vadd.f32 %v529, %v1762
  %v2131 = vadd.f32 %v334, %v1764
  %v2132 = vadd.f32 %v336, %v1766
  %v2133 = vadd.f32 %v533, %v1768
  %v2134 = vadd.f32 %v535, %v1770
  %v2135 = vadd.f32 %v338, %v1772
  %v2136 = vadd.f32 %v340, %v1774
  %v2137 = vadd.f32 %v537, %v1776
  %v2138 = vadd.f32 %v539, %v1778
  %v2139 = vadd.f32 %v344, %v1780
  %v2140 = vadd.f32 %v346, %v1782
  %v2141 = vadd.f32 %v543, %v1784
  %v2142 = vadd.f32 %v545, %v1786
  %v2143 = vadd.f32 %v348, %v1788
  %v2144 = vadd.f32 %v350, %v1790
  %v2145 = vadd.f32 %v547, %v1792
  %v2146 = vadd.f32 %v549, %v1794
  %v2147 = vadd.f32 %v354, %v1796
  %v2148 = vadd.f32 %v356, %v1798
  %v2149 = vadd.f32 %v553, %v1800
  %v2150 = vadd.f32 %v555, %v1802
  %v2151 = vadd.f32 %v358, %v1804
  %v2152 = vadd.f32 %v360, %v1806
  %v2153 = vadd.f32 %v557, %v1808
  %v2154 = vadd.f32 %v559, %v1810
  %v2155 = vadd.f32 %v364, %v1812
  %v2156 = vadd.f32 %v366, %v1814
  %v2157 = vadd.f32 %v563, %v1816
  %v2158 = vadd.f32 %v565, %v1818
  %v2159 = vadd.f32 %v368, %v1820
  %v2160 = vadd.f32 %v370, %v1822
  %v2161 = vadd.f32 %v567, %v1824
  %v2162 = vadd.f32 %v569, %v1826
  %v2163 = vadd.f32 %v374, %v1828
  %v2164 = vadd.f32 %v376, %v1830
  %v2165 = vadd.f32 %v573, %v1832
  %v2166 = vadd.f32 %v575, %v1834
  %v2167 = vadd.f32 %v378, %v1836
  %v2168 = vadd.f32 %v380, %v1838
  %v2169 = vadd.f32 %v577, %v1840
  %v2170 = vadd.f32 %v579, %v1842
  %v2171 = vadd.f32 %v384, %v1844
  %v2172 = vadd.f32 %v386, %v1846
  %v2173 = vadd.f32 %v583, %v1848
  %v2174 = vadd.f32 %v585, %v1850
  %v2175 = vadd.f32 %v388, %v1852
  %v2176 = vadd.f32 %v390, %v1854
  %v2177 = vadd.f32 %v587, %v1856
  %v2178 = vadd.f32 %v589, %v1858
  %v2179 = vadd.f32 %v394, %v1860
  %v2180 = vadd.f32 %v396, %v1862
  %v2181 = vadd.f32 %v593, %v1864
  %v2182 = vadd.f32 %v595, %v1866
  %v2183 = vadd.f32 %v398, %v1868
  %v2184 = vadd.f32 %v400, %v1870
  %v2185 = vadd.f32 %v597, %v1872
  %v2186 = vadd.f32 %v599, %v1874
  %v2187 = vadd.f32 %v404, %v1876
  %v2188 = vadd.f32 %v406, %v1878
  %v2189 = vadd.f32 %v603, %v1880
  %v2190 = vadd.f32 %v605, %v1882
  %v2191 = vadd.f32 %v408, %v1884
  %v2192 = vadd.f32 %v410, %v1886
  %v2193 = vadd.f32 %v607, %v1888
  %v2194 = vadd.f32 %v609, %v1890
  %v2195 = vadd.f32 %v414, %v1892
  %v2196 = vadd.f32 %v416, %v1894
  %v2197 = vadd.f32 %v613, %v1896
  %v2198 = vadd.f32 %v615, %v1898
  %v2199 = vadd.f32 %v418, %v1900
  %v2200 = vadd.f32 %v420, %v1902
  %v2201 = vadd.f32 %v617, %v1904
  %v2202 = vadd.f32 %v619, %v1906
  %v2203 = vadd.f32 %v424, %v1908
  %v2204 = vadd.f32 %v426, %v1910
  %v2205 = vadd.f32 %v623, %v1912
  %v2206 = vadd.f32 %v625, %v1914
  %v2207 = vadd.f32 %v428, %v1916
  %v2208 = vadd.f32 %v430, %v1918
  %v2209 = vadd.f32 %v627, %v1920
  %v2210 = vadd.f32 %v629, %v1922
  %v2211 = vadd.f32 %v434, %v1924
  %v2212 = vadd.f32 %v436, %v1926
  %v2213 = vadd.f32 %v633, %v1928
  %v2214 = vadd.f32 %v635, %v1930
  %v2215 = vadd.f32 %v438, %v1932
  %v2216 = vadd.f32 %v440, %v1934
  %v2217 = vadd.f32 %v637, %v1936
  %v2218 = vadd.f32 %v639, %v1938
  %v2219 = vadd.f32 %v444, %v1940
  %v2220 = vadd.f32 %v446, %v1942
  %v2221 = vadd.f32 %v643, %v1944
  %v2222 = vadd.f32 %v645, %v1946
  %v2223 = vadd.f32 %v448, %v1948
  %v2224 = vadd.f32 %v450, %v1950
  %v2225 = vadd.f32 %v647, %v1952
  %v2226 = vadd.f32 %v649, %v1954
  %v2227 = vadd.f32 %v454, %v1956
  %v2228 = vadd.f32 %v456, %v1958
  %v2229 = vadd.f32 %v653, %v1960
  %v2230 = vadd.f32 %v655, %v1962
  %v2231 = vadd.f32 %v458, %v1964
  %v2232 = vadd.f32 %v460, %v1966
  %v2233 = vadd.f32 %v657, %v1968
  %v2234 = vadd.f32 %v659, %v1970
  %v2235 = vadd.f32 %v464, %v1972
  %v2236 = vadd.f32 %v466, %v1974
  %v2237 = vadd.f32 %v663, %v1976
  %v2238 = vadd.f32 %v665, %v1978
  %v2239 = vadd.f32 %v468, %v1980
  %v2240 = vadd.f32 %v470, %v1982
  %v2241 = vadd.f32 %v667, %v1984
  %v2242 = vadd.f32 %v669, %v1986
  %vm2375 = vcmask 1045504
  %v2376 = vrot.slane %v1228, 2
  %v2377 = vrot.slane %v1232, 2
  %v2378 = vsel %vm2375, %v2376, %v2377
  %v2379 = vrot.slane %v1230, 2
  %v2380 = vrot.slane %v1234, 2
  %v2381 = vsel %vm2375, %v2379, %v2380
  %v2382 = vrot.slane %v1429, 2
  %v2383 = vrot.slane %v1433, 2
  %v2384 = vsel %vm2375, %v2382, %v2383
  %v2385 = vrot.slane %v1431, 2
  %v2386 = vrot.slane %v1435, 2
  %v2387 = vsel %vm2375, %v2385, %v2386
  %v2388 = vrot.slane %v1238, 2
  %v2389 = vsel %vm2375, %v2377, %v2388
  %v2390 = vrot.slane %v1240, 2
  %v2391 = vsel %vm2375, %v2380, %v2390
  %v2392 = vrot.slane %v1439, 2
  %v2393 = vsel %vm2375, %v2383, %v2392
  %v2394 = vrot.slane %v1441, 2
  %v2395 = vsel %vm2375, %v2386, %v2394
  %v2396 = vrot.slane %v1242, 2
  %v2397 = vsel %vm2375, %v2388, %v2396
  %v2398 = vrot.slane %v1244, 2
  %v2399 = vsel %vm2375, %v2390, %v2398
  %v2400 = vrot.slane %v1443, 2
  %v2401 = vsel %vm2375, %v2392, %v2400
  %v2402 = vrot.slane %v1445, 2
  %v2403 = vsel %vm2375, %v2394, %v2402
  %v2404 = vrot.slane %v1248, 2
  %v2405 = vsel %vm2375, %v2396, %v2404
  %v2406 = vrot.slane %v1250, 2
  %v2407 = vsel %vm2375, %v2398, %v2406
  %v2408 = vrot.slane %v1449, 2
  %v2409 = vsel %vm2375, %v2400, %v2408
  %v2410 = vrot.slane %v1451, 2
  %v2411 = vsel %vm2375, %v2402, %v2410
  %v2412 = vrot.slane %v1252, 2
  %v2413 = vsel %vm2375, %v2404, %v2412
  %v2414 = vrot.slane %v1254, 2
  %v2415 = vsel %vm2375, %v2406, %v2414
  %v2416 = vrot.slane %v1453, 2
  %v2417 = vsel %vm2375, %v2408, %v2416
  %v2418 = vrot.slane %v1455, 2
  %v2419 = vsel %vm2375, %v2410, %v2418
  %v2420 = vrot.slane %v1258, 2
  %v2421 = vsel %vm2375, %v2412, %v2420
  %v2422 = vrot.slane %v1260, 2
  %v2423 = vsel %vm2375, %v2414, %v2422
  %v2424 = vrot.slane %v1459, 2
  %v2425 = vsel %vm2375, %v2416, %v2424
  %v2426 = vrot.slane %v1461, 2
  %v2427 = vsel %vm2375, %v2418, %v2426
  %v2428 = vrot.slane %v1262, 2
  %v2429 = vsel %vm2375, %v2420, %v2428
  %v2430 = vrot.slane %v1264, 2
  %v2431 = vsel %vm2375, %v2422, %v2430
  %v2432 = vrot.slane %v1463, 2
  %v2433 = vsel %vm2375, %v2424, %v2432
  %v2434 = vrot.slane %v1465, 2
  %v2435 = vsel %vm2375, %v2426, %v2434
  %v2436 = vrot.slane %v1268, 2
  %v2437 = vsel %vm2375, %v2428, %v2436
  %v2438 = vrot.slane %v1270, 2
  %v2439 = vsel %vm2375, %v2430, %v2438
  %v2440 = vrot.slane %v1469, 2
  %v2441 = vsel %vm2375, %v2432, %v2440
  %v2442 = vrot.slane %v1471, 2
  %v2443 = vsel %vm2375, %v2434, %v2442
  %v2444 = vrot.slane %v1272, 2
  %v2445 = vsel %vm2375, %v2436, %v2444
  %v2446 = vrot.slane %v1274, 2
  %v2447 = vsel %vm2375, %v2438, %v2446
  %v2448 = vrot.slane %v1473, 2
  %v2449 = vsel %vm2375, %v2440, %v2448
  %v2450 = vrot.slane %v1475, 2
  %v2451 = vsel %vm2375, %v2442, %v2450
  %v2452 = vrot.slane %v1278, 2
  %v2453 = vsel %vm2375, %v2444, %v2452
  %v2454 = vrot.slane %v1280, 2
  %v2455 = vsel %vm2375, %v2446, %v2454
  %v2456 = vrot.slane %v1479, 2
  %v2457 = vsel %vm2375, %v2448, %v2456
  %v2458 = vrot.slane %v1481, 2
  %v2459 = vsel %vm2375, %v2450, %v2458
  %v2460 = vrot.slane %v1282, 2
  %v2461 = vsel %vm2375, %v2452, %v2460
  %v2462 = vrot.slane %v1284, 2
  %v2463 = vsel %vm2375, %v2454, %v2462
  %v2464 = vrot.slane %v1483, 2
  %v2465 = vsel %vm2375, %v2456, %v2464
  %v2466 = vrot.slane %v1485, 2
  %v2467 = vsel %vm2375, %v2458, %v2466
  %v2468 = vrot.slane %v1288, 2
  %v2469 = vsel %vm2375, %v2460, %v2468
  %v2470 = vrot.slane %v1290, 2
  %v2471 = vsel %vm2375, %v2462, %v2470
  %v2472 = vrot.slane %v1489, 2
  %v2473 = vsel %vm2375, %v2464, %v2472
  %v2474 = vrot.slane %v1491, 2
  %v2475 = vsel %vm2375, %v2466, %v2474
  %v2476 = vrot.slane %v1292, 2
  %v2477 = vsel %vm2375, %v2468, %v2476
  %v2478 = vrot.slane %v1294, 2
  %v2479 = vsel %vm2375, %v2470, %v2478
  %v2480 = vrot.slane %v1493, 2
  %v2481 = vsel %vm2375, %v2472, %v2480
  %v2482 = vrot.slane %v1495, 2
  %v2483 = vsel %vm2375, %v2474, %v2482
  %v2484 = vrot.slane %v1298, 2
  %v2485 = vsel %vm2375, %v2476, %v2484
  %v2486 = vrot.slane %v1300, 2
  %v2487 = vsel %vm2375, %v2478, %v2486
  %v2488 = vrot.slane %v1499, 2
  %v2489 = vsel %vm2375, %v2480, %v2488
  %v2490 = vrot.slane %v1501, 2
  %v2491 = vsel %vm2375, %v2482, %v2490
  %v2492 = vrot.slane %v1302, 2
  %v2493 = vsel %vm2375, %v2484, %v2492
  %v2494 = vrot.slane %v1304, 2
  %v2495 = vsel %vm2375, %v2486, %v2494
  %v2496 = vrot.slane %v1503, 2
  %v2497 = vsel %vm2375, %v2488, %v2496
  %v2498 = vrot.slane %v1505, 2
  %v2499 = vsel %vm2375, %v2490, %v2498
  %v2500 = vrot.slane %v1308, 2
  %v2501 = vsel %vm2375, %v2492, %v2500
  %v2502 = vrot.slane %v1310, 2
  %v2503 = vsel %vm2375, %v2494, %v2502
  %v2504 = vrot.slane %v1509, 2
  %v2505 = vsel %vm2375, %v2496, %v2504
  %v2506 = vrot.slane %v1511, 2
  %v2507 = vsel %vm2375, %v2498, %v2506
  %v2508 = vrot.slane %v1312, 2
  %v2509 = vsel %vm2375, %v2500, %v2508
  %v2510 = vrot.slane %v1314, 2
  %v2511 = vsel %vm2375, %v2502, %v2510
  %v2512 = vrot.slane %v1513, 2
  %v2513 = vsel %vm2375, %v2504, %v2512
  %v2514 = vrot.slane %v1515, 2
  %v2515 = vsel %vm2375, %v2506, %v2514
  %v2516 = vrot.slane %v1318, 2
  %v2517 = vsel %vm2375, %v2508, %v2516
  %v2518 = vrot.slane %v1320, 2
  %v2519 = vsel %vm2375, %v2510, %v2518
  %v2520 = vrot.slane %v1519, 2
  %v2521 = vsel %vm2375, %v2512, %v2520
  %v2522 = vrot.slane %v1521, 2
  %v2523 = vsel %vm2375, %v2514, %v2522
  %v2524 = vrot.slane %v1322, 2
  %v2525 = vsel %vm2375, %v2516, %v2524
  %v2526 = vrot.slane %v1324, 2
  %v2527 = vsel %vm2375, %v2518, %v2526
  %v2528 = vrot.slane %v1523, 2
  %v2529 = vsel %vm2375, %v2520, %v2528
  %v2530 = vrot.slane %v1525, 2
  %v2531 = vsel %vm2375, %v2522, %v2530
  %v2532 = vrot.slane %v1328, 2
  %v2533 = vsel %vm2375, %v2524, %v2532
  %v2534 = vrot.slane %v1330, 2
  %v2535 = vsel %vm2375, %v2526, %v2534
  %v2536 = vrot.slane %v1529, 2
  %v2537 = vsel %vm2375, %v2528, %v2536
  %v2538 = vrot.slane %v1531, 2
  %v2539 = vsel %vm2375, %v2530, %v2538
  %v2540 = vrot.slane %v1332, 2
  %v2541 = vsel %vm2375, %v2532, %v2540
  %v2542 = vrot.slane %v1334, 2
  %v2543 = vsel %vm2375, %v2534, %v2542
  %v2544 = vrot.slane %v1533, 2
  %v2545 = vsel %vm2375, %v2536, %v2544
  %v2546 = vrot.slane %v1535, 2
  %v2547 = vsel %vm2375, %v2538, %v2546
  %v2548 = vrot.slane %v1338, 2
  %v2549 = vsel %vm2375, %v2540, %v2548
  %v2550 = vrot.slane %v1340, 2
  %v2551 = vsel %vm2375, %v2542, %v2550
  %v2552 = vrot.slane %v1539, 2
  %v2553 = vsel %vm2375, %v2544, %v2552
  %v2554 = vrot.slane %v1541, 2
  %v2555 = vsel %vm2375, %v2546, %v2554
  %v2556 = vrot.slane %v1342, 2
  %v2557 = vsel %vm2375, %v2548, %v2556
  %v2558 = vrot.slane %v1344, 2
  %v2559 = vsel %vm2375, %v2550, %v2558
  %v2560 = vrot.slane %v1543, 2
  %v2561 = vsel %vm2375, %v2552, %v2560
  %v2562 = vrot.slane %v1545, 2
  %v2563 = vsel %vm2375, %v2554, %v2562
  %v2564 = vrot.slane %v1348, 2
  %v2565 = vsel %vm2375, %v2556, %v2564
  %v2566 = vrot.slane %v1350, 2
  %v2567 = vsel %vm2375, %v2558, %v2566
  %v2568 = vrot.slane %v1549, 2
  %v2569 = vsel %vm2375, %v2560, %v2568
  %v2570 = vrot.slane %v1551, 2
  %v2571 = vsel %vm2375, %v2562, %v2570
  %v2572 = vrot.slane %v1352, 2
  %v2573 = vsel %vm2375, %v2564, %v2572
  %v2574 = vrot.slane %v1354, 2
  %v2575 = vsel %vm2375, %v2566, %v2574
  %v2576 = vrot.slane %v1553, 2
  %v2577 = vsel %vm2375, %v2568, %v2576
  %v2578 = vrot.slane %v1555, 2
  %v2579 = vsel %vm2375, %v2570, %v2578
  %v2580 = vrot.slane %v1358, 2
  %v2581 = vsel %vm2375, %v2572, %v2580
  %v2582 = vrot.slane %v1360, 2
  %v2583 = vsel %vm2375, %v2574, %v2582
  %v2584 = vrot.slane %v1559, 2
  %v2585 = vsel %vm2375, %v2576, %v2584
  %v2586 = vrot.slane %v1561, 2
  %v2587 = vsel %vm2375, %v2578, %v2586
  %v2588 = vrot.slane %v1362, 2
  %v2589 = vsel %vm2375, %v2580, %v2588
  %v2590 = vrot.slane %v1364, 2
  %v2591 = vsel %vm2375, %v2582, %v2590
  %v2592 = vrot.slane %v1563, 2
  %v2593 = vsel %vm2375, %v2584, %v2592
  %v2594 = vrot.slane %v1565, 2
  %v2595 = vsel %vm2375, %v2586, %v2594
  %v2596 = vrot.slane %v1368, 2
  %v2597 = vsel %vm2375, %v2588, %v2596
  %v2598 = vrot.slane %v1370, 2
  %v2599 = vsel %vm2375, %v2590, %v2598
  %v2600 = vrot.slane %v1569, 2
  %v2601 = vsel %vm2375, %v2592, %v2600
  %v2602 = vrot.slane %v1571, 2
  %v2603 = vsel %vm2375, %v2594, %v2602
  %v2604 = vrot.slane %v1372, 2
  %v2605 = vsel %vm2375, %v2596, %v2604
  %v2606 = vrot.slane %v1374, 2
  %v2607 = vsel %vm2375, %v2598, %v2606
  %v2608 = vrot.slane %v1573, 2
  %v2609 = vsel %vm2375, %v2600, %v2608
  %v2610 = vrot.slane %v1575, 2
  %v2611 = vsel %vm2375, %v2602, %v2610
  %v2612 = vrot.slane %v1378, 2
  %v2613 = vsel %vm2375, %v2604, %v2612
  %v2614 = vrot.slane %v1380, 2
  %v2615 = vsel %vm2375, %v2606, %v2614
  %v2616 = vrot.slane %v1579, 2
  %v2617 = vsel %vm2375, %v2608, %v2616
  %v2618 = vrot.slane %v1581, 2
  %v2619 = vsel %vm2375, %v2610, %v2618
  %v2620 = vrot.slane %v1382, 2
  %v2621 = vsel %vm2375, %v2612, %v2620
  %v2622 = vrot.slane %v1384, 2
  %v2623 = vsel %vm2375, %v2614, %v2622
  %v2624 = vrot.slane %v1583, 2
  %v2625 = vsel %vm2375, %v2616, %v2624
  %v2626 = vrot.slane %v1585, 2
  %v2627 = vsel %vm2375, %v2618, %v2626
  %v2628 = vrot.slane %v1388, 2
  %v2629 = vsel %vm2375, %v2620, %v2628
  %v2630 = vrot.slane %v1390, 2
  %v2631 = vsel %vm2375, %v2622, %v2630
  %v2632 = vrot.slane %v1589, 2
  %v2633 = vsel %vm2375, %v2624, %v2632
  %v2634 = vrot.slane %v1591, 2
  %v2635 = vsel %vm2375, %v2626, %v2634
  %v2764 = vadd.f32 %v2115, %v2378
  %v2765 = vadd.f32 %v2116, %v2381
  %v2766 = vadd.f32 %v2117, %v2384
  %v2767 = vadd.f32 %v2118, %v2387
  %v2768 = vadd.f32 %v2119, %v2389
  %v2769 = vadd.f32 %v2120, %v2391
  %v2770 = vadd.f32 %v2121, %v2393
  %v2771 = vadd.f32 %v2122, %v2395
  %v2772 = vadd.f32 %v2123, %v2397
  %v2773 = vadd.f32 %v2124, %v2399
  %v2774 = vadd.f32 %v2125, %v2401
  %v2775 = vadd.f32 %v2126, %v2403
  %v2776 = vadd.f32 %v2127, %v2405
  %v2777 = vadd.f32 %v2128, %v2407
  %v2778 = vadd.f32 %v2129, %v2409
  %v2779 = vadd.f32 %v2130, %v2411
  %v2780 = vadd.f32 %v2131, %v2413
  %v2781 = vadd.f32 %v2132, %v2415
  %v2782 = vadd.f32 %v2133, %v2417
  %v2783 = vadd.f32 %v2134, %v2419
  %v2784 = vadd.f32 %v2135, %v2421
  %v2785 = vadd.f32 %v2136, %v2423
  %v2786 = vadd.f32 %v2137, %v2425
  %v2787 = vadd.f32 %v2138, %v2427
  %v2788 = vadd.f32 %v2139, %v2429
  %v2789 = vadd.f32 %v2140, %v2431
  %v2790 = vadd.f32 %v2141, %v2433
  %v2791 = vadd.f32 %v2142, %v2435
  %v2792 = vadd.f32 %v2143, %v2437
  %v2793 = vadd.f32 %v2144, %v2439
  %v2794 = vadd.f32 %v2145, %v2441
  %v2795 = vadd.f32 %v2146, %v2443
  %v2796 = vadd.f32 %v2147, %v2445
  %v2797 = vadd.f32 %v2148, %v2447
  %v2798 = vadd.f32 %v2149, %v2449
  %v2799 = vadd.f32 %v2150, %v2451
  %v2800 = vadd.f32 %v2151, %v2453
  %v2801 = vadd.f32 %v2152, %v2455
  %v2802 = vadd.f32 %v2153, %v2457
  %v2803 = vadd.f32 %v2154, %v2459
  %v2804 = vadd.f32 %v2155, %v2461
  %v2805 = vadd.f32 %v2156, %v2463
  %v2806 = vadd.f32 %v2157, %v2465
  %v2807 = vadd.f32 %v2158, %v2467
  %v2808 = vadd.f32 %v2159, %v2469
  %v2809 = vadd.f32 %v2160, %v2471
  %v2810 = vadd.f32 %v2161, %v2473
  %v2811 = vadd.f32 %v2162, %v2475
  %v2812 = vadd.f32 %v2163, %v2477
  %v2813 = vadd.f32 %v2164, %v2479
  %v2814 = vadd.f32 %v2165, %v2481
  %v2815 = vadd.f32 %v2166, %v2483
  %v2816 = vadd.f32 %v2167, %v2485
  %v2817 = vadd.f32 %v2168, %v2487
  %v2818 = vadd.f32 %v2169, %v2489
  %v2819 = vadd.f32 %v2170, %v2491
  %v2820 = vadd.f32 %v2171, %v2493
  %v2821 = vadd.f32 %v2172, %v2495
  %v2822 = vadd.f32 %v2173, %v2497
  %v2823 = vadd.f32 %v2174, %v2499
  %v2824 = vadd.f32 %v2175, %v2501
  %v2825 = vadd.f32 %v2176, %v2503
  %v2826 = vadd.f32 %v2177, %v2505
  %v2827 = vadd.f32 %v2178, %v2507
  %v2828 = vadd.f32 %v2179, %v2509
  %v2829 = vadd.f32 %v2180, %v2511
  %v2830 = vadd.f32 %v2181, %v2513
  %v2831 = vadd.f32 %v2182, %v2515
  %v2832 = vadd.f32 %v2183, %v2517
  %v2833 = vadd.f32 %v2184, %v2519
  %v2834 = vadd.f32 %v2185, %v2521
  %v2835 = vadd.f32 %v2186, %v2523
  %v2836 = vadd.f32 %v2187, %v2525
  %v2837 = vadd.f32 %v2188, %v2527
  %v2838 = vadd.f32 %v2189, %v2529
  %v2839 = vadd.f32 %v2190, %v2531
  %v2840 = vadd.f32 %v2191, %v2533
  %v2841 = vadd.f32 %v2192, %v2535
  %v2842 = vadd.f32 %v2193, %v2537
  %v2843 = vadd.f32 %v2194, %v2539
  %v2844 = vadd.f32 %v2195, %v2541
  %v2845 = vadd.f32 %v2196, %v2543
  %v2846 = vadd.f32 %v2197, %v2545
  %v2847 = vadd.f32 %v2198, %v2547
  %v2848 = vadd.f32 %v2199, %v2549
  %v2849 = vadd.f32 %v2200, %v2551
  %v2850 = vadd.f32 %v2201, %v2553
  %v2851 = vadd.f32 %v2202, %v2555
  %v2852 = vadd.f32 %v2203, %v2557
  %v2853 = vadd.f32 %v2204, %v2559
  %v2854 = vadd.f32 %v2205, %v2561
  %v2855 = vadd.f32 %v2206, %v2563
  %v2856 = vadd.f32 %v2207, %v2565
  %v2857 = vadd.f32 %v2208, %v2567
  %v2858 = vadd.f32 %v2209, %v2569
  %v2859 = vadd.f32 %v2210, %v2571
  %v2860 = vadd.f32 %v2211, %v2573
  %v2861 = vadd.f32 %v2212, %v2575
  %v2862 = vadd.f32 %v2213, %v2577
  %v2863 = vadd.f32 %v2214, %v2579
  %v2864 = vadd.f32 %v2215, %v2581
  %v2865 = vadd.f32 %v2216, %v2583
  %v2866 = vadd.f32 %v2217, %v2585
  %v2867 = vadd.f32 %v2218, %v2587
  %v2868 = vadd.f32 %v2219, %v2589
  %v2869 = vadd.f32 %v2220, %v2591
  %v2870 = vadd.f32 %v2221, %v2593
  %v2871 = vadd.f32 %v2222, %v2595
  %v2872 = vadd.f32 %v2223, %v2597
  %v2873 = vadd.f32 %v2224, %v2599
  %v2874 = vadd.f32 %v2225, %v2601
  %v2875 = vadd.f32 %v2226, %v2603
  %v2876 = vadd.f32 %v2227, %v2605
  %v2877 = vadd.f32 %v2228, %v2607
  %v2878 = vadd.f32 %v2229, %v2609
  %v2879 = vadd.f32 %v2230, %v2611
  %v2880 = vadd.f32 %v2231, %v2613
  %v2881 = vadd.f32 %v2232, %v2615
  %v2882 = vadd.f32 %v2233, %v2617
  %v2883 = vadd.f32 %v2234, %v2619
  %v2884 = vadd.f32 %v2235, %v2621
  %v2885 = vadd.f32 %v2236, %v2623
  %v2886 = vadd.f32 %v2237, %v2625
  %v2887 = vadd.f32 %v2238, %v2627
  %v2888 = vadd.f32 %v2239, %v2629
  %v2889 = vadd.f32 %v2240, %v2631
  %v2890 = vadd.f32 %v2241, %v2633
  %v2891 = vadd.f32 %v2242, %v2635
  %v2892 = vld [vmem:[%s2] sm:$0xf]
  %v2894 = vlaneseq
  %v2895 = vshrl.u32 %v2894, 7
  %v2896 = vsub.s32 0, %v2895
  %v2897 = vrot.slane %v2892, %v2896
  %v2898 = vlaneseq
  %v2899 = vshrl.u32 %v2898, 7
  %v2900 = vsub.s32 1, %v2899
  %v2901 = vrot.slane %v2892, %v2900
  %v2902 = vlaneseq
  %v2903 = vshrl.u32 %v2902, 7
  %v2904 = vsub.s32 2, %v2903
  %v2905 = vrot.slane %v2892, %v2904
  %v2906 = vlaneseq
  %v2907 = vshrl.u32 %v2906, 7
  %v2908 = vsub.s32 3, %v2907
  %v2909 = vrot.slane %v2892, %v2908
  %v2914 = vadd.f32 %v2764, %v2897
  %v2915 = vadd.f32 %v2765, %v2901
  %v2916 = vadd.f32 %v2766, %v2905
  %v2917 = vadd.f32 %v2767, %v2909
  %v2918 = vadd.f32 %v2768, %v2897
  %v2919 = vadd.f32 %v2769, %v2901
  %v2920 = vadd.f32 %v2770, %v2905
  %v2921 = vadd.f32 %v2771, %v2909
  %v2922 = vadd.f32 %v2772, %v2897
  %v2923 = vadd.f32 %v2773, %v2901
  %v2924 = vadd.f32 %v2774, %v2905
  %v2925 = vadd.f32 %v2775, %v2909
  %v2926 = vadd.f32 %v2776, %v2897
  %v2927 = vadd.f32 %v2777, %v2901
  %v2928 = vadd.f32 %v2778, %v2905
  %v2929 = vadd.f32 %v2779, %v2909
  %v2930 = vadd.f32 %v2780, %v2897
  %v2931 = vadd.f32 %v2781, %v2901
  %v2932 = vadd.f32 %v2782, %v2905
  %v2933 = vadd.f32 %v2783, %v2909
  %v2934 = vadd.f32 %v2784, %v2897
  %v2935 = vadd.f32 %v2785, %v2901
  %v2936 = vadd.f32 %v2786, %v2905
  %v2937 = vadd.f32 %v2787, %v2909
  %v2938 = vadd.f32 %v2788, %v2897
  %v2939 = vadd.f32 %v2789, %v2901
  %v2940 = vadd.f32 %v2790, %v2905
  %v2941 = vadd.f32 %v2791, %v2909
  %v2942 = vadd.f32 %v2792, %v2897
  %v2943 = vadd.f32 %v2793, %v2901
  %v2944 = vadd.f32 %v2794, %v2905
  %v2945 = vadd.f32 %v2795, %v2909
  %v2946 = vadd.f32 %v2796, %v2897
  %v2947 = vadd.f32 %v2797, %v2901
  %v2948 = vadd.f32 %v2798, %v2905
  %v2949 = vadd.f32 %v2799, %v2909
  %v2950 = vadd.f32 %v2800, %v2897
  %v2951 = vadd.f32 %v2801, %v2901
  %v2952 = vadd.f32 %v2802, %v2905
  %v2953 = vadd.f32 %v2803, %v2909
  %v2954 = vadd.f32 %v2804, %v2897
  %v2955 = vadd.f32 %v2805, %v2901
  %v2956 = vadd.f32 %v2806, %v2905
  %v2957 = vadd.f32 %v2807, %v2909
  %v2958 = vadd.f32 %v2808, %v2897
  %v2959 = vadd.f32 %v2809, %v2901
  %v2960 = vadd.f32 %v2810, %v2905
  %v2961 = vadd.f32 %v2811, %v2909
  %v2962 = vadd.f32 %v2812, %v2897
  %v2963 = vadd.f32 %v2813, %v2901
  %v2964 = vadd.f32 %v2814, %v2905
  %v2965 = vadd.f32 %v2815, %v2909
  %v2966 = vadd.f32 %v2816, %v2897
  %v2967 = vadd.f32 %v2817, %v2901
  %v2968 = vadd.f32 %v2818, %v2905
  %v2969 = vadd.f32 %v2819, %v2909
  %v2970 = vadd.f32 %v2820, %v2897
  %v2971 = vadd.f32 %v2821, %v2901
  %v2972 = vadd.f32 %v2822, %v2905
  %v2973 = vadd.f32 %v2823, %v2909
  %v2974 = vadd.f32 %v2824, %v2897
  %v2975 = vadd.f32 %v2825, %v2901
  %v2976 = vadd.f32 %v2826, %v2905
  %v2977 = vadd.f32 %v2827, %v2909
  %v2978 = vadd.f32 %v2828, %v2897
  %v2979 = vadd.f32 %v2829, %v2901
  %v2980 = vadd.f32 %v2830, %v2905
  %v2981 = vadd.f32 %v2831, %v2909
  %v2982 = vadd.f32 %v2832, %v2897
  %v2983 = vadd.f32 %v2833, %v2901
  %v2984 = vadd.f32 %v2834, %v2905
  %v2985 = vadd.f32 %v2835, %v2909
  %v2986 = vadd.f32 %v2836, %v2897
  %v2987 = vadd.f32 %v2837, %v2901
  %v2988 = vadd.f32 %v2838, %v2905
  %v2989 = vadd.f32 %v2839, %v2909
  %v2990 = vadd.f32 %v2840, %v2897
  %v2991 = vadd.f32 %v2841, %v2901
  %v2992 = vadd.f32 %v2842, %v2905
  %v2993 = vadd.f32 %v2843, %v2909
  %v2994 = vadd.f32 %v2844, %v2897
  %v2995 = vadd.f32 %v2845, %v2901
  %v2996 = vadd.f32 %v2846, %v2905
  %v2997 = vadd.f32 %v2847, %v2909
  %v2998 = vadd.f32 %v2848, %v2897
  %v2999 = vadd.f32 %v2849, %v2901
  %v3000 = vadd.f32 %v2850, %v2905
  %v3001 = vadd.f32 %v2851, %v2909
  %v3002 = vadd.f32 %v2852, %v2897
  %v3003 = vadd.f32 %v2853, %v2901
  %v3004 = vadd.f32 %v2854, %v2905
  %v3005 = vadd.f32 %v2855, %v2909
  %v3006 = vadd.f32 %v2856, %v2897
  %v3007 = vadd.f32 %v2857, %v2901
  %v3008 = vadd.f32 %v2858, %v2905
  %v3009 = vadd.f32 %v2859, %v2909
  %v3010 = vadd.f32 %v2860, %v2897
  %v3011 = vadd.f32 %v2861, %v2901
  %v3012 = vadd.f32 %v2862, %v2905
  %v3013 = vadd.f32 %v2863, %v2909
  %v3014 = vadd.f32 %v2864, %v2897
  %v3015 = vadd.f32 %v2865, %v2901
  %v3016 = vadd.f32 %v2866, %v2905
  %v3017 = vadd.f32 %v2867, %v2909
  %v3018 = vadd.f32 %v2868, %v2897
  %v3019 = vadd.f32 %v2869, %v2901
  %v3020 = vadd.f32 %v2870, %v2905
  %v3021 = vadd.f32 %v2871, %v2909
  %v3022 = vadd.f32 %v2872, %v2897
  %v3023 = vadd.f32 %v2873, %v2901
  %v3024 = vadd.f32 %v2874, %v2905
  %v3025 = vadd.f32 %v2875, %v2909
  %v3026 = vadd.f32 %v2876, %v2897
  %v3027 = vadd.f32 %v2877, %v2901
  %v3028 = vadd.f32 %v2878, %v2905
  %v3029 = vadd.f32 %v2879, %v2909
  %v3030 = vadd.f32 %v2880, %v2897
  %v3031 = vadd.f32 %v2881, %v2901
  %v3032 = vadd.f32 %v2882, %v2905
  %v3033 = vadd.f32 %v2883, %v2909
  %v3034 = vadd.f32 %v2884, %v2897
  %v3035 = vadd.f32 %v2885, %v2901
  %v3036 = vadd.f32 %v2886, %v2905
  %v3037 = vadd.f32 %v2887, %v2909
  %v3038 = vadd.f32 %v2888, %v2897
  %v3039 = vadd.f32 %v2889, %v2901
  %v3040 = vadd.f32 %v2890, %v2905
  %v3041 = vadd.f32 %v2891, %v2909
  %v3042 = vmax.f32 %v2914, 0.0
  %v3043 = vmax.f32 %v2915, 0.0
  %v3044 = vmax.f32 %v2916, 0.0
  %v3045 = vmax.f32 %v2917, 0.0
  %v3046 = vmax.f32 %v2918, 0.0
  %v3047 = vmax.f32 %v2919, 0.0
  %v3048 = vmax.f32 %v2920, 0.0
  %v3049 = vmax.f32 %v2921, 0.0
  %v3050 = vmax.f32 %v2922, 0.0
  %v3051 = vmax.f32 %v2923, 0.0
  %v3052 = vmax.f32 %v2924, 0.0
  %v3053 = vmax.f32 %v2925, 0.0
  %v3054 = vmax.f32 %v2926, 0.0
  %v3055 = vmax.f32 %v2927, 0.0
  %v3056 = vmax.f32 %v2928, 0.0
  %v3057 = vmax.f32 %v2929, 0.0
  %v3058 = vmax.f32 %v2930, 0.0
  %v3059 = vmax.f32 %v2931, 0.0
  %v3060 = vmax.f32 %v2932, 0.0
  %v3061 = vmax.f32 %v2933, 0.0
  %v3062 = vmax.f32 %v2934, 0.0
  %v3063 = vmax.f32 %v2935, 0.0
  %v3064 = vmax.f32 %v2936, 0.0
  %v3065 = vmax.f32 %v2937, 0.0
  %v3066 = vmax.f32 %v2938, 0.0
  %v3067 = vmax.f32 %v2939, 0.0
  %v3068 = vmax.f32 %v2940, 0.0
  %v3069 = vmax.f32 %v2941, 0.0
  %v3070 = vmax.f32 %v2942, 0.0
  %v3071 = vmax.f32 %v2943, 0.0
  %v3072 = vmax.f32 %v2944, 0.0
  %v3073 = vmax.f32 %v2945, 0.0
  %v3074 = vmax.f32 %v2946, 0.0
  %v3075 = vmax.f32 %v2947, 0.0
  %v3076 = vmax.f32 %v2948, 0.0
  %v3077 = vmax.f32 %v2949, 0.0
  %v3078 = vmax.f32 %v2950, 0.0
  %v3079 = vmax.f32 %v2951, 0.0
  %v3080 = vmax.f32 %v2952, 0.0
  %v3081 = vmax.f32 %v2953, 0.0
  %v3082 = vmax.f32 %v2954, 0.0
  %v3083 = vmax.f32 %v2955, 0.0
  %v3084 = vmax.f32 %v2956, 0.0
  %v3085 = vmax.f32 %v2957, 0.0
  %v3086 = vmax.f32 %v2958, 0.0
  %v3087 = vmax.f32 %v2959, 0.0
  %v3088 = vmax.f32 %v2960, 0.0
  %v3089 = vmax.f32 %v2961, 0.0
  %v3090 = vmax.f32 %v2962, 0.0
  %v3091 = vmax.f32 %v2963, 0.0
  %v3092 = vmax.f32 %v2964, 0.0
  %v3093 = vmax.f32 %v2965, 0.0
  %v3094 = vmax.f32 %v2966, 0.0
  %v3095 = vmax.f32 %v2967, 0.0
  %v3096 = vmax.f32 %v2968, 0.0
  %v3097 = vmax.f32 %v2969, 0.0
  %v3098 = vmax.f32 %v2970, 0.0
  %v3099 = vmax.f32 %v2971, 0.0
  %v3100 = vmax.f32 %v2972, 0.0
  %v3101 = vmax.f32 %v2973, 0.0
  %v3102 = vmax.f32 %v2974, 0.0
  %v3103 = vmax.f32 %v2975, 0.0
  %v3104 = vmax.f32 %v2976, 0.0
  %v3105 = vmax.f32 %v2977, 0.0
  %v3106 = vmax.f32 %v2978, 0.0
  %v3107 = vmax.f32 %v2979, 0.0
  %v3108 = vmax.f32 %v2980, 0.0
  %v3109 = vmax.f32 %v2981, 0.0
  %v3110 = vmax.f32 %v2982, 0.0
  %v3111 = vmax.f32 %v2983, 0.0
  %v3112 = vmax.f32 %v2984, 0.0
  %v3113 = vmax.f32 %v2985, 0.0
  %v3114 = vmax.f32 %v2986, 0.0
  %v3115 = vmax.f32 %v2987, 0.0
  %v3116 = vmax.f32 %v2988, 0.0
  %v3117 = vmax.f32 %v2989, 0.0
  %v3118 = vmax.f32 %v2990, 0.0
  %v3119 = vmax.f32 %v2991, 0.0
  %v3120 = vmax.f32 %v2992, 0.0
  %v3121 = vmax.f32 %v2993, 0.0
  %v3122 = vmax.f32 %v2994, 0.0
  %v3123 = vmax.f32 %v2995, 0.0
  %v3124 = vmax.f32 %v2996, 0.0
  %v3125 = vmax.f32 %v2997, 0.0
  %v3126 = vmax.f32 %v2998, 0.0
  %v3127 = vmax.f32 %v2999, 0.0
  %v3128 = vmax.f32 %v3000, 0.0
  %v3129 = vmax.f32 %v3001, 0.0
  %v3130 = vmax.f32 %v3002, 0.0
  %v3131 = vmax.f32 %v3003, 0.0
  %v3132 = vmax.f32 %v3004, 0.0
  %v3133 = vmax.f32 %v3005, 0.0
  %v3134 = vmax.f32 %v3006, 0.0
  %v3135 = vmax.f32 %v3007, 0.0
  %v3136 = vmax.f32 %v3008, 0.0
  %v3137 = vmax.f32 %v3009, 0.0
  %v3138 = vmax.f32 %v3010, 0.0
  %v3139 = vmax.f32 %v3011, 0.0
  %v3140 = vmax.f32 %v3012, 0.0
  %v3141 = vmax.f32 %v3013, 0.0
  %v3142 = vmax.f32 %v3014, 0.0
  %v3143 = vmax.f32 %v3015, 0.0
  %v3144 = vmax.f32 %v3016, 0.0
  %v3145 = vmax.f32 %v3017, 0.0
  %v3146 = vmax.f32 %v3018, 0.0
  %v3147 = vmax.f32 %v3019, 0.0
  %v3148 = vmax.f32 %v3020, 0.0
  %v3149 = vmax.f32 %v3021, 0.0
  %v3150 = vmax.f32 %v3022, 0.0
  %v3151 = vmax.f32 %v3023, 0.0
  %v3152 = vmax.f32 %v3024, 0.0
  %v3153 = vmax.f32 %v3025, 0.0
  %v3154 = vmax.f32 %v3026, 0.0
  %v3155 = vmax.f32 %v3027, 0.0
  %v3156 = vmax.f32 %v3028, 0.0
  %v3157 = vmax.f32 %v3029, 0.0
  %v3158 = vmax.f32 %v3030, 0.0
  %v3159 = vmax.f32 %v3031, 0.0
  %v3160 = vmax.f32 %v3032, 0.0
  %v3161 = vmax.f32 %v3033, 0.0
  %v3162 = vmax.f32 %v3034, 0.0
  %v3163 = vmax.f32 %v3035, 0.0
  %v3164 = vmax.f32 %v3036, 0.0
  %v3165 = vmax.f32 %v3037, 0.0
  %v3166 = vmax.f32 %v3038, 0.0
  %v3167 = vmax.f32 %v3039, 0.0
  %v3168 = vmax.f32 %v3040, 0.0
  %v3169 = vmax.f32 %v3041, 0.0
  %v3170 = vpack.c.bf16 %v3046, %v3042
  %v3171 = vpack.c.bf16 %v3047, %v3043
  %v3172 = vpack.c.bf16 %v3048, %v3044
  %v3173 = vpack.c.bf16 %v3049, %v3045
  %v3174 = vpack.c.bf16 %v3054, %v3050
  %v3175 = vpack.c.bf16 %v3055, %v3051
  %v3176 = vpack.c.bf16 %v3056, %v3052
  %v3177 = vpack.c.bf16 %v3057, %v3053
  %v3178 = vpack.c.bf16 %v3062, %v3058
  %v3179 = vpack.c.bf16 %v3063, %v3059
  %v3180 = vpack.c.bf16 %v3064, %v3060
  %v3181 = vpack.c.bf16 %v3065, %v3061
  %v3182 = vpack.c.bf16 %v3070, %v3066
  %v3183 = vpack.c.bf16 %v3071, %v3067
  %v3184 = vpack.c.bf16 %v3072, %v3068
  %v3185 = vpack.c.bf16 %v3073, %v3069
  %v3186 = vpack.c.bf16 %v3078, %v3074
  %v3187 = vpack.c.bf16 %v3079, %v3075
  %v3188 = vpack.c.bf16 %v3080, %v3076
  %v3189 = vpack.c.bf16 %v3081, %v3077
  %v3190 = vpack.c.bf16 %v3086, %v3082
  %v3191 = vpack.c.bf16 %v3087, %v3083
  %v3192 = vpack.c.bf16 %v3088, %v3084
  %v3193 = vpack.c.bf16 %v3089, %v3085
  %v3194 = vpack.c.bf16 %v3094, %v3090
  %v3195 = vpack.c.bf16 %v3095, %v3091
  %v3196 = vpack.c.bf16 %v3096, %v3092
  %v3197 = vpack.c.bf16 %v3097, %v3093
  %v3198 = vpack.c.bf16 %v3102, %v3098
  %v3199 = vpack.c.bf16 %v3103, %v3099
  %v3200 = vpack.c.bf16 %v3104, %v3100
  %v3201 = vpack.c.bf16 %v3105, %v3101
  %v3202 = vpack.c.bf16 %v3110, %v3106
  %v3203 = vpack.c.bf16 %v3111, %v3107
  %v3204 = vpack.c.bf16 %v3112, %v3108
  %v3205 = vpack.c.bf16 %v3113, %v3109
  %v3206 = vpack.c.bf16 %v3118, %v3114
  %v3207 = vpack.c.bf16 %v3119, %v3115
  %v3208 = vpack.c.bf16 %v3120, %v3116
  %v3209 = vpack.c.bf16 %v3121, %v3117
  %v3210 = vpack.c.bf16 %v3126, %v3122
  %v3211 = vpack.c.bf16 %v3127, %v3123
  %v3212 = vpack.c.bf16 %v3128, %v3124
  %v3213 = vpack.c.bf16 %v3129, %v3125
  %v3214 = vpack.c.bf16 %v3134, %v3130
  %v3215 = vpack.c.bf16 %v3135, %v3131
  %v3216 = vpack.c.bf16 %v3136, %v3132
  %v3217 = vpack.c.bf16 %v3137, %v3133
  %v3218 = vpack.c.bf16 %v3142, %v3138
  %v3219 = vpack.c.bf16 %v3143, %v3139
  %v3220 = vpack.c.bf16 %v3144, %v3140
  %v3221 = vpack.c.bf16 %v3145, %v3141
  %v3222 = vpack.c.bf16 %v3150, %v3146
  %v3223 = vpack.c.bf16 %v3151, %v3147
  %v3224 = vpack.c.bf16 %v3152, %v3148
  %v3225 = vpack.c.bf16 %v3153, %v3149
  %v3226 = vpack.c.bf16 %v3158, %v3154
  %v3227 = vpack.c.bf16 %v3159, %v3155
  %v3228 = vpack.c.bf16 %v3160, %v3156
  %v3229 = vpack.c.bf16 %v3161, %v3157
  %v3230 = vpack.c.bf16 %v3166, %v3162
  %v3231 = vpack.c.bf16 %v3167, %v3163
  %v3232 = vpack.c.bf16 %v3168, %v3164
  %v3233 = vpack.c.bf16 %v3169, %v3165
  %v3234 = vld [vmem:[%s4] sm:$0xff]
  %v3235 = vld [vmem:[%s4 + $0x8] sm:$0xff]
  %v3236 = vld [vmem:[%s4 + $0x10] sm:$0xff]
  %v3237 = vld [vmem:[%s4 + $0x18] sm:$0xff]
  %v3238 = vld [vmem:[%s4 + $0x20] sm:$0xff]
  %v3239 = vld [vmem:[%s4 + $0x28] sm:$0xff]
  %v3240 = vld [vmem:[%s4 + $0x30] sm:$0xff]
  %v3241 = vld [vmem:[%s4 + $0x38] sm:$0xff]
  %v3242 = vld [vmem:[%s4 + $0x40] sm:$0xff]
  %v3243 = vld [vmem:[%s4 + $0x48] sm:$0xff]
  %v3244 = vld [vmem:[%s4 + $0x50] sm:$0xff]
  %v3245 = vld [vmem:[%s4 + $0x58] sm:$0xff]
  %v3246 = vld [vmem:[%s4 + $0x60] sm:$0xff]
  %v3247 = vld [vmem:[%s4 + $0x68] sm:$0xff]
  %v3248 = vld [vmem:[%s4 + $0x70] sm:$0xff]
  %v3249 = vld [vmem:[%s4 + $0x78] sm:$0xff]
  %v3250 = vld [vmem:[%s4 + $0x80] sm:$0xff]
  %v3251 = vld [vmem:[%s3] sm:$0xff]
  %v3252 = vld [vmem:[%s3 + $0x8] sm:$0xff]
  %v3253 = vld [vmem:[%s3 + $0x10] sm:$0xff]
  %v3254 = vld [vmem:[%s3 + $0x18] sm:$0xff]
  %v3255 = vld [vmem:[%s3 + $0x20] sm:$0xff]
  %v3256 = vld [vmem:[%s3 + $0x28] sm:$0xff]
  %v3257 = vld [vmem:[%s3 + $0x30] sm:$0xff]
  %v3258 = vld [vmem:[%s3 + $0x38] sm:$0xff]
  %v3259 = vld [vmem:[%s3 + $0x40] sm:$0xff]
  %v3260 = vld [vmem:[%s3 + $0x48] sm:$0xff]
  %v3261 = vld [vmem:[%s3 + $0x50] sm:$0xff]
  %v3262 = vld [vmem:[%s3 + $0x58] sm:$0xff]
  %v3263 = vld [vmem:[%s3 + $0x60] sm:$0xff]
  %v3264 = vld [vmem:[%s3 + $0x68] sm:$0xff]
  %v3265 = vld [vmem:[%s3 + $0x70] sm:$0xff]
  %v3266 = vld [vmem:[%s3 + $0x78] sm:$0xff]
  %v3267 = vld [vmem:[%s3 + $0x80] sm:$0xff]
  %v3268 = vld [vmem:[%s3 + $0x88] sm:$0xff]
  %v3269 = vld [vmem:[%s3 + $0x90] sm:$0xff]
  %v3270 = vld [vmem:[%s3 + $0x98] sm:$0xff]
  %v3271 = vld [vmem:[%s3 + $0xa0] sm:$0xff]
  %v3272 = vld [vmem:[%s3 + $0xa8] sm:$0xff]
  %v3273 = vld [vmem:[%s3 + $0xb0] sm:$0xff]
  %v3274 = vld [vmem:[%s3 + $0xb8] sm:$0xff]
  %v3275 = vld [vmem:[%s3 + $0xc0] sm:$0xff]
  %v3276 = vld [vmem:[%s3 + $0xc8] sm:$0xff]
  %v3277 = vld [vmem:[%s3 + $0xd0] sm:$0xff]
  %v3278 = vld [vmem:[%s3 + $0xd8] sm:$0xff]
  %v3279 = vld [vmem:[%s3 + $0xe0] sm:$0xff]
  %v3280 = vld [vmem:[%s3 + $0xe8] sm:$0xff]
  %v3281 = vld [vmem:[%s3 + $0xf0] sm:$0xff]
  %v3282 = vld [vmem:[%s3 + $0xf8] sm:$0xff]
  %v3283 = vld [vmem:[%s3 + $0x100] sm:$0xff]
  %v3284 = vld [vmem:[%s3 + $0x108] sm:$0xff]
  %v3285 = vld [vmem:[%s3 + $0x110] sm:$0xff]
  %v3286 = vld [vmem:[%s3 + $0x118] sm:$0xff]
  %v3287 = vld [vmem:[%s3 + $0x120] sm:$0xff]
  %v3288 = vld [vmem:[%s3 + $0x128] sm:$0xff]
  %v3289 = vld [vmem:[%s3 + $0x130] sm:$0xff]
  %v3290 = vld [vmem:[%s3 + $0x138] sm:$0xff]
  %v3291 = vld [vmem:[%s3 + $0x140] sm:$0xff]
  %v3292 = vld [vmem:[%s3 + $0x148] sm:$0xff]
  %v3293 = vld [vmem:[%s3 + $0x150] sm:$0xff]
  %v3294 = vld [vmem:[%s3 + $0x158] sm:$0xff]
  %v3295 = vld [vmem:[%s3 + $0x160] sm:$0xff]
  %v3296 = vld [vmem:[%s3 + $0x168] sm:$0xff]
  %v3297 = vld [vmem:[%s3 + $0x170] sm:$0xff]
  %v3298 = vld [vmem:[%s3 + $0x178] sm:$0xff]
  %v3299 = vld [vmem:[%s3 + $0x180] sm:$0xff]
  %v3300 = vld [vmem:[%s3 + $0x188] sm:$0xff]
  %v3301 = vld [vmem:[%s3 + $0x190] sm:$0xff]
  %v3302 = vld [vmem:[%s3 + $0x198] sm:$0xff]
  %v3303 = vld [vmem:[%s3 + $0x1a0] sm:$0xff]
  %v3304 = vld [vmem:[%s3 + $0x1a8] sm:$0xff]
  %v3305 = vld [vmem:[%s3 + $0x1b0] sm:$0xff]
  %v3306 = vld [vmem:[%s3 + $0x1b8] sm:$0xff]
  %v3363 = vunpack.c.l.b16 %v3251
  %v3364 = vunpack.c.h.b16 %v3251
  %v3365 = vunpack.c.l.b16 %v3252
  %v3366 = vunpack.c.h.b16 %v3252
  %v3367 = vunpack.c.l.b16 %v3253
  %v3368 = vunpack.c.h.b16 %v3253
  %v3369 = vunpack.c.l.b16 %v3254
  %v3370 = vunpack.c.h.b16 %v3254
  %v3371 = vunpack.c.l.b16 %v3255
  %v3372 = vunpack.c.h.b16 %v3255
  %v3373 = vunpack.c.l.b16 %v3256
  %v3374 = vunpack.c.h.b16 %v3256
  %v3375 = vunpack.c.l.b16 %v3257
  %v3376 = vunpack.c.h.b16 %v3257
  %v3377 = vunpack.c.l.b16 %v3258
  %v3378 = vunpack.c.h.b16 %v3258
  %v3379 = vunpack.c.l.b16 %v3259
  %v3380 = vunpack.c.h.b16 %v3259
  %v3381 = vunpack.c.l.b16 %v3260
  %v3382 = vunpack.c.h.b16 %v3260
  %v3383 = vunpack.c.l.b16 %v3261
  %v3384 = vunpack.c.h.b16 %v3261
  %v3385 = vunpack.c.l.b16 %v3262
  %v3386 = vunpack.c.h.b16 %v3262
  %v3387 = vunpack.c.l.b16 %v3263
  %v3388 = vunpack.c.h.b16 %v3263
  %v3389 = vunpack.c.l.b16 %v3264
  %v3390 = vunpack.c.h.b16 %v3264
  %v3391 = vunpack.c.l.b16 %v3265
  %v3392 = vunpack.c.h.b16 %v3265
  %v3393 = vunpack.c.l.b16 %v3266
  %v3394 = vunpack.c.h.b16 %v3266
  %v3395 = vunpack.c.l.b16 %v3267
  %v3396 = vunpack.c.h.b16 %v3267
  %v3397 = vunpack.c.l.b16 %v3268
  %v3398 = vunpack.c.h.b16 %v3268
  %v3399 = vunpack.c.l.b16 %v3269
  %v3400 = vunpack.c.h.b16 %v3269
  %v3401 = vunpack.c.l.b16 %v3270
  %v3402 = vunpack.c.h.b16 %v3270
  %v3403 = vunpack.c.l.b16 %v3271
  %v3404 = vunpack.c.h.b16 %v3271
  %v3405 = vunpack.c.l.b16 %v3272
  %v3406 = vunpack.c.h.b16 %v3272
  %v3407 = vunpack.c.l.b16 %v3273
  %v3408 = vunpack.c.h.b16 %v3273
  %v3409 = vunpack.c.l.b16 %v3274
  %v3410 = vunpack.c.h.b16 %v3274
  %v3411 = vunpack.c.l.b16 %v3275
  %v3412 = vunpack.c.h.b16 %v3275
  %v3413 = vunpack.c.l.b16 %v3276
  %v3414 = vunpack.c.h.b16 %v3276
  %v3415 = vunpack.c.l.b16 %v3277
  %v3416 = vunpack.c.h.b16 %v3277
  %v3417 = vunpack.c.l.b16 %v3278
  %v3418 = vunpack.c.h.b16 %v3278
  %v3419 = vunpack.c.l.b16 %v3279
  %v3420 = vunpack.c.h.b16 %v3279
  %v3421 = vunpack.c.l.b16 %v3280
  %v3422 = vunpack.c.h.b16 %v3280
  %v3423 = vunpack.c.l.b16 %v3281
  %v3424 = vunpack.c.h.b16 %v3281
  %v3425 = vunpack.c.l.b16 %v3282
  %v3426 = vunpack.c.h.b16 %v3282
  %v3427 = vunpack.c.l.b16 %v3283
  %v3428 = vunpack.c.h.b16 %v3283
  %v3429 = vunpack.c.l.b16 %v3284
  %v3430 = vunpack.c.h.b16 %v3284
  %v3431 = vunpack.c.l.b16 %v3285
  %v3432 = vunpack.c.h.b16 %v3285
  %v3433 = vunpack.c.l.b16 %v3286
  %v3434 = vunpack.c.h.b16 %v3286
  %v3435 = vunpack.c.l.b16 %v3287
  %v3436 = vunpack.c.h.b16 %v3287
  %v3437 = vunpack.c.l.b16 %v3288
  %v3438 = vunpack.c.h.b16 %v3288
  %v3439 = vunpack.c.l.b16 %v3289
  %v3440 = vunpack.c.h.b16 %v3289
  %v3441 = vunpack.c.l.b16 %v3290
  %v3442 = vunpack.c.h.b16 %v3290
  %v3443 = vunpack.c.l.b16 %v3291
  %v3444 = vunpack.c.h.b16 %v3291
  %v3445 = vunpack.c.l.b16 %v3292
  %v3446 = vunpack.c.h.b16 %v3292
  %v3447 = vunpack.c.l.b16 %v3293
  %v3448 = vunpack.c.h.b16 %v3293
  %v3449 = vunpack.c.l.b16 %v3294
  %v3450 = vunpack.c.h.b16 %v3294
  %v3451 = vunpack.c.l.b16 %v3295
  %v3452 = vunpack.c.h.b16 %v3295
  %v3453 = vunpack.c.l.b16 %v3296
  %v3454 = vunpack.c.h.b16 %v3296
  %v3455 = vunpack.c.l.b16 %v3297
  %v3456 = vunpack.c.h.b16 %v3297
  %v3457 = vunpack.c.l.b16 %v3298
  %v3458 = vunpack.c.h.b16 %v3298
  %v3459 = vunpack.c.l.b16 %v3299
  %v3460 = vunpack.c.h.b16 %v3299
  %v3461 = vunpack.c.l.b16 %v3300
  %v3462 = vunpack.c.h.b16 %v3300
  %v3463 = vunpack.c.l.b16 %v3301
  %v3464 = vunpack.c.h.b16 %v3301
  %v3465 = vunpack.c.l.b16 %v3302
  %v3466 = vunpack.c.h.b16 %v3302
  %v3467 = vunpack.c.l.b16 %v3303
  %v3468 = vunpack.c.h.b16 %v3303
  %v3469 = vunpack.c.l.b16 %v3304
  %v3470 = vunpack.c.h.b16 %v3304
  %v3471 = vunpack.c.l.b16 %v3305
  %v3472 = vunpack.c.h.b16 %v3305
  %v3473 = vunpack.c.l.b16 %v3306
  %v3474 = vunpack.c.h.b16 %v3306
  %v3475 = vpack.c.b16 %v3365, %v3363
  %v3476 = vpack.c.b16 %v3366, %v3364
  %v3477 = vpack.c.b16 %v3369, %v3367
  %v3478 = vpack.c.b16 %v3370, %v3368
  %v3479 = vpack.c.b16 %v3373, %v3371
  %v3480 = vpack.c.b16 %v3374, %v3372
  %v3481 = vpack.c.b16 %v3377, %v3375
  %v3482 = vpack.c.b16 %v3378, %v3376
  %v3483 = vpack.c.b16 %v3381, %v3379
  %v3484 = vpack.c.b16 %v3382, %v3380
  %v3485 = vpack.c.b16 %v3385, %v3383
  %v3486 = vpack.c.b16 %v3386, %v3384
  %v3487 = vpack.c.b16 %v3389, %v3387
  %v3488 = vpack.c.b16 %v3390, %v3388
  %v3489 = vpack.c.b16 %v3393, %v3391
  %v3490 = vpack.c.b16 %v3394, %v3392
  %v3491 = vpack.c.b16 %v3397, %v3395
  %v3492 = vpack.c.b16 %v3398, %v3396
  %v3493 = vpack.c.b16 %v3401, %v3399
  %v3494 = vpack.c.b16 %v3402, %v3400
  %v3495 = vpack.c.b16 %v3405, %v3403
  %v3496 = vpack.c.b16 %v3406, %v3404
  %v3497 = vpack.c.b16 %v3409, %v3407
  %v3498 = vpack.c.b16 %v3410, %v3408
  %v3499 = vpack.c.b16 %v3413, %v3411
  %v3500 = vpack.c.b16 %v3414, %v3412
  %v3501 = vpack.c.b16 %v3417, %v3415
  %v3502 = vpack.c.b16 %v3418, %v3416
  %v3503 = vpack.c.b16 %v3421, %v3419
  %v3504 = vpack.c.b16 %v3422, %v3420
  %v3505 = vpack.c.b16 %v3425, %v3423
  %v3506 = vpack.c.b16 %v3426, %v3424
  %v3507 = vpack.c.b16 %v3429, %v3427
  %v3508 = vpack.c.b16 %v3430, %v3428
  %v3509 = vpack.c.b16 %v3433, %v3431
  %v3510 = vpack.c.b16 %v3434, %v3432
  %v3511 = vpack.c.b16 %v3437, %v3435
  %v3512 = vpack.c.b16 %v3438, %v3436
  %v3513 = vpack.c.b16 %v3441, %v3439
  %v3514 = vpack.c.b16 %v3442, %v3440
  %v3515 = vpack.c.b16 %v3445, %v3443
  %v3516 = vpack.c.b16 %v3446, %v3444
  %v3517 = vpack.c.b16 %v3449, %v3447
  %v3518 = vpack.c.b16 %v3450, %v3448
  %v3519 = vpack.c.b16 %v3453, %v3451
  %v3520 = vpack.c.b16 %v3454, %v3452
  %v3521 = vpack.c.b16 %v3457, %v3455
  %v3522 = vpack.c.b16 %v3458, %v3456
  %v3523 = vpack.c.b16 %v3461, %v3459
  %v3524 = vpack.c.b16 %v3462, %v3460
  %v3525 = vpack.c.b16 %v3465, %v3463
  %v3526 = vpack.c.b16 %v3466, %v3464
  %v3527 = vpack.c.b16 %v3469, %v3467
  %v3528 = vpack.c.b16 %v3470, %v3468
  %v3529 = vpack.c.b16 %v3473, %v3471
  %v3530 = vpack.c.b16 %v3474, %v3472
  %vm3587 = vcmask 523264
  %v3589 = vsel %vm3587, %v3173, 0
  %v3592 = vsel %vm3587, %v3177, 0
  %v3595 = vsel %vm3587, %v3181, 0
  %v3598 = vsel %vm3587, %v3185, 0
  %v3601 = vsel %vm3587, %v3189, 0
  %v3604 = vsel %vm3587, %v3193, 0
  %v3607 = vsel %vm3587, %v3197, 0
  %v3610 = vsel %vm3587, %v3201, 0
  %v3613 = vsel %vm3587, %v3205, 0
  %v3616 = vsel %vm3587, %v3209, 0
  %v3619 = vsel %vm3587, %v3213, 0
  %v3622 = vsel %vm3587, %v3217, 0
  %v3625 = vsel %vm3587, %v3221, 0
  %v3628 = vsel %vm3587, %v3225, 0
  %v3631 = vsel %vm3587, %v3229, 0
  %v3634 = vsel %vm3587, %v3233, 0
  %3636 = vmatprep.subr.bf16.mxu0 %v3490
  %3637 = vmatpush1.bf16.msra.mxu0 %v3489
  %3638 = vmatprep.subr.bf16.mxu0 %v3488
  %3639 = vmatpush1.bf16.msra.mxu0 %v3487
  %3640 = vmatprep.subr.bf16.mxu0 %v3486
  %3641 = vmatpush1.bf16.msra.mxu0 %v3485
  %3642 = vmatprep.subr.bf16.mxu0 %v3484
  %3643 = vmatpush1.bf16.msra.mxu0 %v3483
  %3644 = vmatprep.subr.bf16.mxu0 %v3482
  %3645 = vmatpush1.bf16.msra.mxu0 %v3481
  %3646 = vmatprep.subr.bf16.mxu0 %v3480
  %3647 = vmatpush1.bf16.msra.mxu0 %v3479
  %3648 = vmatprep.subr.bf16.mxu0 %v3478
  %3649 = vmatpush1.bf16.msra.mxu0 %v3477
  %3650 = vmatprep.subr.bf16.mxu0 %v3476
  %3651 = vmatpush1.bf16.msra.mxu0 %v3475
  %3652 = vmatprep.subr.bf16.mxu0 %v3506
  %3653 = vmatpush2.bf16.msra.mxu0 %v3505
  %3654 = vmatprep.subr.bf16.mxu0 %v3504
  %3655 = vmatpush2.bf16.msra.mxu0 %v3503
  %3656 = vmatprep.subr.bf16.mxu0 %v3502
  %3657 = vmatpush2.bf16.msra.mxu0 %v3501
  %3658 = vmatprep.subr.bf16.mxu0 %v3500
  %3659 = vmatpush2.bf16.msra.mxu0 %v3499
  %3660 = vmatprep.subr.bf16.mxu0 %v3498
  %3661 = vmatpush2.bf16.msra.mxu0 %v3497
  %3662 = vmatprep.subr.bf16.mxu0 %v3496
  %3663 = vmatpush2.bf16.msra.mxu0 %v3495
  %3664 = vmatprep.subr.bf16.mxu0 %v3494
  %3665 = vmatpush2.bf16.msra.mxu0 %v3493
  %3666 = vmatprep.subr.bf16.mxu0 %v3492
  %3667 = vmatpush2.bf16.msra.mxu0 %v3491
  %3668 = vmatprep.mubr.bf16.mxu0 %v3171
  %3669 = vmatmul.mubr.bf16.gmra.mxu0 %v3170
  %v3670 = vpop.f32.mrf.mxu0
  %v3671 = vadd.f32 0.0, %v3670
  %v3672 = vpop.f32.mrf.mxu0
  %v3673 = vadd.f32 0.0, %v3672
  %v3674 = vpop.f32.mrf.mxu0
  %v3675 = vadd.f32 0.0, %v3674
  %v3676 = vpop.f32.mrf.mxu0
  %v3677 = vadd.f32 0.0, %v3676
  %3678 = vmatprep.mubr.bf16.mxu0 %v3175
  %3679 = vmatmul.mubr.bf16.gmra.mxu0 %v3174
  %v3680 = vpop.f32.mrf.mxu0
  %v3681 = vadd.f32 0.0, %v3680
  %v3682 = vpop.f32.mrf.mxu0
  %v3683 = vadd.f32 0.0, %v3682
  %v3684 = vpop.f32.mrf.mxu0
  %v3685 = vadd.f32 0.0, %v3684
  %v3686 = vpop.f32.mrf.mxu0
  %v3687 = vadd.f32 0.0, %v3686
  %3688 = vmatprep.mubr.bf16.mxu0 %v3179
  %3689 = vmatmul.mubr.bf16.gmra.mxu0 %v3178
  %v3690 = vpop.f32.mrf.mxu0
  %v3691 = vadd.f32 0.0, %v3690
  %v3692 = vpop.f32.mrf.mxu0
  %v3693 = vadd.f32 0.0, %v3692
  %v3694 = vpop.f32.mrf.mxu0
  %v3695 = vadd.f32 0.0, %v3694
  %v3696 = vpop.f32.mrf.mxu0
  %v3697 = vadd.f32 0.0, %v3696
  %3698 = vmatprep.mubr.bf16.mxu0 %v3183
  %3699 = vmatmul.mubr.bf16.gmra.mxu0 %v3182
  %v3700 = vpop.f32.mrf.mxu0
  %v3701 = vadd.f32 0.0, %v3700
  %v3702 = vpop.f32.mrf.mxu0
  %v3703 = vadd.f32 0.0, %v3702
  %v3704 = vpop.f32.mrf.mxu0
  %v3705 = vadd.f32 0.0, %v3704
  %v3706 = vpop.f32.mrf.mxu0
  %v3707 = vadd.f32 0.0, %v3706
  %3708 = vmatprep.mubr.bf16.mxu0 %v3187
  %3709 = vmatmul.mubr.bf16.gmra.mxu0 %v3186
  %v3710 = vpop.f32.mrf.mxu0
  %v3711 = vadd.f32 0.0, %v3710
  %v3712 = vpop.f32.mrf.mxu0
  %v3713 = vadd.f32 0.0, %v3712
  %v3714 = vpop.f32.mrf.mxu0
  %v3715 = vadd.f32 0.0, %v3714
  %v3716 = vpop.f32.mrf.mxu0
  %v3717 = vadd.f32 0.0, %v3716
  %3718 = vmatprep.mubr.bf16.mxu0 %v3191
  %3719 = vmatmul.mubr.bf16.gmra.mxu0 %v3190
  %v3720 = vpop.f32.mrf.mxu0
  %v3721 = vadd.f32 0.0, %v3720
  %v3722 = vpop.f32.mrf.mxu0
  %v3723 = vadd.f32 0.0, %v3722
  %v3724 = vpop.f32.mrf.mxu0
  %v3725 = vadd.f32 0.0, %v3724
  %v3726 = vpop.f32.mrf.mxu0
  %v3727 = vadd.f32 0.0, %v3726
  %3728 = vmatprep.mubr.bf16.mxu0 %v3195
  %3729 = vmatmul.mubr.bf16.gmra.mxu0 %v3194
  %v3730 = vpop.f32.mrf.mxu0
  %v3731 = vadd.f32 0.0, %v3730
  %v3732 = vpop.f32.mrf.mxu0
  %v3733 = vadd.f32 0.0, %v3732
  %v3734 = vpop.f32.mrf.mxu0
  %v3735 = vadd.f32 0.0, %v3734
  %v3736 = vpop.f32.mrf.mxu0
  %v3737 = vadd.f32 0.0, %v3736
  %3738 = vmatprep.mubr.bf16.mxu0 %v3199
  %3739 = vmatmul.mubr.bf16.gmra.mxu0 %v3198
  %v3740 = vpop.f32.mrf.mxu0
  %v3741 = vadd.f32 0.0, %v3740
  %v3742 = vpop.f32.mrf.mxu0
  %v3743 = vadd.f32 0.0, %v3742
  %v3744 = vpop.f32.mrf.mxu0
  %v3745 = vadd.f32 0.0, %v3744
  %v3746 = vpop.f32.mrf.mxu0
  %v3747 = vadd.f32 0.0, %v3746
  %3748 = vmatprep.mubr.bf16.mxu0 %v3203
  %3749 = vmatmul.mubr.bf16.gmra.mxu0 %v3202
  %v3750 = vpop.f32.mrf.mxu0
  %v3751 = vadd.f32 0.0, %v3750
  %v3752 = vpop.f32.mrf.mxu0
  %v3753 = vadd.f32 0.0, %v3752
  %v3754 = vpop.f32.mrf.mxu0
  %v3755 = vadd.f32 0.0, %v3754
  %v3756 = vpop.f32.mrf.mxu0
  %v3757 = vadd.f32 0.0, %v3756
  %3758 = vmatprep.mubr.bf16.mxu0 %v3207
  %3759 = vmatmul.mubr.bf16.gmra.mxu0 %v3206
  %v3760 = vpop.f32.mrf.mxu0
  %v3761 = vadd.f32 0.0, %v3760
  %v3762 = vpop.f32.mrf.mxu0
  %v3763 = vadd.f32 0.0, %v3762
  %v3764 = vpop.f32.mrf.mxu0
  %v3765 = vadd.f32 0.0, %v3764
  %v3766 = vpop.f32.mrf.mxu0
  %v3767 = vadd.f32 0.0, %v3766
  %3768 = vmatprep.mubr.bf16.mxu0 %v3211
  %3769 = vmatmul.mubr.bf16.gmra.mxu0 %v3210
  %v3770 = vpop.f32.mrf.mxu0
  %v3771 = vadd.f32 0.0, %v3770
  %v3772 = vpop.f32.mrf.mxu0
  %v3773 = vadd.f32 0.0, %v3772
  %v3774 = vpop.f32.mrf.mxu0
  %v3775 = vadd.f32 0.0, %v3774
  %v3776 = vpop.f32.mrf.mxu0
  %v3777 = vadd.f32 0.0, %v3776
  %3778 = vmatprep.mubr.bf16.mxu0 %v3215
  %3779 = vmatmul.mubr.bf16.gmra.mxu0 %v3214
  %v3780 = vpop.f32.mrf.mxu0
  %v3781 = vadd.f32 0.0, %v3780
  %v3782 = vpop.f32.mrf.mxu0
  %v3783 = vadd.f32 0.0, %v3782
  %v3784 = vpop.f32.mrf.mxu0
  %v3785 = vadd.f32 0.0, %v3784
  %v3786 = vpop.f32.mrf.mxu0
  %v3787 = vadd.f32 0.0, %v3786
  %3788 = vmatprep.mubr.bf16.mxu0 %v3219
  %3789 = vmatmul.mubr.bf16.gmra.mxu0 %v3218
  %v3790 = vpop.f32.mrf.mxu0
  %v3791 = vadd.f32 0.0, %v3790
  %v3792 = vpop.f32.mrf.mxu0
  %v3793 = vadd.f32 0.0, %v3792
  %v3794 = vpop.f32.mrf.mxu0
  %v3795 = vadd.f32 0.0, %v3794
  %v3796 = vpop.f32.mrf.mxu0
  %v3797 = vadd.f32 0.0, %v3796
  %3798 = vmatprep.mubr.bf16.mxu0 %v3223
  %3799 = vmatmul.mubr.bf16.gmra.mxu0 %v3222
  %v3800 = vpop.f32.mrf.mxu0
  %v3801 = vadd.f32 0.0, %v3800
  %v3802 = vpop.f32.mrf.mxu0
  %v3803 = vadd.f32 0.0, %v3802
  %v3804 = vpop.f32.mrf.mxu0
  %v3805 = vadd.f32 0.0, %v3804
  %v3806 = vpop.f32.mrf.mxu0
  %v3807 = vadd.f32 0.0, %v3806
  %3808 = vmatprep.mubr.bf16.mxu0 %v3227
  %3809 = vmatmul.mubr.bf16.gmra.mxu0 %v3226
  %v3810 = vpop.f32.mrf.mxu0
  %v3811 = vadd.f32 0.0, %v3810
  %v3812 = vpop.f32.mrf.mxu0
  %v3813 = vadd.f32 0.0, %v3812
  %v3814 = vpop.f32.mrf.mxu0
  %v3815 = vadd.f32 0.0, %v3814
  %v3816 = vpop.f32.mrf.mxu0
  %v3817 = vadd.f32 0.0, %v3816
  %3818 = vmatprep.mubr.bf16.mxu0 %v3231
  %3819 = vmatmul.mubr.bf16.gmra.mxu0 %v3230
  %v3820 = vpop.f32.mrf.mxu0
  %v3821 = vadd.f32 0.0, %v3820
  %v3822 = vpop.f32.mrf.mxu0
  %v3823 = vadd.f32 0.0, %v3822
  %v3824 = vpop.f32.mrf.mxu0
  %v3825 = vadd.f32 0.0, %v3824
  %v3826 = vpop.f32.mrf.mxu0
  %v3827 = vadd.f32 0.0, %v3826
  %3828 = vdwg.mxu0
  %3829 = vmatprep.subr.bf16.mxu0 %v3522
  %3830 = vmatpush1.bf16.msra.mxu0 %v3521
  %3831 = vmatprep.subr.bf16.mxu0 %v3520
  %3832 = vmatpush1.bf16.msra.mxu0 %v3519
  %3833 = vmatprep.subr.bf16.mxu0 %v3518
  %3834 = vmatpush1.bf16.msra.mxu0 %v3517
  %3835 = vmatprep.subr.bf16.mxu0 %v3516
  %3836 = vmatpush1.bf16.msra.mxu0 %v3515
  %3837 = vmatprep.subr.bf16.mxu0 %v3514
  %3838 = vmatpush1.bf16.msra.mxu0 %v3513
  %3839 = vmatprep.subr.bf16.mxu0 %v3512
  %3840 = vmatpush1.bf16.msra.mxu0 %v3511
  %3841 = vmatprep.subr.bf16.mxu0 %v3510
  %3842 = vmatpush1.bf16.msra.mxu0 %v3509
  %3843 = vmatprep.subr.bf16.mxu0 %v3508
  %3844 = vmatpush1.bf16.msra.mxu0 %v3507
  %3845 = vmatprep.subr.bf16.mxu0 0
  %3846 = vmatpush2.bf16.msra.mxu0 0
  %3847 = vmatprep.subr.bf16.mxu0 0
  %3848 = vmatpush2.bf16.msra.mxu0 0
  %3849 = vmatprep.subr.bf16.mxu0 0
  %3850 = vmatpush2.bf16.msra.mxu0 0
  %3851 = vmatprep.subr.bf16.mxu0 0
  %3852 = vmatpush2.bf16.msra.mxu0 0
  %3853 = vmatprep.subr.bf16.mxu0 %v3530
  %3854 = vmatpush2.bf16.msra.mxu0 %v3529
  %3855 = vmatprep.subr.bf16.mxu0 %v3528
  %3856 = vmatpush2.bf16.msra.mxu0 %v3527
  %3857 = vmatprep.subr.bf16.mxu0 %v3526
  %3858 = vmatpush2.bf16.msra.mxu0 %v3525
  %3859 = vmatprep.subr.bf16.mxu0 %v3524
  %3860 = vmatpush2.bf16.msra.mxu0 %v3523
  %3861 = vmatprep.mubr.bf16.mxu0 %v3589
  %3862 = vmatmul.mubr.bf16.gmra.mxu0 %v3172
  %v3863 = vpop.f32.mrf.mxu0
  %v3864 = vadd.f32 %v3671, %v3863
  %v3865 = vpop.f32.mrf.mxu0
  %v3866 = vadd.f32 %v3673, %v3865
  %v3867 = vpop.f32.mrf.mxu0
  %v3868 = vadd.f32 %v3675, %v3867
  %v3869 = vpop.f32.mrf.mxu0
  %v3870 = vadd.f32 %v3677, %v3869
  %3871 = vmatprep.mubr.bf16.mxu0 %v3592
  %3872 = vmatmul.mubr.bf16.gmra.mxu0 %v3176
  %v3873 = vpop.f32.mrf.mxu0
  %v3874 = vadd.f32 %v3681, %v3873
  %v3875 = vpop.f32.mrf.mxu0
  %v3876 = vadd.f32 %v3683, %v3875
  %v3877 = vpop.f32.mrf.mxu0
  %v3878 = vadd.f32 %v3685, %v3877
  %v3879 = vpop.f32.mrf.mxu0
  %v3880 = vadd.f32 %v3687, %v3879
  %3881 = vmatprep.mubr.bf16.mxu0 %v3595
  %3882 = vmatmul.mubr.bf16.gmra.mxu0 %v3180
  %v3883 = vpop.f32.mrf.mxu0
  %v3884 = vadd.f32 %v3691, %v3883
  %v3885 = vpop.f32.mrf.mxu0
  %v3886 = vadd.f32 %v3693, %v3885
  %v3887 = vpop.f32.mrf.mxu0
  %v3888 = vadd.f32 %v3695, %v3887
  %v3889 = vpop.f32.mrf.mxu0
  %v3890 = vadd.f32 %v3697, %v3889
  %3891 = vmatprep.mubr.bf16.mxu0 %v3598
  %3892 = vmatmul.mubr.bf16.gmra.mxu0 %v3184
  %v3893 = vpop.f32.mrf.mxu0
  %v3894 = vadd.f32 %v3701, %v3893
  %v3895 = vpop.f32.mrf.mxu0
  %v3896 = vadd.f32 %v3703, %v3895
  %v3897 = vpop.f32.mrf.mxu0
  %v3898 = vadd.f32 %v3705, %v3897
  %v3899 = vpop.f32.mrf.mxu0
  %v3900 = vadd.f32 %v3707, %v3899
  %3901 = vmatprep.mubr.bf16.mxu0 %v3601
  %3902 = vmatmul.mubr.bf16.gmra.mxu0 %v3188
  %v3903 = vpop.f32.mrf.mxu0
  %v3904 = vadd.f32 %v3711, %v3903
  %v3905 = vpop.f32.mrf.mxu0
  %v3906 = vadd.f32 %v3713, %v3905
  %v3907 = vpop.f32.mrf.mxu0
  %v3908 = vadd.f32 %v3715, %v3907
  %v3909 = vpop.f32.mrf.mxu0
  %v3910 = vadd.f32 %v3717, %v3909
  %3911 = vmatprep.mubr.bf16.mxu0 %v3604
  %3912 = vmatmul.mubr.bf16.gmra.mxu0 %v3192
  %v3913 = vpop.f32.mrf.mxu0
  %v3914 = vadd.f32 %v3721, %v3913
  %v3915 = vpop.f32.mrf.mxu0
  %v3916 = vadd.f32 %v3723, %v3915
  %v3917 = vpop.f32.mrf.mxu0
  %v3918 = vadd.f32 %v3725, %v3917
  %v3919 = vpop.f32.mrf.mxu0
  %v3920 = vadd.f32 %v3727, %v3919
  %3921 = vmatprep.mubr.bf16.mxu0 %v3607
  %3922 = vmatmul.mubr.bf16.gmra.mxu0 %v3196
  %v3923 = vpop.f32.mrf.mxu0
  %v3924 = vadd.f32 %v3731, %v3923
  %v3925 = vpop.f32.mrf.mxu0
  %v3926 = vadd.f32 %v3733, %v3925
  %v3927 = vpop.f32.mrf.mxu0
  %v3928 = vadd.f32 %v3735, %v3927
  %v3929 = vpop.f32.mrf.mxu0
  %v3930 = vadd.f32 %v3737, %v3929
  %3931 = vmatprep.mubr.bf16.mxu0 %v3610
  %3932 = vmatmul.mubr.bf16.gmra.mxu0 %v3200
  %v3933 = vpop.f32.mrf.mxu0
  %v3934 = vadd.f32 %v3741, %v3933
  %v3935 = vpop.f32.mrf.mxu0
  %v3936 = vadd.f32 %v3743, %v3935
  %v3937 = vpop.f32.mrf.mxu0
  %v3938 = vadd.f32 %v3745, %v3937
  %v3939 = vpop.f32.mrf.mxu0
  %v3940 = vadd.f32 %v3747, %v3939
  %3941 = vmatprep.mubr.bf16.mxu0 %v3613
  %3942 = vmatmul.mubr.bf16.gmra.mxu0 %v3204
  %v3943 = vpop.f32.mrf.mxu0
  %v3944 = vadd.f32 %v3751, %v3943
  %v3945 = vpop.f32.mrf.mxu0
  %v3946 = vadd.f32 %v3753, %v3945
  %v3947 = vpop.f32.mrf.mxu0
  %v3948 = vadd.f32 %v3755, %v3947
  %v3949 = vpop.f32.mrf.mxu0
  %v3950 = vadd.f32 %v3757, %v3949
  %3951 = vmatprep.mubr.bf16.mxu0 %v3616
  %3952 = vmatmul.mubr.bf16.gmra.mxu0 %v3208
  %v3953 = vpop.f32.mrf.mxu0
  %v3954 = vadd.f32 %v3761, %v3953
  %v3955 = vpop.f32.mrf.mxu0
  %v3956 = vadd.f32 %v3763, %v3955
  %v3957 = vpop.f32.mrf.mxu0
  %v3958 = vadd.f32 %v3765, %v3957
  %v3959 = vpop.f32.mrf.mxu0
  %v3960 = vadd.f32 %v3767, %v3959
  %3961 = vmatprep.mubr.bf16.mxu0 %v3619
  %3962 = vmatmul.mubr.bf16.gmra.mxu0 %v3212
  %v3963 = vpop.f32.mrf.mxu0
  %v3964 = vadd.f32 %v3771, %v3963
  %v3965 = vpop.f32.mrf.mxu0
  %v3966 = vadd.f32 %v3773, %v3965
  %v3967 = vpop.f32.mrf.mxu0
  %v3968 = vadd.f32 %v3775, %v3967
  %v3969 = vpop.f32.mrf.mxu0
  %v3970 = vadd.f32 %v3777, %v3969
  %3971 = vmatprep.mubr.bf16.mxu0 %v3622
  %3972 = vmatmul.mubr.bf16.gmra.mxu0 %v3216
  %v3973 = vpop.f32.mrf.mxu0
  %v3974 = vadd.f32 %v3781, %v3973
  %v3975 = vpop.f32.mrf.mxu0
  %v3976 = vadd.f32 %v3783, %v3975
  %v3977 = vpop.f32.mrf.mxu0
  %v3978 = vadd.f32 %v3785, %v3977
  %v3979 = vpop.f32.mrf.mxu0
  %v3980 = vadd.f32 %v3787, %v3979
  %3981 = vmatprep.mubr.bf16.mxu0 %v3625
  %3982 = vmatmul.mubr.bf16.gmra.mxu0 %v3220
  %v3983 = vpop.f32.mrf.mxu0
  %v3984 = vadd.f32 %v3791, %v3983
  %v3985 = vpop.f32.mrf.mxu0
  %v3986 = vadd.f32 %v3793, %v3985
  %v3987 = vpop.f32.mrf.mxu0
  %v3988 = vadd.f32 %v3795, %v3987
  %v3989 = vpop.f32.mrf.mxu0
  %v3990 = vadd.f32 %v3797, %v3989
  %3991 = vmatprep.mubr.bf16.mxu0 %v3628
  %3992 = vmatmul.mubr.bf16.gmra.mxu0 %v3224
  %v3993 = vpop.f32.mrf.mxu0
  %v3994 = vadd.f32 %v3801, %v3993
  %v3995 = vpop.f32.mrf.mxu0
  %v3996 = vadd.f32 %v3803, %v3995
  %v3997 = vpop.f32.mrf.mxu0
  %v3998 = vadd.f32 %v3805, %v3997
  %v3999 = vpop.f32.mrf.mxu0
  %v4000 = vadd.f32 %v3807, %v3999
  %4001 = vmatprep.mubr.bf16.mxu0 %v3631
  %4002 = vmatmul.mubr.bf16.gmra.mxu0 %v3228
  %v4003 = vpop.f32.mrf.mxu0
  %v4004 = vadd.f32 %v3811, %v4003
  %v4005 = vpop.f32.mrf.mxu0
  %v4006 = vadd.f32 %v3813, %v4005
  %v4007 = vpop.f32.mrf.mxu0
  %v4008 = vadd.f32 %v3815, %v4007
  %v4009 = vpop.f32.mrf.mxu0
  %v4010 = vadd.f32 %v3817, %v4009
  %4011 = vmatprep.mubr.bf16.mxu0 %v3634
  %4012 = vmatmul.mubr.bf16.gmra.mxu0 %v3232
  %v4013 = vpop.f32.mrf.mxu0
  %v4014 = vadd.f32 %v3821, %v4013
  %v4015 = vpop.f32.mrf.mxu0
  %v4016 = vadd.f32 %v3823, %v4015
  %v4017 = vpop.f32.mrf.mxu0
  %v4018 = vadd.f32 %v3825, %v4017
  %v4019 = vpop.f32.mrf.mxu0
  %v4020 = vadd.f32 %v3827, %v4019
  %4021 = vdwg.mxu0
  %v4022 = vpack.c.bf16 %v3868, %v3864
  %v4023 = vpack.c.bf16 %v3870, %v3866
  %v4024 = vpack.c.bf16 %v3878, %v3874
  %v4025 = vpack.c.bf16 %v3880, %v3876
  %v4026 = vpack.c.bf16 %v3888, %v3884
  %v4027 = vpack.c.bf16 %v3890, %v3886
  %v4028 = vpack.c.bf16 %v3898, %v3894
  %v4029 = vpack.c.bf16 %v3900, %v3896
  %v4030 = vpack.c.bf16 %v3908, %v3904
  %v4031 = vpack.c.bf16 %v3910, %v3906
  %v4032 = vpack.c.bf16 %v3918, %v3914
  %v4033 = vpack.c.bf16 %v3920, %v3916
  %v4034 = vpack.c.bf16 %v3928, %v3924
  %v4035 = vpack.c.bf16 %v3930, %v3926
  %v4036 = vpack.c.bf16 %v3938, %v3934
  %v4037 = vpack.c.bf16 %v3940, %v3936
  %v4038 = vpack.c.bf16 %v3948, %v3944
  %v4039 = vpack.c.bf16 %v3950, %v3946
  %v4040 = vpack.c.bf16 %v3958, %v3954
  %v4041 = vpack.c.bf16 %v3960, %v3956
  %v4042 = vpack.c.bf16 %v3968, %v3964
  %v4043 = vpack.c.bf16 %v3970, %v3966
  %v4044 = vpack.c.bf16 %v3978, %v3974
  %v4045 = vpack.c.bf16 %v3980, %v3976
  %v4046 = vpack.c.bf16 %v3988, %v3984
  %v4047 = vpack.c.bf16 %v3990, %v3986
  %v4048 = vpack.c.bf16 %v3998, %v3994
  %v4049 = vpack.c.bf16 %v4000, %v3996
  %v4050 = vpack.c.bf16 %v4008, %v4004
  %v4051 = vpack.c.bf16 %v4010, %v4006
  %v4052 = vpack.c.bf16 %v4018, %v4014
  %v4053 = vpack.c.bf16 %v4020, %v4016
  %v4071 = vunpack.c.l.b16 %v3234
  %v4072 = vunpack.c.h.b16 %v3234
  %v4073 = vunpack.c.l.b16 %v3235
  %v4074 = vunpack.c.h.b16 %v3235
  %v4075 = vunpack.c.l.b16 %v3236
  %v4076 = vunpack.c.h.b16 %v3236
  %v4077 = vunpack.c.l.b16 %v3237
  %v4078 = vunpack.c.h.b16 %v3237
  %v4079 = vunpack.c.l.b16 %v3238
  %v4080 = vunpack.c.h.b16 %v3238
  %v4081 = vunpack.c.l.b16 %v3239
  %v4082 = vunpack.c.h.b16 %v3239
  %v4083 = vunpack.c.l.b16 %v3240
  %v4084 = vunpack.c.h.b16 %v3240
  %v4085 = vunpack.c.l.b16 %v3241
  %v4086 = vunpack.c.h.b16 %v3241
  %v4087 = vunpack.c.l.b16 %v3242
  %v4088 = vunpack.c.h.b16 %v3242
  %v4089 = vunpack.c.l.b16 %v3243
  %v4090 = vunpack.c.h.b16 %v3243
  %v4091 = vunpack.c.l.b16 %v3244
  %v4092 = vunpack.c.h.b16 %v3244
  %v4093 = vunpack.c.l.b16 %v3245
  %v4094 = vunpack.c.h.b16 %v3245
  %v4095 = vunpack.c.l.b16 %v3246
  %v4096 = vunpack.c.h.b16 %v3246
  %v4097 = vunpack.c.l.b16 %v3247
  %v4098 = vunpack.c.h.b16 %v3247
  %v4099 = vunpack.c.l.b16 %v3248
  %v4100 = vunpack.c.h.b16 %v3248
  %v4101 = vunpack.c.l.b16 %v3249
  %v4102 = vunpack.c.h.b16 %v3249
  %v4103 = vunpack.c.l.b16 %v3250
  %v4104 = vunpack.c.h.b16 %v3250
  %v4105 = vpack.c.b16 %v4073, %v4071
  %v4106 = vpack.c.b16 %v4074, %v4072
  %v4107 = vpack.c.b16 %v4077, %v4075
  %v4108 = vpack.c.b16 %v4078, %v4076
  %v4109 = vpack.c.b16 %v4081, %v4079
  %v4110 = vpack.c.b16 %v4082, %v4080
  %v4111 = vpack.c.b16 %v4085, %v4083
  %v4112 = vpack.c.b16 %v4086, %v4084
  %v4113 = vpack.c.b16 %v4089, %v4087
  %v4114 = vpack.c.b16 %v4090, %v4088
  %v4115 = vpack.c.b16 %v4093, %v4091
  %v4116 = vpack.c.b16 %v4094, %v4092
  %v4117 = vpack.c.b16 %v4097, %v4095
  %v4118 = vpack.c.b16 %v4098, %v4096
  %v4119 = vpack.c.b16 %v4101, %v4099
  %v4120 = vpack.c.b16 %v4102, %v4100
  %v4121 = vpack.c.b16 %v4103, %v4103
  %v4122 = vpack.c.b16 %v4104, %v4104
  %4141 = vmatprep.subr.bf16.mxu0 %v4037
  %4142 = vmatpush1.bf16.msra.mxu0 %v4036
  %4143 = vmatprep.subr.bf16.mxu0 %v4035
  %4144 = vmatpush1.bf16.msra.mxu0 %v4034
  %4145 = vmatprep.subr.bf16.mxu0 %v4033
  %4146 = vmatpush1.bf16.msra.mxu0 %v4032
  %4147 = vmatprep.subr.bf16.mxu0 %v4031
  %4148 = vmatpush1.bf16.msra.mxu0 %v4030
  %4149 = vmatprep.subr.bf16.mxu0 %v4029
  %4150 = vmatpush1.bf16.msra.mxu0 %v4028
  %4151 = vmatprep.subr.bf16.mxu0 %v4027
  %4152 = vmatpush1.bf16.msra.mxu0 %v4026
  %4153 = vmatprep.subr.bf16.mxu0 %v4025
  %4154 = vmatpush1.bf16.msra.mxu0 %v4024
  %4155 = vmatprep.subr.bf16.mxu0 %v4023
  %4156 = vmatpush1.bf16.msra.mxu0 %v4022
  %4157 = vmatprep.subr.bf16.mxu0 %v4053
  %4158 = vmatpush2.bf16.msra.mxu0 %v4052
  %4159 = vmatprep.subr.bf16.mxu0 %v4051
  %4160 = vmatpush2.bf16.msra.mxu0 %v4050
  %4161 = vmatprep.subr.bf16.mxu0 %v4049
  %4162 = vmatpush2.bf16.msra.mxu0 %v4048
  %4163 = vmatprep.subr.bf16.mxu0 %v4047
  %4164 = vmatpush2.bf16.msra.mxu0 %v4046
  %4165 = vmatprep.subr.bf16.mxu0 %v4045
  %4166 = vmatpush2.bf16.msra.mxu0 %v4044
  %4167 = vmatprep.subr.bf16.mxu0 %v4043
  %4168 = vmatpush2.bf16.msra.mxu0 %v4042
  %4169 = vmatprep.subr.bf16.mxu0 %v4041
  %4170 = vmatpush2.bf16.msra.mxu0 %v4040
  %4171 = vmatprep.subr.bf16.mxu0 %v4039
  %4172 = vmatpush2.bf16.msra.mxu0 %v4038
  %4173 = vmatprep.mubr.bf16.mxu0 %v4106
  %4174 = vmatmul.mubr.bf16.gmra.mxu0 %v4105
  %v4175 = vpop.f32.mrf.mxu0
  %v4176 = vadd.f32 0.0, %v4175
  %v4177 = vpop.f32.mrf.mxu0
  %v4178 = vadd.f32 0.0, %v4177
  %v4179 = vpop.f32.mrf.mxu0
  %v4180 = vadd.f32 0.0, %v4179
  %v4181 = vpop.f32.mrf.mxu0
  %v4182 = vadd.f32 0.0, %v4181
  %4183 = vmatprep.mubr.bf16.mxu0 %v4108
  %4184 = vmatmul.mubr.bf16.gmra.mxu0 %v4107
  %v4185 = vpop.f32.mrf.mxu0
  %v4186 = vadd.f32 0.0, %v4185
  %v4187 = vpop.f32.mrf.mxu0
  %v4188 = vadd.f32 0.0, %v4187
  %v4189 = vpop.f32.mrf.mxu0
  %v4190 = vadd.f32 0.0, %v4189
  %v4191 = vpop.f32.mrf.mxu0
  %v4192 = vadd.f32 0.0, %v4191
  %4193 = vmatprep.mubr.bf16.mxu0 %v4110
  %4194 = vmatmul.mubr.bf16.gmra.mxu0 %v4109
  %v4195 = vpop.f32.mrf.mxu0
  %v4196 = vadd.f32 0.0, %v4195
  %v4197 = vpop.f32.mrf.mxu0
  %v4198 = vadd.f32 0.0, %v4197
  %v4199 = vpop.f32.mrf.mxu0
  %v4200 = vadd.f32 0.0, %v4199
  %v4201 = vpop.f32.mrf.mxu0
  %v4202 = vadd.f32 0.0, %v4201
  %4203 = vmatprep.mubr.bf16.mxu0 %v4112
  %4204 = vmatmul.mubr.bf16.gmra.mxu0 %v4111
  %v4205 = vpop.f32.mrf.mxu0
  %v4206 = vadd.f32 0.0, %v4205
  %v4207 = vpop.f32.mrf.mxu0
  %v4208 = vadd.f32 0.0, %v4207
  %v4209 = vpop.f32.mrf.mxu0
  %v4210 = vadd.f32 0.0, %v4209
  %v4211 = vpop.f32.mrf.mxu0
  %v4212 = vadd.f32 0.0, %v4211
  %4213 = vmatprep.mubr.bf16.mxu0 %v4114
  %4214 = vmatmul.mubr.bf16.gmra.mxu0 %v4113
  %v4215 = vpop.f32.mrf.mxu0
  %v4216 = vadd.f32 0.0, %v4215
  %v4217 = vpop.f32.mrf.mxu0
  %v4218 = vadd.f32 0.0, %v4217
  %v4219 = vpop.f32.mrf.mxu0
  %v4220 = vadd.f32 0.0, %v4219
  %v4221 = vpop.f32.mrf.mxu0
  %v4222 = vadd.f32 0.0, %v4221
  %4223 = vmatprep.mubr.bf16.mxu0 %v4116
  %4224 = vmatmul.mubr.bf16.gmra.mxu0 %v4115
  %v4225 = vpop.f32.mrf.mxu0
  %v4226 = vadd.f32 0.0, %v4225
  %v4227 = vpop.f32.mrf.mxu0
  %v4228 = vadd.f32 0.0, %v4227
  %v4229 = vpop.f32.mrf.mxu0
  %v4230 = vadd.f32 0.0, %v4229
  %v4231 = vpop.f32.mrf.mxu0
  %v4232 = vadd.f32 0.0, %v4231
  %4233 = vmatprep.mubr.bf16.mxu0 %v4118
  %4234 = vmatmul.mubr.bf16.gmra.mxu0 %v4117
  %v4235 = vpop.f32.mrf.mxu0
  %v4236 = vadd.f32 0.0, %v4235
  %v4237 = vpop.f32.mrf.mxu0
  %v4238 = vadd.f32 0.0, %v4237
  %v4239 = vpop.f32.mrf.mxu0
  %v4240 = vadd.f32 0.0, %v4239
  %v4241 = vpop.f32.mrf.mxu0
  %v4242 = vadd.f32 0.0, %v4241
  %4243 = vmatprep.mubr.bf16.mxu0 %v4120
  %4244 = vmatmul.mubr.bf16.gmra.mxu0 %v4119
  %v4245 = vpop.f32.mrf.mxu0
  %v4246 = vadd.f32 0.0, %v4245
  %v4247 = vpop.f32.mrf.mxu0
  %v4248 = vadd.f32 0.0, %v4247
  %v4249 = vpop.f32.mrf.mxu0
  %v4250 = vadd.f32 0.0, %v4249
  %v4251 = vpop.f32.mrf.mxu0
  %v4252 = vadd.f32 0.0, %v4251
  %4253 = vmatprep.mubr.bf16.mxu0 %v4122
  %4254 = vmatmul.mubr.bf16.gmra.mxu0 %v4121
  %v4255 = vpop.f32.mrf.mxu0
  %v4256 = vadd.f32 0.0, %v4255
  %v4257 = vpop.f32.mrf.mxu0
  %v4258 = vadd.f32 0.0, %v4257
  %v4259 = vpop.f32.mrf.mxu0
  %v4260 = vpop.f32.mrf.mxu0
  %4261 = vdwg.mxu0
  %v4262 = vpack.c.bf16 %v4180, %v4176
  %v4263 = vpack.c.bf16 %v4182, %v4178
  %v4264 = vpack.c.bf16 %v4190, %v4186
  %v4265 = vpack.c.bf16 %v4192, %v4188
  %v4266 = vpack.c.bf16 %v4200, %v4196
  %v4267 = vpack.c.bf16 %v4202, %v4198
  %v4268 = vpack.c.bf16 %v4210, %v4206
  %v4269 = vpack.c.bf16 %v4212, %v4208
  %v4270 = vpack.c.bf16 %v4220, %v4216
  %v4271 = vpack.c.bf16 %v4222, %v4218
  %v4272 = vpack.c.bf16 %v4230, %v4226
  %v4273 = vpack.c.bf16 %v4232, %v4228
  %v4274 = vpack.c.bf16 %v4240, %v4236
  %v4275 = vpack.c.bf16 %v4242, %v4238
  %v4276 = vpack.c.bf16 %v4250, %v4246
  %v4277 = vpack.c.bf16 %v4252, %v4248
  %v4278 = vpack.c.bf16 %v4256, %v4256
  %v4279 = vpack.c.bf16 %v4258, %v4258
  %v4280 = vld [vmem:[%s5] sm:$0xff]
  %v4281 = vld [vmem:[%s5 + $0x8] sm:$0xf]
  %v4282 = vld [vmem:[%s5 + $0xc] sm:$0xff]
  %v4283 = vld [vmem:[%s5 + $0x14] sm:$0xf]
  %v4284 = vld [vmem:[%s5 + $0x18] sm:$0xff]
  %v4285 = vld [vmem:[%s5 + $0x20] sm:$0xf]
  %v4286 = vld [vmem:[%s5 + $0x24] sm:$0xff]
  %v4287 = vld [vmem:[%s5 + $0x2c] sm:$0xf]
  %v4288 = vld [vmem:[%s5 + $0x30] sm:$0xff]
  %v4289 = vld [vmem:[%s5 + $0x38] sm:$0xf]
  %v4290 = vld [vmem:[%s5 + $0x3c] sm:$0xff]
  %v4291 = vld [vmem:[%s5 + $0x44] sm:$0xf]
  %v4292 = vld [vmem:[%s5 + $0x48] sm:$0xff]
  %v4293 = vld [vmem:[%s5 + $0x50] sm:$0xf]
  %v4294 = vld [vmem:[%s5 + $0x54] sm:$0xff]
  %v4295 = vld [vmem:[%s5 + $0x5c] sm:$0xf]
  %v4296 = vld [vmem:[%s5 + $0x60] sm:$0xff]
  %v4297 = vld [vmem:[%s5 + $0x68] sm:$0xf]
  %v4298 = vld [vmem:[%s5 + $0x6c] sm:$0xff]
  %v4299 = vld [vmem:[%s5 + $0x74] sm:$0xf]
  %v4300 = vld [vmem:[%s5 + $0x78] sm:$0xff]
  %v4301 = vld [vmem:[%s5 + $0x80] sm:$0xf]
  %v4302 = vld [vmem:[%s5 + $0x84] sm:$0xff]
  %v4303 = vld [vmem:[%s5 + $0x8c] sm:$0xf]
  %v4304 = vld [vmem:[%s5 + $0x90] sm:$0xff]
  %v4305 = vld [vmem:[%s5 + $0x98] sm:$0xf]
  %v4306 = vld [vmem:[%s5 + $0x9c] sm:$0xff]
  %v4307 = vld [vmem:[%s5 + $0xa4] sm:$0xf]
  %v4308 = vld [vmem:[%s5 + $0xa8] sm:$0xff]
  %v4309 = vld [vmem:[%s5 + $0xb0] sm:$0xf]
  %v4310 = vld [vmem:[%s5 + $0xb4] sm:$0xff]
  %v4311 = vld [vmem:[%s5 + $0xbc] sm:$0xf]
  %v4312 = vld [vmem:[%s5 + $0xc0] sm:$0xff]
  %v4313 = vld [vmem:[%s5 + $0xc8] sm:$0xf]
  %v4314 = vld [vmem:[%s5 + $0xcc] sm:$0xff]
  %v4315 = vld [vmem:[%s5 + $0xd4] sm:$0xf]
  %v4316 = vld [vmem:[%s5 + $0xd8] sm:$0xff]
  %v4317 = vld [vmem:[%s5 + $0xe0] sm:$0xf]
  %v4318 = vld [vmem:[%s5 + $0xe4] sm:$0xff]
  %v4319 = vld [vmem:[%s5 + $0xec] sm:$0xf]
  %v4320 = vld [vmem:[%s5 + $0xf0] sm:$0xff]
  %v4321 = vld [vmem:[%s5 + $0xf8] sm:$0xf]
  %v4322 = vld [vmem:[%s5 + $0xfc] sm:$0xff]
  %v4323 = vld [vmem:[%s5 + $0x104] sm:$0xf]
  %v4324 = vld [vmem:[%s5 + $0x108] sm:$0xff]
  %v4325 = vld [vmem:[%s5 + $0x110] sm:$0xf]
  %v4326 = vld [vmem:[%s5 + $0x114] sm:$0xff]
  %v4327 = vld [vmem:[%s5 + $0x11c] sm:$0xf]
  %v4328 = vld [vmem:[%s5 + $0x120] sm:$0xff]
  %v4329 = vld [vmem:[%s5 + $0x128] sm:$0xf]
  %v4330 = vld [vmem:[%s5 + $0x12c] sm:$0xff]
  %v4331 = vld [vmem:[%s5 + $0x134] sm:$0xf]
  %v4332 = vld [vmem:[%s5 + $0x138] sm:$0xff]
  %v4333 = vld [vmem:[%s5 + $0x140] sm:$0xf]
  %v4334 = vld [vmem:[%s5 + $0x144] sm:$0xff]
  %v4335 = vld [vmem:[%s5 + $0x14c] sm:$0xf]
  %v4392 = vunpack.c.l.b16 %v4280
  %v4393 = vunpack.c.h.b16 %v4280
  %v4394 = vunpack.c.l.b16 %v4281
  %v4395 = vunpack.c.l.b16 %v4282
  %v4396 = vunpack.c.h.b16 %v4282
  %v4397 = vunpack.c.l.b16 %v4283
  %v4398 = vunpack.c.l.b16 %v4284
  %v4399 = vunpack.c.h.b16 %v4284
  %v4400 = vunpack.c.l.b16 %v4285
  %v4401 = vunpack.c.l.b16 %v4286
  %v4402 = vunpack.c.h.b16 %v4286
  %v4403 = vunpack.c.l.b16 %v4287
  %v4404 = vunpack.c.l.b16 %v4288
  %v4405 = vunpack.c.h.b16 %v4288
  %v4406 = vunpack.c.l.b16 %v4289
  %v4407 = vunpack.c.l.b16 %v4290
  %v4408 = vunpack.c.h.b16 %v4290
  %v4409 = vunpack.c.l.b16 %v4291
  %v4410 = vunpack.c.l.b16 %v4292
  %v4411 = vunpack.c.h.b16 %v4292
  %v4412 = vunpack.c.l.b16 %v4293
  %v4413 = vunpack.c.l.b16 %v4294
  %v4414 = vunpack.c.h.b16 %v4294
  %v4415 = vunpack.c.l.b16 %v4295
  %v4416 = vunpack.c.l.b16 %v4296
  %v4417 = vunpack.c.h.b16 %v4296
  %v4418 = vunpack.c.l.b16 %v4297
  %v4419 = vunpack.c.l.b16 %v4298
  %v4420 = vunpack.c.h.b16 %v4298
  %v4421 = vunpack.c.l.b16 %v4299
  %v4422 = vunpack.c.l.b16 %v4300
  %v4423 = vunpack.c.h.b16 %v4300
  %v4424 = vunpack.c.l.b16 %v4301
  %v4425 = vunpack.c.l.b16 %v4302
  %v4426 = vunpack.c.h.b16 %v4302
  %v4427 = vunpack.c.l.b16 %v4303
  %v4428 = vunpack.c.l.b16 %v4304
  %v4429 = vunpack.c.h.b16 %v4304
  %v4430 = vunpack.c.l.b16 %v4305
  %v4431 = vunpack.c.l.b16 %v4306
  %v4432 = vunpack.c.h.b16 %v4306
  %v4433 = vunpack.c.l.b16 %v4307
  %v4434 = vunpack.c.l.b16 %v4308
  %v4435 = vunpack.c.h.b16 %v4308
  %v4436 = vunpack.c.l.b16 %v4309
  %v4437 = vunpack.c.l.b16 %v4310
  %v4438 = vunpack.c.h.b16 %v4310
  %v4439 = vunpack.c.l.b16 %v4311
  %v4440 = vunpack.c.l.b16 %v4312
  %v4441 = vunpack.c.h.b16 %v4312
  %v4442 = vunpack.c.l.b16 %v4313
  %v4443 = vunpack.c.l.b16 %v4314
  %v4444 = vunpack.c.h.b16 %v4314
  %v4445 = vunpack.c.l.b16 %v4315
  %v4446 = vunpack.c.l.b16 %v4316
  %v4447 = vunpack.c.h.b16 %v4316
  %v4448 = vunpack.c.l.b16 %v4317
  %v4449 = vunpack.c.l.b16 %v4318
  %v4450 = vunpack.c.h.b16 %v4318
  %v4451 = vunpack.c.l.b16 %v4319
  %v4452 = vunpack.c.l.b16 %v4320
  %v4453 = vunpack.c.h.b16 %v4320
  %v4454 = vunpack.c.l.b16 %v4321
  %v4455 = vunpack.c.l.b16 %v4322
  %v4456 = vunpack.c.h.b16 %v4322
  %v4457 = vunpack.c.l.b16 %v4323
  %v4458 = vunpack.c.l.b16 %v4324
  %v4459 = vunpack.c.h.b16 %v4324
  %v4460 = vunpack.c.l.b16 %v4325
  %v4461 = vunpack.c.l.b16 %v4326
  %v4462 = vunpack.c.h.b16 %v4326
  %v4463 = vunpack.c.l.b16 %v4327
  %v4464 = vunpack.c.l.b16 %v4328
  %v4465 = vunpack.c.h.b16 %v4328
  %v4466 = vunpack.c.l.b16 %v4329
  %v4467 = vunpack.c.l.b16 %v4330
  %v4468 = vunpack.c.h.b16 %v4330
  %v4469 = vunpack.c.l.b16 %v4331
  %v4470 = vunpack.c.l.b16 %v4332
  %v4471 = vunpack.c.h.b16 %v4332
  %v4472 = vunpack.c.l.b16 %v4333
  %v4473 = vunpack.c.l.b16 %v4334
  %v4474 = vunpack.c.h.b16 %v4334
  %v4475 = vunpack.c.l.b16 %v4335
  %v4476 = vpack.c.b16 %v4395, %v4392
  %v4477 = vpack.c.b16 %v4396, %v4393
  %v4478 = vpack.c.b16 %v4397, %v4394
  %v4479 = vpack.c.b16 %v4401, %v4398
  %v4480 = vpack.c.b16 %v4402, %v4399
  %v4481 = vpack.c.b16 %v4403, %v4400
  %v4482 = vpack.c.b16 %v4407, %v4404
  %v4483 = vpack.c.b16 %v4408, %v4405
  %v4484 = vpack.c.b16 %v4409, %v4406
  %v4485 = vpack.c.b16 %v4413, %v4410
  %v4486 = vpack.c.b16 %v4414, %v4411
  %v4487 = vpack.c.b16 %v4415, %v4412
  %v4488 = vpack.c.b16 %v4419, %v4416
  %v4489 = vpack.c.b16 %v4420, %v4417
  %v4490 = vpack.c.b16 %v4421, %v4418
  %v4491 = vpack.c.b16 %v4425, %v4422
  %v4492 = vpack.c.b16 %v4426, %v4423
  %v4493 = vpack.c.b16 %v4427, %v4424
  %v4494 = vpack.c.b16 %v4431, %v4428
  %v4495 = vpack.c.b16 %v4432, %v4429
  %v4496 = vpack.c.b16 %v4433, %v4430
  %v4497 = vpack.c.b16 %v4437, %v4434
  %v4498 = vpack.c.b16 %v4438, %v4435
  %v4499 = vpack.c.b16 %v4439, %v4436
  %v4500 = vpack.c.b16 %v4443, %v4440
  %v4501 = vpack.c.b16 %v4444, %v4441
  %v4502 = vpack.c.b16 %v4445, %v4442
  %v4503 = vpack.c.b16 %v4449, %v4446
  %v4504 = vpack.c.b16 %v4450, %v4447
  %v4505 = vpack.c.b16 %v4451, %v4448
  %v4506 = vpack.c.b16 %v4455, %v4452
  %v4507 = vpack.c.b16 %v4456, %v4453
  %v4508 = vpack.c.b16 %v4457, %v4454
  %v4509 = vpack.c.b16 %v4461, %v4458
  %v4510 = vpack.c.b16 %v4462, %v4459
  %v4511 = vpack.c.b16 %v4463, %v4460
  %v4512 = vpack.c.b16 %v4467, %v4464
  %v4513 = vpack.c.b16 %v4468, %v4465
  %v4514 = vpack.c.b16 %v4469, %v4466
  %v4515 = vpack.c.b16 %v4473, %v4470
  %v4516 = vpack.c.b16 %v4474, %v4471
  %v4517 = vpack.c.b16 %v4475, %v4472
  %vm4560 = vcmask 785408
  %v4562 = vsel %vm4560, %v4263, 0
  %v4565 = vsel %vm4560, %v4265, 0
  %v4568 = vsel %vm4560, %v4267, 0
  %v4571 = vsel %vm4560, %v4269, 0
  %v4574 = vsel %vm4560, %v4271, 0
  %v4577 = vsel %vm4560, %v4273, 0
  %v4580 = vsel %vm4560, %v4275, 0
  %v4583 = vsel %vm4560, %v4277, 0
  %v4586 = vsel %vm4560, %v4279, 0
  %4588 = vmatprep.subr.bf16.mxu0 %v4498
  %4589 = vmatpush1.bf16.msra.mxu0 %v4497
  %4590 = vmatprep.subr.bf16.mxu0 %v4495
  %4591 = vmatpush1.bf16.msra.mxu0 %v4494
  %4592 = vmatprep.subr.bf16.mxu0 %v4492
  %4593 = vmatpush1.bf16.msra.mxu0 %v4491
  %4594 = vmatprep.subr.bf16.mxu0 %v4489
  %4595 = vmatpush1.bf16.msra.mxu0 %v4488
  %4596 = vmatprep.subr.bf16.mxu0 %v4486
  %4597 = vmatpush1.bf16.msra.mxu0 %v4485
  %4598 = vmatprep.subr.bf16.mxu0 %v4483
  %4599 = vmatpush1.bf16.msra.mxu0 %v4482
  %4600 = vmatprep.subr.bf16.mxu0 %v4480
  %4601 = vmatpush1.bf16.msra.mxu0 %v4479
  %4602 = vmatprep.subr.bf16.mxu0 %v4477
  %4603 = vmatpush1.bf16.msra.mxu0 %v4476
  %4604 = vmatprep.subr.bf16.mxu0 0
  %4605 = vmatpush2.bf16.msra.mxu0 0
  %4606 = vmatprep.subr.bf16.mxu0 0
  %4607 = vmatpush2.bf16.msra.mxu0 0
  %4608 = vmatprep.subr.bf16.mxu0 %v4516
  %4609 = vmatpush2.bf16.msra.mxu0 %v4515
  %4610 = vmatprep.subr.bf16.mxu0 %v4513
  %4611 = vmatpush2.bf16.msra.mxu0 %v4512
  %4612 = vmatprep.subr.bf16.mxu0 %v4510
  %4613 = vmatpush2.bf16.msra.mxu0 %v4509
  %4614 = vmatprep.subr.bf16.mxu0 %v4507
  %4615 = vmatpush2.bf16.msra.mxu0 %v4506
  %4616 = vmatprep.subr.bf16.mxu0 %v4504
  %4617 = vmatpush2.bf16.msra.mxu0 %v4503
  %4618 = vmatprep.subr.bf16.mxu0 %v4501
  %4619 = vmatpush2.bf16.msra.mxu0 %v4500
  %4620 = vmatprep.mubr.bf16.mxu0 %v4562
  %4621 = vmatmul.mubr.bf16.gmra.mxu0 %v4262
  %v4622 = vpop.f32.mrf.mxu0
  %v4623 = vadd.f32 0.0, %v4622
  %v4624 = vpop.f32.mrf.mxu0
  %v4625 = vadd.f32 0.0, %v4624
  %v4626 = vpop.f32.mrf.mxu0
  %v4627 = vadd.f32 0.0, %v4626
  %v4628 = vpop.f32.mrf.mxu0
  %v4629 = vadd.f32 0.0, %v4628
  %4630 = vmatprep.mubr.bf16.mxu0 %v4565
  %4631 = vmatmul.mubr.bf16.gmra.mxu0 %v4264
  %v4632 = vpop.f32.mrf.mxu0
  %v4633 = vadd.f32 0.0, %v4632
  %v4634 = vpop.f32.mrf.mxu0
  %v4635 = vadd.f32 0.0, %v4634
  %v4636 = vpop.f32.mrf.mxu0
  %v4637 = vadd.f32 0.0, %v4636
  %v4638 = vpop.f32.mrf.mxu0
  %v4639 = vadd.f32 0.0, %v4638
  %4640 = vmatprep.mubr.bf16.mxu0 %v4568
  %4641 = vmatmul.mubr.bf16.gmra.mxu0 %v4266
  %v4642 = vpop.f32.mrf.mxu0
  %v4643 = vadd.f32 0.0, %v4642
  %v4644 = vpop.f32.mrf.mxu0
  %v4645 = vadd.f32 0.0, %v4644
  %v4646 = vpop.f32.mrf.mxu0
  %v4647 = vadd.f32 0.0, %v4646
  %v4648 = vpop.f32.mrf.mxu0
  %v4649 = vadd.f32 0.0, %v4648
  %4650 = vmatprep.mubr.bf16.mxu0 %v4571
  %4651 = vmatmul.mubr.bf16.gmra.mxu0 %v4268
  %v4652 = vpop.f32.mrf.mxu0
  %v4653 = vadd.f32 0.0, %v4652
  %v4654 = vpop.f32.mrf.mxu0
  %v4655 = vadd.f32 0.0, %v4654
  %v4656 = vpop.f32.mrf.mxu0
  %v4657 = vadd.f32 0.0, %v4656
  %v4658 = vpop.f32.mrf.mxu0
  %v4659 = vadd.f32 0.0, %v4658
  %4660 = vmatprep.mubr.bf16.mxu0 %v4574
  %4661 = vmatmul.mubr.bf16.gmra.mxu0 %v4270
  %v4662 = vpop.f32.mrf.mxu0
  %v4663 = vadd.f32 0.0, %v4662
  %v4664 = vpop.f32.mrf.mxu0
  %v4665 = vadd.f32 0.0, %v4664
  %v4666 = vpop.f32.mrf.mxu0
  %v4667 = vadd.f32 0.0, %v4666
  %v4668 = vpop.f32.mrf.mxu0
  %v4669 = vadd.f32 0.0, %v4668
  %4670 = vmatprep.mubr.bf16.mxu0 %v4577
  %4671 = vmatmul.mubr.bf16.gmra.mxu0 %v4272
  %v4672 = vpop.f32.mrf.mxu0
  %v4673 = vadd.f32 0.0, %v4672
  %v4674 = vpop.f32.mrf.mxu0
  %v4675 = vadd.f32 0.0, %v4674
  %v4676 = vpop.f32.mrf.mxu0
  %v4677 = vadd.f32 0.0, %v4676
  %v4678 = vpop.f32.mrf.mxu0
  %v4679 = vadd.f32 0.0, %v4678
  %4680 = vmatprep.mubr.bf16.mxu0 %v4580
  %4681 = vmatmul.mubr.bf16.gmra.mxu0 %v4274
  %v4682 = vpop.f32.mrf.mxu0
  %v4683 = vadd.f32 0.0, %v4682
  %v4684 = vpop.f32.mrf.mxu0
  %v4685 = vadd.f32 0.0, %v4684
  %v4686 = vpop.f32.mrf.mxu0
  %v4687 = vadd.f32 0.0, %v4686
  %v4688 = vpop.f32.mrf.mxu0
  %v4689 = vadd.f32 0.0, %v4688
  %4690 = vmatprep.mubr.bf16.mxu0 %v4583
  %4691 = vmatmul.mubr.bf16.gmra.mxu0 %v4276
  %v4692 = vpop.f32.mrf.mxu0
  %v4693 = vadd.f32 0.0, %v4692
  %v4694 = vpop.f32.mrf.mxu0
  %v4695 = vadd.f32 0.0, %v4694
  %v4696 = vpop.f32.mrf.mxu0
  %v4697 = vadd.f32 0.0, %v4696
  %v4698 = vpop.f32.mrf.mxu0
  %v4699 = vadd.f32 0.0, %v4698
  %4700 = vmatprep.mubr.bf16.mxu0 %v4586
  %4701 = vmatmul.mubr.bf16.gmra.mxu0 %v4278
  %v4702 = vpop.f32.mrf.mxu0
  %v4703 = vpop.f32.mrf.mxu0
  %v4704 = vpop.f32.mrf.mxu0
  %v4705 = vpop.f32.mrf.mxu0
  %4706 = vdwg.mxu0
  %4707 = vmatprep.subr.bf16.mxu0 0
  %4708 = vmatpush1.bf16.msra.mxu0 %v4499
  %4709 = vmatprep.subr.bf16.mxu0 0
  %4710 = vmatpush1.bf16.msra.mxu0 %v4496
  %4711 = vmatprep.subr.bf16.mxu0 0
  %4712 = vmatpush1.bf16.msra.mxu0 %v4493
  %4713 = vmatprep.subr.bf16.mxu0 0
  %4714 = vmatpush1.bf16.msra.mxu0 %v4490
  %4715 = vmatprep.subr.bf16.mxu0 0
  %4716 = vmatpush1.bf16.msra.mxu0 %v4487
  %4717 = vmatprep.subr.bf16.mxu0 0
  %4718 = vmatpush1.bf16.msra.mxu0 %v4484
  %4719 = vmatprep.subr.bf16.mxu0 0
  %4720 = vmatpush1.bf16.msra.mxu0 %v4481
  %4721 = vmatprep.subr.bf16.mxu0 0
  %4722 = vmatpush1.bf16.msra.mxu0 %v4478
  %4723 = vmatprep.subr.bf16.mxu0 0
  %4724 = vmatpush2.bf16.msra.mxu0 0
  %4725 = vmatprep.subr.bf16.mxu0 0
  %4726 = vmatpush2.bf16.msra.mxu0 0
  %4727 = vmatprep.subr.bf16.mxu0 0
  %4728 = vmatpush2.bf16.msra.mxu0 %v4517
  %4729 = vmatprep.subr.bf16.mxu0 0
  %4730 = vmatpush2.bf16.msra.mxu0 %v4514
  %4731 = vmatprep.subr.bf16.mxu0 0
  %4732 = vmatpush2.bf16.msra.mxu0 %v4511
  %4733 = vmatprep.subr.bf16.mxu0 0
  %4734 = vmatpush2.bf16.msra.mxu0 %v4508
  %4735 = vmatprep.subr.bf16.mxu0 0
  %4736 = vmatpush2.bf16.msra.mxu0 %v4505
  %4737 = vmatprep.subr.bf16.mxu0 0
  %4738 = vmatpush2.bf16.msra.mxu0 %v4502
  %4739 = vmatprep.mubr.bf16.mxu0 %v4562
  %4740 = vmatmul.mubr.bf16.gmra.mxu0 %v4262
  %v4741 = vpop.f32.mrf.mxu0
  %v4742 = vadd.f32 0.0, %v4741
  %v4743 = vpop.f32.mrf.mxu0
  %v4744 = vpop.f32.mrf.mxu0
  %v4745 = vadd.f32 0.0, %v4744
  %v4746 = vpop.f32.mrf.mxu0
  %4747 = vmatprep.mubr.bf16.mxu0 %v4565
  %4748 = vmatmul.mubr.bf16.gmra.mxu0 %v4264
  %v4749 = vpop.f32.mrf.mxu0
  %v4750 = vadd.f32 0.0, %v4749
  %v4751 = vpop.f32.mrf.mxu0
  %v4752 = vpop.f32.mrf.mxu0
  %v4753 = vadd.f32 0.0, %v4752
  %v4754 = vpop.f32.mrf.mxu0
  %4755 = vmatprep.mubr.bf16.mxu0 %v4568
  %4756 = vmatmul.mubr.bf16.gmra.mxu0 %v4266
  %v4757 = vpop.f32.mrf.mxu0
  %v4758 = vadd.f32 0.0, %v4757
  %v4759 = vpop.f32.mrf.mxu0
  %v4760 = vpop.f32.mrf.mxu0
  %v4761 = vadd.f32 0.0, %v4760
  %v4762 = vpop.f32.mrf.mxu0
  %4763 = vmatprep.mubr.bf16.mxu0 %v4571
  %4764 = vmatmul.mubr.bf16.gmra.mxu0 %v4268
  %v4765 = vpop.f32.mrf.mxu0
  %v4766 = vadd.f32 0.0, %v4765
  %v4767 = vpop.f32.mrf.mxu0
  %v4768 = vpop.f32.mrf.mxu0
  %v4769 = vadd.f32 0.0, %v4768
  %v4770 = vpop.f32.mrf.mxu0
  %4771 = vmatprep.mubr.bf16.mxu0 %v4574
  %4772 = vmatmul.mubr.bf16.gmra.mxu0 %v4270
  %v4773 = vpop.f32.mrf.mxu0
  %v4774 = vadd.f32 0.0, %v4773
  %v4775 = vpop.f32.mrf.mxu0
  %v4776 = vpop.f32.mrf.mxu0
  %v4777 = vadd.f32 0.0, %v4776
  %v4778 = vpop.f32.mrf.mxu0
  %4779 = vmatprep.mubr.bf16.mxu0 %v4577
  %4780 = vmatmul.mubr.bf16.gmra.mxu0 %v4272
  %v4781 = vpop.f32.mrf.mxu0
  %v4782 = vadd.f32 0.0, %v4781
  %v4783 = vpop.f32.mrf.mxu0
  %v4784 = vpop.f32.mrf.mxu0
  %v4785 = vadd.f32 0.0, %v4784
  %v4786 = vpop.f32.mrf.mxu0
  %4787 = vmatprep.mubr.bf16.mxu0 %v4580
  %4788 = vmatmul.mubr.bf16.gmra.mxu0 %v4274
  %v4789 = vpop.f32.mrf.mxu0
  %v4790 = vadd.f32 0.0, %v4789
  %v4791 = vpop.f32.mrf.mxu0
  %v4792 = vpop.f32.mrf.mxu0
  %v4793 = vadd.f32 0.0, %v4792
  %v4794 = vpop.f32.mrf.mxu0
  %4795 = vmatprep.mubr.bf16.mxu0 %v4583
  %4796 = vmatmul.mubr.bf16.gmra.mxu0 %v4276
  %v4797 = vpop.f32.mrf.mxu0
  %v4798 = vadd.f32 0.0, %v4797
  %v4799 = vpop.f32.mrf.mxu0
  %v4800 = vpop.f32.mrf.mxu0
  %v4801 = vadd.f32 0.0, %v4800
  %v4802 = vpop.f32.mrf.mxu0
  %4803 = vmatprep.mubr.bf16.mxu0 %v4586
  %4804 = vmatmul.mubr.bf16.gmra.mxu0 %v4278
  %v4805 = vpop.f32.mrf.mxu0
  %v4806 = vpop.f32.mrf.mxu0
  %v4807 = vpop.f32.mrf.mxu0
  %v4808 = vpop.f32.mrf.mxu0
  %4809 = vdwg.mxu0
  %s4810 = scalar_lea.vmem %s5, 336
  %v4811 = vld [vmem:[%s4810] sm:$0xff]
  %v4812 = vld [vmem:[%s4810 + $0x8] sm:$0xf]
  %v4813 = vld [vmem:[%s4810 + $0xc] sm:$0xff]
  %v4814 = vld [vmem:[%s4810 + $0x14] sm:$0xf]
  %v4815 = vld [vmem:[%s4810 + $0x18] sm:$0xff]
  %v4816 = vld [vmem:[%s4810 + $0x20] sm:$0xf]
  %v4817 = vld [vmem:[%s4810 + $0x24] sm:$0xff]
  %v4818 = vld [vmem:[%s4810 + $0x2c] sm:$0xf]
  %v4819 = vld [vmem:[%s4810 + $0x30] sm:$0xff]
  %v4820 = vld [vmem:[%s4810 + $0x38] sm:$0xf]
  %v4821 = vld [vmem:[%s4810 + $0x3c] sm:$0xff]
  %v4822 = vld [vmem:[%s4810 + $0x44] sm:$0xf]
  %v4823 = vld [vmem:[%s4810 + $0x48] sm:$0xff]
  %v4824 = vld [vmem:[%s4810 + $0x50] sm:$0xf]
  %v4825 = vld [vmem:[%s4810 + $0x54] sm:$0xff]
  %v4826 = vld [vmem:[%s4810 + $0x5c] sm:$0xf]
  %v4827 = vld [vmem:[%s4810 + $0x60] sm:$0xff]
  %v4828 = vld [vmem:[%s4810 + $0x68] sm:$0xf]
  %v4829 = vld [vmem:[%s4810 + $0x6c] sm:$0xff]
  %v4830 = vld [vmem:[%s4810 + $0x74] sm:$0xf]
  %v4831 = vld [vmem:[%s4810 + $0x78] sm:$0xff]
  %v4832 = vld [vmem:[%s4810 + $0x80] sm:$0xf]
  %v4833 = vld [vmem:[%s4810 + $0x84] sm:$0xff]
  %v4834 = vld [vmem:[%s4810 + $0x8c] sm:$0xf]
  %v4835 = vld [vmem:[%s4810 + $0x90] sm:$0xff]
  %v4836 = vld [vmem:[%s4810 + $0x98] sm:$0xf]
  %v4837 = vld [vmem:[%s4810 + $0x9c] sm:$0xff]
  %v4838 = vld [vmem:[%s4810 + $0xa4] sm:$0xf]
  %v4839 = vld [vmem:[%s4810 + $0xa8] sm:$0xff]
  %v4840 = vld [vmem:[%s4810 + $0xb0] sm:$0xf]
  %v4841 = vld [vmem:[%s4810 + $0xb4] sm:$0xff]
  %v4842 = vld [vmem:[%s4810 + $0xbc] sm:$0xf]
  %v4843 = vld [vmem:[%s4810 + $0xc0] sm:$0xff]
  %v4844 = vld [vmem:[%s4810 + $0xc8] sm:$0xf]
  %v4845 = vld [vmem:[%s4810 + $0xcc] sm:$0xff]
  %v4846 = vld [vmem:[%s4810 + $0xd4] sm:$0xf]
  %v4847 = vld [vmem:[%s4810 + $0xd8] sm:$0xff]
  %v4848 = vld [vmem:[%s4810 + $0xe0] sm:$0xf]
  %v4849 = vld [vmem:[%s4810 + $0xe4] sm:$0xff]
  %v4850 = vld [vmem:[%s4810 + $0xec] sm:$0xf]
  %v4851 = vld [vmem:[%s4810 + $0xf0] sm:$0xff]
  %v4852 = vld [vmem:[%s4810 + $0xf8] sm:$0xf]
  %v4853 = vld [vmem:[%s4810 + $0xfc] sm:$0xff]
  %v4854 = vld [vmem:[%s4810 + $0x104] sm:$0xf]
  %v4855 = vld [vmem:[%s4810 + $0x108] sm:$0xff]
  %v4856 = vld [vmem:[%s4810 + $0x110] sm:$0xf]
  %v4857 = vld [vmem:[%s4810 + $0x114] sm:$0xff]
  %v4858 = vld [vmem:[%s4810 + $0x11c] sm:$0xf]
  %v4859 = vld [vmem:[%s4810 + $0x120] sm:$0xff]
  %v4860 = vld [vmem:[%s4810 + $0x128] sm:$0xf]
  %v4861 = vld [vmem:[%s4810 + $0x12c] sm:$0xff]
  %v4862 = vld [vmem:[%s4810 + $0x134] sm:$0xf]
  %v4863 = vld [vmem:[%s4810 + $0x138] sm:$0xff]
  %v4864 = vld [vmem:[%s4810 + $0x140] sm:$0xf]
  %v4865 = vld [vmem:[%s4810 + $0x144] sm:$0xff]
  %v4866 = vld [vmem:[%s4810 + $0x14c] sm:$0xf]
  %v4923 = vunpack.c.l.b16 %v4811
  %v4924 = vunpack.c.h.b16 %v4811
  %v4925 = vunpack.c.l.b16 %v4812
  %v4926 = vunpack.c.l.b16 %v4813
  %v4927 = vunpack.c.h.b16 %v4813
  %v4928 = vunpack.c.l.b16 %v4814
  %v4929 = vunpack.c.l.b16 %v4815
  %v4930 = vunpack.c.h.b16 %v4815
  %v4931 = vunpack.c.l.b16 %v4816
  %v4932 = vunpack.c.l.b16 %v4817
  %v4933 = vunpack.c.h.b16 %v4817
  %v4934 = vunpack.c.l.b16 %v4818
  %v4935 = vunpack.c.l.b16 %v4819
  %v4936 = vunpack.c.h.b16 %v4819
  %v4937 = vunpack.c.l.b16 %v4820
  %v4938 = vunpack.c.l.b16 %v4821
  %v4939 = vunpack.c.h.b16 %v4821
  %v4940 = vunpack.c.l.b16 %v4822
  %v4941 = vunpack.c.l.b16 %v4823
  %v4942 = vunpack.c.h.b16 %v4823
  %v4943 = vunpack.c.l.b16 %v4824
  %v4944 = vunpack.c.l.b16 %v4825
  %v4945 = vunpack.c.h.b16 %v4825
  %v4946 = vunpack.c.l.b16 %v4826
  %v4947 = vunpack.c.l.b16 %v4827
  %v4948 = vunpack.c.h.b16 %v4827
  %v4949 = vunpack.c.l.b16 %v4828
  %v4950 = vunpack.c.l.b16 %v4829
  %v4951 = vunpack.c.h.b16 %v4829
  %v4952 = vunpack.c.l.b16 %v4830
  %v4953 = vunpack.c.l.b16 %v4831
  %v4954 = vunpack.c.h.b16 %v4831
  %v4955 = vunpack.c.l.b16 %v4832
  %v4956 = vunpack.c.l.b16 %v4833
  %v4957 = vunpack.c.h.b16 %v4833
  %v4958 = vunpack.c.l.b16 %v4834
  %v4959 = vunpack.c.l.b16 %v4835
  %v4960 = vunpack.c.h.b16 %v4835
  %v4961 = vunpack.c.l.b16 %v4836
  %v4962 = vunpack.c.l.b16 %v4837
  %v4963 = vunpack.c.h.b16 %v4837
  %v4964 = vunpack.c.l.b16 %v4838
  %v4965 = vunpack.c.l.b16 %v4839
  %v4966 = vunpack.c.h.b16 %v4839
  %v4967 = vunpack.c.l.b16 %v4840
  %v4968 = vunpack.c.l.b16 %v4841
  %v4969 = vunpack.c.h.b16 %v4841
  %v4970 = vunpack.c.l.b16 %v4842
  %v4971 = vunpack.c.l.b16 %v4843
  %v4972 = vunpack.c.h.b16 %v4843
  %v4973 = vunpack.c.l.b16 %v4844
  %v4974 = vunpack.c.l.b16 %v4845
  %v4975 = vunpack.c.h.b16 %v4845
  %v4976 = vunpack.c.l.b16 %v4846
  %v4977 = vunpack.c.l.b16 %v4847
  %v4978 = vunpack.c.h.b16 %v4847
  %v4979 = vunpack.c.l.b16 %v4848
  %v4980 = vunpack.c.l.b16 %v4849
  %v4981 = vunpack.c.h.b16 %v4849
  %v4982 = vunpack.c.l.b16 %v4850
  %v4983 = vunpack.c.l.b16 %v4851
  %v4984 = vunpack.c.h.b16 %v4851
  %v4985 = vunpack.c.l.b16 %v4852
  %v4986 = vunpack.c.l.b16 %v4853
  %v4987 = vunpack.c.h.b16 %v4853
  %v4988 = vunpack.c.l.b16 %v4854
  %v4989 = vunpack.c.l.b16 %v4855
  %v4990 = vunpack.c.h.b16 %v4855
  %v4991 = vunpack.c.l.b16 %v4856
  %v4992 = vunpack.c.l.b16 %v4857
  %v4993 = vunpack.c.h.b16 %v4857
  %v4994 = vunpack.c.l.b16 %v4858
  %v4995 = vunpack.c.l.b16 %v4859
  %v4996 = vunpack.c.h.b16 %v4859
  %v4997 = vunpack.c.l.b16 %v4860
  %v4998 = vunpack.c.l.b16 %v4861
  %v4999 = vunpack.c.h.b16 %v4861
  %v5000 = vunpack.c.l.b16 %v4862
  %v5001 = vunpack.c.l.b16 %v4863
  %v5002 = vunpack.c.h.b16 %v4863
  %v5003 = vunpack.c.l.b16 %v4864
  %v5004 = vunpack.c.l.b16 %v4865
  %v5005 = vunpack.c.h.b16 %v4865
  %v5006 = vunpack.c.l.b16 %v4866
  %v5007 = vpack.c.b16 %v4926, %v4923
  %v5008 = vpack.c.b16 %v4927, %v4924
  %v5009 = vpack.c.b16 %v4928, %v4925
  %v5010 = vpack.c.b16 %v4932, %v4929
  %v5011 = vpack.c.b16 %v4933, %v4930
  %v5012 = vpack.c.b16 %v4934, %v4931
  %v5013 = vpack.c.b16 %v4938, %v4935
  %v5014 = vpack.c.b16 %v4939, %v4936
  %v5015 = vpack.c.b16 %v4940, %v4937
  %v5016 = vpack.c.b16 %v4944, %v4941
  %v5017 = vpack.c.b16 %v4945, %v4942
  %v5018 = vpack.c.b16 %v4946, %v4943
  %v5019 = vpack.c.b16 %v4950, %v4947
  %v5020 = vpack.c.b16 %v4951, %v4948
  %v5021 = vpack.c.b16 %v4952, %v4949
  %v5022 = vpack.c.b16 %v4956, %v4953
  %v5023 = vpack.c.b16 %v4957, %v4954
  %v5024 = vpack.c.b16 %v4958, %v4955
  %v5025 = vpack.c.b16 %v4962, %v4959
  %v5026 = vpack.c.b16 %v4963, %v4960
  %v5027 = vpack.c.b16 %v4964, %v4961
  %v5028 = vpack.c.b16 %v4968, %v4965
  %v5029 = vpack.c.b16 %v4969, %v4966
  %v5030 = vpack.c.b16 %v4970, %v4967
  %v5031 = vpack.c.b16 %v4974, %v4971
  %v5032 = vpack.c.b16 %v4975, %v4972
  %v5033 = vpack.c.b16 %v4976, %v4973
  %v5034 = vpack.c.b16 %v4980, %v4977
  %v5035 = vpack.c.b16 %v4981, %v4978
  %v5036 = vpack.c.b16 %v4982, %v4979
  %v5037 = vpack.c.b16 %v4986, %v4983
  %v5038 = vpack.c.b16 %v4987, %v4984
  %v5039 = vpack.c.b16 %v4988, %v4985
  %v5040 = vpack.c.b16 %v4992, %v4989
  %v5041 = vpack.c.b16 %v4993, %v4990
  %v5042 = vpack.c.b16 %v4994, %v4991
  %v5043 = vpack.c.b16 %v4998, %v4995
  %v5044 = vpack.c.b16 %v4999, %v4996
  %v5045 = vpack.c.b16 %v5000, %v4997
  %v5046 = vpack.c.b16 %v5004, %v5001
  %v5047 = vpack.c.b16 %v5005, %v5002
  %v5048 = vpack.c.b16 %v5006, %v5003
  %5091 = vmatprep.subr.bf16.mxu0 %v5029
  %5092 = vmatpush1.bf16.msra.mxu0 %v5028
  %5093 = vmatprep.subr.bf16.mxu0 %v5026
  %5094 = vmatpush1.bf16.msra.mxu0 %v5025
  %5095 = vmatprep.subr.bf16.mxu0 %v5023
  %5096 = vmatpush1.bf16.msra.mxu0 %v5022
  %5097 = vmatprep.subr.bf16.mxu0 %v5020
  %5098 = vmatpush1.bf16.msra.mxu0 %v5019
  %5099 = vmatprep.subr.bf16.mxu0 %v5017
  %5100 = vmatpush1.bf16.msra.mxu0 %v5016
  %5101 = vmatprep.subr.bf16.mxu0 %v5014
  %5102 = vmatpush1.bf16.msra.mxu0 %v5013
  %5103 = vmatprep.subr.bf16.mxu0 %v5011
  %5104 = vmatpush1.bf16.msra.mxu0 %v5010
  %5105 = vmatprep.subr.bf16.mxu0 %v5008
  %5106 = vmatpush1.bf16.msra.mxu0 %v5007
  %5107 = vmatprep.subr.bf16.mxu0 0
  %5108 = vmatpush2.bf16.msra.mxu0 0
  %5109 = vmatprep.subr.bf16.mxu0 0
  %5110 = vmatpush2.bf16.msra.mxu0 0
  %5111 = vmatprep.subr.bf16.mxu0 %v5047
  %5112 = vmatpush2.bf16.msra.mxu0 %v5046
  %5113 = vmatprep.subr.bf16.mxu0 %v5044
  %5114 = vmatpush2.bf16.msra.mxu0 %v5043
  %5115 = vmatprep.subr.bf16.mxu0 %v5041
  %5116 = vmatpush2.bf16.msra.mxu0 %v5040
  %5117 = vmatprep.subr.bf16.mxu0 %v5038
  %5118 = vmatpush2.bf16.msra.mxu0 %v5037
  %5119 = vmatprep.subr.bf16.mxu0 %v5035
  %5120 = vmatpush2.bf16.msra.mxu0 %v5034
  %5121 = vmatprep.subr.bf16.mxu0 %v5032
  %5122 = vmatpush2.bf16.msra.mxu0 %v5031
  %5123 = vmatprep.mubr.bf16.mxu0 %v4562
  %5124 = vmatmul.mubr.bf16.gmra.mxu0 %v4262
  %v5125 = vpop.f32.mrf.mxu0
  %v5126 = vadd.f32 0.0, %v5125
  %v5127 = vpop.f32.mrf.mxu0
  %v5128 = vadd.f32 0.0, %v5127
  %v5129 = vpop.f32.mrf.mxu0
  %v5130 = vadd.f32 0.0, %v5129
  %v5131 = vpop.f32.mrf.mxu0
  %v5132 = vadd.f32 0.0, %v5131
  %5133 = vmatprep.mubr.bf16.mxu0 %v4565
  %5134 = vmatmul.mubr.bf16.gmra.mxu0 %v4264
  %v5135 = vpop.f32.mrf.mxu0
  %v5136 = vadd.f32 0.0, %v5135
  %v5137 = vpop.f32.mrf.mxu0
  %v5138 = vadd.f32 0.0, %v5137
  %v5139 = vpop.f32.mrf.mxu0
  %v5140 = vadd.f32 0.0, %v5139
  %v5141 = vpop.f32.mrf.mxu0
  %v5142 = vadd.f32 0.0, %v5141
  %5143 = vmatprep.mubr.bf16.mxu0 %v4568
  %5144 = vmatmul.mubr.bf16.gmra.mxu0 %v4266
  %v5145 = vpop.f32.mrf.mxu0
  %v5146 = vadd.f32 0.0, %v5145
  %v5147 = vpop.f32.mrf.mxu0
  %v5148 = vadd.f32 0.0, %v5147
  %v5149 = vpop.f32.mrf.mxu0
  %v5150 = vadd.f32 0.0, %v5149
  %v5151 = vpop.f32.mrf.mxu0
  %v5152 = vadd.f32 0.0, %v5151
  %5153 = vmatprep.mubr.bf16.mxu0 %v4571
  %5154 = vmatmul.mubr.bf16.gmra.mxu0 %v4268
  %v5155 = vpop.f32.mrf.mxu0
  %v5156 = vadd.f32 0.0, %v5155
  %v5157 = vpop.f32.mrf.mxu0
  %v5158 = vadd.f32 0.0, %v5157
  %v5159 = vpop.f32.mrf.mxu0
  %v5160 = vadd.f32 0.0, %v5159
  %v5161 = vpop.f32.mrf.mxu0
  %v5162 = vadd.f32 0.0, %v5161
  %5163 = vmatprep.mubr.bf16.mxu0 %v4574
  %5164 = vmatmul.mubr.bf16.gmra.mxu0 %v4270
  %v5165 = vpop.f32.mrf.mxu0
  %v5166 = vadd.f32 0.0, %v5165
  %v5167 = vpop.f32.mrf.mxu0
  %v5168 = vadd.f32 0.0, %v5167
  %v5169 = vpop.f32.mrf.mxu0
  %v5170 = vadd.f32 0.0, %v5169
  %v5171 = vpop.f32.mrf.mxu0
  %v5172 = vadd.f32 0.0, %v5171
  %5173 = vmatprep.mubr.bf16.mxu0 %v4577
  %5174 = vmatmul.mubr.bf16.gmra.mxu0 %v4272
  %v5175 = vpop.f32.mrf.mxu0
  %v5176 = vadd.f32 0.0, %v5175
  %v5177 = vpop.f32.mrf.mxu0
  %v5178 = vadd.f32 0.0, %v5177
  %v5179 = vpop.f32.mrf.mxu0
  %v5180 = vadd.f32 0.0, %v5179
  %v5181 = vpop.f32.mrf.mxu0
  %v5182 = vadd.f32 0.0, %v5181
  %5183 = vmatprep.mubr.bf16.mxu0 %v4580
  %5184 = vmatmul.mubr.bf16.gmra.mxu0 %v4274
  %v5185 = vpop.f32.mrf.mxu0
  %v5186 = vadd.f32 0.0, %v5185
  %v5187 = vpop.f32.mrf.mxu0
  %v5188 = vadd.f32 0.0, %v5187
  %v5189 = vpop.f32.mrf.mxu0
  %v5190 = vadd.f32 0.0, %v5189
  %v5191 = vpop.f32.mrf.mxu0
  %v5192 = vadd.f32 0.0, %v5191
  %5193 = vmatprep.mubr.bf16.mxu0 %v4583
  %5194 = vmatmul.mubr.bf16.gmra.mxu0 %v4276
  %v5195 = vpop.f32.mrf.mxu0
  %v5196 = vadd.f32 0.0, %v5195
  %v5197 = vpop.f32.mrf.mxu0
  %v5198 = vadd.f32 0.0, %v5197
  %v5199 = vpop.f32.mrf.mxu0
  %v5200 = vadd.f32 0.0, %v5199
  %v5201 = vpop.f32.mrf.mxu0
  %v5202 = vadd.f32 0.0, %v5201
  %5203 = vmatprep.mubr.bf16.mxu0 %v4586
  %5204 = vmatmul.mubr.bf16.gmra.mxu0 %v4278
  %v5205 = vpop.f32.mrf.mxu0
  %v5206 = vadd.f32 0.0, %v5205
  %v5207 = vpop.f32.mrf.mxu0
  %v5208 = vadd.f32 0.0, %v5207
  %v5209 = vpop.f32.mrf.mxu0
  %v5210 = vpop.f32.mrf.mxu0
  %5211 = vdwg.mxu0
  %5212 = vmatprep.subr.bf16.mxu0 0
  %5213 = vmatpush1.bf16.msra.mxu0 %v5030
  %5214 = vmatprep.subr.bf16.mxu0 0
  %5215 = vmatpush1.bf16.msra.mxu0 %v5027
  %5216 = vmatprep.subr.bf16.mxu0 0
  %5217 = vmatpush1.bf16.msra.mxu0 %v5024
  %5218 = vmatprep.subr.bf16.mxu0 0
  %5219 = vmatpush1.bf16.msra.mxu0 %v5021
  %5220 = vmatprep.subr.bf16.mxu0 0
  %5221 = vmatpush1.bf16.msra.mxu0 %v5018
  %5222 = vmatprep.subr.bf16.mxu0 0
  %5223 = vmatpush1.bf16.msra.mxu0 %v5015
  %5224 = vmatprep.subr.bf16.mxu0 0
  %5225 = vmatpush1.bf16.msra.mxu0 %v5012
  %5226 = vmatprep.subr.bf16.mxu0 0
  %5227 = vmatpush1.bf16.msra.mxu0 %v5009
  %5228 = vmatprep.subr.bf16.mxu0 0
  %5229 = vmatpush2.bf16.msra.mxu0 0
  %5230 = vmatprep.subr.bf16.mxu0 0
  %5231 = vmatpush2.bf16.msra.mxu0 0
  %5232 = vmatprep.subr.bf16.mxu0 0
  %5233 = vmatpush2.bf16.msra.mxu0 %v5048
  %5234 = vmatprep.subr.bf16.mxu0 0
  %5235 = vmatpush2.bf16.msra.mxu0 %v5045
  %5236 = vmatprep.subr.bf16.mxu0 0
  %5237 = vmatpush2.bf16.msra.mxu0 %v5042
  %5238 = vmatprep.subr.bf16.mxu0 0
  %5239 = vmatpush2.bf16.msra.mxu0 %v5039
  %5240 = vmatprep.subr.bf16.mxu0 0
  %5241 = vmatpush2.bf16.msra.mxu0 %v5036
  %5242 = vmatprep.subr.bf16.mxu0 0
  %5243 = vmatpush2.bf16.msra.mxu0 %v5033
  %5244 = vmatprep.mubr.bf16.mxu0 %v4562
  %5245 = vmatmul.mubr.bf16.gmra.mxu0 %v4262
  %v5246 = vpop.f32.mrf.mxu0
  %v5247 = vadd.f32 0.0, %v5246
  %v5248 = vpop.f32.mrf.mxu0
  %v5249 = vpop.f32.mrf.mxu0
  %v5250 = vadd.f32 0.0, %v5249
  %v5251 = vpop.f32.mrf.mxu0
  %5252 = vmatprep.mubr.bf16.mxu0 %v4565
  %5253 = vmatmul.mubr.bf16.gmra.mxu0 %v4264
  %v5254 = vpop.f32.mrf.mxu0
  %v5255 = vadd.f32 0.0, %v5254
  %v5256 = vpop.f32.mrf.mxu0
  %v5257 = vpop.f32.mrf.mxu0
  %v5258 = vadd.f32 0.0, %v5257
  %v5259 = vpop.f32.mrf.mxu0
  %5260 = vmatprep.mubr.bf16.mxu0 %v4568
  %5261 = vmatmul.mubr.bf16.gmra.mxu0 %v4266
  %v5262 = vpop.f32.mrf.mxu0
  %v5263 = vadd.f32 0.0, %v5262
  %v5264 = vpop.f32.mrf.mxu0
  %v5265 = vpop.f32.mrf.mxu0
  %v5266 = vadd.f32 0.0, %v5265
  %v5267 = vpop.f32.mrf.mxu0
  %5268 = vmatprep.mubr.bf16.mxu0 %v4571
  %5269 = vmatmul.mubr.bf16.gmra.mxu0 %v4268
  %v5270 = vpop.f32.mrf.mxu0
  %v5271 = vadd.f32 0.0, %v5270
  %v5272 = vpop.f32.mrf.mxu0
  %v5273 = vpop.f32.mrf.mxu0
  %v5274 = vadd.f32 0.0, %v5273
  %v5275 = vpop.f32.mrf.mxu0
  %5276 = vmatprep.mubr.bf16.mxu0 %v4574
  %5277 = vmatmul.mubr.bf16.gmra.mxu0 %v4270
  %v5278 = vpop.f32.mrf.mxu0
  %v5279 = vadd.f32 0.0, %v5278
  %v5280 = vpop.f32.mrf.mxu0
  %v5281 = vpop.f32.mrf.mxu0
  %v5282 = vadd.f32 0.0, %v5281
  %v5283 = vpop.f32.mrf.mxu0
  %5284 = vmatprep.mubr.bf16.mxu0 %v4577
  %5285 = vmatmul.mubr.bf16.gmra.mxu0 %v4272
  %v5286 = vpop.f32.mrf.mxu0
  %v5287 = vadd.f32 0.0, %v5286
  %v5288 = vpop.f32.mrf.mxu0
  %v5289 = vpop.f32.mrf.mxu0
  %v5290 = vadd.f32 0.0, %v5289
  %v5291 = vpop.f32.mrf.mxu0
  %5292 = vmatprep.mubr.bf16.mxu0 %v4580
  %5293 = vmatmul.mubr.bf16.gmra.mxu0 %v4274
  %v5294 = vpop.f32.mrf.mxu0
  %v5295 = vadd.f32 0.0, %v5294
  %v5296 = vpop.f32.mrf.mxu0
  %v5297 = vpop.f32.mrf.mxu0
  %v5298 = vadd.f32 0.0, %v5297
  %v5299 = vpop.f32.mrf.mxu0
  %5300 = vmatprep.mubr.bf16.mxu0 %v4583
  %5301 = vmatmul.mubr.bf16.gmra.mxu0 %v4276
  %v5302 = vpop.f32.mrf.mxu0
  %v5303 = vadd.f32 0.0, %v5302
  %v5304 = vpop.f32.mrf.mxu0
  %v5305 = vpop.f32.mrf.mxu0
  %v5306 = vadd.f32 0.0, %v5305
  %v5307 = vpop.f32.mrf.mxu0
  %5308 = vmatprep.mubr.bf16.mxu0 %v4586
  %5309 = vmatmul.mubr.bf16.gmra.mxu0 %v4278
  %v5310 = vpop.f32.mrf.mxu0
  %v5311 = vadd.f32 0.0, %v5310
  %v5312 = vpop.f32.mrf.mxu0
  %v5313 = vpop.f32.mrf.mxu0
  %v5314 = vpop.f32.mrf.mxu0
  %5315 = vdwg.mxu0
  %s5316 = scalar_lea.vmem %s5, 672
  %v5317 = vld [vmem:[%s5316] sm:$0xff]
  %v5318 = vld [vmem:[%s5316 + $0x8] sm:$0xf]
  %v5319 = vld [vmem:[%s5316 + $0xc] sm:$0xff]
  %v5320 = vld [vmem:[%s5316 + $0x14] sm:$0xf]
  %v5321 = vld [vmem:[%s5316 + $0x18] sm:$0xff]
  %v5322 = vld [vmem:[%s5316 + $0x20] sm:$0xf]
  %v5323 = vld [vmem:[%s5316 + $0x24] sm:$0xff]
  %v5324 = vld [vmem:[%s5316 + $0x2c] sm:$0xf]
  %v5325 = vld [vmem:[%s5316 + $0x30] sm:$0xff]
  %v5326 = vld [vmem:[%s5316 + $0x38] sm:$0xf]
  %v5327 = vld [vmem:[%s5316 + $0x3c] sm:$0xff]
  %v5328 = vld [vmem:[%s5316 + $0x44] sm:$0xf]
  %v5329 = vld [vmem:[%s5316 + $0x48] sm:$0xff]
  %v5330 = vld [vmem:[%s5316 + $0x50] sm:$0xf]
  %v5331 = vld [vmem:[%s5316 + $0x54] sm:$0xff]
  %v5332 = vld [vmem:[%s5316 + $0x5c] sm:$0xf]
  %v5333 = vld [vmem:[%s5316 + $0x60] sm:$0xff]
  %v5334 = vld [vmem:[%s5316 + $0x68] sm:$0xf]
  %v5335 = vld [vmem:[%s5316 + $0x6c] sm:$0xff]
  %v5336 = vld [vmem:[%s5316 + $0x74] sm:$0xf]
  %v5337 = vld [vmem:[%s5316 + $0x78] sm:$0xff]
  %v5338 = vld [vmem:[%s5316 + $0x80] sm:$0xf]
  %v5339 = vld [vmem:[%s5316 + $0x84] sm:$0xff]
  %v5340 = vld [vmem:[%s5316 + $0x8c] sm:$0xf]
  %v5341 = vld [vmem:[%s5316 + $0x90] sm:$0xff]
  %v5342 = vld [vmem:[%s5316 + $0x98] sm:$0xf]
  %v5343 = vld [vmem:[%s5316 + $0x9c] sm:$0xff]
  %v5344 = vld [vmem:[%s5316 + $0xa4] sm:$0xf]
  %v5345 = vld [vmem:[%s5316 + $0xa8] sm:$0xff]
  %v5346 = vld [vmem:[%s5316 + $0xb0] sm:$0xf]
  %v5347 = vld [vmem:[%s5316 + $0xb4] sm:$0xff]
  %v5348 = vld [vmem:[%s5316 + $0xbc] sm:$0xf]
  %v5349 = vld [vmem:[%s5316 + $0xc0] sm:$0xff]
  %v5350 = vld [vmem:[%s5316 + $0xc8] sm:$0xf]
  %v5351 = vld [vmem:[%s5316 + $0xcc] sm:$0xff]
  %v5352 = vld [vmem:[%s5316 + $0xd4] sm:$0xf]
  %v5353 = vld [vmem:[%s5316 + $0xd8] sm:$0xff]
  %v5354 = vld [vmem:[%s5316 + $0xe0] sm:$0xf]
  %v5355 = vld [vmem:[%s5316 + $0xe4] sm:$0xff]
  %v5356 = vld [vmem:[%s5316 + $0xec] sm:$0xf]
  %v5357 = vld [vmem:[%s5316 + $0xf0] sm:$0xff]
  %v5358 = vld [vmem:[%s5316 + $0xf8] sm:$0xf]
  %v5359 = vld [vmem:[%s5316 + $0xfc] sm:$0xff]
  %v5360 = vld [vmem:[%s5316 + $0x104] sm:$0xf]
  %v5361 = vld [vmem:[%s5316 + $0x108] sm:$0xff]
  %v5362 = vld [vmem:[%s5316 + $0x110] sm:$0xf]
  %v5363 = vld [vmem:[%s5316 + $0x114] sm:$0xff]
  %v5364 = vld [vmem:[%s5316 + $0x11c] sm:$0xf]
  %v5365 = vld [vmem:[%s5316 + $0x120] sm:$0xff]
  %v5366 = vld [vmem:[%s5316 + $0x128] sm:$0xf]
  %v5367 = vld [vmem:[%s5316 + $0x12c] sm:$0xff]
  %v5368 = vld [vmem:[%s5316 + $0x134] sm:$0xf]
  %v5369 = vld [vmem:[%s5316 + $0x138] sm:$0xff]
  %v5370 = vld [vmem:[%s5316 + $0x140] sm:$0xf]
  %v5371 = vld [vmem:[%s5316 + $0x144] sm:$0xff]
  %v5372 = vld [vmem:[%s5316 + $0x14c] sm:$0xf]
  %v5429 = vunpack.c.l.b16 %v5317
  %v5430 = vunpack.c.h.b16 %v5317
  %v5431 = vunpack.c.l.b16 %v5318
  %v5432 = vunpack.c.l.b16 %v5319
  %v5433 = vunpack.c.h.b16 %v5319
  %v5434 = vunpack.c.l.b16 %v5320
  %v5435 = vunpack.c.l.b16 %v5321
  %v5436 = vunpack.c.h.b16 %v5321
  %v5437 = vunpack.c.l.b16 %v5322
  %v5438 = vunpack.c.l.b16 %v5323
  %v5439 = vunpack.c.h.b16 %v5323
  %v5440 = vunpack.c.l.b16 %v5324
  %v5441 = vunpack.c.l.b16 %v5325
  %v5442 = vunpack.c.h.b16 %v5325
  %v5443 = vunpack.c.l.b16 %v5326
  %v5444 = vunpack.c.l.b16 %v5327
  %v5445 = vunpack.c.h.b16 %v5327
  %v5446 = vunpack.c.l.b16 %v5328
  %v5447 = vunpack.c.l.b16 %v5329
  %v5448 = vunpack.c.h.b16 %v5329
  %v5449 = vunpack.c.l.b16 %v5330
  %v5450 = vunpack.c.l.b16 %v5331
  %v5451 = vunpack.c.h.b16 %v5331
  %v5452 = vunpack.c.l.b16 %v5332
  %v5453 = vunpack.c.l.b16 %v5333
  %v5454 = vunpack.c.h.b16 %v5333
  %v5455 = vunpack.c.l.b16 %v5334
  %v5456 = vunpack.c.l.b16 %v5335
  %v5457 = vunpack.c.h.b16 %v5335
  %v5458 = vunpack.c.l.b16 %v5336
  %v5459 = vunpack.c.l.b16 %v5337
  %v5460 = vunpack.c.h.b16 %v5337
  %v5461 = vunpack.c.l.b16 %v5338
  %v5462 = vunpack.c.l.b16 %v5339
  %v5463 = vunpack.c.h.b16 %v5339
  %v5464 = vunpack.c.l.b16 %v5340
  %v5465 = vunpack.c.l.b16 %v5341
  %v5466 = vunpack.c.h.b16 %v5341
  %v5467 = vunpack.c.l.b16 %v5342
  %v5468 = vunpack.c.l.b16 %v5343
  %v5469 = vunpack.c.h.b16 %v5343
  %v5470 = vunpack.c.l.b16 %v5344
  %v5471 = vunpack.c.l.b16 %v5345
  %v5472 = vunpack.c.h.b16 %v5345
  %v5473 = vunpack.c.l.b16 %v5346
  %v5474 = vunpack.c.l.b16 %v5347
  %v5475 = vunpack.c.h.b16 %v5347
  %v5476 = vunpack.c.l.b16 %v5348
  %v5477 = vunpack.c.l.b16 %v5349
  %v5478 = vunpack.c.h.b16 %v5349
  %v5479 = vunpack.c.l.b16 %v5350
  %v5480 = vunpack.c.l.b16 %v5351
  %v5481 = vunpack.c.h.b16 %v5351
  %v5482 = vunpack.c.l.b16 %v5352
  %v5483 = vunpack.c.l.b16 %v5353
  %v5484 = vunpack.c.h.b16 %v5353
  %v5485 = vunpack.c.l.b16 %v5354
  %v5486 = vunpack.c.l.b16 %v5355
  %v5487 = vunpack.c.h.b16 %v5355
  %v5488 = vunpack.c.l.b16 %v5356
  %v5489 = vunpack.c.l.b16 %v5357
  %v5490 = vunpack.c.h.b16 %v5357
  %v5491 = vunpack.c.l.b16 %v5358
  %v5492 = vunpack.c.l.b16 %v5359
  %v5493 = vunpack.c.h.b16 %v5359
  %v5494 = vunpack.c.l.b16 %v5360
  %v5495 = vunpack.c.l.b16 %v5361
  %v5496 = vunpack.c.h.b16 %v5361
  %v5497 = vunpack.c.l.b16 %v5362
  %v5498 = vunpack.c.l.b16 %v5363
  %v5499 = vunpack.c.h.b16 %v5363
  %v5500 = vunpack.c.l.b16 %v5364
  %v5501 = vunpack.c.l.b16 %v5365
  %v5502 = vunpack.c.h.b16 %v5365
  %v5503 = vunpack.c.l.b16 %v5366
  %v5504 = vunpack.c.l.b16 %v5367
  %v5505 = vunpack.c.h.b16 %v5367
  %v5506 = vunpack.c.l.b16 %v5368
  %v5507 = vunpack.c.l.b16 %v5369
  %v5508 = vunpack.c.h.b16 %v5369
  %v5509 = vunpack.c.l.b16 %v5370
  %v5510 = vunpack.c.l.b16 %v5371
  %v5511 = vunpack.c.h.b16 %v5371
  %v5512 = vunpack.c.l.b16 %v5372
  %v5513 = vpack.c.b16 %v5432, %v5429
  %v5514 = vpack.c.b16 %v5433, %v5430
  %v5515 = vpack.c.b16 %v5434, %v5431
  %v5516 = vpack.c.b16 %v5438, %v5435
  %v5517 = vpack.c.b16 %v5439, %v5436
  %v5518 = vpack.c.b16 %v5440, %v5437
  %v5519 = vpack.c.b16 %v5444, %v5441
  %v5520 = vpack.c.b16 %v5445, %v5442
  %v5521 = vpack.c.b16 %v5446, %v5443
  %v5522 = vpack.c.b16 %v5450, %v5447
  %v5523 = vpack.c.b16 %v5451, %v5448
  %v5524 = vpack.c.b16 %v5452, %v5449
  %v5525 = vpack.c.b16 %v5456, %v5453
  %v5526 = vpack.c.b16 %v5457, %v5454
  %v5527 = vpack.c.b16 %v5458, %v5455
  %v5528 = vpack.c.b16 %v5462, %v5459
  %v5529 = vpack.c.b16 %v5463, %v5460
  %v5530 = vpack.c.b16 %v5464, %v5461
  %v5531 = vpack.c.b16 %v5468, %v5465
  %v5532 = vpack.c.b16 %v5469, %v5466
  %v5533 = vpack.c.b16 %v5470, %v5467
  %v5534 = vpack.c.b16 %v5474, %v5471
  %v5535 = vpack.c.b16 %v5475, %v5472
  %v5536 = vpack.c.b16 %v5476, %v5473
  %v5537 = vpack.c.b16 %v5480, %v5477
  %v5538 = vpack.c.b16 %v5481, %v5478
  %v5539 = vpack.c.b16 %v5482, %v5479
  %v5540 = vpack.c.b16 %v5486, %v5483
  %v5541 = vpack.c.b16 %v5487, %v5484
  %v5542 = vpack.c.b16 %v5488, %v5485
  %v5543 = vpack.c.b16 %v5492, %v5489
  %v5544 = vpack.c.b16 %v5493, %v5490
  %v5545 = vpack.c.b16 %v5494, %v5491
  %v5546 = vpack.c.b16 %v5498, %v5495
  %v5547 = vpack.c.b16 %v5499, %v5496
  %v5548 = vpack.c.b16 %v5500, %v5497
  %v5549 = vpack.c.b16 %v5504, %v5501
  %v5550 = vpack.c.b16 %v5505, %v5502
  %v5551 = vpack.c.b16 %v5506, %v5503
  %v5552 = vpack.c.b16 %v5510, %v5507
  %v5553 = vpack.c.b16 %v5511, %v5508
  %v5554 = vpack.c.b16 %v5512, %v5509
  %5597 = vmatprep.subr.bf16.mxu0 %v5535
  %5598 = vmatpush1.bf16.msra.mxu0 %v5534
  %5599 = vmatprep.subr.bf16.mxu0 %v5532
  %5600 = vmatpush1.bf16.msra.mxu0 %v5531
  %5601 = vmatprep.subr.bf16.mxu0 %v5529
  %5602 = vmatpush1.bf16.msra.mxu0 %v5528
  %5603 = vmatprep.subr.bf16.mxu0 %v5526
  %5604 = vmatpush1.bf16.msra.mxu0 %v5525
  %5605 = vmatprep.subr.bf16.mxu0 %v5523
  %5606 = vmatpush1.bf16.msra.mxu0 %v5522
  %5607 = vmatprep.subr.bf16.mxu0 %v5520
  %5608 = vmatpush1.bf16.msra.mxu0 %v5519
  %5609 = vmatprep.subr.bf16.mxu0 %v5517
  %5610 = vmatpush1.bf16.msra.mxu0 %v5516
  %5611 = vmatprep.subr.bf16.mxu0 %v5514
  %5612 = vmatpush1.bf16.msra.mxu0 %v5513
  %5613 = vmatprep.subr.bf16.mxu0 0
  %5614 = vmatpush2.bf16.msra.mxu0 0
  %5615 = vmatprep.subr.bf16.mxu0 0
  %5616 = vmatpush2.bf16.msra.mxu0 0
  %5617 = vmatprep.subr.bf16.mxu0 %v5553
  %5618 = vmatpush2.bf16.msra.mxu0 %v5552
  %5619 = vmatprep.subr.bf16.mxu0 %v5550
  %5620 = vmatpush2.bf16.msra.mxu0 %v5549
  %5621 = vmatprep.subr.bf16.mxu0 %v5547
  %5622 = vmatpush2.bf16.msra.mxu0 %v5546
  %5623 = vmatprep.subr.bf16.mxu0 %v5544
  %5624 = vmatpush2.bf16.msra.mxu0 %v5543
  %5625 = vmatprep.subr.bf16.mxu0 %v5541
  %5626 = vmatpush2.bf16.msra.mxu0 %v5540
  %5627 = vmatprep.subr.bf16.mxu0 %v5538
  %5628 = vmatpush2.bf16.msra.mxu0 %v5537
  %5629 = vmatprep.mubr.bf16.mxu0 %v4562
  %5630 = vmatmul.mubr.bf16.gmra.mxu0 %v4262
  %v5631 = vpop.f32.mrf.mxu0
  %v5632 = vadd.f32 0.0, %v5631
  %v5633 = vpop.f32.mrf.mxu0
  %v5634 = vadd.f32 0.0, %v5633
  %v5635 = vpop.f32.mrf.mxu0
  %v5636 = vadd.f32 0.0, %v5635
  %v5637 = vpop.f32.mrf.mxu0
  %v5638 = vadd.f32 0.0, %v5637
  %5639 = vmatprep.mubr.bf16.mxu0 %v4565
  %5640 = vmatmul.mubr.bf16.gmra.mxu0 %v4264
  %v5641 = vpop.f32.mrf.mxu0
  %v5642 = vadd.f32 0.0, %v5641
  %v5643 = vpop.f32.mrf.mxu0
  %v5644 = vadd.f32 0.0, %v5643
  %v5645 = vpop.f32.mrf.mxu0
  %v5646 = vadd.f32 0.0, %v5645
  %v5647 = vpop.f32.mrf.mxu0
  %v5648 = vadd.f32 0.0, %v5647
  %5649 = vmatprep.mubr.bf16.mxu0 %v4568
  %5650 = vmatmul.mubr.bf16.gmra.mxu0 %v4266
  %v5651 = vpop.f32.mrf.mxu0
  %v5652 = vadd.f32 0.0, %v5651
  %v5653 = vpop.f32.mrf.mxu0
  %v5654 = vadd.f32 0.0, %v5653
  %v5655 = vpop.f32.mrf.mxu0
  %v5656 = vadd.f32 0.0, %v5655
  %v5657 = vpop.f32.mrf.mxu0
  %v5658 = vadd.f32 0.0, %v5657
  %5659 = vmatprep.mubr.bf16.mxu0 %v4571
  %5660 = vmatmul.mubr.bf16.gmra.mxu0 %v4268
  %v5661 = vpop.f32.mrf.mxu0
  %v5662 = vadd.f32 0.0, %v5661
  %v5663 = vpop.f32.mrf.mxu0
  %v5664 = vadd.f32 0.0, %v5663
  %v5665 = vpop.f32.mrf.mxu0
  %v5666 = vadd.f32 0.0, %v5665
  %v5667 = vpop.f32.mrf.mxu0
  %v5668 = vadd.f32 0.0, %v5667
  %5669 = vmatprep.mubr.bf16.mxu0 %v4574
  %5670 = vmatmul.mubr.bf16.gmra.mxu0 %v4270
  %v5671 = vpop.f32.mrf.mxu0
  %v5672 = vadd.f32 0.0, %v5671
  %v5673 = vpop.f32.mrf.mxu0
  %v5674 = vadd.f32 0.0, %v5673
  %v5675 = vpop.f32.mrf.mxu0
  %v5676 = vadd.f32 0.0, %v5675
  %v5677 = vpop.f32.mrf.mxu0
  %v5678 = vadd.f32 0.0, %v5677
  %5679 = vmatprep.mubr.bf16.mxu0 %v4577
  %5680 = vmatmul.mubr.bf16.gmra.mxu0 %v4272
  %v5681 = vpop.f32.mrf.mxu0
  %v5682 = vadd.f32 0.0, %v5681
  %v5683 = vpop.f32.mrf.mxu0
  %v5684 = vadd.f32 0.0, %v5683
  %v5685 = vpop.f32.mrf.mxu0
  %v5686 = vadd.f32 0.0, %v5685
  %v5687 = vpop.f32.mrf.mxu0
  %v5688 = vadd.f32 0.0, %v5687
  %5689 = vmatprep.mubr.bf16.mxu0 %v4580
  %5690 = vmatmul.mubr.bf16.gmra.mxu0 %v4274
  %v5691 = vpop.f32.mrf.mxu0
  %v5692 = vadd.f32 0.0, %v5691
  %v5693 = vpop.f32.mrf.mxu0
  %v5694 = vadd.f32 0.0, %v5693
  %v5695 = vpop.f32.mrf.mxu0
  %v5696 = vadd.f32 0.0, %v5695
  %v5697 = vpop.f32.mrf.mxu0
  %v5698 = vadd.f32 0.0, %v5697
  %5699 = vmatprep.mubr.bf16.mxu0 %v4583
  %5700 = vmatmul.mubr.bf16.gmra.mxu0 %v4276
  %v5701 = vpop.f32.mrf.mxu0
  %v5702 = vadd.f32 0.0, %v5701
  %v5703 = vpop.f32.mrf.mxu0
  %v5704 = vadd.f32 0.0, %v5703
  %v5705 = vpop.f32.mrf.mxu0
  %v5706 = vadd.f32 0.0, %v5705
  %v5707 = vpop.f32.mrf.mxu0
  %v5708 = vadd.f32 0.0, %v5707
  %5709 = vmatprep.mubr.bf16.mxu0 %v4586
  %5710 = vmatmul.mubr.bf16.gmra.mxu0 %v4278
  %v5711 = vpop.f32.mrf.mxu0
  %v5712 = vadd.f32 0.0, %v5711
  %v5713 = vpop.f32.mrf.mxu0
  %v5714 = vadd.f32 0.0, %v5713
  %v5715 = vpop.f32.mrf.mxu0
  %v5716 = vpop.f32.mrf.mxu0
  %5717 = vdwg.mxu0
  %5718 = vmatprep.subr.bf16.mxu0 0
  %5719 = vmatpush1.bf16.msra.mxu0 %v5536
  %5720 = vmatprep.subr.bf16.mxu0 0
  %5721 = vmatpush1.bf16.msra.mxu0 %v5533
  %5722 = vmatprep.subr.bf16.mxu0 0
  %5723 = vmatpush1.bf16.msra.mxu0 %v5530
  %5724 = vmatprep.subr.bf16.mxu0 0
  %5725 = vmatpush1.bf16.msra.mxu0 %v5527
  %5726 = vmatprep.subr.bf16.mxu0 0
  %5727 = vmatpush1.bf16.msra.mxu0 %v5524
  %5728 = vmatprep.subr.bf16.mxu0 0
  %5729 = vmatpush1.bf16.msra.mxu0 %v5521
  %5730 = vmatprep.subr.bf16.mxu0 0
  %5731 = vmatpush1.bf16.msra.mxu0 %v5518
  %5732 = vmatprep.subr.bf16.mxu0 0
  %5733 = vmatpush1.bf16.msra.mxu0 %v5515
  %5734 = vmatprep.subr.bf16.mxu0 0
  %5735 = vmatpush2.bf16.msra.mxu0 0
  %5736 = vmatprep.subr.bf16.mxu0 0
  %5737 = vmatpush2.bf16.msra.mxu0 0
  %5738 = vmatprep.subr.bf16.mxu0 0
  %5739 = vmatpush2.bf16.msra.mxu0 %v5554
  %5740 = vmatprep.subr.bf16.mxu0 0
  %5741 = vmatpush2.bf16.msra.mxu0 %v5551
  %5742 = vmatprep.subr.bf16.mxu0 0
  %5743 = vmatpush2.bf16.msra.mxu0 %v5548
  %5744 = vmatprep.subr.bf16.mxu0 0
  %5745 = vmatpush2.bf16.msra.mxu0 %v5545
  %5746 = vmatprep.subr.bf16.mxu0 0
  %5747 = vmatpush2.bf16.msra.mxu0 %v5542
  %5748 = vmatprep.subr.bf16.mxu0 0
  %5749 = vmatpush2.bf16.msra.mxu0 %v5539
  %5750 = vmatprep.mubr.bf16.mxu0 %v4562
  %5751 = vmatmul.mubr.bf16.gmra.mxu0 %v4262
  %v5752 = vpop.f32.mrf.mxu0
  %v5753 = vadd.f32 0.0, %v5752
  %v5754 = vpop.f32.mrf.mxu0
  %v5755 = vpop.f32.mrf.mxu0
  %v5756 = vadd.f32 0.0, %v5755
  %v5757 = vpop.f32.mrf.mxu0
  %5758 = vmatprep.mubr.bf16.mxu0 %v4565
  %5759 = vmatmul.mubr.bf16.gmra.mxu0 %v4264
  %v5760 = vpop.f32.mrf.mxu0
  %v5761 = vadd.f32 0.0, %v5760
  %v5762 = vpop.f32.mrf.mxu0
  %v5763 = vpop.f32.mrf.mxu0
  %v5764 = vadd.f32 0.0, %v5763
  %v5765 = vpop.f32.mrf.mxu0
  %5766 = vmatprep.mubr.bf16.mxu0 %v4568
  %5767 = vmatmul.mubr.bf16.gmra.mxu0 %v4266
  %v5768 = vpop.f32.mrf.mxu0
  %v5769 = vadd.f32 0.0, %v5768
  %v5770 = vpop.f32.mrf.mxu0
  %v5771 = vpop.f32.mrf.mxu0
  %v5772 = vadd.f32 0.0, %v5771
  %v5773 = vpop.f32.mrf.mxu0
  %5774 = vmatprep.mubr.bf16.mxu0 %v4571
  %5775 = vmatmul.mubr.bf16.gmra.mxu0 %v4268
  %v5776 = vpop.f32.mrf.mxu0
  %v5777 = vadd.f32 0.0, %v5776
  %v5778 = vpop.f32.mrf.mxu0
  %v5779 = vpop.f32.mrf.mxu0
  %v5780 = vadd.f32 0.0, %v5779
  %v5781 = vpop.f32.mrf.mxu0
  %5782 = vmatprep.mubr.bf16.mxu0 %v4574
  %5783 = vmatmul.mubr.bf16.gmra.mxu0 %v4270
  %v5784 = vpop.f32.mrf.mxu0
  %v5785 = vadd.f32 0.0, %v5784
  %v5786 = vpop.f32.mrf.mxu0
  %v5787 = vpop.f32.mrf.mxu0
  %v5788 = vadd.f32 0.0, %v5787
  %v5789 = vpop.f32.mrf.mxu0
  %5790 = vmatprep.mubr.bf16.mxu0 %v4577
  %5791 = vmatmul.mubr.bf16.gmra.mxu0 %v4272
  %v5792 = vpop.f32.mrf.mxu0
  %v5793 = vadd.f32 0.0, %v5792
  %v5794 = vpop.f32.mrf.mxu0
  %v5795 = vpop.f32.mrf.mxu0
  %v5796 = vadd.f32 0.0, %v5795
  %v5797 = vpop.f32.mrf.mxu0
  %5798 = vmatprep.mubr.bf16.mxu0 %v4580
  %5799 = vmatmul.mubr.bf16.gmra.mxu0 %v4274
  %v5800 = vpop.f32.mrf.mxu0
  %v5801 = vadd.f32 0.0, %v5800
  %v5802 = vpop.f32.mrf.mxu0
  %v5803 = vpop.f32.mrf.mxu0
  %v5804 = vadd.f32 0.0, %v5803
  %v5805 = vpop.f32.mrf.mxu0
  %5806 = vmatprep.mubr.bf16.mxu0 %v4583
  %5807 = vmatmul.mubr.bf16.gmra.mxu0 %v4276
  %v5808 = vpop.f32.mrf.mxu0
  %v5809 = vadd.f32 0.0, %v5808
  %v5810 = vpop.f32.mrf.mxu0
  %v5811 = vpop.f32.mrf.mxu0
  %v5812 = vadd.f32 0.0, %v5811
  %v5813 = vpop.f32.mrf.mxu0
  %5814 = vmatprep.mubr.bf16.mxu0 %v4586
  %5815 = vmatmul.mubr.bf16.gmra.mxu0 %v4278
  %v5816 = vpop.f32.mrf.mxu0
  %v5817 = vadd.f32 0.0, %v5816
  %v5818 = vpop.f32.mrf.mxu0
  %v5819 = vpop.f32.mrf.mxu0
  %v5820 = vpop.f32.mrf.mxu0
  %5821 = vdwg.mxu0
  %v5873 = vrot.slane %v5126, 1
  %v5874 = vrot.slane %v5130, 1
  %v5875 = vsel %vm266, %v5873, %v5874
  %v5876 = vrot.slane %v5128, 1
  %v5877 = vrot.slane %v5132, 1
  %v5878 = vsel %vm266, %v5876, %v5877
  %v5879 = vrot.slane %v5247, 1
  %v5880 = vrot.slane %v5250, 1
  %v5881 = vsel %vm266, %v5879, %v5880
  %v5882 = vrot.slane %v5136, 1
  %v5883 = vsel %vm266, %v5874, %v5882
  %v5884 = vrot.slane %v5138, 1
  %v5885 = vsel %vm266, %v5877, %v5884
  %v5886 = vrot.slane %v5255, 1
  %v5887 = vsel %vm266, %v5880, %v5886
  %v5888 = vrot.slane %v5140, 1
  %v5889 = vsel %vm266, %v5882, %v5888
  %v5890 = vrot.slane %v5142, 1
  %v5891 = vsel %vm266, %v5884, %v5890
  %v5892 = vrot.slane %v5258, 1
  %v5893 = vsel %vm266, %v5886, %v5892
  %v5894 = vrot.slane %v5146, 1
  %v5895 = vsel %vm266, %v5888, %v5894
  %v5896 = vrot.slane %v5148, 1
  %v5897 = vsel %vm266, %v5890, %v5896
  %v5898 = vrot.slane %v5263, 1
  %v5899 = vsel %vm266, %v5892, %v5898
  %v5900 = vrot.slane %v5150, 1
  %v5901 = vsel %vm266, %v5894, %v5900
  %v5902 = vrot.slane %v5152, 1
  %v5903 = vsel %vm266, %v5896, %v5902
  %v5904 = vrot.slane %v5266, 1
  %v5905 = vsel %vm266, %v5898, %v5904
  %v5906 = vrot.slane %v5156, 1
  %v5907 = vsel %vm266, %v5900, %v5906
  %v5908 = vrot.slane %v5158, 1
  %v5909 = vsel %vm266, %v5902, %v5908
  %v5910 = vrot.slane %v5271, 1
  %v5911 = vsel %vm266, %v5904, %v5910
  %v5912 = vrot.slane %v5160, 1
  %v5913 = vsel %vm266, %v5906, %v5912
  %v5914 = vrot.slane %v5162, 1
  %v5915 = vsel %vm266, %v5908, %v5914
  %v5916 = vrot.slane %v5274, 1
  %v5917 = vsel %vm266, %v5910, %v5916
  %v5918 = vrot.slane %v5166, 1
  %v5919 = vsel %vm266, %v5912, %v5918
  %v5920 = vrot.slane %v5168, 1
  %v5921 = vsel %vm266, %v5914, %v5920
  %v5922 = vrot.slane %v5279, 1
  %v5923 = vsel %vm266, %v5916, %v5922
  %v5924 = vrot.slane %v5170, 1
  %v5925 = vsel %vm266, %v5918, %v5924
  %v5926 = vrot.slane %v5172, 1
  %v5927 = vsel %vm266, %v5920, %v5926
  %v5928 = vrot.slane %v5282, 1
  %v5929 = vsel %vm266, %v5922, %v5928
  %v5930 = vrot.slane %v5176, 1
  %v5931 = vsel %vm266, %v5924, %v5930
  %v5932 = vrot.slane %v5178, 1
  %v5933 = vsel %vm266, %v5926, %v5932
  %v5934 = vrot.slane %v5287, 1
  %v5935 = vsel %vm266, %v5928, %v5934
  %v5936 = vrot.slane %v5180, 1
  %v5937 = vsel %vm266, %v5930, %v5936
  %v5938 = vrot.slane %v5182, 1
  %v5939 = vsel %vm266, %v5932, %v5938
  %v5940 = vrot.slane %v5290, 1
  %v5941 = vsel %vm266, %v5934, %v5940
  %v5942 = vrot.slane %v5186, 1
  %v5943 = vsel %vm266, %v5936, %v5942
  %v5944 = vrot.slane %v5188, 1
  %v5945 = vsel %vm266, %v5938, %v5944
  %v5946 = vrot.slane %v5295, 1
  %v5947 = vsel %vm266, %v5940, %v5946
  %v5948 = vrot.slane %v5190, 1
  %v5949 = vsel %vm266, %v5942, %v5948
  %v5950 = vrot.slane %v5192, 1
  %v5951 = vsel %vm266, %v5944, %v5950
  %v5952 = vrot.slane %v5298, 1
  %v5953 = vsel %vm266, %v5946, %v5952
  %v5954 = vrot.slane %v5196, 1
  %v5955 = vsel %vm266, %v5948, %v5954
  %v5956 = vrot.slane %v5198, 1
  %v5957 = vsel %vm266, %v5950, %v5956
  %v5958 = vrot.slane %v5303, 1
  %v5959 = vsel %vm266, %v5952, %v5958
  %v5960 = vrot.slane %v5200, 1
  %v5961 = vsel %vm266, %v5954, %v5960
  %v5962 = vrot.slane %v5202, 1
  %v5963 = vsel %vm266, %v5956, %v5962
  %v5964 = vrot.slane %v5306, 1
  %v5965 = vsel %vm266, %v5958, %v5964
  %v5966 = vrot.slane %v5206, 1
  %v5967 = vsel %vm266, %v5960, %v5966
  %v5968 = vrot.slane %v5208, 1
  %v5969 = vsel %vm266, %v5962, %v5968
  %v5970 = vrot.slane %v5311, 1
  %v5971 = vsel %vm266, %v5964, %v5970
  %v6020 = vadd.f32 %v4623, %v5875
  %v6021 = vadd.f32 %v4625, %v5878
  %v6022 = vadd.f32 %v4742, %v5881
  %v6023 = vadd.f32 %v4627, %v5883
  %v6024 = vadd.f32 %v4629, %v5885
  %v6025 = vadd.f32 %v4745, %v5887
  %v6026 = vadd.f32 %v4633, %v5889
  %v6027 = vadd.f32 %v4635, %v5891
  %v6028 = vadd.f32 %v4750, %v5893
  %v6029 = vadd.f32 %v4637, %v5895
  %v6030 = vadd.f32 %v4639, %v5897
  %v6031 = vadd.f32 %v4753, %v5899
  %v6032 = vadd.f32 %v4643, %v5901
  %v6033 = vadd.f32 %v4645, %v5903
  %v6034 = vadd.f32 %v4758, %v5905
  %v6035 = vadd.f32 %v4647, %v5907
  %v6036 = vadd.f32 %v4649, %v5909
  %v6037 = vadd.f32 %v4761, %v5911
  %v6038 = vadd.f32 %v4653, %v5913
  %v6039 = vadd.f32 %v4655, %v5915
  %v6040 = vadd.f32 %v4766, %v5917
  %v6041 = vadd.f32 %v4657, %v5919
  %v6042 = vadd.f32 %v4659, %v5921
  %v6043 = vadd.f32 %v4769, %v5923
  %v6044 = vadd.f32 %v4663, %v5925
  %v6045 = vadd.f32 %v4665, %v5927
  %v6046 = vadd.f32 %v4774, %v5929
  %v6047 = vadd.f32 %v4667, %v5931
  %v6048 = vadd.f32 %v4669, %v5933
  %v6049 = vadd.f32 %v4777, %v5935
  %v6050 = vadd.f32 %v4673, %v5937
  %v6051 = vadd.f32 %v4675, %v5939
  %v6052 = vadd.f32 %v4782, %v5941
  %v6053 = vadd.f32 %v4677, %v5943
  %v6054 = vadd.f32 %v4679, %v5945
  %v6055 = vadd.f32 %v4785, %v5947
  %v6056 = vadd.f32 %v4683, %v5949
  %v6057 = vadd.f32 %v4685, %v5951
  %v6058 = vadd.f32 %v4790, %v5953
  %v6059 = vadd.f32 %v4687, %v5955
  %v6060 = vadd.f32 %v4689, %v5957
  %v6061 = vadd.f32 %v4793, %v5959
  %v6062 = vadd.f32 %v4693, %v5961
  %v6063 = vadd.f32 %v4695, %v5963
  %v6064 = vadd.f32 %v4798, %v5965
  %v6065 = vadd.f32 %v4697, %v5967
  %v6066 = vadd.f32 %v4699, %v5969
  %v6067 = vadd.f32 %v4801, %v5971
  %v6119 = vrot.slane %v5632, 2
  %v6120 = vrot.slane %v5636, 2
  %v6121 = vsel %vm2375, %v6119, %v6120
  %v6122 = vrot.slane %v5634, 2
  %v6123 = vrot.slane %v5638, 2
  %v6124 = vsel %vm2375, %v6122, %v6123
  %v6125 = vrot.slane %v5753, 2
  %v6126 = vrot.slane %v5756, 2
  %v6127 = vsel %vm2375, %v6125, %v6126
  %v6128 = vrot.slane %v5642, 2
  %v6129 = vsel %vm2375, %v6120, %v6128
  %v6130 = vrot.slane %v5644, 2
  %v6131 = vsel %vm2375, %v6123, %v6130
  %v6132 = vrot.slane %v5761, 2
  %v6133 = vsel %vm2375, %v6126, %v6132
  %v6134 = vrot.slane %v5646, 2
  %v6135 = vsel %vm2375, %v6128, %v6134
  %v6136 = vrot.slane %v5648, 2
  %v6137 = vsel %vm2375, %v6130, %v6136
  %v6138 = vrot.slane %v5764, 2
  %v6139 = vsel %vm2375, %v6132, %v6138
  %v6140 = vrot.slane %v5652, 2
  %v6141 = vsel %vm2375, %v6134, %v6140
  %v6142 = vrot.slane %v5654, 2
  %v6143 = vsel %vm2375, %v6136, %v6142
  %v6144 = vrot.slane %v5769, 2
  %v6145 = vsel %vm2375, %v6138, %v6144
  %v6146 = vrot.slane %v5656, 2
  %v6147 = vsel %vm2375, %v6140, %v6146
  %v6148 = vrot.slane %v5658, 2
  %v6149 = vsel %vm2375, %v6142, %v6148
  %v6150 = vrot.slane %v5772, 2
  %v6151 = vsel %vm2375, %v6144, %v6150
  %v6152 = vrot.slane %v5662, 2
  %v6153 = vsel %vm2375, %v6146, %v6152
  %v6154 = vrot.slane %v5664, 2
  %v6155 = vsel %vm2375, %v6148, %v6154
  %v6156 = vrot.slane %v5777, 2
  %v6157 = vsel %vm2375, %v6150, %v6156
  %v6158 = vrot.slane %v5666, 2
  %v6159 = vsel %vm2375, %v6152, %v6158
  %v6160 = vrot.slane %v5668, 2
  %v6161 = vsel %vm2375, %v6154, %v6160
  %v6162 = vrot.slane %v5780, 2
  %v6163 = vsel %vm2375, %v6156, %v6162
  %v6164 = vrot.slane %v5672, 2
  %v6165 = vsel %vm2375, %v6158, %v6164
  %v6166 = vrot.slane %v5674, 2
  %v6167 = vsel %vm2375, %v6160, %v6166
  %v6168 = vrot.slane %v5785, 2
  %v6169 = vsel %vm2375, %v6162, %v6168
  %v6170 = vrot.slane %v5676, 2
  %v6171 = vsel %vm2375, %v6164, %v6170
  %v6172 = vrot.slane %v5678, 2
  %v6173 = vsel %vm2375, %v6166, %v6172
  %v6174 = vrot.slane %v5788, 2
  %v6175 = vsel %vm2375, %v6168, %v6174
  %v6176 = vrot.slane %v5682, 2
  %v6177 = vsel %vm2375, %v6170, %v6176
  %v6178 = vrot.slane %v5684, 2
  %v6179 = vsel %vm2375, %v6172, %v6178
  %v6180 = vrot.slane %v5793, 2
  %v6181 = vsel %vm2375, %v6174, %v6180
  %v6182 = vrot.slane %v5686, 2
  %v6183 = vsel %vm2375, %v6176, %v6182
  %v6184 = vrot.slane %v5688, 2
  %v6185 = vsel %vm2375, %v6178, %v6184
  %v6186 = vrot.slane %v5796, 2
  %v6187 = vsel %vm2375, %v6180, %v6186
  %v6188 = vrot.slane %v5692, 2
  %v6189 = vsel %vm2375, %v6182, %v6188
  %v6190 = vrot.slane %v5694, 2
  %v6191 = vsel %vm2375, %v6184, %v6190
  %v6192 = vrot.slane %v5801, 2
  %v6193 = vsel %vm2375, %v6186, %v6192
  %v6194 = vrot.slane %v5696, 2
  %v6195 = vsel %vm2375, %v6188, %v6194
  %v6196 = vrot.slane %v5698, 2
  %v6197 = vsel %vm2375, %v6190, %v6196
  %v6198 = vrot.slane %v5804, 2
  %v6199 = vsel %vm2375, %v6192, %v6198
  %v6200 = vrot.slane %v5702, 2
  %v6201 = vsel %vm2375, %v6194, %v6200
  %v6202 = vrot.slane %v5704, 2
  %v6203 = vsel %vm2375, %v6196, %v6202
  %v6204 = vrot.slane %v5809, 2
  %v6205 = vsel %vm2375, %v6198, %v6204
  %v6206 = vrot.slane %v5706, 2
  %v6207 = vsel %vm2375, %v6200, %v6206
  %v6208 = vrot.slane %v5708, 2
  %v6209 = vsel %vm2375, %v6202, %v6208
  %v6210 = vrot.slane %v5812, 2
  %v6211 = vsel %vm2375, %v6204, %v6210
  %v6212 = vrot.slane %v5712, 2
  %v6213 = vsel %vm2375, %v6206, %v6212
  %v6214 = vrot.slane %v5714, 2
  %v6215 = vsel %vm2375, %v6208, %v6214
  %v6216 = vrot.slane %v5817, 2
  %v6217 = vsel %vm2375, %v6210, %v6216
  %v6266 = vadd.f32 %v6020, %v6121
  %v6267 = vadd.f32 %v6021, %v6124
  %v6268 = vadd.f32 %v6022, %v6127
  %v6269 = vadd.f32 %v6023, %v6129
  %v6270 = vadd.f32 %v6024, %v6131
  %v6271 = vadd.f32 %v6025, %v6133
  %v6272 = vadd.f32 %v6026, %v6135
  %v6273 = vadd.f32 %v6027, %v6137
  %v6274 = vadd.f32 %v6028, %v6139
  %v6275 = vadd.f32 %v6029, %v6141
  %v6276 = vadd.f32 %v6030, %v6143
  %v6277 = vadd.f32 %v6031, %v6145
  %v6278 = vadd.f32 %v6032, %v6147
  %v6279 = vadd.f32 %v6033, %v6149
  %v6280 = vadd.f32 %v6034, %v6151
  %v6281 = vadd.f32 %v6035, %v6153
  %v6282 = vadd.f32 %v6036, %v6155
  %v6283 = vadd.f32 %v6037, %v6157
  %v6284 = vadd.f32 %v6038, %v6159
  %v6285 = vadd.f32 %v6039, %v6161
  %v6286 = vadd.f32 %v6040, %v6163
  %v6287 = vadd.f32 %v6041, %v6165
  %v6288 = vadd.f32 %v6042, %v6167
  %v6289 = vadd.f32 %v6043, %v6169
  %v6290 = vadd.f32 %v6044, %v6171
  %v6291 = vadd.f32 %v6045, %v6173
  %v6292 = vadd.f32 %v6046, %v6175
  %v6293 = vadd.f32 %v6047, %v6177
  %v6294 = vadd.f32 %v6048, %v6179
  %v6295 = vadd.f32 %v6049, %v6181
  %v6296 = vadd.f32 %v6050, %v6183
  %v6297 = vadd.f32 %v6051, %v6185
  %v6298 = vadd.f32 %v6052, %v6187
  %v6299 = vadd.f32 %v6053, %v6189
  %v6300 = vadd.f32 %v6054, %v6191
  %v6301 = vadd.f32 %v6055, %v6193
  %v6302 = vadd.f32 %v6056, %v6195
  %v6303 = vadd.f32 %v6057, %v6197
  %v6304 = vadd.f32 %v6058, %v6199
  %v6305 = vadd.f32 %v6059, %v6201
  %v6306 = vadd.f32 %v6060, %v6203
  %v6307 = vadd.f32 %v6061, %v6205
  %v6308 = vadd.f32 %v6062, %v6207
  %v6309 = vadd.f32 %v6063, %v6209
  %v6310 = vadd.f32 %v6064, %v6211
  %v6311 = vadd.f32 %v6065, %v6213
  %v6312 = vadd.f32 %v6066, %v6215
  %v6313 = vadd.f32 %v6067, %v6217
  %v6314 = vld [vmem:[%s6] sm:$0x7]
  %v6316 = vlaneseq
  %v6317 = vshrl.u32 %v6316, 7
  %v6318 = vsub.s32 0, %v6317
  %v6319 = vrot.slane %v6314, %v6318
  %v6320 = vlaneseq
  %v6321 = vshrl.u32 %v6320, 7
  %v6322 = vsub.s32 1, %v6321
  %v6323 = vrot.slane %v6314, %v6322
  %v6324 = vlaneseq
  %v6325 = vshrl.u32 %v6324, 7
  %v6326 = vsub.s32 2, %v6325
  %v6327 = vrot.slane %v6314, %v6326
  %v6331 = vadd.f32 %v6266, %v6319
  %v6332 = vadd.f32 %v6267, %v6323
  %v6333 = vadd.f32 %v6268, %v6327
  %v6334 = vadd.f32 %v6269, %v6319
  %v6335 = vadd.f32 %v6270, %v6323
  %v6336 = vadd.f32 %v6271, %v6327
  %v6337 = vadd.f32 %v6272, %v6319
  %v6338 = vadd.f32 %v6273, %v6323
  %v6339 = vadd.f32 %v6274, %v6327
  %v6340 = vadd.f32 %v6275, %v6319
  %v6341 = vadd.f32 %v6276, %v6323
  %v6342 = vadd.f32 %v6277, %v6327
  %v6343 = vadd.f32 %v6278, %v6319
  %v6344 = vadd.f32 %v6279, %v6323
  %v6345 = vadd.f32 %v6280, %v6327
  %v6346 = vadd.f32 %v6281, %v6319
  %v6347 = vadd.f32 %v6282, %v6323
  %v6348 = vadd.f32 %v6283, %v6327
  %v6349 = vadd.f32 %v6284, %v6319
  %v6350 = vadd.f32 %v6285, %v6323
  %v6351 = vadd.f32 %v6286, %v6327
  %v6352 = vadd.f32 %v6287, %v6319
  %v6353 = vadd.f32 %v6288, %v6323
  %v6354 = vadd.f32 %v6289, %v6327
  %v6355 = vadd.f32 %v6290, %v6319
  %v6356 = vadd.f32 %v6291, %v6323
  %v6357 = vadd.f32 %v6292, %v6327
  %v6358 = vadd.f32 %v6293, %v6319
  %v6359 = vadd.f32 %v6294, %v6323
  %v6360 = vadd.f32 %v6295, %v6327
  %v6361 = vadd.f32 %v6296, %v6319
  %v6362 = vadd.f32 %v6297, %v6323
  %v6363 = vadd.f32 %v6298, %v6327
  %v6364 = vadd.f32 %v6299, %v6319
  %v6365 = vadd.f32 %v6300, %v6323
  %v6366 = vadd.f32 %v6301, %v6327
  %v6367 = vadd.f32 %v6302, %v6319
  %v6368 = vadd.f32 %v6303, %v6323
  %v6369 = vadd.f32 %v6304, %v6327
  %v6370 = vadd.f32 %v6305, %v6319
  %v6371 = vadd.f32 %v6306, %v6323
  %v6372 = vadd.f32 %v6307, %v6327
  %v6373 = vadd.f32 %v6308, %v6319
  %v6374 = vadd.f32 %v6309, %v6323
  %v6375 = vadd.f32 %v6310, %v6327
  %v6376 = vadd.f32 %v6311, %v6319
  %v6377 = vadd.f32 %v6312, %v6323
  %v6378 = vadd.f32 %v6313, %v6327
  %v6379 = vmax.f32 %v6331, 0.0
  %v6380 = vmax.f32 %v6332, 0.0
  %v6381 = vmax.f32 %v6333, 0.0
  %v6382 = vmax.f32 %v6334, 0.0
  %v6383 = vmax.f32 %v6335, 0.0
  %v6384 = vmax.f32 %v6336, 0.0
  %v6385 = vmax.f32 %v6337, 0.0
  %v6386 = vmax.f32 %v6338, 0.0
  %v6387 = vmax.f32 %v6339, 0.0
  %v6388 = vmax.f32 %v6340, 0.0
  %v6389 = vmax.f32 %v6341, 0.0
  %v6390 = vmax.f32 %v6342, 0.0
  %v6391 = vmax.f32 %v6343, 0.0
  %v6392 = vmax.f32 %v6344, 0.0
  %v6393 = vmax.f32 %v6345, 0.0
  %v6394 = vmax.f32 %v6346, 0.0
  %v6395 = vmax.f32 %v6347, 0.0
  %v6396 = vmax.f32 %v6348, 0.0
  %v6397 = vmax.f32 %v6349, 0.0
  %v6398 = vmax.f32 %v6350, 0.0
  %v6399 = vmax.f32 %v6351, 0.0
  %v6400 = vmax.f32 %v6352, 0.0
  %v6401 = vmax.f32 %v6353, 0.0
  %v6402 = vmax.f32 %v6354, 0.0
  %v6403 = vmax.f32 %v6355, 0.0
  %v6404 = vmax.f32 %v6356, 0.0
  %v6405 = vmax.f32 %v6357, 0.0
  %v6406 = vmax.f32 %v6358, 0.0
  %v6407 = vmax.f32 %v6359, 0.0
  %v6408 = vmax.f32 %v6360, 0.0
  %v6409 = vmax.f32 %v6361, 0.0
  %v6410 = vmax.f32 %v6362, 0.0
  %v6411 = vmax.f32 %v6363, 0.0
  %v6412 = vmax.f32 %v6364, 0.0
  %v6413 = vmax.f32 %v6365, 0.0
  %v6414 = vmax.f32 %v6366, 0.0
  %v6415 = vmax.f32 %v6367, 0.0
  %v6416 = vmax.f32 %v6368, 0.0
  %v6417 = vmax.f32 %v6369, 0.0
  %v6418 = vmax.f32 %v6370, 0.0
  %v6419 = vmax.f32 %v6371, 0.0
  %v6420 = vmax.f32 %v6372, 0.0
  %v6421 = vmax.f32 %v6373, 0.0
  %v6422 = vmax.f32 %v6374, 0.0
  %v6423 = vmax.f32 %v6375, 0.0
  %v6424 = vmax.f32 %v6376, 0.0
  %v6425 = vmax.f32 %v6377, 0.0
  %v6426 = vmax.f32 %v6378, 0.0
  %v6427 = vpack.c.bf16 %v6382, %v6379
  %v6428 = vpack.c.bf16 %v6383, %v6380
  %v6429 = vpack.c.bf16 %v6384, %v6381
  %v6430 = vpack.c.bf16 %v6388, %v6385
  %v6431 = vpack.c.bf16 %v6389, %v6386
  %v6432 = vpack.c.bf16 %v6390, %v6387
  %v6433 = vpack.c.bf16 %v6394, %v6391
  %v6434 = vpack.c.bf16 %v6395, %v6392
  %v6435 = vpack.c.bf16 %v6396, %v6393
  %v6436 = vpack.c.bf16 %v6400, %v6397
  %v6437 = vpack.c.bf16 %v6401, %v6398
  %v6438 = vpack.c.bf16 %v6402, %v6399
  %v6439 = vpack.c.bf16 %v6406, %v6403
  %v6440 = vpack.c.bf16 %v6407, %v6404
  %v6441 = vpack.c.bf16 %v6408, %v6405
  %v6442 = vpack.c.bf16 %v6412, %v6409
  %v6443 = vpack.c.bf16 %v6413, %v6410
  %v6444 = vpack.c.bf16 %v6414, %v6411
  %v6445 = vpack.c.bf16 %v6418, %v6415
  %v6446 = vpack.c.bf16 %v6419, %v6416
  %v6447 = vpack.c.bf16 %v6420, %v6417
  %v6448 = vpack.c.bf16 %v6424, %v6421
  %v6449 = vpack.c.bf16 %v6425, %v6422
  %v6450 = vpack.c.bf16 %v6426, %v6423
  %v6451 = vld [vmem:[%s8] sm:$0xf]
  %v6452 = vld [vmem:[%s8 + $0x4] sm:$0xf]
  %v6453 = vld [vmem:[%s8 + $0x8] sm:$0xf]
  %v6454 = vld [vmem:[%s8 + $0xc] sm:$0xf]
  %v6455 = vld [vmem:[%s8 + $0x10] sm:$0xf]
  %v6456 = vld [vmem:[%s8 + $0x14] sm:$0xf]
  %v6457 = vld [vmem:[%s8 + $0x18] sm:$0xf]
  %v6458 = vld [vmem:[%s8 + $0x1c] sm:$0xf]
  %v6459 = vld [vmem:[%s8 + $0x20] sm:$0xf]
  %v6460 = vld [vmem:[%s7] sm:$0xff]
  %v6461 = vld [vmem:[%s7 + $0x8] sm:$0xff]
  %v6462 = vld [vmem:[%s7 + $0x10] sm:$0xff]
  %v6463 = vld [vmem:[%s7 + $0x18] sm:$0xff]
  %v6464 = vld [vmem:[%s7 + $0x20] sm:$0xff]
  %v6465 = vld [vmem:[%s7 + $0x28] sm:$0xff]
  %v6466 = vld [vmem:[%s7 + $0x30] sm:$0xff]
  %v6467 = vld [vmem:[%s7 + $0x38] sm:$0xff]
  %v6468 = vld [vmem:[%s7 + $0x40] sm:$0xff]
  %v6469 = vld [vmem:[%s7 + $0x48] sm:$0xff]
  %v6470 = vld [vmem:[%s7 + $0x50] sm:$0xff]
  %v6471 = vld [vmem:[%s7 + $0x58] sm:$0xff]
  %v6472 = vld [vmem:[%s7 + $0x60] sm:$0xff]
  %v6473 = vld [vmem:[%s7 + $0x68] sm:$0xff]
  %v6474 = vld [vmem:[%s7 + $0x70] sm:$0xff]
  %v6475 = vld [vmem:[%s7 + $0x78] sm:$0xff]
  %v6476 = vld [vmem:[%s7 + $0x80] sm:$0xff]
  %v6477 = vld [vmem:[%s7 + $0x88] sm:$0xff]
  %v6478 = vld [vmem:[%s7 + $0x90] sm:$0xff]
  %v6479 = vld [vmem:[%s7 + $0x98] sm:$0xff]
  %v6480 = vld [vmem:[%s7 + $0xa0] sm:$0xff]
  %v6481 = vld [vmem:[%s7 + $0xa8] sm:$0xff]
  %v6482 = vld [vmem:[%s7 + $0xb0] sm:$0xff]
  %v6483 = vld [vmem:[%s7 + $0xb8] sm:$0xff]
  %v6484 = vld [vmem:[%s7 + $0xc0] sm:$0xff]
  %v6485 = vld [vmem:[%s7 + $0xc8] sm:$0xff]
  %v6486 = vld [vmem:[%s7 + $0xd0] sm:$0xff]
  %v6487 = vld [vmem:[%s7 + $0xd8] sm:$0xff]
  %v6488 = vld [vmem:[%s7 + $0xe0] sm:$0xff]
  %v6489 = vld [vmem:[%s7 + $0xe8] sm:$0xff]
  %v6490 = vld [vmem:[%s7 + $0xf0] sm:$0xff]
  %v6491 = vld [vmem:[%s7 + $0xf8] sm:$0xff]
  %v6492 = vld [vmem:[%s7 + $0x100] sm:$0xff]
  %v6493 = vld [vmem:[%s7 + $0x108] sm:$0xff]
  %v6494 = vld [vmem:[%s7 + $0x110] sm:$0xff]
  %v6495 = vld [vmem:[%s7 + $0x118] sm:$0xff]
  %v6496 = vld [vmem:[%s7 + $0x120] sm:$0xff]
  %v6497 = vld [vmem:[%s7 + $0x128] sm:$0xff]
  %v6498 = vld [vmem:[%s7 + $0x130] sm:$0xff]
  %v6499 = vld [vmem:[%s7 + $0x138] sm:$0xff]
  %v6500 = vld [vmem:[%s7 + $0x140] sm:$0xff]
  %v6501 = vld [vmem:[%s7 + $0x148] sm:$0xff]
  %v6502 = vld [vmem:[%s7 + $0x150] sm:$0xff]
  %v6503 = vld [vmem:[%s7 + $0x158] sm:$0xff]
  %v6504 = vld [vmem:[%s7 + $0x160] sm:$0xff]
  %v6505 = vld [vmem:[%s7 + $0x168] sm:$0xff]
  %v6506 = vld [vmem:[%s7 + $0x170] sm:$0xff]
  %v6507 = vld [vmem:[%s7 + $0x178] sm:$0xff]
  %v6556 = vunpack.c.l.b16 %v6460
  %v6557 = vunpack.c.h.b16 %v6460
  %v6558 = vunpack.c.l.b16 %v6461
  %v6559 = vunpack.c.h.b16 %v6461
  %v6560 = vunpack.c.l.b16 %v6462
  %v6561 = vunpack.c.h.b16 %v6462
  %v6562 = vunpack.c.l.b16 %v6463
  %v6563 = vunpack.c.h.b16 %v6463
  %v6564 = vunpack.c.l.b16 %v6464
  %v6565 = vunpack.c.h.b16 %v6464
  %v6566 = vunpack.c.l.b16 %v6465
  %v6567 = vunpack.c.h.b16 %v6465
  %v6568 = vunpack.c.l.b16 %v6466
  %v6569 = vunpack.c.h.b16 %v6466
  %v6570 = vunpack.c.l.b16 %v6467
  %v6571 = vunpack.c.h.b16 %v6467
  %v6572 = vunpack.c.l.b16 %v6468
  %v6573 = vunpack.c.h.b16 %v6468
  %v6574 = vunpack.c.l.b16 %v6469
  %v6575 = vunpack.c.h.b16 %v6469
  %v6576 = vunpack.c.l.b16 %v6470
  %v6577 = vunpack.c.h.b16 %v6470
  %v6578 = vunpack.c.l.b16 %v6471
  %v6579 = vunpack.c.h.b16 %v6471
  %v6580 = vunpack.c.l.b16 %v6472
  %v6581 = vunpack.c.h.b16 %v6472
  %v6582 = vunpack.c.l.b16 %v6473
  %v6583 = vunpack.c.h.b16 %v6473
  %v6584 = vunpack.c.l.b16 %v6474
  %v6585 = vunpack.c.h.b16 %v6474
  %v6586 = vunpack.c.l.b16 %v6475
  %v6587 = vunpack.c.h.b16 %v6475
  %v6588 = vunpack.c.l.b16 %v6476
  %v6589 = vunpack.c.h.b16 %v6476
  %v6590 = vunpack.c.l.b16 %v6477
  %v6591 = vunpack.c.h.b16 %v6477
  %v6592 = vunpack.c.l.b16 %v6478
  %v6593 = vunpack.c.h.b16 %v6478
  %v6594 = vunpack.c.l.b16 %v6479
  %v6595 = vunpack.c.h.b16 %v6479
  %v6596 = vunpack.c.l.b16 %v6480
  %v6597 = vunpack.c.h.b16 %v6480
  %v6598 = vunpack.c.l.b16 %v6481
  %v6599 = vunpack.c.h.b16 %v6481
  %v6600 = vunpack.c.l.b16 %v6482
  %v6601 = vunpack.c.h.b16 %v6482
  %v6602 = vunpack.c.l.b16 %v6483
  %v6603 = vunpack.c.h.b16 %v6483
  %v6604 = vunpack.c.l.b16 %v6484
  %v6605 = vunpack.c.h.b16 %v6484
  %v6606 = vunpack.c.l.b16 %v6485
  %v6607 = vunpack.c.h.b16 %v6485
  %v6608 = vunpack.c.l.b16 %v6486
  %v6609 = vunpack.c.h.b16 %v6486
  %v6610 = vunpack.c.l.b16 %v6487
  %v6611 = vunpack.c.h.b16 %v6487
  %v6612 = vunpack.c.l.b16 %v6488
  %v6613 = vunpack.c.h.b16 %v6488
  %v6614 = vunpack.c.l.b16 %v6489
  %v6615 = vunpack.c.h.b16 %v6489
  %v6616 = vunpack.c.l.b16 %v6490
  %v6617 = vunpack.c.h.b16 %v6490
  %v6618 = vunpack.c.l.b16 %v6491
  %v6619 = vunpack.c.h.b16 %v6491
  %v6620 = vunpack.c.l.b16 %v6492
  %v6621 = vunpack.c.h.b16 %v6492
  %v6622 = vunpack.c.l.b16 %v6493
  %v6623 = vunpack.c.h.b16 %v6493
  %v6624 = vunpack.c.l.b16 %v6494
  %v6625 = vunpack.c.h.b16 %v6494
  %v6626 = vunpack.c.l.b16 %v6495
  %v6627 = vunpack.c.h.b16 %v6495
  %v6628 = vunpack.c.l.b16 %v6496
  %v6629 = vunpack.c.h.b16 %v6496
  %v6630 = vunpack.c.l.b16 %v6497
  %v6631 = vunpack.c.h.b16 %v6497
  %v6632 = vunpack.c.l.b16 %v6498
  %v6633 = vunpack.c.h.b16 %v6498
  %v6634 = vunpack.c.l.b16 %v6499
  %v6635 = vunpack.c.h.b16 %v6499
  %v6636 = vunpack.c.l.b16 %v6500
  %v6637 = vunpack.c.h.b16 %v6500
  %v6638 = vunpack.c.l.b16 %v6501
  %v6639 = vunpack.c.h.b16 %v6501
  %v6640 = vunpack.c.l.b16 %v6502
  %v6641 = vunpack.c.h.b16 %v6502
  %v6642 = vunpack.c.l.b16 %v6503
  %v6643 = vunpack.c.h.b16 %v6503
  %v6644 = vunpack.c.l.b16 %v6504
  %v6645 = vunpack.c.h.b16 %v6504
  %v6646 = vunpack.c.l.b16 %v6505
  %v6647 = vunpack.c.h.b16 %v6505
  %v6648 = vunpack.c.l.b16 %v6506
  %v6649 = vunpack.c.h.b16 %v6506
  %v6650 = vunpack.c.l.b16 %v6507
  %v6651 = vunpack.c.h.b16 %v6507
  %v6652 = vpack.c.b16 %v6558, %v6556
  %v6653 = vpack.c.b16 %v6559, %v6557
  %v6654 = vpack.c.b16 %v6562, %v6560
  %v6655 = vpack.c.b16 %v6563, %v6561
  %v6656 = vpack.c.b16 %v6566, %v6564
  %v6657 = vpack.c.b16 %v6567, %v6565
  %v6658 = vpack.c.b16 %v6570, %v6568
  %v6659 = vpack.c.b16 %v6571, %v6569
  %v6660 = vpack.c.b16 %v6574, %v6572
  %v6661 = vpack.c.b16 %v6575, %v6573
  %v6662 = vpack.c.b16 %v6578, %v6576
  %v6663 = vpack.c.b16 %v6579, %v6577
  %v6664 = vpack.c.b16 %v6582, %v6580
  %v6665 = vpack.c.b16 %v6583, %v6581
  %v6666 = vpack.c.b16 %v6586, %v6584
  %v6667 = vpack.c.b16 %v6587, %v6585
  %v6668 = vpack.c.b16 %v6590, %v6588
  %v6669 = vpack.c.b16 %v6591, %v6589
  %v6670 = vpack.c.b16 %v6594, %v6592
  %v6671 = vpack.c.b16 %v6595, %v6593
  %v6672 = vpack.c.b16 %v6598, %v6596
  %v6673 = vpack.c.b16 %v6599, %v6597
  %v6674 = vpack.c.b16 %v6602, %v6600
  %v6675 = vpack.c.b16 %v6603, %v6601
  %v6676 = vpack.c.b16 %v6606, %v6604
  %v6677 = vpack.c.b16 %v6607, %v6605
  %v6678 = vpack.c.b16 %v6610, %v6608
  %v6679 = vpack.c.b16 %v6611, %v6609
  %v6680 = vpack.c.b16 %v6614, %v6612
  %v6681 = vpack.c.b16 %v6615, %v6613
  %v6682 = vpack.c.b16 %v6618, %v6616
  %v6683 = vpack.c.b16 %v6619, %v6617
  %v6684 = vpack.c.b16 %v6622, %v6620
  %v6685 = vpack.c.b16 %v6623, %v6621
  %v6686 = vpack.c.b16 %v6626, %v6624
  %v6687 = vpack.c.b16 %v6627, %v6625
  %v6688 = vpack.c.b16 %v6630, %v6628
  %v6689 = vpack.c.b16 %v6631, %v6629
  %v6690 = vpack.c.b16 %v6634, %v6632
  %v6691 = vpack.c.b16 %v6635, %v6633
  %v6692 = vpack.c.b16 %v6638, %v6636
  %v6693 = vpack.c.b16 %v6639, %v6637
  %v6694 = vpack.c.b16 %v6642, %v6640
  %v6695 = vpack.c.b16 %v6643, %v6641
  %v6696 = vpack.c.b16 %v6646, %v6644
  %v6697 = vpack.c.b16 %v6647, %v6645
  %v6698 = vpack.c.b16 %v6650, %v6648
  %v6699 = vpack.c.b16 %v6651, %v6649
  %6748 = vmatprep.subr.bf16.mxu0 %v6667
  %6749 = vmatpush1.bf16.msra.mxu0 %v6666
  %6750 = vmatprep.subr.bf16.mxu0 %v6665
  %6751 = vmatpush1.bf16.msra.mxu0 %v6664
  %6752 = vmatprep.subr.bf16.mxu0 %v6663
  %6753 = vmatpush1.bf16.msra.mxu0 %v6662
  %6754 = vmatprep.subr.bf16.mxu0 %v6661
  %6755 = vmatpush1.bf16.msra.mxu0 %v6660
  %6756 = vmatprep.subr.bf16.mxu0 %v6659
  %6757 = vmatpush1.bf16.msra.mxu0 %v6658
  %6758 = vmatprep.subr.bf16.mxu0 %v6657
  %6759 = vmatpush1.bf16.msra.mxu0 %v6656
  %6760 = vmatprep.subr.bf16.mxu0 %v6655
  %6761 = vmatpush1.bf16.msra.mxu0 %v6654
  %6762 = vmatprep.subr.bf16.mxu0 %v6653
  %6763 = vmatpush1.bf16.msra.mxu0 %v6652
  %6764 = vmatprep.subr.bf16.mxu0 %v6683
  %6765 = vmatpush2.bf16.msra.mxu0 %v6682
  %6766 = vmatprep.subr.bf16.mxu0 %v6681
  %6767 = vmatpush2.bf16.msra.mxu0 %v6680
  %6768 = vmatprep.subr.bf16.mxu0 %v6679
  %6769 = vmatpush2.bf16.msra.mxu0 %v6678
  %6770 = vmatprep.subr.bf16.mxu0 %v6677
  %6771 = vmatpush2.bf16.msra.mxu0 %v6676
  %6772 = vmatprep.subr.bf16.mxu0 %v6675
  %6773 = vmatpush2.bf16.msra.mxu0 %v6674
  %6774 = vmatprep.subr.bf16.mxu0 %v6673
  %6775 = vmatpush2.bf16.msra.mxu0 %v6672
  %6776 = vmatprep.subr.bf16.mxu0 %v6671
  %6777 = vmatpush2.bf16.msra.mxu0 %v6670
  %6778 = vmatprep.subr.bf16.mxu0 %v6669
  %6779 = vmatpush2.bf16.msra.mxu0 %v6668
  %6780 = vmatprep.mubr.bf16.mxu0 %v6428
  %6781 = vmatmul.mubr.bf16.gmra.mxu0 %v6427
  %v6782 = vpop.f32.mrf.mxu0
  %v6783 = vadd.f32 0.0, %v6782
  %v6784 = vpop.f32.mrf.mxu0
  %v6785 = vadd.f32 0.0, %v6784
  %v6786 = vpop.f32.mrf.mxu0
  %v6787 = vadd.f32 0.0, %v6786
  %v6788 = vpop.f32.mrf.mxu0
  %v6789 = vadd.f32 0.0, %v6788
  %6790 = vmatprep.mubr.bf16.mxu0 %v6431
  %6791 = vmatmul.mubr.bf16.gmra.mxu0 %v6430
  %v6792 = vpop.f32.mrf.mxu0
  %v6793 = vadd.f32 0.0, %v6792
  %v6794 = vpop.f32.mrf.mxu0
  %v6795 = vadd.f32 0.0, %v6794
  %v6796 = vpop.f32.mrf.mxu0
  %v6797 = vadd.f32 0.0, %v6796
  %v6798 = vpop.f32.mrf.mxu0
  %v6799 = vadd.f32 0.0, %v6798
  %6800 = vmatprep.mubr.bf16.mxu0 %v6434
  %6801 = vmatmul.mubr.bf16.gmra.mxu0 %v6433
  %v6802 = vpop.f32.mrf.mxu0
  %v6803 = vadd.f32 0.0, %v6802
  %v6804 = vpop.f32.mrf.mxu0
  %v6805 = vadd.f32 0.0, %v6804
  %v6806 = vpop.f32.mrf.mxu0
  %v6807 = vadd.f32 0.0, %v6806
  %v6808 = vpop.f32.mrf.mxu0
  %v6809 = vadd.f32 0.0, %v6808
  %6810 = vmatprep.mubr.bf16.mxu0 %v6437
  %6811 = vmatmul.mubr.bf16.gmra.mxu0 %v6436
  %v6812 = vpop.f32.mrf.mxu0
  %v6813 = vadd.f32 0.0, %v6812
  %v6814 = vpop.f32.mrf.mxu0
  %v6815 = vadd.f32 0.0, %v6814
  %v6816 = vpop.f32.mrf.mxu0
  %v6817 = vadd.f32 0.0, %v6816
  %v6818 = vpop.f32.mrf.mxu0
  %v6819 = vadd.f32 0.0, %v6818
  %6820 = vmatprep.mubr.bf16.mxu0 %v6440
  %6821 = vmatmul.mubr.bf16.gmra.mxu0 %v6439
  %v6822 = vpop.f32.mrf.mxu0
  %v6823 = vadd.f32 0.0, %v6822
  %v6824 = vpop.f32.mrf.mxu0
  %v6825 = vadd.f32 0.0, %v6824
  %v6826 = vpop.f32.mrf.mxu0
  %v6827 = vadd.f32 0.0, %v6826
  %v6828 = vpop.f32.mrf.mxu0
  %v6829 = vadd.f32 0.0, %v6828
  %6830 = vmatprep.mubr.bf16.mxu0 %v6443
  %6831 = vmatmul.mubr.bf16.gmra.mxu0 %v6442
  %v6832 = vpop.f32.mrf.mxu0
  %v6833 = vadd.f32 0.0, %v6832
  %v6834 = vpop.f32.mrf.mxu0
  %v6835 = vadd.f32 0.0, %v6834
  %v6836 = vpop.f32.mrf.mxu0
  %v6837 = vadd.f32 0.0, %v6836
  %v6838 = vpop.f32.mrf.mxu0
  %v6839 = vadd.f32 0.0, %v6838
  %6840 = vmatprep.mubr.bf16.mxu0 %v6446
  %6841 = vmatmul.mubr.bf16.gmra.mxu0 %v6445
  %v6842 = vpop.f32.mrf.mxu0
  %v6843 = vadd.f32 0.0, %v6842
  %v6844 = vpop.f32.mrf.mxu0
  %v6845 = vadd.f32 0.0, %v6844
  %v6846 = vpop.f32.mrf.mxu0
  %v6847 = vadd.f32 0.0, %v6846
  %v6848 = vpop.f32.mrf.mxu0
  %v6849 = vadd.f32 0.0, %v6848
  %6850 = vmatprep.mubr.bf16.mxu0 %v6449
  %6851 = vmatmul.mubr.bf16.gmra.mxu0 %v6448
  %v6852 = vpop.f32.mrf.mxu0
  %v6853 = vadd.f32 0.0, %v6852
  %v6854 = vpop.f32.mrf.mxu0
  %v6855 = vadd.f32 0.0, %v6854
  %v6856 = vpop.f32.mrf.mxu0
  %v6857 = vadd.f32 0.0, %v6856
  %v6858 = vpop.f32.mrf.mxu0
  %v6859 = vadd.f32 0.0, %v6858
  %6860 = vdwg.mxu0
  %6861 = vmatprep.subr.bf16.mxu0 %v6699
  %6862 = vmatpush1.bf16.msra.mxu0 %v6698
  %6863 = vmatprep.subr.bf16.mxu0 %v6697
  %6864 = vmatpush1.bf16.msra.mxu0 %v6696
  %6865 = vmatprep.subr.bf16.mxu0 %v6695
  %6866 = vmatpush1.bf16.msra.mxu0 %v6694
  %6867 = vmatprep.subr.bf16.mxu0 %v6693
  %6868 = vmatpush1.bf16.msra.mxu0 %v6692
  %6869 = vmatprep.subr.bf16.mxu0 %v6691
  %6870 = vmatpush1.bf16.msra.mxu0 %v6690
  %6871 = vmatprep.subr.bf16.mxu0 %v6689
  %6872 = vmatpush1.bf16.msra.mxu0 %v6688
  %6873 = vmatprep.subr.bf16.mxu0 %v6687
  %6874 = vmatpush1.bf16.msra.mxu0 %v6686
  %6875 = vmatprep.subr.bf16.mxu0 %v6685
  %6876 = vmatpush1.bf16.msra.mxu0 %v6684
  %6877 = vmatprep.subr.bf16.mxu0 0
  %6878 = vmatpush2.bf16.msra.mxu0 0
  %6879 = vmatprep.subr.bf16.mxu0 0
  %6880 = vmatpush2.bf16.msra.mxu0 0
  %6881 = vmatprep.subr.bf16.mxu0 0
  %6882 = vmatpush2.bf16.msra.mxu0 0
  %6883 = vmatprep.subr.bf16.mxu0 0
  %6884 = vmatpush2.bf16.msra.mxu0 0
  %6885 = vmatprep.subr.bf16.mxu0 0
  %6886 = vmatpush2.bf16.msra.mxu0 0
  %6887 = vmatprep.subr.bf16.mxu0 0
  %6888 = vmatpush2.bf16.msra.mxu0 0
  %6889 = vmatprep.subr.bf16.mxu0 0
  %6890 = vmatpush2.bf16.msra.mxu0 0
  %6891 = vmatprep.subr.bf16.mxu0 0
  %6892 = vmatpush2.bf16.msra.mxu0 0
  %6893 = vmatprep.mubr.bf16.mxu0 0
  %6894 = vmatmul.mubr.bf16.gmra.mxu0 %v6429
  %v6895 = vpop.f32.mrf.mxu0
  %v6896 = vadd.f32 %v6783, %v6895
  %v6897 = vpop.f32.mrf.mxu0
  %v6898 = vadd.f32 %v6785, %v6897
  %v6899 = vpop.f32.mrf.mxu0
  %v6900 = vadd.f32 %v6787, %v6899
  %v6901 = vpop.f32.mrf.mxu0
  %v6902 = vadd.f32 %v6789, %v6901
  %6903 = vmatprep.mubr.bf16.mxu0 0
  %6904 = vmatmul.mubr.bf16.gmra.mxu0 %v6432
  %v6905 = vpop.f32.mrf.mxu0
  %v6906 = vadd.f32 %v6793, %v6905
  %v6907 = vpop.f32.mrf.mxu0
  %v6908 = vadd.f32 %v6795, %v6907
  %v6909 = vpop.f32.mrf.mxu0
  %v6910 = vadd.f32 %v6797, %v6909
  %v6911 = vpop.f32.mrf.mxu0
  %v6912 = vadd.f32 %v6799, %v6911
  %6913 = vmatprep.mubr.bf16.mxu0 0
  %6914 = vmatmul.mubr.bf16.gmra.mxu0 %v6435
  %v6915 = vpop.f32.mrf.mxu0
  %v6916 = vadd.f32 %v6803, %v6915
  %v6917 = vpop.f32.mrf.mxu0
  %v6918 = vadd.f32 %v6805, %v6917
  %v6919 = vpop.f32.mrf.mxu0
  %v6920 = vadd.f32 %v6807, %v6919
  %v6921 = vpop.f32.mrf.mxu0
  %v6922 = vadd.f32 %v6809, %v6921
  %6923 = vmatprep.mubr.bf16.mxu0 0
  %6924 = vmatmul.mubr.bf16.gmra.mxu0 %v6438
  %v6925 = vpop.f32.mrf.mxu0
  %v6926 = vadd.f32 %v6813, %v6925
  %v6927 = vpop.f32.mrf.mxu0
  %v6928 = vadd.f32 %v6815, %v6927
  %v6929 = vpop.f32.mrf.mxu0
  %v6930 = vadd.f32 %v6817, %v6929
  %v6931 = vpop.f32.mrf.mxu0
  %v6932 = vadd.f32 %v6819, %v6931
  %6933 = vmatprep.mubr.bf16.mxu0 0
  %6934 = vmatmul.mubr.bf16.gmra.mxu0 %v6441
  %v6935 = vpop.f32.mrf.mxu0
  %v6936 = vadd.f32 %v6823, %v6935
  %v6937 = vpop.f32.mrf.mxu0
  %v6938 = vadd.f32 %v6825, %v6937
  %v6939 = vpop.f32.mrf.mxu0
  %v6940 = vadd.f32 %v6827, %v6939
  %v6941 = vpop.f32.mrf.mxu0
  %v6942 = vadd.f32 %v6829, %v6941
  %6943 = vmatprep.mubr.bf16.mxu0 0
  %6944 = vmatmul.mubr.bf16.gmra.mxu0 %v6444
  %v6945 = vpop.f32.mrf.mxu0
  %v6946 = vadd.f32 %v6833, %v6945
  %v6947 = vpop.f32.mrf.mxu0
  %v6948 = vadd.f32 %v6835, %v6947
  %v6949 = vpop.f32.mrf.mxu0
  %v6950 = vadd.f32 %v6837, %v6949
  %v6951 = vpop.f32.mrf.mxu0
  %v6952 = vadd.f32 %v6839, %v6951
  %6953 = vmatprep.mubr.bf16.mxu0 0
  %6954 = vmatmul.mubr.bf16.gmra.mxu0 %v6447
  %v6955 = vpop.f32.mrf.mxu0
  %v6956 = vadd.f32 %v6843, %v6955
  %v6957 = vpop.f32.mrf.mxu0
  %v6958 = vadd.f32 %v6845, %v6957
  %v6959 = vpop.f32.mrf.mxu0
  %v6960 = vadd.f32 %v6847, %v6959
  %v6961 = vpop.f32.mrf.mxu0
  %v6962 = vadd.f32 %v6849, %v6961
  %6963 = vmatprep.mubr.bf16.mxu0 0
  %6964 = vmatmul.mubr.bf16.gmra.mxu0 %v6450
  %v6965 = vpop.f32.mrf.mxu0
  %v6966 = vadd.f32 %v6853, %v6965
  %v6967 = vpop.f32.mrf.mxu0
  %v6968 = vadd.f32 %v6855, %v6967
  %v6969 = vpop.f32.mrf.mxu0
  %v6970 = vadd.f32 %v6857, %v6969
  %v6971 = vpop.f32.mrf.mxu0
  %v6972 = vadd.f32 %v6859, %v6971
  %6973 = vdwg.mxu0
  %v6974 = vpack.c.bf16 %v6900, %v6896
  %v6975 = vpack.c.bf16 %v6902, %v6898
  %v6976 = vpack.c.bf16 %v6910, %v6906
  %v6977 = vpack.c.bf16 %v6912, %v6908
  %v6978 = vpack.c.bf16 %v6920, %v6916
  %v6979 = vpack.c.bf16 %v6922, %v6918
  %v6980 = vpack.c.bf16 %v6930, %v6926
  %v6981 = vpack.c.bf16 %v6932, %v6928
  %v6982 = vpack.c.bf16 %v6940, %v6936
  %v6983 = vpack.c.bf16 %v6942, %v6938
  %v6984 = vpack.c.bf16 %v6950, %v6946
  %v6985 = vpack.c.bf16 %v6952, %v6948
  %v6986 = vpack.c.bf16 %v6960, %v6956
  %v6987 = vpack.c.bf16 %v6962, %v6958
  %v6988 = vpack.c.bf16 %v6970, %v6966
  %v6989 = vpack.c.bf16 %v6972, %v6968
  %v6999 = vunpack.c.l.b16 %v6451
  %v7000 = vunpack.c.l.b16 %v6452
  %v7001 = vunpack.c.l.b16 %v6453
  %v7002 = vunpack.c.l.b16 %v6454
  %v7003 = vunpack.c.l.b16 %v6455
  %v7004 = vunpack.c.l.b16 %v6456
  %v7005 = vunpack.c.l.b16 %v6457
  %v7006 = vunpack.c.l.b16 %v6458
  %v7007 = vunpack.c.l.b16 %v6459
  %v7008 = vpack.c.b16 %v7000, %v6999
  %v7009 = vpack.c.b16 %v7002, %v7001
  %v7010 = vpack.c.b16 %v7004, %v7003
  %v7011 = vpack.c.b16 %v7006, %v7005
  %v7012 = vpack.c.b16 %v7007, %v7007
  %7018 = vmatprep.subr.bf16.mxu0 %v6989
  %7019 = vmatpush1.bf16.msra.mxu0 %v6988
  %7020 = vmatprep.subr.bf16.mxu0 %v6987
  %7021 = vmatpush1.bf16.msra.mxu0 %v6986
  %7022 = vmatprep.subr.bf16.mxu0 %v6985
  %7023 = vmatpush1.bf16.msra.mxu0 %v6984
  %7024 = vmatprep.subr.bf16.mxu0 %v6983
  %7025 = vmatpush1.bf16.msra.mxu0 %v6982
  %7026 = vmatprep.subr.bf16.mxu0 %v6981
  %7027 = vmatpush1.bf16.msra.mxu0 %v6980
  %7028 = vmatprep.subr.bf16.mxu0 %v6979
  %7029 = vmatpush1.bf16.msra.mxu0 %v6978
  %7030 = vmatprep.subr.bf16.mxu0 %v6977
  %7031 = vmatpush1.bf16.msra.mxu0 %v6976
  %7032 = vmatprep.subr.bf16.mxu0 %v6975
  %7033 = vmatpush1.bf16.msra.mxu0 %v6974
  %7034 = vmatprep.subr.bf16.mxu0 0
  %7035 = vmatpush2.bf16.msra.mxu0 0
  %7036 = vmatprep.subr.bf16.mxu0 0
  %7037 = vmatpush2.bf16.msra.mxu0 0
  %7038 = vmatprep.subr.bf16.mxu0 0
  %7039 = vmatpush2.bf16.msra.mxu0 0
  %7040 = vmatprep.subr.bf16.mxu0 0
  %7041 = vmatpush2.bf16.msra.mxu0 0
  %7042 = vmatprep.subr.bf16.mxu0 0
  %7043 = vmatpush2.bf16.msra.mxu0 0
  %7044 = vmatprep.subr.bf16.mxu0 0
  %7045 = vmatpush2.bf16.msra.mxu0 0
  %7046 = vmatprep.subr.bf16.mxu0 0
  %7047 = vmatpush2.bf16.msra.mxu0 0
  %7048 = vmatprep.subr.bf16.mxu0 0
  %7049 = vmatpush2.bf16.msra.mxu0 0
  %7050 = vmatprep.mubr.bf16.mxu0 0
  %7051 = vmatmul.mubr.bf16.gmra.mxu0 %v7008
  %v7052 = vpop.f32.mrf.mxu0
  %v7053 = vadd.f32 0.0, %v7052
  %v7054 = vpop.f32.mrf.mxu0
  %v7055 = vadd.f32 0.0, %v7054
  %v7056 = vpop.f32.mrf.mxu0
  %v7057 = vadd.f32 0.0, %v7056
  %v7058 = vpop.f32.mrf.mxu0
  %v7059 = vadd.f32 0.0, %v7058
  %7060 = vmatprep.mubr.bf16.mxu0 0
  %7061 = vmatmul.mubr.bf16.gmra.mxu0 %v7009
  %v7062 = vpop.f32.mrf.mxu0
  %v7063 = vadd.f32 0.0, %v7062
  %v7064 = vpop.f32.mrf.mxu0
  %v7065 = vadd.f32 0.0, %v7064
  %v7066 = vpop.f32.mrf.mxu0
  %v7067 = vadd.f32 0.0, %v7066
  %v7068 = vpop.f32.mrf.mxu0
  %v7069 = vadd.f32 0.0, %v7068
  %7070 = vmatprep.mubr.bf16.mxu0 0
  %7071 = vmatmul.mubr.bf16.gmra.mxu0 %v7010
  %v7072 = vpop.f32.mrf.mxu0
  %v7073 = vadd.f32 0.0, %v7072
  %v7074 = vpop.f32.mrf.mxu0
  %v7075 = vadd.f32 0.0, %v7074
  %v7076 = vpop.f32.mrf.mxu0
  %v7077 = vadd.f32 0.0, %v7076
  %v7078 = vpop.f32.mrf.mxu0
  %v7079 = vadd.f32 0.0, %v7078
  %7080 = vmatprep.mubr.bf16.mxu0 0
  %7081 = vmatmul.mubr.bf16.gmra.mxu0 %v7011
  %v7082 = vpop.f32.mrf.mxu0
  %v7083 = vadd.f32 0.0, %v7082
  %v7084 = vpop.f32.mrf.mxu0
  %v7085 = vadd.f32 0.0, %v7084
  %v7086 = vpop.f32.mrf.mxu0
  %v7087 = vadd.f32 0.0, %v7086
  %v7088 = vpop.f32.mrf.mxu0
  %v7089 = vadd.f32 0.0, %v7088
  %7090 = vmatprep.mubr.bf16.mxu0 0
  %7091 = vmatmul.mubr.bf16.gmra.mxu0 %v7012
  %v7092 = vpop.f32.mrf.mxu0
  %v7093 = vadd.f32 0.0, %v7092
  %v7094 = vpop.f32.mrf.mxu0
  %v7095 = vadd.f32 0.0, %v7094
  %v7096 = vpop.f32.mrf.mxu0
  %v7097 = vpop.f32.mrf.mxu0
  %7098 = vdwg.mxu0
  %v7099 = vpack.c.bf16 %v7057, %v7053
  %v7100 = vpack.c.bf16 %v7059, %v7055
  %v7101 = vpack.c.bf16 %v7067, %v7063
  %v7102 = vpack.c.bf16 %v7069, %v7065
  %v7103 = vpack.c.bf16 %v7077, %v7073
  %v7104 = vpack.c.bf16 %v7079, %v7075
  %v7105 = vpack.c.bf16 %v7087, %v7083
  %v7106 = vpack.c.bf16 %v7089, %v7085
  %v7107 = vpack.c.bf16 %v7093, %v7093
  %v7108 = vpack.c.bf16 %v7095, %v7095
  %v7109 = vld [vmem:[%s9] sm:$0xff]
  %v7110 = vld [vmem:[%s9 + $0x8] sm:$0xff]
  %v7111 = vld [vmem:[%s9 + $0x10] sm:$0xff]
  %v7112 = vld [vmem:[%s9 + $0x18] sm:$0xff]
  %v7113 = vld [vmem:[%s9 + $0x20] sm:$0xff]
  %v7114 = vld [vmem:[%s9 + $0x28] sm:$0xff]
  %v7115 = vld [vmem:[%s9 + $0x30] sm:$0xff]
  %v7116 = vld [vmem:[%s9 + $0x38] sm:$0xff]
  %v7117 = vld [vmem:[%s9 + $0x40] sm:$0xff]
  %v7118 = vld [vmem:[%s9 + $0x48] sm:$0xff]
  %v7119 = vld [vmem:[%s9 + $0x50] sm:$0xff]
  %v7120 = vld [vmem:[%s9 + $0x58] sm:$0xff]
  %v7121 = vld [vmem:[%s9 + $0x60] sm:$0xff]
  %v7122 = vld [vmem:[%s9 + $0x68] sm:$0xff]
  %v7123 = vld [vmem:[%s9 + $0x70] sm:$0xff]
  %v7124 = vld [vmem:[%s9 + $0x78] sm:$0xff]
  %v7125 = vld [vmem:[%s9 + $0x80] sm:$0xff]
  %v7126 = vld [vmem:[%s9 + $0x88] sm:$0xff]
  %v7127 = vld [vmem:[%s9 + $0x90] sm:$0xff]
  %v7128 = vld [vmem:[%s9 + $0x98] sm:$0xff]
  %v7129 = vld [vmem:[%s9 + $0xa0] sm:$0xff]
  %v7130 = vld [vmem:[%s9 + $0xa8] sm:$0xff]
  %v7131 = vld [vmem:[%s9 + $0xb0] sm:$0xff]
  %v7132 = vld [vmem:[%s9 + $0xb8] sm:$0xff]
  %s7133 = scalar_lea.vmem %s9, 192
  %v7134 = vld [vmem:[%s7133] sm:$0xff]
  %v7135 = vld [vmem:[%s7133 + $0x8] sm:$0xff]
  %v7136 = vld [vmem:[%s7133 + $0x10] sm:$0xff]
  %v7137 = vld [vmem:[%s7133 + $0x18] sm:$0xff]
  %v7138 = vld [vmem:[%s7133 + $0x20] sm:$0xff]
  %v7139 = vld [vmem:[%s7133 + $0x28] sm:$0xff]
  %v7140 = vld [vmem:[%s7133 + $0x30] sm:$0xff]
  %v7141 = vld [vmem:[%s7133 + $0x38] sm:$0xff]
  %v7142 = vld [vmem:[%s7133 + $0x40] sm:$0xff]
  %v7143 = vld [vmem:[%s7133 + $0x48] sm:$0xff]
  %v7144 = vld [vmem:[%s7133 + $0x50] sm:$0xff]
  %v7145 = vld [vmem:[%s7133 + $0x58] sm:$0xff]
  %v7146 = vld [vmem:[%s7133 + $0x60] sm:$0xff]
  %v7147 = vld [vmem:[%s7133 + $0x68] sm:$0xff]
  %v7148 = vld [vmem:[%s7133 + $0x70] sm:$0xff]
  %v7149 = vld [vmem:[%s7133 + $0x78] sm:$0xff]
  %v7150 = vld [vmem:[%s7133 + $0x80] sm:$0xff]
  %v7151 = vld [vmem:[%s7133 + $0x88] sm:$0xff]
  %v7152 = vld [vmem:[%s7133 + $0x90] sm:$0xff]
  %v7153 = vld [vmem:[%s7133 + $0x98] sm:$0xff]
  %v7154 = vld [vmem:[%s7133 + $0xa0] sm:$0xff]
  %v7155 = vld [vmem:[%s7133 + $0xa8] sm:$0xff]
  %v7156 = vld [vmem:[%s7133 + $0xb0] sm:$0xff]
  %v7157 = vld [vmem:[%s7133 + $0xb8] sm:$0xff]
  %vm7158 = vsmask.f32 7424
  %v7160 = vshrl.u32 %v7099, 16
  %v7162 = vshll.u32 %v7099, 16
  %v7164 = vrot.slane %v7162, 1
  %v7165 = vor.u32 %v7160, %v7164
  %v7167 = vshll.u32 %v7101, 16
  %v7169 = vrot.slane %v7167, 1
  %v7170 = vsel %vm7158, %v7165, %v7169
  %v7172 = vshrl.u32 %v7100, 16
  %v7174 = vshll.u32 %v7100, 16
  %v7176 = vrot.slane %v7174, 1
  %v7177 = vor.u32 %v7172, %v7176
  %v7179 = vshll.u32 %v7102, 16
  %v7181 = vrot.slane %v7179, 1
  %v7182 = vsel %vm7158, %v7177, %v7181
  %v7183 = vshrl.u32 %v7101, 16
  %v7185 = vor.u32 %v7183, %v7169
  %v7187 = vshll.u32 %v7103, 16
  %v7189 = vrot.slane %v7187, 1
  %v7190 = vsel %vm7158, %v7185, %v7189
  %v7191 = vshrl.u32 %v7102, 16
  %v7193 = vor.u32 %v7191, %v7181
  %v7195 = vshll.u32 %v7104, 16
  %v7197 = vrot.slane %v7195, 1
  %v7198 = vsel %vm7158, %v7193, %v7197
  %v7199 = vshrl.u32 %v7103, 16
  %v7201 = vor.u32 %v7199, %v7189
  %v7203 = vshll.u32 %v7105, 16
  %v7205 = vrot.slane %v7203, 1
  %v7206 = vsel %vm7158, %v7201, %v7205
  %v7207 = vshrl.u32 %v7104, 16
  %v7209 = vor.u32 %v7207, %v7197
  %v7211 = vshll.u32 %v7106, 16
  %v7213 = vrot.slane %v7211, 1
  %v7214 = vsel %vm7158, %v7209, %v7213
  %v7215 = vshrl.u32 %v7105, 16
  %v7217 = vor.u32 %v7215, %v7205
  %v7219 = vshll.u32 %v7107, 16
  %v7221 = vrot.slane %v7219, 1
  %v7222 = vsel %vm7158, %v7217, %v7221
  %v7223 = vshrl.u32 %v7106, 16
  %v7225 = vor.u32 %v7223, %v7213
  %v7227 = vshll.u32 %v7108, 16
  %v7229 = vrot.slane %v7227, 1
  %v7230 = vsel %vm7158, %v7225, %v7229
  %v7259 = vunpack.c.l.b16 %v7134
  %v7260 = vunpack.c.h.b16 %v7134
  %v7261 = vunpack.c.l.b16 %v7135
  %v7262 = vunpack.c.h.b16 %v7135
  %v7263 = vunpack.c.l.b16 %v7136
  %v7264 = vunpack.c.h.b16 %v7136
  %v7265 = vunpack.c.l.b16 %v7137
  %v7266 = vunpack.c.h.b16 %v7137
  %v7267 = vunpack.c.l.b16 %v7138
  %v7268 = vunpack.c.h.b16 %v7138
  %v7269 = vunpack.c.l.b16 %v7139
  %v7270 = vunpack.c.h.b16 %v7139
  %v7271 = vunpack.c.l.b16 %v7140
  %v7272 = vunpack.c.h.b16 %v7140
  %v7273 = vunpack.c.l.b16 %v7141
  %v7274 = vunpack.c.h.b16 %v7141
  %v7275 = vunpack.c.l.b16 %v7142
  %v7276 = vunpack.c.h.b16 %v7142
  %v7277 = vunpack.c.l.b16 %v7143
  %v7278 = vunpack.c.h.b16 %v7143
  %v7279 = vunpack.c.l.b16 %v7144
  %v7280 = vunpack.c.h.b16 %v7144
  %v7281 = vunpack.c.l.b16 %v7145
  %v7282 = vunpack.c.h.b16 %v7145
  %v7283 = vunpack.c.l.b16 %v7146
  %v7284 = vunpack.c.h.b16 %v7146
  %v7285 = vunpack.c.l.b16 %v7147
  %v7286 = vunpack.c.h.b16 %v7147
  %v7287 = vunpack.c.l.b16 %v7148
  %v7288 = vunpack.c.h.b16 %v7148
  %v7289 = vunpack.c.l.b16 %v7149
  %v7290 = vunpack.c.h.b16 %v7149
  %v7291 = vunpack.c.l.b16 %v7150
  %v7292 = vunpack.c.h.b16 %v7150
  %v7293 = vunpack.c.l.b16 %v7151
  %v7294 = vunpack.c.h.b16 %v7151
  %v7295 = vunpack.c.l.b16 %v7152
  %v7296 = vunpack.c.h.b16 %v7152
  %v7297 = vunpack.c.l.b16 %v7153
  %v7298 = vunpack.c.h.b16 %v7153
  %v7299 = vunpack.c.l.b16 %v7154
  %v7300 = vunpack.c.h.b16 %v7154
  %v7301 = vunpack.c.l.b16 %v7155
  %v7302 = vunpack.c.h.b16 %v7155
  %v7303 = vunpack.c.l.b16 %v7156
  %v7304 = vunpack.c.h.b16 %v7156
  %v7305 = vunpack.c.l.b16 %v7157
  %v7306 = vunpack.c.h.b16 %v7157
  %v7307 = vpack.c.b16 %v7261, %v7259
  %v7308 = vpack.c.b16 %v7262, %v7260
  %v7309 = vpack.c.b16 %v7265, %v7263
  %v7310 = vpack.c.b16 %v7266, %v7264
  %v7311 = vpack.c.b16 %v7269, %v7267
  %v7312 = vpack.c.b16 %v7270, %v7268
  %v7313 = vpack.c.b16 %v7273, %v7271
  %v7314 = vpack.c.b16 %v7274, %v7272
  %v7315 = vpack.c.b16 %v7277, %v7275
  %v7316 = vpack.c.b16 %v7278, %v7276
  %v7317 = vpack.c.b16 %v7281, %v7279
  %v7318 = vpack.c.b16 %v7282, %v7280
  %v7319 = vpack.c.b16 %v7285, %v7283
  %v7320 = vpack.c.b16 %v7286, %v7284
  %v7321 = vpack.c.b16 %v7289, %v7287
  %v7322 = vpack.c.b16 %v7290, %v7288
  %v7323 = vpack.c.b16 %v7293, %v7291
  %v7324 = vpack.c.b16 %v7294, %v7292
  %v7325 = vpack.c.b16 %v7297, %v7295
  %v7326 = vpack.c.b16 %v7298, %v7296
  %v7327 = vpack.c.b16 %v7301, %v7299
  %v7328 = vpack.c.b16 %v7302, %v7300
  %v7329 = vpack.c.b16 %v7305, %v7303
  %v7330 = vpack.c.b16 %v7306, %v7304
  %v7356 = vsel %vm3587, %v7182, 0
  %v7359 = vsel %vm3587, %v7198, 0
  %v7362 = vsel %vm3587, %v7214, 0
  %v7365 = vsel %vm3587, %v7230, 0
  %7367 = vmatprep.subr.bf16.mxu0 %v7322
  %7368 = vmatpush1.bf16.msra.mxu0 %v7321
  %7369 = vmatprep.subr.bf16.mxu0 %v7320
  %7370 = vmatpush1.bf16.msra.mxu0 %v7319
  %7371 = vmatprep.subr.bf16.mxu0 %v7318
  %7372 = vmatpush1.bf16.msra.mxu0 %v7317
  %7373 = vmatprep.subr.bf16.mxu0 %v7316
  %7374 = vmatpush1.bf16.msra.mxu0 %v7315
  %7375 = vmatprep.subr.bf16.mxu0 %v7314
  %7376 = vmatpush1.bf16.msra.mxu0 %v7313
  %7377 = vmatprep.subr.bf16.mxu0 %v7312
  %7378 = vmatpush1.bf16.msra.mxu0 %v7311
  %7379 = vmatprep.subr.bf16.mxu0 %v7310
  %7380 = vmatpush1.bf16.msra.mxu0 %v7309
  %7381 = vmatprep.subr.bf16.mxu0 %v7308
  %7382 = vmatpush1.bf16.msra.mxu0 %v7307
  %7383 = vmatprep.subr.bf16.mxu0 0
  %7384 = vmatpush2.bf16.msra.mxu0 0
  %7385 = vmatprep.subr.bf16.mxu0 0
  %7386 = vmatpush2.bf16.msra.mxu0 0
  %7387 = vmatprep.subr.bf16.mxu0 0
  %7388 = vmatpush2.bf16.msra.mxu0 0
  %7389 = vmatprep.subr.bf16.mxu0 0
  %7390 = vmatpush2.bf16.msra.mxu0 0
  %7391 = vmatprep.subr.bf16.mxu0 %v7330
  %7392 = vmatpush2.bf16.msra.mxu0 %v7329
  %7393 = vmatprep.subr.bf16.mxu0 %v7328
  %7394 = vmatpush2.bf16.msra.mxu0 %v7327
  %7395 = vmatprep.subr.bf16.mxu0 %v7326
  %7396 = vmatpush2.bf16.msra.mxu0 %v7325
  %7397 = vmatprep.subr.bf16.mxu0 %v7324
  %7398 = vmatpush2.bf16.msra.mxu0 %v7323
  %7399 = vmatprep.mubr.bf16.mxu0 %v7356
  %7400 = vmatmul.mubr.bf16.gmra.mxu0 %v7170
  %v7401 = vpop.f32.mrf.mxu0
  %v7402 = vadd.f32 0.0, %v7401
  %v7403 = vpop.f32.mrf.mxu0
  %v7404 = vadd.f32 0.0, %v7403
  %v7405 = vpop.f32.mrf.mxu0
  %v7406 = vadd.f32 0.0, %v7405
  %v7407 = vpop.f32.mrf.mxu0
  %v7408 = vadd.f32 0.0, %v7407
  %7409 = vmatprep.mubr.bf16.mxu0 %v7359
  %7410 = vmatmul.mubr.bf16.gmra.mxu0 %v7190
  %v7411 = vpop.f32.mrf.mxu0
  %v7412 = vadd.f32 0.0, %v7411
  %v7413 = vpop.f32.mrf.mxu0
  %v7414 = vadd.f32 0.0, %v7413
  %v7415 = vpop.f32.mrf.mxu0
  %v7416 = vadd.f32 0.0, %v7415
  %v7417 = vpop.f32.mrf.mxu0
  %v7418 = vadd.f32 0.0, %v7417
  %7419 = vmatprep.mubr.bf16.mxu0 %v7362
  %7420 = vmatmul.mubr.bf16.gmra.mxu0 %v7206
  %v7421 = vpop.f32.mrf.mxu0
  %v7422 = vadd.f32 0.0, %v7421
  %v7423 = vpop.f32.mrf.mxu0
  %v7424 = vadd.f32 0.0, %v7423
  %v7425 = vpop.f32.mrf.mxu0
  %v7426 = vadd.f32 0.0, %v7425
  %v7427 = vpop.f32.mrf.mxu0
  %v7428 = vadd.f32 0.0, %v7427
  %7429 = vmatprep.mubr.bf16.mxu0 %v7365
  %7430 = vmatmul.mubr.bf16.gmra.mxu0 %v7222
  %v7431 = vpop.f32.mrf.mxu0
  %v7432 = vadd.f32 0.0, %v7431
  %v7433 = vpop.f32.mrf.mxu0
  %v7434 = vadd.f32 0.0, %v7433
  %v7435 = vpop.f32.mrf.mxu0
  %v7436 = vadd.f32 0.0, %v7435
  %v7437 = vpop.f32.mrf.mxu0
  %v7438 = vadd.f32 0.0, %v7437
  %7439 = vdwg.mxu0
  %s7440 = scalar_lea.vmem %s9, 384
  %v7441 = vld [vmem:[%s7440] sm:$0xff]
  %v7442 = vld [vmem:[%s7440 + $0x8] sm:$0xff]
  %v7443 = vld [vmem:[%s7440 + $0x10] sm:$0xff]
  %v7444 = vld [vmem:[%s7440 + $0x18] sm:$0xff]
  %v7445 = vld [vmem:[%s7440 + $0x20] sm:$0xff]
  %v7446 = vld [vmem:[%s7440 + $0x28] sm:$0xff]
  %v7447 = vld [vmem:[%s7440 + $0x30] sm:$0xff]
  %v7448 = vld [vmem:[%s7440 + $0x38] sm:$0xff]
  %v7449 = vld [vmem:[%s7440 + $0x40] sm:$0xff]
  %v7450 = vld [vmem:[%s7440 + $0x48] sm:$0xff]
  %v7451 = vld [vmem:[%s7440 + $0x50] sm:$0xff]
  %v7452 = vld [vmem:[%s7440 + $0x58] sm:$0xff]
  %v7453 = vld [vmem:[%s7440 + $0x60] sm:$0xff]
  %v7454 = vld [vmem:[%s7440 + $0x68] sm:$0xff]
  %v7455 = vld [vmem:[%s7440 + $0x70] sm:$0xff]
  %v7456 = vld [vmem:[%s7440 + $0x78] sm:$0xff]
  %v7457 = vld [vmem:[%s7440 + $0x80] sm:$0xff]
  %v7458 = vld [vmem:[%s7440 + $0x88] sm:$0xff]
  %v7459 = vld [vmem:[%s7440 + $0x90] sm:$0xff]
  %v7460 = vld [vmem:[%s7440 + $0x98] sm:$0xff]
  %v7461 = vld [vmem:[%s7440 + $0xa0] sm:$0xff]
  %v7462 = vld [vmem:[%s7440 + $0xa8] sm:$0xff]
  %v7463 = vld [vmem:[%s7440 + $0xb0] sm:$0xff]
  %v7464 = vld [vmem:[%s7440 + $0xb8] sm:$0xff]
  %s7465 = scalar_lea.vmem %s9, 576
  %v7466 = vld [vmem:[%s7465] sm:$0xff]
  %v7467 = vld [vmem:[%s7465 + $0x8] sm:$0xff]
  %v7468 = vld [vmem:[%s7465 + $0x10] sm:$0xff]
  %v7469 = vld [vmem:[%s7465 + $0x18] sm:$0xff]
  %v7470 = vld [vmem:[%s7465 + $0x20] sm:$0xff]
  %v7471 = vld [vmem:[%s7465 + $0x28] sm:$0xff]
  %v7472 = vld [vmem:[%s7465 + $0x30] sm:$0xff]
  %v7473 = vld [vmem:[%s7465 + $0x38] sm:$0xff]
  %v7474 = vld [vmem:[%s7465 + $0x40] sm:$0xff]
  %v7475 = vld [vmem:[%s7465 + $0x48] sm:$0xff]
  %v7476 = vld [vmem:[%s7465 + $0x50] sm:$0xff]
  %v7477 = vld [vmem:[%s7465 + $0x58] sm:$0xff]
  %v7478 = vld [vmem:[%s7465 + $0x60] sm:$0xff]
  %v7479 = vld [vmem:[%s7465 + $0x68] sm:$0xff]
  %v7480 = vld [vmem:[%s7465 + $0x70] sm:$0xff]
  %v7481 = vld [vmem:[%s7465 + $0x78] sm:$0xff]
  %v7482 = vld [vmem:[%s7465 + $0x80] sm:$0xff]
  %v7483 = vld [vmem:[%s7465 + $0x88] sm:$0xff]
  %v7484 = vld [vmem:[%s7465 + $0x90] sm:$0xff]
  %v7485 = vld [vmem:[%s7465 + $0x98] sm:$0xff]
  %v7486 = vld [vmem:[%s7465 + $0xa0] sm:$0xff]
  %v7487 = vld [vmem:[%s7465 + $0xa8] sm:$0xff]
  %v7488 = vld [vmem:[%s7465 + $0xb0] sm:$0xff]
  %v7489 = vld [vmem:[%s7465 + $0xb8] sm:$0xff]
  %vm7490 = vsmask.f32 6400
  %v7491 = vrot.slane %v7160, 1
  %v7492 = vrot.slane %v7162, 2
  %v7493 = vor.u32 %v7491, %v7492
  %v7494 = vrot.slane %v7183, 1
  %v7495 = vrot.slane %v7167, 2
  %v7496 = vor.u32 %v7494, %v7495
  %v7497 = vsel %vm7490, %v7493, %v7496
  %v7498 = vrot.slane %v7172, 1
  %v7499 = vrot.slane %v7174, 2
  %v7500 = vor.u32 %v7498, %v7499
  %v7501 = vrot.slane %v7191, 1
  %v7502 = vrot.slane %v7179, 2
  %v7503 = vor.u32 %v7501, %v7502
  %v7504 = vsel %vm7490, %v7500, %v7503
  %v7505 = vrot.slane %v7199, 1
  %v7506 = vrot.slane %v7187, 2
  %v7507 = vor.u32 %v7505, %v7506
  %v7508 = vsel %vm7490, %v7496, %v7507
  %v7509 = vrot.slane %v7207, 1
  %v7510 = vrot.slane %v7195, 2
  %v7511 = vor.u32 %v7509, %v7510
  %v7512 = vsel %vm7490, %v7503, %v7511
  %v7513 = vrot.slane %v7215, 1
  %v7514 = vrot.slane %v7203, 2
  %v7515 = vor.u32 %v7513, %v7514
  %v7516 = vsel %vm7490, %v7507, %v7515
  %v7517 = vrot.slane %v7223, 1
  %v7518 = vrot.slane %v7211, 2
  %v7519 = vor.u32 %v7517, %v7518
  %v7520 = vsel %vm7490, %v7511, %v7519
  %v7521 = vshrl.u32 %v7107, 16
  %v7523 = vrot.slane %v7521, 1
  %v7524 = vrot.slane %v7219, 2
  %v7525 = vor.u32 %v7523, %v7524
  %v7526 = vsel %vm7490, %v7515, %v7525
  %v7527 = vshrl.u32 %v7108, 16
  %v7529 = vrot.slane %v7527, 1
  %v7530 = vrot.slane %v7227, 2
  %v7531 = vor.u32 %v7529, %v7530
  %v7532 = vsel %vm7490, %v7519, %v7531
  %v7561 = vunpack.c.l.b16 %v7466
  %v7562 = vunpack.c.h.b16 %v7466
  %v7563 = vunpack.c.l.b16 %v7467
  %v7564 = vunpack.c.h.b16 %v7467
  %v7565 = vunpack.c.l.b16 %v7468
  %v7566 = vunpack.c.h.b16 %v7468
  %v7567 = vunpack.c.l.b16 %v7469
  %v7568 = vunpack.c.h.b16 %v7469
  %v7569 = vunpack.c.l.b16 %v7470
  %v7570 = vunpack.c.h.b16 %v7470
  %v7571 = vunpack.c.l.b16 %v7471
  %v7572 = vunpack.c.h.b16 %v7471
  %v7573 = vunpack.c.l.b16 %v7472
  %v7574 = vunpack.c.h.b16 %v7472
  %v7575 = vunpack.c.l.b16 %v7473
  %v7576 = vunpack.c.h.b16 %v7473
  %v7577 = vunpack.c.l.b16 %v7474
  %v7578 = vunpack.c.h.b16 %v7474
  %v7579 = vunpack.c.l.b16 %v7475
  %v7580 = vunpack.c.h.b16 %v7475
  %v7581 = vunpack.c.l.b16 %v7476
  %v7582 = vunpack.c.h.b16 %v7476
  %v7583 = vunpack.c.l.b16 %v7477
  %v7584 = vunpack.c.h.b16 %v7477
  %v7585 = vunpack.c.l.b16 %v7478
  %v7586 = vunpack.c.h.b16 %v7478
  %v7587 = vunpack.c.l.b16 %v7479
  %v7588 = vunpack.c.h.b16 %v7479
  %v7589 = vunpack.c.l.b16 %v7480
  %v7590 = vunpack.c.h.b16 %v7480
  %v7591 = vunpack.c.l.b16 %v7481
  %v7592 = vunpack.c.h.b16 %v7481
  %v7593 = vunpack.c.l.b16 %v7482
  %v7594 = vunpack.c.h.b16 %v7482
  %v7595 = vunpack.c.l.b16 %v7483
  %v7596 = vunpack.c.h.b16 %v7483
  %v7597 = vunpack.c.l.b16 %v7484
  %v7598 = vunpack.c.h.b16 %v7484
  %v7599 = vunpack.c.l.b16 %v7485
  %v7600 = vunpack.c.h.b16 %v7485
  %v7601 = vunpack.c.l.b16 %v7486
  %v7602 = vunpack.c.h.b16 %v7486
  %v7603 = vunpack.c.l.b16 %v7487
  %v7604 = vunpack.c.h.b16 %v7487
  %v7605 = vunpack.c.l.b16 %v7488
  %v7606 = vunpack.c.h.b16 %v7488
  %v7607 = vunpack.c.l.b16 %v7489
  %v7608 = vunpack.c.h.b16 %v7489
  %v7609 = vpack.c.b16 %v7563, %v7561
  %v7610 = vpack.c.b16 %v7564, %v7562
  %v7611 = vpack.c.b16 %v7567, %v7565
  %v7612 = vpack.c.b16 %v7568, %v7566
  %v7613 = vpack.c.b16 %v7571, %v7569
  %v7614 = vpack.c.b16 %v7572, %v7570
  %v7615 = vpack.c.b16 %v7575, %v7573
  %v7616 = vpack.c.b16 %v7576, %v7574
  %v7617 = vpack.c.b16 %v7579, %v7577
  %v7618 = vpack.c.b16 %v7580, %v7578
  %v7619 = vpack.c.b16 %v7583, %v7581
  %v7620 = vpack.c.b16 %v7584, %v7582
  %v7621 = vpack.c.b16 %v7587, %v7585
  %v7622 = vpack.c.b16 %v7588, %v7586
  %v7623 = vpack.c.b16 %v7591, %v7589
  %v7624 = vpack.c.b16 %v7592, %v7590
  %v7625 = vpack.c.b16 %v7595, %v7593
  %v7626 = vpack.c.b16 %v7596, %v7594
  %v7627 = vpack.c.b16 %v7599, %v7597
  %v7628 = vpack.c.b16 %v7600, %v7598
  %v7629 = vpack.c.b16 %v7603, %v7601
  %v7630 = vpack.c.b16 %v7604, %v7602
  %v7631 = vpack.c.b16 %v7607, %v7605
  %v7632 = vpack.c.b16 %v7608, %v7606
  %v7658 = vsel %vm3587, %v7504, 0
  %v7661 = vsel %vm3587, %v7512, 0
  %v7664 = vsel %vm3587, %v7520, 0
  %v7667 = vsel %vm3587, %v7532, 0
  %7669 = vmatprep.subr.bf16.mxu0 %v7624
  %7670 = vmatpush1.bf16.msra.mxu0 %v7623
  %7671 = vmatprep.subr.bf16.mxu0 %v7622
  %7672 = vmatpush1.bf16.msra.mxu0 %v7621
  %7673 = vmatprep.subr.bf16.mxu0 %v7620
  %7674 = vmatpush1.bf16.msra.mxu0 %v7619
  %7675 = vmatprep.subr.bf16.mxu0 %v7618
  %7676 = vmatpush1.bf16.msra.mxu0 %v7617
  %7677 = vmatprep.subr.bf16.mxu0 %v7616
  %7678 = vmatpush1.bf16.msra.mxu0 %v7615
  %7679 = vmatprep.subr.bf16.mxu0 %v7614
  %7680 = vmatpush1.bf16.msra.mxu0 %v7613
  %7681 = vmatprep.subr.bf16.mxu0 %v7612
  %7682 = vmatpush1.bf16.msra.mxu0 %v7611
  %7683 = vmatprep.subr.bf16.mxu0 %v7610
  %7684 = vmatpush1.bf16.msra.mxu0 %v7609
  %7685 = vmatprep.subr.bf16.mxu0 0
  %7686 = vmatpush2.bf16.msra.mxu0 0
  %7687 = vmatprep.subr.bf16.mxu0 0
  %7688 = vmatpush2.bf16.msra.mxu0 0
  %7689 = vmatprep.subr.bf16.mxu0 0
  %7690 = vmatpush2.bf16.msra.mxu0 0
  %7691 = vmatprep.subr.bf16.mxu0 0
  %7692 = vmatpush2.bf16.msra.mxu0 0
  %7693 = vmatprep.subr.bf16.mxu0 %v7632
  %7694 = vmatpush2.bf16.msra.mxu0 %v7631
  %7695 = vmatprep.subr.bf16.mxu0 %v7630
  %7696 = vmatpush2.bf16.msra.mxu0 %v7629
  %7697 = vmatprep.subr.bf16.mxu0 %v7628
  %7698 = vmatpush2.bf16.msra.mxu0 %v7627
  %7699 = vmatprep.subr.bf16.mxu0 %v7626
  %7700 = vmatpush2.bf16.msra.mxu0 %v7625
  %7701 = vmatprep.mubr.bf16.mxu0 %v7658
  %7702 = vmatmul.mubr.bf16.gmra.mxu0 %v7497
  %v7703 = vpop.f32.mrf.mxu0
  %v7704 = vadd.f32 0.0, %v7703
  %v7705 = vpop.f32.mrf.mxu0
  %v7706 = vadd.f32 0.0, %v7705
  %v7707 = vpop.f32.mrf.mxu0
  %v7708 = vadd.f32 0.0, %v7707
  %v7709 = vpop.f32.mrf.mxu0
  %v7710 = vadd.f32 0.0, %v7709
  %7711 = vmatprep.mubr.bf16.mxu0 %v7661
  %7712 = vmatmul.mubr.bf16.gmra.mxu0 %v7508
  %v7713 = vpop.f32.mrf.mxu0
  %v7714 = vadd.f32 0.0, %v7713
  %v7715 = vpop.f32.mrf.mxu0
  %v7716 = vadd.f32 0.0, %v7715
  %v7717 = vpop.f32.mrf.mxu0
  %v7718 = vadd.f32 0.0, %v7717
  %v7719 = vpop.f32.mrf.mxu0
  %v7720 = vadd.f32 0.0, %v7719
  %7721 = vmatprep.mubr.bf16.mxu0 %v7664
  %7722 = vmatmul.mubr.bf16.gmra.mxu0 %v7516
  %v7723 = vpop.f32.mrf.mxu0
  %v7724 = vadd.f32 0.0, %v7723
  %v7725 = vpop.f32.mrf.mxu0
  %v7726 = vadd.f32 0.0, %v7725
  %v7727 = vpop.f32.mrf.mxu0
  %v7728 = vadd.f32 0.0, %v7727
  %v7729 = vpop.f32.mrf.mxu0
  %v7730 = vadd.f32 0.0, %v7729
  %7731 = vmatprep.mubr.bf16.mxu0 %v7667
  %7732 = vmatmul.mubr.bf16.gmra.mxu0 %v7526
  %v7733 = vpop.f32.mrf.mxu0
  %v7734 = vadd.f32 0.0, %v7733
  %v7735 = vpop.f32.mrf.mxu0
  %v7736 = vadd.f32 0.0, %v7735
  %v7737 = vpop.f32.mrf.mxu0
  %v7738 = vadd.f32 0.0, %v7737
  %v7739 = vpop.f32.mrf.mxu0
  %v7740 = vadd.f32 0.0, %v7739
  %7741 = vdwg.mxu0
  %s7742 = scalar_lea.vmem %s9, 768
  %v7743 = vld [vmem:[%s7742] sm:$0xff]
  %v7744 = vld [vmem:[%s7742 + $0x8] sm:$0xff]
  %v7745 = vld [vmem:[%s7742 + $0x10] sm:$0xff]
  %v7746 = vld [vmem:[%s7742 + $0x18] sm:$0xff]
  %v7747 = vld [vmem:[%s7742 + $0x20] sm:$0xff]
  %v7748 = vld [vmem:[%s7742 + $0x28] sm:$0xff]
  %v7749 = vld [vmem:[%s7742 + $0x30] sm:$0xff]
  %v7750 = vld [vmem:[%s7742 + $0x38] sm:$0xff]
  %v7751 = vld [vmem:[%s7742 + $0x40] sm:$0xff]
  %v7752 = vld [vmem:[%s7742 + $0x48] sm:$0xff]
  %v7753 = vld [vmem:[%s7742 + $0x50] sm:$0xff]
  %v7754 = vld [vmem:[%s7742 + $0x58] sm:$0xff]
  %v7755 = vld [vmem:[%s7742 + $0x60] sm:$0xff]
  %v7756 = vld [vmem:[%s7742 + $0x68] sm:$0xff]
  %v7757 = vld [vmem:[%s7742 + $0x70] sm:$0xff]
  %v7758 = vld [vmem:[%s7742 + $0x78] sm:$0xff]
  %v7759 = vld [vmem:[%s7742 + $0x80] sm:$0xff]
  %v7760 = vld [vmem:[%s7742 + $0x88] sm:$0xff]
  %v7761 = vld [vmem:[%s7742 + $0x90] sm:$0xff]
  %v7762 = vld [vmem:[%s7742 + $0x98] sm:$0xff]
  %v7763 = vld [vmem:[%s7742 + $0xa0] sm:$0xff]
  %v7764 = vld [vmem:[%s7742 + $0xa8] sm:$0xff]
  %v7765 = vld [vmem:[%s7742 + $0xb0] sm:$0xff]
  %v7766 = vld [vmem:[%s7742 + $0xb8] sm:$0xff]
  %s7767 = scalar_lea.vmem %s9, 960
  %v7768 = vld [vmem:[%s7767] sm:$0xff]
  %v7769 = vld [vmem:[%s7767 + $0x8] sm:$0xff]
  %v7770 = vld [vmem:[%s7767 + $0x10] sm:$0xff]
  %v7771 = vld [vmem:[%s7767 + $0x18] sm:$0xff]
  %v7772 = vld [vmem:[%s7767 + $0x20] sm:$0xff]
  %v7773 = vld [vmem:[%s7767 + $0x28] sm:$0xff]
  %v7774 = vld [vmem:[%s7767 + $0x30] sm:$0xff]
  %v7775 = vld [vmem:[%s7767 + $0x38] sm:$0xff]
  %v7776 = vld [vmem:[%s7767 + $0x40] sm:$0xff]
  %v7777 = vld [vmem:[%s7767 + $0x48] sm:$0xff]
  %v7778 = vld [vmem:[%s7767 + $0x50] sm:$0xff]
  %v7779 = vld [vmem:[%s7767 + $0x58] sm:$0xff]
  %v7780 = vld [vmem:[%s7767 + $0x60] sm:$0xff]
  %v7781 = vld [vmem:[%s7767 + $0x68] sm:$0xff]
  %v7782 = vld [vmem:[%s7767 + $0x70] sm:$0xff]
  %v7783 = vld [vmem:[%s7767 + $0x78] sm:$0xff]
  %v7784 = vld [vmem:[%s7767 + $0x80] sm:$0xff]
  %v7785 = vld [vmem:[%s7767 + $0x88] sm:$0xff]
  %v7786 = vld [vmem:[%s7767 + $0x90] sm:$0xff]
  %v7787 = vld [vmem:[%s7767 + $0x98] sm:$0xff]
  %v7788 = vld [vmem:[%s7767 + $0xa0] sm:$0xff]
  %v7789 = vld [vmem:[%s7767 + $0xa8] sm:$0xff]
  %v7790 = vld [vmem:[%s7767 + $0xb0] sm:$0xff]
  %v7791 = vld [vmem:[%s7767 + $0xb8] sm:$0xff]
  %vm7792 = vsmask.f32 5376
  %v7793 = vrot.slane %v7160, 2
  %v7794 = vrot.slane %v7162, 3
  %v7795 = vor.u32 %v7793, %v7794
  %v7796 = vrot.slane %v7183, 2
  %v7797 = vrot.slane %v7167, 3
  %v7798 = vor.u32 %v7796, %v7797
  %v7799 = vsel %vm7792, %v7795, %v7798
  %v7800 = vrot.slane %v7172, 2
  %v7801 = vrot.slane %v7174, 3
  %v7802 = vor.u32 %v7800, %v7801
  %v7803 = vrot.slane %v7191, 2
  %v7804 = vrot.slane %v7179, 3
  %v7805 = vor.u32 %v7803, %v7804
  %v7806 = vsel %vm7792, %v7802, %v7805
  %v7807 = vrot.slane %v7199, 2
  %v7808 = vrot.slane %v7187, 3
  %v7809 = vor.u32 %v7807, %v7808
  %v7810 = vsel %vm7792, %v7798, %v7809
  %v7811 = vrot.slane %v7207, 2
  %v7812 = vrot.slane %v7195, 3
  %v7813 = vor.u32 %v7811, %v7812
  %v7814 = vsel %vm7792, %v7805, %v7813
  %v7815 = vrot.slane %v7215, 2
  %v7816 = vrot.slane %v7203, 3
  %v7817 = vor.u32 %v7815, %v7816
  %v7818 = vsel %vm7792, %v7809, %v7817
  %v7819 = vrot.slane %v7223, 2
  %v7820 = vrot.slane %v7211, 3
  %v7821 = vor.u32 %v7819, %v7820
  %v7822 = vsel %vm7792, %v7813, %v7821
  %v7823 = vrot.slane %v7521, 2
  %v7824 = vrot.slane %v7219, 3
  %v7825 = vor.u32 %v7823, %v7824
  %v7826 = vsel %vm7792, %v7817, %v7825
  %v7827 = vrot.slane %v7527, 2
  %v7828 = vrot.slane %v7227, 3
  %v7829 = vor.u32 %v7827, %v7828
  %v7830 = vsel %vm7792, %v7821, %v7829
  %v7859 = vunpack.c.l.b16 %v7768
  %v7860 = vunpack.c.h.b16 %v7768
  %v7861 = vunpack.c.l.b16 %v7769
  %v7862 = vunpack.c.h.b16 %v7769
  %v7863 = vunpack.c.l.b16 %v7770
  %v7864 = vunpack.c.h.b16 %v7770
  %v7865 = vunpack.c.l.b16 %v7771
  %v7866 = vunpack.c.h.b16 %v7771
  %v7867 = vunpack.c.l.b16 %v7772
  %v7868 = vunpack.c.h.b16 %v7772
  %v7869 = vunpack.c.l.b16 %v7773
  %v7870 = vunpack.c.h.b16 %v7773
  %v7871 = vunpack.c.l.b16 %v7774
  %v7872 = vunpack.c.h.b16 %v7774
  %v7873 = vunpack.c.l.b16 %v7775
  %v7874 = vunpack.c.h.b16 %v7775
  %v7875 = vunpack.c.l.b16 %v7776
  %v7876 = vunpack.c.h.b16 %v7776
  %v7877 = vunpack.c.l.b16 %v7777
  %v7878 = vunpack.c.h.b16 %v7777
  %v7879 = vunpack.c.l.b16 %v7778
  %v7880 = vunpack.c.h.b16 %v7778
  %v7881 = vunpack.c.l.b16 %v7779
  %v7882 = vunpack.c.h.b16 %v7779
  %v7883 = vunpack.c.l.b16 %v7780
  %v7884 = vunpack.c.h.b16 %v7780
  %v7885 = vunpack.c.l.b16 %v7781
  %v7886 = vunpack.c.h.b16 %v7781
  %v7887 = vunpack.c.l.b16 %v7782
  %v7888 = vunpack.c.h.b16 %v7782
  %v7889 = vunpack.c.l.b16 %v7783
  %v7890 = vunpack.c.h.b16 %v7783
  %v7891 = vunpack.c.l.b16 %v7784
  %v7892 = vunpack.c.h.b16 %v7784
  %v7893 = vunpack.c.l.b16 %v7785
  %v7894 = vunpack.c.h.b16 %v7785
  %v7895 = vunpack.c.l.b16 %v7786
  %v7896 = vunpack.c.h.b16 %v7786
  %v7897 = vunpack.c.l.b16 %v7787
  %v7898 = vunpack.c.h.b16 %v7787
  %v7899 = vunpack.c.l.b16 %v7788
  %v7900 = vunpack.c.h.b16 %v7788
  %v7901 = vunpack.c.l.b16 %v7789
  %v7902 = vunpack.c.h.b16 %v7789
  %v7903 = vunpack.c.l.b16 %v7790
  %v7904 = vunpack.c.h.b16 %v7790
  %v7905 = vunpack.c.l.b16 %v7791
  %v7906 = vunpack.c.h.b16 %v7791
  %v7907 = vpack.c.b16 %v7861, %v7859
  %v7908 = vpack.c.b16 %v7862, %v7860
  %v7909 = vpack.c.b16 %v7865, %v7863
  %v7910 = vpack.c.b16 %v7866, %v7864
  %v7911 = vpack.c.b16 %v7869, %v7867
  %v7912 = vpack.c.b16 %v7870, %v7868
  %v7913 = vpack.c.b16 %v7873, %v7871
  %v7914 = vpack.c.b16 %v7874, %v7872
  %v7915 = vpack.c.b16 %v7877, %v7875
  %v7916 = vpack.c.b16 %v7878, %v7876
  %v7917 = vpack.c.b16 %v7881, %v7879
  %v7918 = vpack.c.b16 %v7882, %v7880
  %v7919 = vpack.c.b16 %v7885, %v7883
  %v7920 = vpack.c.b16 %v7886, %v7884
  %v7921 = vpack.c.b16 %v7889, %v7887
  %v7922 = vpack.c.b16 %v7890, %v7888
  %v7923 = vpack.c.b16 %v7893, %v7891
  %v7924 = vpack.c.b16 %v7894, %v7892
  %v7925 = vpack.c.b16 %v7897, %v7895
  %v7926 = vpack.c.b16 %v7898, %v7896
  %v7927 = vpack.c.b16 %v7901, %v7899
  %v7928 = vpack.c.b16 %v7902, %v7900
  %v7929 = vpack.c.b16 %v7905, %v7903
  %v7930 = vpack.c.b16 %v7906, %v7904
  %v7956 = vsel %vm3587, %v7806, 0
  %v7959 = vsel %vm3587, %v7814, 0
  %v7962 = vsel %vm3587, %v7822, 0
  %v7965 = vsel %vm3587, %v7830, 0
  %7967 = vmatprep.subr.bf16.mxu0 %v7922
  %7968 = vmatpush1.bf16.msra.mxu0 %v7921
  %7969 = vmatprep.subr.bf16.mxu0 %v7920
  %7970 = vmatpush1.bf16.msra.mxu0 %v7919
  %7971 = vmatprep.subr.bf16.mxu0 %v7918
  %7972 = vmatpush1.bf16.msra.mxu0 %v7917
  %7973 = vmatprep.subr.bf16.mxu0 %v7916
  %7974 = vmatpush1.bf16.msra.mxu0 %v7915
  %7975 = vmatprep.subr.bf16.mxu0 %v7914
  %7976 = vmatpush1.bf16.msra.mxu0 %v7913
  %7977 = vmatprep.subr.bf16.mxu0 %v7912
  %7978 = vmatpush1.bf16.msra.mxu0 %v7911
  %7979 = vmatprep.subr.bf16.mxu0 %v7910
  %7980 = vmatpush1.bf16.msra.mxu0 %v7909
  %7981 = vmatprep.subr.bf16.mxu0 %v7908
  %7982 = vmatpush1.bf16.msra.mxu0 %v7907
  %7983 = vmatprep.subr.bf16.mxu0 0
  %7984 = vmatpush2.bf16.msra.mxu0 0
  %7985 = vmatprep.subr.bf16.mxu0 0
  %7986 = vmatpush2.bf16.msra.mxu0 0
  %7987 = vmatprep.subr.bf16.mxu0 0
  %7988 = vmatpush2.bf16.msra.mxu0 0
  %7989 = vmatprep.subr.bf16.mxu0 0
  %7990 = vmatpush2.bf16.msra.mxu0 0
  %7991 = vmatprep.subr.bf16.mxu0 %v7930
  %7992 = vmatpush2.bf16.msra.mxu0 %v7929
  %7993 = vmatprep.subr.bf16.mxu0 %v7928
  %7994 = vmatpush2.bf16.msra.mxu0 %v7927
  %7995 = vmatprep.subr.bf16.mxu0 %v7926
  %7996 = vmatpush2.bf16.msra.mxu0 %v7925
  %7997 = vmatprep.subr.bf16.mxu0 %v7924
  %7998 = vmatpush2.bf16.msra.mxu0 %v7923
  %7999 = vmatprep.mubr.bf16.mxu0 %v7956
  %8000 = vmatmul.mubr.bf16.gmra.mxu0 %v7799
  %v8001 = vpop.f32.mrf.mxu0
  %v8002 = vadd.f32 0.0, %v8001
  %v8003 = vpop.f32.mrf.mxu0
  %v8004 = vadd.f32 0.0, %v8003
  %v8005 = vpop.f32.mrf.mxu0
  %v8006 = vadd.f32 0.0, %v8005
  %v8007 = vpop.f32.mrf.mxu0
  %v8008 = vadd.f32 0.0, %v8007
  %8009 = vmatprep.mubr.bf16.mxu0 %v7959
  %8010 = vmatmul.mubr.bf16.gmra.mxu0 %v7810
  %v8011 = vpop.f32.mrf.mxu0
  %v8012 = vadd.f32 0.0, %v8011
  %v8013 = vpop.f32.mrf.mxu0
  %v8014 = vadd.f32 0.0, %v8013
  %v8015 = vpop.f32.mrf.mxu0
  %v8016 = vadd.f32 0.0, %v8015
  %v8017 = vpop.f32.mrf.mxu0
  %v8018 = vadd.f32 0.0, %v8017
  %8019 = vmatprep.mubr.bf16.mxu0 %v7962
  %8020 = vmatmul.mubr.bf16.gmra.mxu0 %v7818
  %v8021 = vpop.f32.mrf.mxu0
  %v8022 = vadd.f32 0.0, %v8021
  %v8023 = vpop.f32.mrf.mxu0
  %v8024 = vadd.f32 0.0, %v8023
  %v8025 = vpop.f32.mrf.mxu0
  %v8026 = vadd.f32 0.0, %v8025
  %v8027 = vpop.f32.mrf.mxu0
  %v8028 = vadd.f32 0.0, %v8027
  %8029 = vmatprep.mubr.bf16.mxu0 %v7965
  %8030 = vmatmul.mubr.bf16.gmra.mxu0 %v7826
  %v8031 = vpop.f32.mrf.mxu0
  %v8032 = vadd.f32 0.0, %v8031
  %v8033 = vpop.f32.mrf.mxu0
  %v8034 = vadd.f32 0.0, %v8033
  %v8035 = vpop.f32.mrf.mxu0
  %v8036 = vadd.f32 0.0, %v8035
  %v8037 = vpop.f32.mrf.mxu0
  %v8038 = vadd.f32 0.0, %v8037
  %8039 = vdwg.mxu0
  %v8064 = vunpack.c.l.b16 %v7109
  %v8065 = vunpack.c.h.b16 %v7109
  %v8066 = vunpack.c.l.b16 %v7110
  %v8067 = vunpack.c.h.b16 %v7110
  %v8068 = vunpack.c.l.b16 %v7111
  %v8069 = vunpack.c.h.b16 %v7111
  %v8070 = vunpack.c.l.b16 %v7112
  %v8071 = vunpack.c.h.b16 %v7112
  %v8072 = vunpack.c.l.b16 %v7113
  %v8073 = vunpack.c.h.b16 %v7113
  %v8074 = vunpack.c.l.b16 %v7114
  %v8075 = vunpack.c.h.b16 %v7114
  %v8076 = vunpack.c.l.b16 %v7115
  %v8077 = vunpack.c.h.b16 %v7115
  %v8078 = vunpack.c.l.b16 %v7116
  %v8079 = vunpack.c.h.b16 %v7116
  %v8080 = vunpack.c.l.b16 %v7117
  %v8081 = vunpack.c.h.b16 %v7117
  %v8082 = vunpack.c.l.b16 %v7118
  %v8083 = vunpack.c.h.b16 %v7118
  %v8084 = vunpack.c.l.b16 %v7119
  %v8085 = vunpack.c.h.b16 %v7119
  %v8086 = vunpack.c.l.b16 %v7120
  %v8087 = vunpack.c.h.b16 %v7120
  %v8088 = vunpack.c.l.b16 %v7121
  %v8089 = vunpack.c.h.b16 %v7121
  %v8090 = vunpack.c.l.b16 %v7122
  %v8091 = vunpack.c.h.b16 %v7122
  %v8092 = vunpack.c.l.b16 %v7123
  %v8093 = vunpack.c.h.b16 %v7123
  %v8094 = vunpack.c.l.b16 %v7124
  %v8095 = vunpack.c.h.b16 %v7124
  %v8096 = vunpack.c.l.b16 %v7125
  %v8097 = vunpack.c.h.b16 %v7125
  %v8098 = vunpack.c.l.b16 %v7126
  %v8099 = vunpack.c.h.b16 %v7126
  %v8100 = vunpack.c.l.b16 %v7127
  %v8101 = vunpack.c.h.b16 %v7127
  %v8102 = vunpack.c.l.b16 %v7128
  %v8103 = vunpack.c.h.b16 %v7128
  %v8104 = vunpack.c.l.b16 %v7129
  %v8105 = vunpack.c.h.b16 %v7129
  %v8106 = vunpack.c.l.b16 %v7130
  %v8107 = vunpack.c.h.b16 %v7130
  %v8108 = vunpack.c.l.b16 %v7131
  %v8109 = vunpack.c.h.b16 %v7131
  %v8110 = vunpack.c.l.b16 %v7132
  %v8111 = vunpack.c.h.b16 %v7132
  %v8112 = vpack.c.b16 %v8066, %v8064
  %v8113 = vpack.c.b16 %v8067, %v8065
  %v8114 = vpack.c.b16 %v8070, %v8068
  %v8115 = vpack.c.b16 %v8071, %v8069
  %v8116 = vpack.c.b16 %v8074, %v8072
  %v8117 = vpack.c.b16 %v8075, %v8073
  %v8118 = vpack.c.b16 %v8078, %v8076
  %v8119 = vpack.c.b16 %v8079, %v8077
  %v8120 = vpack.c.b16 %v8082, %v8080
  %v8121 = vpack.c.b16 %v8083, %v8081
  %v8122 = vpack.c.b16 %v8086, %v8084
  %v8123 = vpack.c.b16 %v8087, %v8085
  %v8124 = vpack.c.b16 %v8090, %v8088
  %v8125 = vpack.c.b16 %v8091, %v8089
  %v8126 = vpack.c.b16 %v8094, %v8092
  %v8127 = vpack.c.b16 %v8095, %v8093
  %v8128 = vpack.c.b16 %v8098, %v8096
  %v8129 = vpack.c.b16 %v8099, %v8097
  %v8130 = vpack.c.b16 %v8102, %v8100
  %v8131 = vpack.c.b16 %v8103, %v8101
  %v8132 = vpack.c.b16 %v8106, %v8104
  %v8133 = vpack.c.b16 %v8107, %v8105
  %v8134 = vpack.c.b16 %v8110, %v8108
  %v8135 = vpack.c.b16 %v8111, %v8109
  %v8160 = vsel %vm3587, %v7100, 0
  %v8162 = vsel %vm3587, %v7102, 0
  %v8164 = vsel %vm3587, %v7104, 0
  %v8166 = vsel %vm3587, %v7106, 0
  %8168 = vmatprep.subr.bf16.mxu0 %v8127
  %8169 = vmatpush1.bf16.msra.mxu0 %v8126
  %8170 = vmatprep.subr.bf16.mxu0 %v8125
  %8171 = vmatpush1.bf16.msra.mxu0 %v8124
  %8172 = vmatprep.subr.bf16.mxu0 %v8123
  %8173 = vmatpush1.bf16.msra.mxu0 %v8122
  %8174 = vmatprep.subr.bf16.mxu0 %v8121
  %8175 = vmatpush1.bf16.msra.mxu0 %v8120
  %8176 = vmatprep.subr.bf16.mxu0 %v8119
  %8177 = vmatpush1.bf16.msra.mxu0 %v8118
  %8178 = vmatprep.subr.bf16.mxu0 %v8117
  %8179 = vmatpush1.bf16.msra.mxu0 %v8116
  %8180 = vmatprep.subr.bf16.mxu0 %v8115
  %8181 = vmatpush1.bf16.msra.mxu0 %v8114
  %8182 = vmatprep.subr.bf16.mxu0 %v8113
  %8183 = vmatpush1.bf16.msra.mxu0 %v8112
  %8184 = vmatprep.subr.bf16.mxu0 0
  %8185 = vmatpush2.bf16.msra.mxu0 0
  %8186 = vmatprep.subr.bf16.mxu0 0
  %8187 = vmatpush2.bf16.msra.mxu0 0
  %8188 = vmatprep.subr.bf16.mxu0 0
  %8189 = vmatpush2.bf16.msra.mxu0 0
  %8190 = vmatprep.subr.bf16.mxu0 0
  %8191 = vmatpush2.bf16.msra.mxu0 0
  %8192 = vmatprep.subr.bf16.mxu0 %v8135
  %8193 = vmatpush2.bf16.msra.mxu0 %v8134
  %8194 = vmatprep.subr.bf16.mxu0 %v8133
  %8195 = vmatpush2.bf16.msra.mxu0 %v8132
  %8196 = vmatprep.subr.bf16.mxu0 %v8131
  %8197 = vmatpush2.bf16.msra.mxu0 %v8130
  %8198 = vmatprep.subr.bf16.mxu0 %v8129
  %8199 = vmatpush2.bf16.msra.mxu0 %v8128
  %8200 = vmatprep.mubr.bf16.mxu0 %v8160
  %8201 = vmatmul.mubr.bf16.gmra.mxu0 %v7099
  %v8202 = vpop.f32.mrf.mxu0
  %v8203 = vadd.f32 %v7402, %v8202
  %v8204 = vpop.f32.mrf.mxu0
  %v8205 = vadd.f32 %v7404, %v8204
  %v8206 = vpop.f32.mrf.mxu0
  %v8207 = vadd.f32 %v7406, %v8206
  %v8208 = vpop.f32.mrf.mxu0
  %v8209 = vadd.f32 %v7408, %v8208
  %8210 = vmatprep.mubr.bf16.mxu0 %v8162
  %8211 = vmatmul.mubr.bf16.gmra.mxu0 %v7101
  %v8212 = vpop.f32.mrf.mxu0
  %v8213 = vadd.f32 %v7412, %v8212
  %v8214 = vpop.f32.mrf.mxu0
  %v8215 = vadd.f32 %v7414, %v8214
  %v8216 = vpop.f32.mrf.mxu0
  %v8217 = vadd.f32 %v7416, %v8216
  %v8218 = vpop.f32.mrf.mxu0
  %v8219 = vadd.f32 %v7418, %v8218
  %8220 = vmatprep.mubr.bf16.mxu0 %v8164
  %8221 = vmatmul.mubr.bf16.gmra.mxu0 %v7103
  %v8222 = vpop.f32.mrf.mxu0
  %v8223 = vadd.f32 %v7422, %v8222
  %v8224 = vpop.f32.mrf.mxu0
  %v8225 = vadd.f32 %v7424, %v8224
  %v8226 = vpop.f32.mrf.mxu0
  %v8227 = vadd.f32 %v7426, %v8226
  %v8228 = vpop.f32.mrf.mxu0
  %v8229 = vadd.f32 %v7428, %v8228
  %8230 = vmatprep.mubr.bf16.mxu0 %v8166
  %8231 = vmatmul.mubr.bf16.gmra.mxu0 %v7105
  %v8232 = vpop.f32.mrf.mxu0
  %v8233 = vadd.f32 %v7432, %v8232
  %v8234 = vpop.f32.mrf.mxu0
  %v8235 = vadd.f32 %v7434, %v8234
  %v8236 = vpop.f32.mrf.mxu0
  %v8237 = vadd.f32 %v7436, %v8236
  %v8238 = vpop.f32.mrf.mxu0
  %v8239 = vadd.f32 %v7438, %v8238
  %8240 = vdwg.mxu0
  %vm8251 = vcmask 1046528
  %v8252 = vrot.slane %v7099, 1
  %v8253 = vrot.slane %v7101, 1
  %v8254 = vsel %vm8251, %v8252, %v8253
  %v8255 = vrot.slane %v7100, 1
  %v8256 = vrot.slane %v7102, 1
  %v8257 = vsel %vm8251, %v8255, %v8256
  %v8258 = vrot.slane %v7103, 1
  %v8259 = vsel %vm8251, %v8253, %v8258
  %v8260 = vrot.slane %v7104, 1
  %v8261 = vsel %vm8251, %v8256, %v8260
  %v8262 = vrot.slane %v7105, 1
  %v8263 = vsel %vm8251, %v8258, %v8262
  %v8264 = vrot.slane %v7106, 1
  %v8265 = vsel %vm8251, %v8260, %v8264
  %v8266 = vrot.slane %v7107, 1
  %v8267 = vsel %vm8251, %v8262, %v8266
  %v8268 = vrot.slane %v7108, 1
  %v8269 = vsel %vm8251, %v8264, %v8268
  %v8298 = vunpack.c.l.b16 %v7441
  %v8299 = vunpack.c.h.b16 %v7441
  %v8300 = vunpack.c.l.b16 %v7442
  %v8301 = vunpack.c.h.b16 %v7442
  %v8302 = vunpack.c.l.b16 %v7443
  %v8303 = vunpack.c.h.b16 %v7443
  %v8304 = vunpack.c.l.b16 %v7444
  %v8305 = vunpack.c.h.b16 %v7444
  %v8306 = vunpack.c.l.b16 %v7445
  %v8307 = vunpack.c.h.b16 %v7445
  %v8308 = vunpack.c.l.b16 %v7446
  %v8309 = vunpack.c.h.b16 %v7446
  %v8310 = vunpack.c.l.b16 %v7447
  %v8311 = vunpack.c.h.b16 %v7447
  %v8312 = vunpack.c.l.b16 %v7448
  %v8313 = vunpack.c.h.b16 %v7448
  %v8314 = vunpack.c.l.b16 %v7449
  %v8315 = vunpack.c.h.b16 %v7449
  %v8316 = vunpack.c.l.b16 %v7450
  %v8317 = vunpack.c.h.b16 %v7450
  %v8318 = vunpack.c.l.b16 %v7451
  %v8319 = vunpack.c.h.b16 %v7451
  %v8320 = vunpack.c.l.b16 %v7452
  %v8321 = vunpack.c.h.b16 %v7452
  %v8322 = vunpack.c.l.b16 %v7453
  %v8323 = vunpack.c.h.b16 %v7453
  %v8324 = vunpack.c.l.b16 %v7454
  %v8325 = vunpack.c.h.b16 %v7454
  %v8326 = vunpack.c.l.b16 %v7455
  %v8327 = vunpack.c.h.b16 %v7455
  %v8328 = vunpack.c.l.b16 %v7456
  %v8329 = vunpack.c.h.b16 %v7456
  %v8330 = vunpack.c.l.b16 %v7457
  %v8331 = vunpack.c.h.b16 %v7457
  %v8332 = vunpack.c.l.b16 %v7458
  %v8333 = vunpack.c.h.b16 %v7458
  %v8334 = vunpack.c.l.b16 %v7459
  %v8335 = vunpack.c.h.b16 %v7459
  %v8336 = vunpack.c.l.b16 %v7460
  %v8337 = vunpack.c.h.b16 %v7460
  %v8338 = vunpack.c.l.b16 %v7461
  %v8339 = vunpack.c.h.b16 %v7461
  %v8340 = vunpack.c.l.b16 %v7462
  %v8341 = vunpack.c.h.b16 %v7462
  %v8342 = vunpack.c.l.b16 %v7463
  %v8343 = vunpack.c.h.b16 %v7463
  %v8344 = vunpack.c.l.b16 %v7464
  %v8345 = vunpack.c.h.b16 %v7464
  %v8346 = vpack.c.b16 %v8300, %v8298
  %v8347 = vpack.c.b16 %v8301, %v8299
  %v8348 = vpack.c.b16 %v8304, %v8302
  %v8349 = vpack.c.b16 %v8305, %v8303
  %v8350 = vpack.c.b16 %v8308, %v8306
  %v8351 = vpack.c.b16 %v8309, %v8307
  %v8352 = vpack.c.b16 %v8312, %v8310
  %v8353 = vpack.c.b16 %v8313, %v8311
  %v8354 = vpack.c.b16 %v8316, %v8314
  %v8355 = vpack.c.b16 %v8317, %v8315
  %v8356 = vpack.c.b16 %v8320, %v8318
  %v8357 = vpack.c.b16 %v8321, %v8319
  %v8358 = vpack.c.b16 %v8324, %v8322
  %v8359 = vpack.c.b16 %v8325, %v8323
  %v8360 = vpack.c.b16 %v8328, %v8326
  %v8361 = vpack.c.b16 %v8329, %v8327
  %v8362 = vpack.c.b16 %v8332, %v8330
  %v8363 = vpack.c.b16 %v8333, %v8331
  %v8364 = vpack.c.b16 %v8336, %v8334
  %v8365 = vpack.c.b16 %v8337, %v8335
  %v8366 = vpack.c.b16 %v8340, %v8338
  %v8367 = vpack.c.b16 %v8341, %v8339
  %v8368 = vpack.c.b16 %v8344, %v8342
  %v8369 = vpack.c.b16 %v8345, %v8343
  %v8395 = vsel %vm3587, %v8257, 0
  %v8398 = vsel %vm3587, %v8261, 0
  %v8401 = vsel %vm3587, %v8265, 0
  %v8404 = vsel %vm3587, %v8269, 0
  %8406 = vmatprep.subr.bf16.mxu0 %v8361
  %8407 = vmatpush1.bf16.msra.mxu0 %v8360
  %8408 = vmatprep.subr.bf16.mxu0 %v8359
  %8409 = vmatpush1.bf16.msra.mxu0 %v8358
  %8410 = vmatprep.subr.bf16.mxu0 %v8357
  %8411 = vmatpush1.bf16.msra.mxu0 %v8356
  %8412 = vmatprep.subr.bf16.mxu0 %v8355
  %8413 = vmatpush1.bf16.msra.mxu0 %v8354
  %8414 = vmatprep.subr.bf16.mxu0 %v8353
  %8415 = vmatpush1.bf16.msra.mxu0 %v8352
  %8416 = vmatprep.subr.bf16.mxu0 %v8351
  %8417 = vmatpush1.bf16.msra.mxu0 %v8350
  %8418 = vmatprep.subr.bf16.mxu0 %v8349
  %8419 = vmatpush1.bf16.msra.mxu0 %v8348
  %8420 = vmatprep.subr.bf16.mxu0 %v8347
  %8421 = vmatpush1.bf16.msra.mxu0 %v8346
  %8422 = vmatprep.subr.bf16.mxu0 0
  %8423 = vmatpush2.bf16.msra.mxu0 0
  %8424 = vmatprep.subr.bf16.mxu0 0
  %8425 = vmatpush2.bf16.msra.mxu0 0
  %8426 = vmatprep.subr.bf16.mxu0 0
  %8427 = vmatpush2.bf16.msra.mxu0 0
  %8428 = vmatprep.subr.bf16.mxu0 0
  %8429 = vmatpush2.bf16.msra.mxu0 0
  %8430 = vmatprep.subr.bf16.mxu0 %v8369
  %8431 = vmatpush2.bf16.msra.mxu0 %v8368
  %8432 = vmatprep.subr.bf16.mxu0 %v8367
  %8433 = vmatpush2.bf16.msra.mxu0 %v8366
  %8434 = vmatprep.subr.bf16.mxu0 %v8365
  %8435 = vmatpush2.bf16.msra.mxu0 %v8364
  %8436 = vmatprep.subr.bf16.mxu0 %v8363
  %8437 = vmatpush2.bf16.msra.mxu0 %v8362
  %8438 = vmatprep.mubr.bf16.mxu0 %v8395
  %8439 = vmatmul.mubr.bf16.gmra.mxu0 %v8254
  %v8440 = vpop.f32.mrf.mxu0
  %v8441 = vadd.f32 %v7704, %v8440
  %v8442 = vpop.f32.mrf.mxu0
  %v8443 = vadd.f32 %v7706, %v8442
  %v8444 = vpop.f32.mrf.mxu0
  %v8445 = vadd.f32 %v7708, %v8444
  %v8446 = vpop.f32.mrf.mxu0
  %v8447 = vadd.f32 %v7710, %v8446
  %8448 = vmatprep.mubr.bf16.mxu0 %v8398
  %8449 = vmatmul.mubr.bf16.gmra.mxu0 %v8259
  %v8450 = vpop.f32.mrf.mxu0
  %v8451 = vadd.f32 %v7714, %v8450
  %v8452 = vpop.f32.mrf.mxu0
  %v8453 = vadd.f32 %v7716, %v8452
  %v8454 = vpop.f32.mrf.mxu0
  %v8455 = vadd.f32 %v7718, %v8454
  %v8456 = vpop.f32.mrf.mxu0
  %v8457 = vadd.f32 %v7720, %v8456
  %8458 = vmatprep.mubr.bf16.mxu0 %v8401
  %8459 = vmatmul.mubr.bf16.gmra.mxu0 %v8263
  %v8460 = vpop.f32.mrf.mxu0
  %v8461 = vadd.f32 %v7724, %v8460
  %v8462 = vpop.f32.mrf.mxu0
  %v8463 = vadd.f32 %v7726, %v8462
  %v8464 = vpop.f32.mrf.mxu0
  %v8465 = vadd.f32 %v7728, %v8464
  %v8466 = vpop.f32.mrf.mxu0
  %v8467 = vadd.f32 %v7730, %v8466
  %8468 = vmatprep.mubr.bf16.mxu0 %v8404
  %8469 = vmatmul.mubr.bf16.gmra.mxu0 %v8267
  %v8470 = vpop.f32.mrf.mxu0
  %v8471 = vadd.f32 %v7734, %v8470
  %v8472 = vpop.f32.mrf.mxu0
  %v8473 = vadd.f32 %v7736, %v8472
  %v8474 = vpop.f32.mrf.mxu0
  %v8475 = vadd.f32 %v7738, %v8474
  %v8476 = vpop.f32.mrf.mxu0
  %v8477 = vadd.f32 %v7740, %v8476
  %8478 = vdwg.mxu0
  %v8479 = vadd.f32 %v8203, %v8441
  %v8480 = vadd.f32 %v8205, %v8443
  %v8481 = vadd.f32 %v8207, %v8445
  %v8482 = vadd.f32 %v8209, %v8447
  %v8483 = vadd.f32 %v8213, %v8451
  %v8484 = vadd.f32 %v8215, %v8453
  %v8485 = vadd.f32 %v8217, %v8455
  %v8486 = vadd.f32 %v8219, %v8457
  %v8487 = vadd.f32 %v8223, %v8461
  %v8488 = vadd.f32 %v8225, %v8463
  %v8489 = vadd.f32 %v8227, %v8465
  %v8490 = vadd.f32 %v8229, %v8467
  %v8491 = vadd.f32 %v8233, %v8471
  %v8492 = vadd.f32 %v8235, %v8473
  %v8493 = vadd.f32 %v8237, %v8475
  %v8494 = vadd.f32 %v8239, %v8477
  %vm8495 = vcmask 1045504
  %v8496 = vrot.slane %v7099, 2
  %v8497 = vrot.slane %v7101, 2
  %v8498 = vsel %vm8495, %v8496, %v8497
  %v8499 = vrot.slane %v7100, 2
  %v8500 = vrot.slane %v7102, 2
  %v8501 = vsel %vm8495, %v8499, %v8500
  %v8502 = vrot.slane %v7103, 2
  %v8503 = vsel %vm8495, %v8497, %v8502
  %v8504 = vrot.slane %v7104, 2
  %v8505 = vsel %vm8495, %v8500, %v8504
  %v8506 = vrot.slane %v7105, 2
  %v8507 = vsel %vm8495, %v8502, %v8506
  %v8508 = vrot.slane %v7106, 2
  %v8509 = vsel %vm8495, %v8504, %v8508
  %v8510 = vrot.slane %v7107, 2
  %v8511 = vsel %vm8495, %v8506, %v8510
  %v8512 = vrot.slane %v7108, 2
  %v8513 = vsel %vm8495, %v8508, %v8512
  %v8542 = vunpack.c.l.b16 %v7743
  %v8543 = vunpack.c.h.b16 %v7743
  %v8544 = vunpack.c.l.b16 %v7744
  %v8545 = vunpack.c.h.b16 %v7744
  %v8546 = vunpack.c.l.b16 %v7745
  %v8547 = vunpack.c.h.b16 %v7745
  %v8548 = vunpack.c.l.b16 %v7746
  %v8549 = vunpack.c.h.b16 %v7746
  %v8550 = vunpack.c.l.b16 %v7747
  %v8551 = vunpack.c.h.b16 %v7747
  %v8552 = vunpack.c.l.b16 %v7748
  %v8553 = vunpack.c.h.b16 %v7748
  %v8554 = vunpack.c.l.b16 %v7749
  %v8555 = vunpack.c.h.b16 %v7749
  %v8556 = vunpack.c.l.b16 %v7750
  %v8557 = vunpack.c.h.b16 %v7750
  %v8558 = vunpack.c.l.b16 %v7751
  %v8559 = vunpack.c.h.b16 %v7751
  %v8560 = vunpack.c.l.b16 %v7752
  %v8561 = vunpack.c.h.b16 %v7752
  %v8562 = vunpack.c.l.b16 %v7753
  %v8563 = vunpack.c.h.b16 %v7753
  %v8564 = vunpack.c.l.b16 %v7754
  %v8565 = vunpack.c.h.b16 %v7754
  %v8566 = vunpack.c.l.b16 %v7755
  %v8567 = vunpack.c.h.b16 %v7755
  %v8568 = vunpack.c.l.b16 %v7756
  %v8569 = vunpack.c.h.b16 %v7756
  %v8570 = vunpack.c.l.b16 %v7757
  %v8571 = vunpack.c.h.b16 %v7757
  %v8572 = vunpack.c.l.b16 %v7758
  %v8573 = vunpack.c.h.b16 %v7758
  %v8574 = vunpack.c.l.b16 %v7759
  %v8575 = vunpack.c.h.b16 %v7759
  %v8576 = vunpack.c.l.b16 %v7760
  %v8577 = vunpack.c.h.b16 %v7760
  %v8578 = vunpack.c.l.b16 %v7761
  %v8579 = vunpack.c.h.b16 %v7761
  %v8580 = vunpack.c.l.b16 %v7762
  %v8581 = vunpack.c.h.b16 %v7762
  %v8582 = vunpack.c.l.b16 %v7763
  %v8583 = vunpack.c.h.b16 %v7763
  %v8584 = vunpack.c.l.b16 %v7764
  %v8585 = vunpack.c.h.b16 %v7764
  %v8586 = vunpack.c.l.b16 %v7765
  %v8587 = vunpack.c.h.b16 %v7765
  %v8588 = vunpack.c.l.b16 %v7766
  %v8589 = vunpack.c.h.b16 %v7766
  %v8590 = vpack.c.b16 %v8544, %v8542
  %v8591 = vpack.c.b16 %v8545, %v8543
  %v8592 = vpack.c.b16 %v8548, %v8546
  %v8593 = vpack.c.b16 %v8549, %v8547
  %v8594 = vpack.c.b16 %v8552, %v8550
  %v8595 = vpack.c.b16 %v8553, %v8551
  %v8596 = vpack.c.b16 %v8556, %v8554
  %v8597 = vpack.c.b16 %v8557, %v8555
  %v8598 = vpack.c.b16 %v8560, %v8558
  %v8599 = vpack.c.b16 %v8561, %v8559
  %v8600 = vpack.c.b16 %v8564, %v8562
  %v8601 = vpack.c.b16 %v8565, %v8563
  %v8602 = vpack.c.b16 %v8568, %v8566
  %v8603 = vpack.c.b16 %v8569, %v8567
  %v8604 = vpack.c.b16 %v8572, %v8570
  %v8605 = vpack.c.b16 %v8573, %v8571
  %v8606 = vpack.c.b16 %v8576, %v8574
  %v8607 = vpack.c.b16 %v8577, %v8575
  %v8608 = vpack.c.b16 %v8580, %v8578
  %v8609 = vpack.c.b16 %v8581, %v8579
  %v8610 = vpack.c.b16 %v8584, %v8582
  %v8611 = vpack.c.b16 %v8585, %v8583
  %v8612 = vpack.c.b16 %v8588, %v8586
  %v8613 = vpack.c.b16 %v8589, %v8587
  %v8639 = vsel %vm3587, %v8501, 0
  %v8642 = vsel %vm3587, %v8505, 0
  %v8645 = vsel %vm3587, %v8509, 0
  %v8648 = vsel %vm3587, %v8513, 0
  %8650 = vmatprep.subr.bf16.mxu0 %v8605
  %8651 = vmatpush1.bf16.msra.mxu0 %v8604
  %8652 = vmatprep.subr.bf16.mxu0 %v8603
  %8653 = vmatpush1.bf16.msra.mxu0 %v8602
  %8654 = vmatprep.subr.bf16.mxu0 %v8601
  %8655 = vmatpush1.bf16.msra.mxu0 %v8600
  %8656 = vmatprep.subr.bf16.mxu0 %v8599
  %8657 = vmatpush1.bf16.msra.mxu0 %v8598
  %8658 = vmatprep.subr.bf16.mxu0 %v8597
  %8659 = vmatpush1.bf16.msra.mxu0 %v8596
  %8660 = vmatprep.subr.bf16.mxu0 %v8595
  %8661 = vmatpush1.bf16.msra.mxu0 %v8594
  %8662 = vmatprep.subr.bf16.mxu0 %v8593
  %8663 = vmatpush1.bf16.msra.mxu0 %v8592
  %8664 = vmatprep.subr.bf16.mxu0 %v8591
  %8665 = vmatpush1.bf16.msra.mxu0 %v8590
  %8666 = vmatprep.subr.bf16.mxu0 0
  %8667 = vmatpush2.bf16.msra.mxu0 0
  %8668 = vmatprep.subr.bf16.mxu0 0
  %8669 = vmatpush2.bf16.msra.mxu0 0
  %8670 = vmatprep.subr.bf16.mxu0 0
  %8671 = vmatpush2.bf16.msra.mxu0 0
  %8672 = vmatprep.subr.bf16.mxu0 0
  %8673 = vmatpush2.bf16.msra.mxu0 0
  %8674 = vmatprep.subr.bf16.mxu0 %v8613
  %8675 = vmatpush2.bf16.msra.mxu0 %v8612
  %8676 = vmatprep.subr.bf16.mxu0 %v8611
  %8677 = vmatpush2.bf16.msra.mxu0 %v8610
  %8678 = vmatprep.subr.bf16.mxu0 %v8609
  %8679 = vmatpush2.bf16.msra.mxu0 %v8608
  %8680 = vmatprep.subr.bf16.mxu0 %v8607
  %8681 = vmatpush2.bf16.msra.mxu0 %v8606
  %8682 = vmatprep.mubr.bf16.mxu0 %v8639
  %8683 = vmatmul.mubr.bf16.gmra.mxu0 %v8498
  %v8684 = vpop.f32.mrf.mxu0
  %v8685 = vadd.f32 %v8002, %v8684
  %v8686 = vpop.f32.mrf.mxu0
  %v8687 = vadd.f32 %v8004, %v8686
  %v8688 = vpop.f32.mrf.mxu0
  %v8689 = vadd.f32 %v8006, %v8688
  %v8690 = vpop.f32.mrf.mxu0
  %v8691 = vadd.f32 %v8008, %v8690
  %8692 = vmatprep.mubr.bf16.mxu0 %v8642
  %8693 = vmatmul.mubr.bf16.gmra.mxu0 %v8503
  %v8694 = vpop.f32.mrf.mxu0
  %v8695 = vadd.f32 %v8012, %v8694
  %v8696 = vpop.f32.mrf.mxu0
  %v8697 = vadd.f32 %v8014, %v8696
  %v8698 = vpop.f32.mrf.mxu0
  %v8699 = vadd.f32 %v8016, %v8698
  %v8700 = vpop.f32.mrf.mxu0
  %v8701 = vadd.f32 %v8018, %v8700
  %8702 = vmatprep.mubr.bf16.mxu0 %v8645
  %8703 = vmatmul.mubr.bf16.gmra.mxu0 %v8507
  %v8704 = vpop.f32.mrf.mxu0
  %v8705 = vadd.f32 %v8022, %v8704
  %v8706 = vpop.f32.mrf.mxu0
  %v8707 = vadd.f32 %v8024, %v8706
  %v8708 = vpop.f32.mrf.mxu0
  %v8709 = vadd.f32 %v8026, %v8708
  %v8710 = vpop.f32.mrf.mxu0
  %v8711 = vadd.f32 %v8028, %v8710
  %8712 = vmatprep.mubr.bf16.mxu0 %v8648
  %8713 = vmatmul.mubr.bf16.gmra.mxu0 %v8511
  %v8714 = vpop.f32.mrf.mxu0
  %v8715 = vadd.f32 %v8032, %v8714
  %v8716 = vpop.f32.mrf.mxu0
  %v8717 = vadd.f32 %v8034, %v8716
  %v8718 = vpop.f32.mrf.mxu0
  %v8719 = vadd.f32 %v8036, %v8718
  %v8720 = vpop.f32.mrf.mxu0
  %v8721 = vadd.f32 %v8038, %v8720
  %8722 = vdwg.mxu0
  %v8723 = vld [vmem:[%s10] sm:$0x3]
  %v8725 = vlaneseq
  %v8726 = vshrl.u32 %v8725, 7
  %v8727 = vsub.s32 0, %v8726
  %v8728 = vrot.slane %v8723, %v8727
  %v8729 = vlaneseq
  %v8730 = vshrl.u32 %v8729, 7
  %v8731 = vsub.s32 1, %v8730
  %v8732 = vrot.slane %v8723, %v8731
  %v8735 = vadd.f32 %v8685, %v8728
  %v8736 = vadd.f32 %v8687, %v8732
  %v8737 = vadd.f32 %v8689, %v8728
  %v8738 = vadd.f32 %v8691, %v8732
  %v8739 = vadd.f32 %v8695, %v8728
  %v8740 = vadd.f32 %v8697, %v8732
  %v8741 = vadd.f32 %v8699, %v8728
  %v8742 = vadd.f32 %v8701, %v8732
  %v8743 = vadd.f32 %v8705, %v8728
  %v8744 = vadd.f32 %v8707, %v8732
  %v8745 = vadd.f32 %v8709, %v8728
  %v8746 = vadd.f32 %v8711, %v8732
  %v8747 = vadd.f32 %v8715, %v8728
  %v8748 = vadd.f32 %v8717, %v8732
  %v8749 = vadd.f32 %v8719, %v8728
  %v8750 = vadd.f32 %v8721, %v8732
  %v8751 = vadd.f32 %v8479, %v8735
  %v8752 = vadd.f32 %v8480, %v8736
  %v8753 = vadd.f32 %v8481, %v8737
  %v8754 = vadd.f32 %v8482, %v8738
  %v8755 = vadd.f32 %v8483, %v8739
  %v8756 = vadd.f32 %v8484, %v8740
  %v8757 = vadd.f32 %v8485, %v8741
  %v8758 = vadd.f32 %v8486, %v8742
  %v8759 = vadd.f32 %v8487, %v8743
  %v8760 = vadd.f32 %v8488, %v8744
  %v8761 = vadd.f32 %v8489, %v8745
  %v8762 = vadd.f32 %v8490, %v8746
  %v8763 = vadd.f32 %v8491, %v8747
  %v8764 = vadd.f32 %v8492, %v8748
  %v8765 = vadd.f32 %v8493, %v8749
  %v8766 = vadd.f32 %v8494, %v8750
  %v8767 = vmax.f32 %v8751, 0.0
  %v8768 = vmax.f32 %v8752, 0.0
  %v8769 = vmax.f32 %v8753, 0.0
  %v8770 = vmax.f32 %v8754, 0.0
  %v8771 = vmax.f32 %v8755, 0.0
  %v8772 = vmax.f32 %v8756, 0.0
  %v8773 = vmax.f32 %v8757, 0.0
  %v8774 = vmax.f32 %v8758, 0.0
  %v8775 = vmax.f32 %v8759, 0.0
  %v8776 = vmax.f32 %v8760, 0.0
  %v8777 = vmax.f32 %v8761, 0.0
  %v8778 = vmax.f32 %v8762, 0.0
  %v8779 = vmax.f32 %v8763, 0.0
  %v8780 = vmax.f32 %v8764, 0.0
  %v8781 = vmax.f32 %v8765, 0.0
  %v8782 = vmax.f32 %v8766, 0.0
  %v8783 = vpack.c.bf16 %v8769, %v8767
  %v8784 = vpack.c.bf16 %v8770, %v8768
  %v8785 = vpack.c.bf16 %v8773, %v8771
  %v8786 = vpack.c.bf16 %v8774, %v8772
  %v8787 = vpack.c.bf16 %v8777, %v8775
  %v8788 = vpack.c.bf16 %v8778, %v8776
  %v8789 = vpack.c.bf16 %v8781, %v8779
  %v8790 = vpack.c.bf16 %v8782, %v8780
  %v8791 = vld [vmem:[%s11] sm:$0xf]
  %v8792 = vld [vmem:[%s11 + $0x4] sm:$0xf]
  %v8793 = vld [vmem:[%s11 + $0x8] sm:$0xf]
  %v8794 = vld [vmem:[%s11 + $0xc] sm:$0xf]
  %v8795 = vld [vmem:[%s11 + $0x10] sm:$0xf]
  %v8796 = vld [vmem:[%s11 + $0x14] sm:$0xf]
  %v8797 = vld [vmem:[%s11 + $0x18] sm:$0xf]
  %v8798 = vld [vmem:[%s11 + $0x1c] sm:$0xf]
  %v8799 = vld [vmem:[%s11 + $0x20] sm:$0xf]
  %v8800 = vld [vmem:[%s11 + $0x24] sm:$0xf]
  %v8801 = vld [vmem:[%s11 + $0x28] sm:$0xf]
  %v8802 = vld [vmem:[%s11 + $0x2c] sm:$0xf]
  %v8803 = vld [vmem:[%s11 + $0x30] sm:$0xf]
  %v8804 = vld [vmem:[%s11 + $0x34] sm:$0xf]
  %v8805 = vld [vmem:[%s11 + $0x38] sm:$0xf]
  %v8806 = vld [vmem:[%s11 + $0x3c] sm:$0xf]
  %v8807 = vld [vmem:[%s11 + $0x40] sm:$0xf]
  %v8808 = vld [vmem:[%s11 + $0x44] sm:$0xf]
  %v8809 = vld [vmem:[%s11 + $0x48] sm:$0xf]
  %v8810 = vld [vmem:[%s11 + $0x4c] sm:$0xf]
  %v8811 = vld [vmem:[%s11 + $0x50] sm:$0xf]
  %v8812 = vld [vmem:[%s11 + $0x54] sm:$0xf]
  %v8813 = vld [vmem:[%s11 + $0x58] sm:$0xf]
  %v8814 = vld [vmem:[%s11 + $0x5c] sm:$0xf]
  %v8815 = vld [vmem:[%s11 + $0x60] sm:$0xf]
  %v8816 = vld [vmem:[%s11 + $0x64] sm:$0xf]
  %v8817 = vld [vmem:[%s11 + $0x68] sm:$0xf]
  %v8818 = vld [vmem:[%s11 + $0x6c] sm:$0xf]
  %v8819 = vld [vmem:[%s11 + $0x70] sm:$0xf]
  %v8820 = vld [vmem:[%s11 + $0x74] sm:$0xf]
  %v8821 = vld [vmem:[%s11 + $0x78] sm:$0xf]
  %v8822 = vld [vmem:[%s11 + $0x7c] sm:$0xf]
  %v8823 = vld [vmem:[%s12] sm:$0x1]
  %v8825 = vlaneseq
  %v8826 = vshrl.u32 %v8825, 7
  %v8827 = vsub.s32 0, %v8826
  %v8828 = vrot.slane %v8823, %v8827
  %v8862 = vunpack.c.l.b16 %v8791
  %v8863 = vunpack.c.l.b16 %v8792
  %v8864 = vunpack.c.l.b16 %v8793
  %v8865 = vunpack.c.l.b16 %v8794
  %v8866 = vunpack.c.l.b16 %v8795
  %v8867 = vunpack.c.l.b16 %v8796
  %v8868 = vunpack.c.l.b16 %v8797
  %v8869 = vunpack.c.l.b16 %v8798
  %v8870 = vunpack.c.l.b16 %v8799
  %v8871 = vunpack.c.l.b16 %v8800
  %v8872 = vunpack.c.l.b16 %v8801
  %v8873 = vunpack.c.l.b16 %v8802
  %v8874 = vunpack.c.l.b16 %v8803
  %v8875 = vunpack.c.l.b16 %v8804
  %v8876 = vunpack.c.l.b16 %v8805
  %v8877 = vunpack.c.l.b16 %v8806
  %v8878 = vunpack.c.l.b16 %v8807
  %v8879 = vunpack.c.l.b16 %v8808
  %v8880 = vunpack.c.l.b16 %v8809
  %v8881 = vunpack.c.l.b16 %v8810
  %v8882 = vunpack.c.l.b16 %v8811
  %v8883 = vunpack.c.l.b16 %v8812
  %v8884 = vunpack.c.l.b16 %v8813
  %v8885 = vunpack.c.l.b16 %v8814
  %v8886 = vunpack.c.l.b16 %v8815
  %v8887 = vunpack.c.l.b16 %v8816
  %v8888 = vunpack.c.l.b16 %v8817
  %v8889 = vunpack.c.l.b16 %v8818
  %v8890 = vunpack.c.l.b16 %v8819
  %v8891 = vunpack.c.l.b16 %v8820
  %v8892 = vunpack.c.l.b16 %v8821
  %v8893 = vunpack.c.l.b16 %v8822
  %v8894 = vpack.c.b16 %v8863, %v8862
  %v8895 = vpack.c.b16 %v8865, %v8864
  %v8896 = vpack.c.b16 %v8867, %v8866
  %v8897 = vpack.c.b16 %v8869, %v8868
  %v8898 = vpack.c.b16 %v8871, %v8870
  %v8899 = vpack.c.b16 %v8873, %v8872
  %v8900 = vpack.c.b16 %v8875, %v8874
  %v8901 = vpack.c.b16 %v8877, %v8876
  %v8902 = vpack.c.b16 %v8879, %v8878
  %v8903 = vpack.c.b16 %v8881, %v8880
  %v8904 = vpack.c.b16 %v8883, %v8882
  %v8905 = vpack.c.b16 %v8885, %v8884
  %v8906 = vpack.c.b16 %v8887, %v8886
  %v8907 = vpack.c.b16 %v8889, %v8888
  %v8908 = vpack.c.b16 %v8891, %v8890
  %v8909 = vpack.c.b16 %v8893, %v8892
  %8926 = vmatprep.subr.bf16.mxu0 0
  %8927 = vmatpush1.bf16.msra.mxu0 %v8901
  %8928 = vmatprep.subr.bf16.mxu0 0
  %8929 = vmatpush1.bf16.msra.mxu0 %v8900
  %8930 = vmatprep.subr.bf16.mxu0 0
  %8931 = vmatpush1.bf16.msra.mxu0 %v8899
  %8932 = vmatprep.subr.bf16.mxu0 0
  %8933 = vmatpush1.bf16.msra.mxu0 %v8898
  %8934 = vmatprep.subr.bf16.mxu0 0
  %8935 = vmatpush1.bf16.msra.mxu0 %v8897
  %8936 = vmatprep.subr.bf16.mxu0 0
  %8937 = vmatpush1.bf16.msra.mxu0 %v8896
  %8938 = vmatprep.subr.bf16.mxu0 0
  %8939 = vmatpush1.bf16.msra.mxu0 %v8895
  %8940 = vmatprep.subr.bf16.mxu0 0
  %8941 = vmatpush1.bf16.msra.mxu0 %v8894
  %8942 = vmatprep.subr.bf16.mxu0 0
  %8943 = vmatpush2.bf16.msra.mxu0 %v8909
  %8944 = vmatprep.subr.bf16.mxu0 0
  %8945 = vmatpush2.bf16.msra.mxu0 %v8908
  %8946 = vmatprep.subr.bf16.mxu0 0
  %8947 = vmatpush2.bf16.msra.mxu0 %v8907
  %8948 = vmatprep.subr.bf16.mxu0 0
  %8949 = vmatpush2.bf16.msra.mxu0 %v8906
  %8950 = vmatprep.subr.bf16.mxu0 0
  %8951 = vmatpush2.bf16.msra.mxu0 %v8905
  %8952 = vmatprep.subr.bf16.mxu0 0
  %8953 = vmatpush2.bf16.msra.mxu0 %v8904
  %8954 = vmatprep.subr.bf16.mxu0 0
  %8955 = vmatpush2.bf16.msra.mxu0 %v8903
  %8956 = vmatprep.subr.bf16.mxu0 0
  %8957 = vmatpush2.bf16.msra.mxu0 %v8902
  %8958 = vmatprep.mubr.bf16.mxu0 %v8784
  %8959 = vmatmul.mubr.bf16.gmra.mxu0 %v8783
  %v8960 = vpop.f32.mrf.mxu0
  %v8961 = vadd.f32 %v8828, %v8960
  %v8962 = vpop.f32.mrf.mxu0
  %v8963 = vpop.f32.mrf.mxu0
  %v8964 = vadd.f32 %v8828, %v8963
  %v8965 = vpop.f32.mrf.mxu0
  %8966 = vmatprep.mubr.bf16.mxu0 %v8786
  %8967 = vmatmul.mubr.bf16.gmra.mxu0 %v8785
  %v8968 = vpop.f32.mrf.mxu0
  %v8969 = vadd.f32 %v8828, %v8968
  %v8970 = vpop.f32.mrf.mxu0
  %v8971 = vpop.f32.mrf.mxu0
  %v8972 = vadd.f32 %v8828, %v8971
  %v8973 = vpop.f32.mrf.mxu0
  %8974 = vmatprep.mubr.bf16.mxu0 %v8788
  %8975 = vmatmul.mubr.bf16.gmra.mxu0 %v8787
  %v8976 = vpop.f32.mrf.mxu0
  %v8977 = vadd.f32 %v8828, %v8976
  %v8978 = vpop.f32.mrf.mxu0
  %v8979 = vpop.f32.mrf.mxu0
  %v8980 = vadd.f32 %v8828, %v8979
  %v8981 = vpop.f32.mrf.mxu0
  %8982 = vmatprep.mubr.bf16.mxu0 %v8790
  %8983 = vmatmul.mubr.bf16.gmra.mxu0 %v8789
  %v8984 = vpop.f32.mrf.mxu0
  %v8985 = vadd.f32 %v8828, %v8984
  %v8986 = vpop.f32.mrf.mxu0
  %v8987 = vpop.f32.mrf.mxu0
  %v8988 = vadd.f32 %v8828, %v8987
  %v8989 = vpop.f32.mrf.mxu0
  %8990 = vdwg.mxu0
  %v8991 = vmax.f32 %v8961, 0.0
  %v8992 = vmax.f32 %v8964, 0.0
  %v8993 = vmax.f32 %v8969, 0.0
  %v8994 = vmax.f32 %v8972, 0.0
  %v8995 = vmax.f32 %v8977, 0.0
  %v8996 = vmax.f32 %v8980, 0.0
  %v8997 = vmax.f32 %v8985, 0.0
  %v8998 = vmax.f32 %v8988, 0.0
  %v8999 = vpack.c.bf16 %v8992, %v8991
  %v9000 = vpack.c.bf16 %v8994, %v8993
  %v9001 = vpack.c.bf16 %v8996, %v8995
  %v9002 = vpack.c.bf16 %v8998, %v8997
  %v9003 = vld [vmem:[%s13] sm:$0xf]
  %v9004 = vld [vmem:[%s13 + $0x4] sm:$0xf]
  %v9005 = vld [vmem:[%s13 + $0x8] sm:$0xf]
  %v9006 = vld [vmem:[%s13 + $0xc] sm:$0xf]
  %v9007 = vld [vmem:[%s13 + $0x10] sm:$0xf]
  %v9008 = vld [vmem:[%s13 + $0x14] sm:$0xf]
  %v9009 = vld [vmem:[%s13 + $0x18] sm:$0xf]
  %v9010 = vld [vmem:[%s13 + $0x1c] sm:$0xf]
  %v9011 = vld [vmem:[%s13 + $0x20] sm:$0xf]
  %v9012 = vld [vmem:[%s13 + $0x24] sm:$0xf]
  %v9013 = vld [vmem:[%s13 + $0x28] sm:$0xf]
  %v9014 = vld [vmem:[%s13 + $0x2c] sm:$0xf]
  %v9015 = vld [vmem:[%s13 + $0x30] sm:$0xf]
  %v9016 = vld [vmem:[%s13 + $0x34] sm:$0xf]
  %v9017 = vld [vmem:[%s13 + $0x38] sm:$0xf]
  %v9018 = vld [vmem:[%s13 + $0x3c] sm:$0xf]
  %v9019 = vld [vmem:[%s14] sm:$0x1]
  %v9021 = vlaneseq
  %v9022 = vshrl.u32 %v9021, 7
  %v9023 = vsub.s32 0, %v9022
  %v9024 = vrot.slane %v9019, %v9023
  %v9042 = vunpack.c.l.b16 %v9003
  %v9043 = vunpack.c.l.b16 %v9004
  %v9044 = vunpack.c.l.b16 %v9005
  %v9045 = vunpack.c.l.b16 %v9006
  %v9046 = vunpack.c.l.b16 %v9007
  %v9047 = vunpack.c.l.b16 %v9008
  %v9048 = vunpack.c.l.b16 %v9009
  %v9049 = vunpack.c.l.b16 %v9010
  %v9050 = vunpack.c.l.b16 %v9011
  %v9051 = vunpack.c.l.b16 %v9012
  %v9052 = vunpack.c.l.b16 %v9013
  %v9053 = vunpack.c.l.b16 %v9014
  %v9054 = vunpack.c.l.b16 %v9015
  %v9055 = vunpack.c.l.b16 %v9016
  %v9056 = vunpack.c.l.b16 %v9017
  %v9057 = vunpack.c.l.b16 %v9018
  %v9058 = vpack.c.b16 %v9043, %v9042
  %v9059 = vpack.c.b16 %v9045, %v9044
  %v9060 = vpack.c.b16 %v9047, %v9046
  %v9061 = vpack.c.b16 %v9049, %v9048
  %v9062 = vpack.c.b16 %v9051, %v9050
  %v9063 = vpack.c.b16 %v9053, %v9052
  %v9064 = vpack.c.b16 %v9055, %v9054
  %v9065 = vpack.c.b16 %v9057, %v9056
  %9074 = vmatprep.subr.bf16.mxu0 0
  %9075 = vmatpush1.bf16.msra.mxu0 %v9065
  %9076 = vmatprep.subr.bf16.mxu0 0
  %9077 = vmatpush1.bf16.msra.mxu0 %v9064
  %9078 = vmatprep.subr.bf16.mxu0 0
  %9079 = vmatpush1.bf16.msra.mxu0 %v9063
  %9080 = vmatprep.subr.bf16.mxu0 0
  %9081 = vmatpush1.bf16.msra.mxu0 %v9062
  %9082 = vmatprep.subr.bf16.mxu0 0
  %9083 = vmatpush1.bf16.msra.mxu0 %v9061
  %9084 = vmatprep.subr.bf16.mxu0 0
  %9085 = vmatpush1.bf16.msra.mxu0 %v9060
  %9086 = vmatprep.subr.bf16.mxu0 0
  %9087 = vmatpush1.bf16.msra.mxu0 %v9059
  %9088 = vmatprep.subr.bf16.mxu0 0
  %9089 = vmatpush1.bf16.msra.mxu0 %v9058
  %9090 = vmatprep.subr.bf16.mxu0 0
  %9091 = vmatpush2.bf16.msra.mxu0 0
  %9092 = vmatprep.subr.bf16.mxu0 0
  %9093 = vmatpush2.bf16.msra.mxu0 0
  %9094 = vmatprep.subr.bf16.mxu0 0
  %9095 = vmatpush2.bf16.msra.mxu0 0
  %9096 = vmatprep.subr.bf16.mxu0 0
  %9097 = vmatpush2.bf16.msra.mxu0 0
  %9098 = vmatprep.subr.bf16.mxu0 0
  %9099 = vmatpush2.bf16.msra.mxu0 0
  %9100 = vmatprep.subr.bf16.mxu0 0
  %9101 = vmatpush2.bf16.msra.mxu0 0
  %9102 = vmatprep.subr.bf16.mxu0 0
  %9103 = vmatpush2.bf16.msra.mxu0 0
  %9104 = vmatprep.subr.bf16.mxu0 0
  %9105 = vmatpush2.bf16.msra.mxu0 0
  %9106 = vmatprep.mubr.bf16.mxu0 0
  %9107 = vmatmul.mubr.bf16.gmra.mxu0 %v8999
  %v9108 = vpop.f32.mrf.mxu0
  %v9109 = vadd.f32 %v9024, %v9108
  %v9110 = vpop.f32.mrf.mxu0
  %v9111 = vpop.f32.mrf.mxu0
  %v9112 = vadd.f32 %v9024, %v9111
  %v9113 = vpop.f32.mrf.mxu0
  %9114 = vmatprep.mubr.bf16.mxu0 0
  %9115 = vmatmul.mubr.bf16.gmra.mxu0 %v9000
  %v9116 = vpop.f32.mrf.mxu0
  %v9117 = vadd.f32 %v9024, %v9116
  %v9118 = vpop.f32.mrf.mxu0
  %v9119 = vpop.f32.mrf.mxu0
  %v9120 = vadd.f32 %v9024, %v9119
  %v9121 = vpop.f32.mrf.mxu0
  %9122 = vmatprep.mubr.bf16.mxu0 0
  %9123 = vmatmul.mubr.bf16.gmra.mxu0 %v9001
  %v9124 = vpop.f32.mrf.mxu0
  %v9125 = vadd.f32 %v9024, %v9124
  %v9126 = vpop.f32.mrf.mxu0
  %v9127 = vpop.f32.mrf.mxu0
  %v9128 = vadd.f32 %v9024, %v9127
  %v9129 = vpop.f32.mrf.mxu0
  %9130 = vmatprep.mubr.bf16.mxu0 0
  %9131 = vmatmul.mubr.bf16.gmra.mxu0 %v9002
  %v9132 = vpop.f32.mrf.mxu0
  %v9133 = vadd.f32 %v9024, %v9132
  %v9134 = vpop.f32.mrf.mxu0
  %v9135 = vpop.f32.mrf.mxu0
  %v9136 = vadd.f32 %v9024, %v9135
  %v9137 = vpop.f32.mrf.mxu0
  %9138 = vdwg.mxu0
  %9139 = vst [vmem:[%s15] sm:$0xff] %v9109
  %9140 = vst [vmem:[%s15 + $0x8] sm:$0xff] %v9112
  %9141 = vst [vmem:[%s15 + $0x10] sm:$0xff] %v9117
  %9142 = vst [vmem:[%s15 + $0x18] sm:$0xff] %v9120
  %9143 = vst [vmem:[%s15 + $0x20] sm:$0xff] %v9125
  %9144 = vst [vmem:[%s15 + $0x28] sm:$0xff] %v9128
  %9145 = vst [vmem:[%s15 + $0x30] sm:$0xff] %v9133
  %9146 = vst [vmem:[%s15 + $0x38] sm:$0xff] %v9136
  // Predicated region
  $region62: #{lenet5_forward.1} parent=0 // pred_check
    _
  $region63: #{lenet5_forward.1} parent=0 // pred_check_branch
    %9148 = sbr.rel (0) target = $region65
  $region64: #{lenet5_forward.1} parent=0 // pred_region
    _
  $region65: #{lenet5_forward.1} parent=0 // pred_fallthru
    _
  // Predicated region
  $region66: #{lenet5_forward.1} parent=0 // pred_check
    _
  $region67: #{lenet5_forward.1} parent=0 // pred_check_branch
    %9150 = sbr.rel (0) target = $region69
  $region68: #{lenet5_forward.1} parent=0 // pred_region
    _
  $region69: #{lenet5_forward.1} parent=0 // pred_fallthru
    _

</llo_original>
